<compile_context>
chip_gen: v7x
topology: tpu7x:2x2x1
jax: 0.10.0
libtpu: 0.0.40
codegen_flags: <defaults>
</compile_context>

<pallas_src>
import math

import jax
import jax.numpy as jnp
from jax.experimental import pallas as pl
from jax.experimental.pallas import tpu as pltpu

# ----------------------------- synthetic config ------------------------------
VOCAB_SIZE = 128          # output_dim / vocabulary size
HID_DIM = 32              # bert hidden_size
N_HEADS = 4
HEAD_DIM = HID_DIM // N_HEADS
N_LAYERS = 2
INTER_DIM = 4 * HID_DIM   # BERT intermediate size (=128)
VECTOR_SIZE = 64          # encoder feature size fed to enc_to_dec_proj
TRG_LEN = 8               # DECODER_OUTPUT_LENGTH (target sequence length)
ENC_LEN = 16              # encoder sequence length
BATCH = 2
LN_EPS = 1e-12            # BertLayerNorm eps
NEG_INF = -1e9            # additive-mask value (safe, HF-equivalent)


# ------------------------------ in-kernel helpers -----------------------------
def _layernorm(x, g, b):
    mean = jnp.mean(x, axis=-1, keepdims=True)
    var = jnp.mean(jnp.square(x - mean), axis=-1, keepdims=True)
    return (x - mean) * jax.lax.rsqrt(var + LN_EPS) * g + b


def _mm(x, w_bf16):
    # bf16 MXU inputs, f32 accumulation.
    return jnp.dot(x.astype(jnp.bfloat16), w_bf16, preferred_element_type=jnp.float32)


def _gelu(x):
    # exact (erf) GELU, matching HF BERT's "gelu"; f32 math.
    return 0.5 * x * (1.0 + jax.lax.erf(x * (1.0 / math.sqrt(2.0))))


def _split_heads(x, seq):
    # (B*seq, H) -> (B*NH, seq, HEAD_DIM): one head-major relayout per attention.
    return (x.reshape(BATCH, seq, N_HEADS, HEAD_DIM)
             .transpose(0, 2, 1, 3)
             .reshape(BATCH * N_HEADS, seq, HEAD_DIM))


def _merge_heads(x, seq):
    # (B*NH, seq, HEAD_DIM) -> (B*seq, H)
    return (x.reshape(BATCH, N_HEADS, seq, HEAD_DIM)
             .transpose(0, 2, 1, 3)
             .reshape(BATCH * seq, HID_DIM))


def _mha(q, k, v, mask, s_q, s_kv):
    """Batched multi-head attention over all (batch, head) pairs.

    q: (B*s_q, H); k, v: (B*s_kv, H); mask: (B*NH, s_q, s_kv) additive, f32.
    Returns:
      ctx:    (B*s_q, H) f32 merged context (kept in vregs, no VMEM scratch).
      probs:  (s_q, B*NH*s_kv) f32 — lane-friendly layout for a dense writeback.
    """
    qh = _split_heads(q, s_q).astype(jnp.bfloat16)
    kh = _split_heads(k, s_kv).astype(jnp.bfloat16)
    vh = _split_heads(v, s_kv).astype(jnp.bfloat16)

    scale = 1.0 / math.sqrt(HEAD_DIM)
    # Batched QK^T on the MXU (contract last dims; (B*NH) is the batch dim).
    s = jnp.einsum("bqd,bkd->bqk", qh, kh,
                   preferred_element_type=jnp.float32) * scale + mask
    s = s - jnp.max(s, axis=-1, keepdims=True)
    e = jnp.exp(s)
    p = e / jnp.sum(e, axis=-1, keepdims=True)   # exact softmax (returned probabilities)

    # Batched P @ V on the MXU (bf16 inputs, f32 accumulation).
    ctx = jnp.einsum("bqk,bkd->bqd", p.astype(jnp.bfloat16), vh,
                     preferred_element_type=jnp.float32)

    # probs -> (s_q, B*NH*s_kv): lane-dense once concatenated across layers.
    p_lane = p.transpose(1, 0, 2).reshape(s_q, BATCH * N_HEADS * s_kv)
    return _merge_heads(ctx, s_q), p_lane


# ------------------------------- fused kernel ---------------------------------
def _decoder_kernel(
    # layer-invariant inputs
    emb_ref, emb_g_ref, emb_b_ref,
    enc_src_ref, enc_w_ref, enc_b_ref,
    self_mask_ref, cross_mask_ref,
    out_w_ref, out_b_ref,
    # per-layer stacked weights (leading dim = layer), whole stack resident in VMEM
    qkv_w_ref, qkv_b_ref, sa_o_w_ref, sa_o_b_ref, sa_ln_g_ref, sa_ln_b_ref,
    ca_q_w_ref, ca_q_b_ref, ca_kv_w_ref, ca_kv_b_ref, ca_o_w_ref, ca_o_b_ref,
    ca_ln_g_ref, ca_ln_b_ref,
    ff_i_w_ref, ff_i_b_ref, ff_o_w_ref, ff_o_b_ref, ff_ln_g_ref, ff_ln_b_ref,
    # outputs
    logits_ref, self_p_ref, cross_p_ref,
):
    H = HID_DIM

    # BertEmbeddings LayerNorm of (word + position + token_type) sum.
    h = _layernorm(emb_ref[...], emb_g_ref[...], emb_b_ref[...])
    # enc_to_dec_proj (layer-invariant, computed once, kept as a value).
    enc_h = _mm(enc_src_ref[...], enc_w_ref[...]) + enc_b_ref[...]

    self_mask = self_mask_ref[...]     # (B*NH, S, S) additive
    cross_mask = cross_mask_ref[...]   # (B*NH, S, E) additive

    self_ps, cross_ps = [], []
    for l in range(N_LAYERS):          # static 2-iter unroll; no layer grid
        # ---- self-attention (fused QKV projection) ----
        qkv = _mm(h, qkv_w_ref[l]) + qkv_b_ref[l]            # (B*S, 3H)
        q, k, v = qkv[:, 0:H], qkv[:, H:2 * H], qkv[:, 2 * H:3 * H]
        ctx, p_self = _mha(q, k, v, self_mask, TRG_LEN, TRG_LEN)
        self_ps.append(p_self)
        h = _layernorm(_mm(ctx, sa_o_w_ref[l]) + sa_o_b_ref[l] + h,
                       sa_ln_g_ref[l], sa_ln_b_ref[l])

        # ---- cross-attention (fused KV projection over encoder states) ----
        qc = _mm(h, ca_q_w_ref[l]) + ca_q_b_ref[l]           # (B*S, H)
        kv = _mm(enc_h, ca_kv_w_ref[l]) + ca_kv_b_ref[l]     # (B*E, 2H)
        kc, vc = kv[:, 0:H], kv[:, H:2 * H]
        ctx_c, p_cross = _mha(qc, kc, vc, cross_mask, TRG_LEN, ENC_LEN)
        cross_ps.append(p_cross)
        h = _layernorm(_mm(ctx_c, ca_o_w_ref[l]) + ca_o_b_ref[l] + h,
                       ca_ln_g_ref[l], ca_ln_b_ref[l])

        # ---- feed-forward (GELU) ----
        inter = _gelu(_mm(h, ff_i_w_ref[l]) + ff_i_b_ref[l])
        h = _layernorm(_mm(inter, ff_o_w_ref[l]) + ff_o_b_ref[l] + h,
                       ff_ln_g_ref[l], ff_ln_b_ref[l])

    # ---- final vocabulary projection (lane-dense: last dim 128) ----
    logits_ref[...] = _mm(h, out_w_ref[...]) + out_b_ref[...]

    # ---- lane-dense probability writeback ----
    # self:  (S, N_LAYERS*B*NH*S)   = (8, 128)
    # cross: (S, N_LAYERS*B*NH*E)   = (8, 256)
    self_p_ref[...] = jnp.concatenate(self_ps, axis=-1)
    cross_p_ref[...] = jnp.concatenate(cross_ps, axis=-1)


# ----------------------------- parameter setup --------------------------------
def init_params(key):
    keys = jax.random.split(key, 64)
    ki = iter(range(64))

    def nrm(shape):
        return 0.02 * jax.random.normal(keys[next(ki)], shape, jnp.float32)

    def stack_w(shape):   # per-layer weights stacked on a leading layer dim, bf16 for MXU
        return jnp.stack([nrm(shape) for _ in range(N_LAYERS)]).astype(jnp.bfloat16)

    def zeros_l(shape):
        return jnp.zeros((N_LAYERS,) + shape, jnp.float32)

    def ones_l(shape):
        return jnp.ones((N_LAYERS,) + shape, jnp.float32)

    p = {}
    p["word_emb"] = nrm((VOCAB_SIZE, HID_DIM))
    p["pos_emb"] = nrm((TRG_LEN, HID_DIM))
    p["tok_emb"] = nrm((2, HID_DIM))
    p["emb_ln_g"] = jnp.ones((1, HID_DIM), jnp.float32)
    p["emb_ln_b"] = jnp.zeros((1, HID_DIM), jnp.float32)
    p["enc_w"] = nrm((VECTOR_SIZE, HID_DIM)).astype(jnp.bfloat16)
    p["enc_b"] = jnp.zeros((1, HID_DIM), jnp.float32)
    p["out_w"] = nrm((HID_DIM, VOCAB_SIZE)).astype(jnp.bfloat16)
    p["out_b"] = jnp.zeros((1, VOCAB_SIZE), jnp.float32)

    p["qkv_w"] = stack_w((HID_DIM, 3 * HID_DIM))     # concat of W_q | W_k | W_v
    p["qkv_b"] = zeros_l((1, 3 * HID_DIM))
    p["sa_o_w"] = stack_w((HID_DIM, HID_DIM))
    p["sa_o_b"] = zeros_l((1, HID_DIM))
    p["sa_ln_g"] = ones_l((1, HID_DIM))
    p["sa_ln_b"] = zeros_l((1, HID_DIM))
    p["ca_q_w"] = stack_w((HID_DIM, HID_DIM))
    p["ca_q_b"] = zeros_l((1, HID_DIM))
    p["ca_kv_w"] = stack_w((HID_DIM, 2 * HID_DIM))   # concat of W_k | W_v (cross)
    p["ca_kv_b"] = zeros_l((1, 2 * HID_DIM))
    p["ca_o_w"] = stack_w((HID_DIM, HID_DIM))
    p["ca_o_b"] = zeros_l((1, HID_DIM))
    p["ca_ln_g"] = ones_l((1, HID_DIM))
    p["ca_ln_b"] = zeros_l((1, HID_DIM))
    p["ff_i_w"] = stack_w((HID_DIM, INTER_DIM))
    p["ff_i_b"] = zeros_l((1, INTER_DIM))
    p["ff_o_w"] = stack_w((INTER_DIM, HID_DIM))
    p["ff_o_b"] = zeros_l((1, HID_DIM))
    p["ff_ln_g"] = ones_l((1, HID_DIM))
    p["ff_ln_b"] = zeros_l((1, HID_DIM))
    return p


# -------------------------------- forward pass ---------------------------------
def bert_decoder_forward(params, trg, enc_src, trg_mask, src_mask):
    B, S = trg.shape
    E = enc_src.shape[1]
    H, V, NH = HID_DIM, VOCAB_SIZE, N_HEADS

    # --- mask preprocessing (matches the PyTorch forward) ---
    src_mask_2d = src_mask.reshape(-1, E).astype(jnp.float32)      # (B, E)
    trg_mask_2d = trg_mask[:, -1, -1, :].astype(jnp.float32)       # (B, S)

    # --- BertEmbeddings sum (word + position + token_type) ---
    # TODO(synk): embedding gather done with jnp.take (dynamic vocab gather), not in-kernel.
    word = jnp.take(params["word_emb"], trg, axis=0)               # (B, S, H)
    pos = params["pos_emb"][jnp.arange(S)][None, :, :]             # (1, S, H)
    tok = params["tok_emb"][0][None, None, :]                      # (1, 1, H)
    emb = (word + pos + tok).reshape(B * S, H).astype(jnp.float32)

    # --- extended additive attention masks (HF decoder semantics), head-major layout ---
    seq = jnp.arange(S)
    causal = (seq[None, :] <= seq[:, None]).astype(jnp.float32)    # (S, S) lower-triangular
    self_keep = causal[None, :, :] * trg_mask_2d[:, None, :]       # (B, S, S)
    self_add = (1.0 - self_keep) * NEG_INF                         # (B, S, S)
    cross_add = ((1.0 - src_mask_2d) * NEG_INF)[:, None, :]        # (B, 1, E)
    self_mask = jnp.broadcast_to(self_add[:, None], (B, NH, S, S)).reshape(B * NH, S, S)
    cross_mask = jnp.broadcast_to(cross_add[:, None], (B, NH, S, E)).reshape(B * NH, S, E)

    enc2d = enc_src.reshape(B * E, VECTOR_SIZE).astype(jnp.float32)

    out_shape = (
        jax.ShapeDtypeStruct((B * S, V), jnp.float32),                     # logits (16,128)
        jax.ShapeDtypeStruct((S, N_LAYERS * B * NH * S), jnp.float32),     # self probs (8,128)
        jax.ShapeDtypeStruct((S, N_LAYERS * B * NH * E), jnp.float32),     # cross probs (8,256)
    )
    vmem = pl.BlockSpec(memory_space=pltpu.MemorySpace.VMEM)

    # Single kernel invocation (no grid): everything is tiny and VMEM-resident;
    # the two decoder layers are unrolled inside the kernel body.
    logits2d, self_p, cross_p = pl.pallas_call(
        _decoder_kernel,
        out_shape=out_shape,
        in_specs=[vmem] * 30,
        out_specs=(vmem, vmem, vmem),
    )(
        emb, params["emb_ln_g"], params["emb_ln_b"],
        enc2d, params["enc_w"], params["enc_b"],
        self_mask, cross_mask,
        params["out_w"], params["out_b"],
        params["qkv_w"], params["qkv_b"],
        params["sa_o_w"], params["sa_o_b"], params["sa_ln_g"], params["sa_ln_b"],
        params["ca_q_w"], params["ca_q_b"], params["ca_kv_w"], params["ca_kv_b"],
        params["ca_o_w"], params["ca_o_b"], params["ca_ln_g"], params["ca_ln_b"],
        params["ff_i_w"], params["ff_i_b"], params["ff_o_w"], params["ff_o_b"],
        params["ff_ln_g"], params["ff_ln_b"],
    )

    logits = logits2d.reshape(B, S, V)
    # undo lane-dense packing: (S, L, B, NH, S_kv) -> (L, B, NH, S, S_kv)
    self_p = self_p.reshape(S, N_LAYERS, B, NH, S).transpose(1, 2, 3, 0, 4)
    cross_p = cross_p.reshape(S, N_LAYERS, B, NH, E).transpose(1, 2, 3, 0, 4)
    dec_attentions = tuple(self_p[l] for l in range(N_LAYERS))
    cross_attentions = tuple(cross_p[l] for l in range(N_LAYERS))
    return logits, cross_attentions, dec_attentions


# ----------------------------------- main --------------------------------------
if __name__ == "__main__":
    key = jax.random.PRNGKey(0)
    k_param, k_trg, k_enc = jax.random.split(key, 3)

    params = init_params(k_param)

    trg = jax.random.randint(k_trg, (BATCH, TRG_LEN), 0, VOCAB_SIZE, dtype=jnp.int32)
    enc_src = jax.random.normal(k_enc, (BATCH, ENC_LEN, VECTOR_SIZE), jnp.float32)

    # target mask: (B, 1, S, S) causal mask (the forward only uses its last row)
    causal = (jnp.arange(TRG_LEN)[None, :] <= jnp.arange(TRG_LEN)[:, None]).astype(jnp.float32)
    trg_mask = jnp.broadcast_to(causal[None, None], (BATCH, 1, TRG_LEN, TRG_LEN))

    # source (encoder) padding mask: (B, 1, 1, E); mask out last 3 positions of batch 1
    src_mask = jnp.ones((BATCH, 1, 1, ENC_LEN), jnp.float32)
    src_mask = src_mask.at[1, :, :, ENC_LEN - 3:].set(0.0)

    fwd = jax.jit(bert_decoder_forward)
    logits, cross_attentions, dec_attentions = fwd(params, trg, enc_src, trg_mask, src_mask)
    jax.block_until_ready((logits, cross_attentions, dec_attentions))

    assert logits.shape == (BATCH, TRG_LEN, VOCAB_SIZE)
    assert len(cross_attentions) == N_LAYERS and len(dec_attentions) == N_LAYERS
    assert cross_attentions[0].shape == (BATCH, N_HEADS, TRG_LEN, ENC_LEN)
    assert dec_attentions[0].shape == (BATCH, N_HEADS, TRG_LEN, TRG_LEN)
    assert bool(jnp.all(jnp.isfinite(logits)))
    # exact softmax: probabilities must sum to 1
    assert bool(jnp.allclose(dec_attentions[0].sum(-1), 1.0, atol=1e-3))
    assert bool(jnp.allclose(cross_attentions[0].sum(-1), 1.0, atol=1e-3))

    print("KERNEL_OK")
</pallas_src>

<mosaic_0001>
module attributes {stable_mosaic.version = 11 : i64} {
  func.func @_decoder_kernel(%arg0: memref<16x32xf32, #tpu.memory_space<vmem>>, %arg1: memref<1x32xf32, #tpu.memory_space<vmem>>, %arg2: memref<1x32xf32, #tpu.memory_space<vmem>>, %arg3: memref<32x64xf32, #tpu.memory_space<vmem>>, %arg4: memref<64x32xbf16, #tpu.memory_space<vmem>>, %arg5: memref<1x32xf32, #tpu.memory_space<vmem>>, %arg6: memref<8x8x8xf32, #tpu.memory_space<vmem>>, %arg7: memref<8x8x16xf32, #tpu.memory_space<vmem>>, %arg8: memref<32x128xbf16, #tpu.memory_space<vmem>>, %arg9: memref<1x128xf32, #tpu.memory_space<vmem>>, %arg10: memref<2x32x96xbf16, #tpu.memory_space<vmem>>, %arg11: memref<2x1x96xf32, #tpu.memory_space<vmem>>, %arg12: memref<2x32x32xbf16, #tpu.memory_space<vmem>>, %arg13: memref<2x1x32xf32, #tpu.memory_space<vmem>>, %arg14: memref<2x1x32xf32, #tpu.memory_space<vmem>>, %arg15: memref<2x1x32xf32, #tpu.memory_space<vmem>>, %arg16: memref<2x32x32xbf16, #tpu.memory_space<vmem>>, %arg17: memref<2x1x32xf32, #tpu.memory_space<vmem>>, %arg18: memref<2x32x64xbf16, #tpu.memory_space<vmem>>, %arg19: memref<2x1x64xf32, #tpu.memory_space<vmem>>, %arg20: memref<2x32x32xbf16, #tpu.memory_space<vmem>>, %arg21: memref<2x1x32xf32, #tpu.memory_space<vmem>>, %arg22: memref<2x1x32xf32, #tpu.memory_space<vmem>>, %arg23: memref<2x1x32xf32, #tpu.memory_space<vmem>>, %arg24: memref<2x32x128xbf16, #tpu.memory_space<vmem>>, %arg25: memref<2x1x128xf32, #tpu.memory_space<vmem>>, %arg26: memref<2x128x32xbf16, #tpu.memory_space<vmem>>, %arg27: memref<2x1x32xf32, #tpu.memory_space<vmem>>, %arg28: memref<2x1x32xf32, #tpu.memory_space<vmem>>, %arg29: memref<2x1x32xf32, #tpu.memory_space<vmem>>, %arg30: memref<16x128xf32, #tpu.memory_space<vmem>>, %arg31: memref<8x128xf32, #tpu.memory_space<vmem>>, %arg32: memref<8x256xf32, #tpu.memory_space<vmem>>) attributes {dimension_semantics = [], scalar_prefetch = 0 : i64, scratch_operands = 0 : i64, tpu.core_type = #tpu.core_type<tc>} {
    %c0 = arith.constant 0 : index
    %c0_0 = arith.constant 0 : index
    %0 = vector.load %arg0[%c0, %c0_0] : memref<16x32xf32, #tpu.memory_space<vmem>>, vector<16x32xf32>
    %c0_1 = arith.constant 0 : index
    %c0_2 = arith.constant 0 : index
    %1 = vector.load %arg1[%c0_1, %c0_2] : memref<1x32xf32, #tpu.memory_space<vmem>>, vector<1x32xf32>
    %c0_3 = arith.constant 0 : index
    %c0_4 = arith.constant 0 : index
    %2 = vector.load %arg2[%c0_3, %c0_4] : memref<1x32xf32, #tpu.memory_space<vmem>>, vector<1x32xf32>
    %cst = arith.constant dense<0.000000e+00> : vector<16xf32>
    %3 = vector.multi_reduction <add>, %0, %cst [1] : vector<16x32xf32> to vector<16xf32>
    %4 = vector.shape_cast %3 : vector<16xf32> to vector<16x1xf32>
    %cst_5 = arith.constant 3.200000e+01 : f32
    %5 = vector.broadcast %cst_5 : f32 to vector<16x1xf32>
    %6 = arith.divf %4, %5 : vector<16x1xf32>
    %7 = vector.broadcast %6 : vector<16x1xf32> to vector<16x32xf32>
    %8 = arith.subf %0, %7 : vector<16x32xf32>
    %9 = arith.mulf %8, %8 : vector<16x32xf32>
    %cst_6 = arith.constant dense<0.000000e+00> : vector<16xf32>
    %10 = vector.multi_reduction <add>, %9, %cst_6 [1] : vector<16x32xf32> to vector<16xf32>
    %11 = vector.shape_cast %10 : vector<16xf32> to vector<16x1xf32>
    %cst_7 = arith.constant 3.200000e+01 : f32
    %12 = vector.broadcast %cst_7 : f32 to vector<16x1xf32>
    %13 = arith.divf %11, %12 : vector<16x1xf32>
    %14 = vector.broadcast %6 : vector<16x1xf32> to vector<16x32xf32>
    %15 = arith.subf %0, %14 : vector<16x32xf32>
    %cst_8 = arith.constant 9.99999996E-13 : f32
    %16 = vector.broadcast %cst_8 : f32 to vector<16x1xf32>
    %17 = arith.addf %13, %16 : vector<16x1xf32>
    %18 = math.rsqrt %17 : vector<16x1xf32>
    %19 = vector.broadcast %18 : vector<16x1xf32> to vector<16x32xf32>
    %20 = arith.mulf %15, %19 : vector<16x32xf32>
    %21 = vector.broadcast %1 : vector<1x32xf32> to vector<16x32xf32>
    %22 = arith.mulf %20, %21 : vector<16x32xf32>
    %23 = vector.broadcast %2 : vector<1x32xf32> to vector<16x32xf32>
    %24 = arith.addf %22, %23 : vector<16x32xf32>
    %c0_9 = arith.constant 0 : index
    %c0_10 = arith.constant 0 : index
    %25 = vector.load %arg3[%c0_9, %c0_10] : memref<32x64xf32, #tpu.memory_space<vmem>>, vector<32x64xf32>
    %c0_11 = arith.constant 0 : index
    %c0_12 = arith.constant 0 : index
    %26 = vector.load %arg4[%c0_11, %c0_12] : memref<64x32xbf16, #tpu.memory_space<vmem>>, vector<64x32xbf16>
    %27 = arith.truncf %25 : vector<32x64xf32> to vector<32x64xbf16>
    %cst_13 = arith.constant dense<0.000000e+00> : vector<32x32xf32>
    %28 = tpu.matmul %27, %26, %cst_13 {dimension_numbers = #tpu.dot_dimension_numbers<[1], [0], [0], [1], [0, 0, 1, 1], [], []>} : vector<32x64xbf16>, vector<64x32xbf16>, vector<32x32xf32> -> vector<32x32xf32>
    %c0_14 = arith.constant 0 : index
    %c0_15 = arith.constant 0 : index
    %29 = vector.load %arg5[%c0_14, %c0_15] : memref<1x32xf32, #tpu.memory_space<vmem>>, vector<1x32xf32>
    %30 = vector.broadcast %29 : vector<1x32xf32> to vector<32x32xf32>
    %31 = arith.addf %28, %30 : vector<32x32xf32>
    %c0_16 = arith.constant 0 : index
    %c0_17 = arith.constant 0 : index
    %c0_18 = arith.constant 0 : index
    %32 = vector.load %arg6[%c0_16, %c0_17, %c0_18] : memref<8x8x8xf32, #tpu.memory_space<vmem>>, vector<8x8x8xf32>
    %c0_19 = arith.constant 0 : index
    %c0_20 = arith.constant 0 : index
    %c0_21 = arith.constant 0 : index
    %33 = vector.load %arg7[%c0_19, %c0_20, %c0_21] : memref<8x8x16xf32, #tpu.memory_space<vmem>>, vector<8x8x16xf32>
    %c0_22 = arith.constant 0 : index
    %c0_23 = arith.constant 0 : index
    %c0_24 = arith.constant 0 : index
    %34 = vector.load %arg10[%c0_22, %c0_23, %c0_24] : memref<2x32x96xbf16, #tpu.memory_space<vmem>>, vector<1x32x96xbf16>
    %35 = vector.shape_cast %34 : vector<1x32x96xbf16> to vector<32x96xbf16>
    %36 = arith.truncf %24 : vector<16x32xf32> to vector<16x32xbf16>
    %cst_25 = arith.constant dense<0.000000e+00> : vector<16x96xf32>
    %37 = tpu.matmul %36, %35, %cst_25 {dimension_numbers = #tpu.dot_dimension_numbers<[1], [0], [0], [1], [0, 0, 1, 1], [], []>} : vector<16x32xbf16>, vector<32x96xbf16>, vector<16x96xf32> -> vector<16x96xf32>
    %c0_26 = arith.constant 0 : index
    %c0_27 = arith.constant 0 : index
    %c0_28 = arith.constant 0 : index
    %38 = vector.load %arg11[%c0_26, %c0_27, %c0_28] : memref<2x1x96xf32, #tpu.memory_space<vmem>>, vector<1x1x96xf32>
    %39 = vector.shape_cast %38 : vector<1x1x96xf32> to vector<1x96xf32>
    %40 = vector.broadcast %39 : vector<1x96xf32> to vector<16x96xf32>
    %41 = arith.addf %37, %40 : vector<16x96xf32>
    %42 = vector.extract_strided_slice %41 {offsets = [0, 0], sizes = [16, 32], strides = [1, 1]} : vector<16x96xf32> to vector<16x32xf32>
    %43 = vector.extract_strided_slice %41 {offsets = [0, 32], sizes = [16, 32], strides = [1, 1]} : vector<16x96xf32> to vector<16x32xf32>
    %44 = vector.extract_strided_slice %41 {offsets = [0, 64], sizes = [16, 32], strides = [1, 1]} : vector<16x96xf32> to vector<16x32xf32>
    %45 = vector.shape_cast %42 : vector<16x32xf32> to vector<2x8x4x8xf32>
    %46 = tpu.transpose %45, [0, 2, 1, 3] : vector<2x8x4x8xf32> -> vector<2x4x8x8xf32>
    %47 = vector.shape_cast %46 : vector<2x4x8x8xf32> to vector<8x8x8xf32>
    %48 = arith.truncf %47 : vector<8x8x8xf32> to vector<8x8x8xbf16>
    %49 = vector.shape_cast %43 : vector<16x32xf32> to vector<2x8x4x8xf32>
    %50 = tpu.transpose %49, [0, 2, 1, 3] : vector<2x8x4x8xf32> -> vector<2x4x8x8xf32>
    %51 = vector.shape_cast %50 : vector<2x4x8x8xf32> to vector<8x8x8xf32>
    %52 = arith.truncf %51 : vector<8x8x8xf32> to vector<8x8x8xbf16>
    %53 = vector.shape_cast %44 : vector<16x32xf32> to vector<2x8x4x8xf32>
    %54 = tpu.transpose %53, [0, 2, 1, 3] : vector<2x8x4x8xf32> -> vector<2x4x8x8xf32>
    %55 = vector.shape_cast %54 : vector<2x4x8x8xf32> to vector<8x8x8xf32>
    %56 = arith.truncf %55 : vector<8x8x8xf32> to vector<8x8x8xbf16>
    "tpu.trace_start"() <{level = 10 : i32, message = "bqd,bkd->bqk"}> : () -> ()
    %cst_29 = arith.constant dense<0.000000e+00> : vector<8x8x8xf32>
    %57 = tpu.matmul %48, %52, %cst_29 {dimension_numbers = #tpu.dot_dimension_numbers<[2], [2], [1], [1], [0, 0, 0, 1, 1, 1], [0], [0]>} : vector<8x8x8xbf16>, vector<8x8x8xbf16>, vector<8x8x8xf32> -> vector<8x8x8xf32>
    "tpu.trace_stop"() : () -> ()
    %cst_30 = arith.constant 0.353553385 : f32
    %58 = vector.broadcast %cst_30 : f32 to vector<8x8x8xf32>
    %59 = arith.mulf %57, %58 : vector<8x8x8xf32>
    %60 = arith.addf %59, %32 : vector<8x8x8xf32>
    %cst_31 = arith.constant dense<0xFF800000> : vector<8x8xf32>
    %61 = vector.multi_reduction <maximumf>, %60, %cst_31 [2] : vector<8x8x8xf32> to vector<8x8xf32>
    %62 = vector.shape_cast %61 : vector<8x8xf32> to vector<8x8x1xf32>
    %63 = vector.broadcast %62 : vector<8x8x1xf32> to vector<8x8x8xf32>
    %64 = arith.subf %60, %63 : vector<8x8x8xf32>
    %65 = math.exp %64 : vector<8x8x8xf32>
    %cst_32 = arith.constant dense<0.000000e+00> : vector<8x8xf32>
    %66 = vector.multi_reduction <add>, %65, %cst_32 [2] : vector<8x8x8xf32> to vector<8x8xf32>
    %67 = vector.shape_cast %66 : vector<8x8xf32> to vector<8x8x1xf32>
    %68 = vector.broadcast %67 : vector<8x8x1xf32> to vector<8x8x8xf32>
    %69 = arith.divf %65, %68 : vector<8x8x8xf32>
    %70 = arith.truncf %69 : vector<8x8x8xf32> to vector<8x8x8xbf16>
    "tpu.trace_start"() <{level = 10 : i32, message = "bqk,bkd->bqd"}> : () -> ()
    %cst_33 = arith.constant dense<0.000000e+00> : vector<8x8x8xf32>
    %71 = tpu.matmul %70, %56, %cst_33 {dimension_numbers = #tpu.dot_dimension_numbers<[2], [1], [1], [2], [0, 0, 0, 1, 1, 2], [0], [0]>} : vector<8x8x8xbf16>, vector<8x8x8xbf16>, vector<8x8x8xf32> -> vector<8x8x8xf32>
    "tpu.trace_stop"() : () -> ()
    %72 = tpu.transpose %69, [1, 0, 2] : vector<8x8x8xf32> -> vector<8x8x8xf32>
    %73 = vector.shape_cast %72 : vector<8x8x8xf32> to vector<8x64xf32>
    %74 = vector.shape_cast %71 : vector<8x8x8xf32> to vector<2x4x8x8xf32>
    %75 = tpu.transpose %74, [0, 2, 1, 3] : vector<2x4x8x8xf32> -> vector<2x8x4x8xf32>
    %76 = vector.shape_cast %75 : vector<2x8x4x8xf32> to vector<16x32xf32>
    %c0_34 = arith.constant 0 : index
    %c0_35 = arith.constant 0 : index
    %c0_36 = arith.constant 0 : index
    %77 = vector.load %arg12[%c0_34, %c0_35, %c0_36] : memref<2x32x32xbf16, #tpu.memory_space<vmem>>, vector<1x32x32xbf16>
    %78 = vector.shape_cast %77 : vector<1x32x32xbf16> to vector<32x32xbf16>
    %79 = arith.truncf %76 : vector<16x32xf32> to vector<16x32xbf16>
    %cst_37 = arith.constant dense<0.000000e+00> : vector<16x32xf32>
    %80 = tpu.matmul %79, %78, %cst_37 {dimension_numbers = #tpu.dot_dimension_numbers<[1], [0], [0], [1], [0, 0, 1, 1], [], []>} : vector<16x32xbf16>, vector<32x32xbf16>, vector<16x32xf32> -> vector<16x32xf32>
    %c0_38 = arith.constant 0 : index
    %c0_39 = arith.constant 0 : index
    %c0_40 = arith.constant 0 : index
    %81 = vector.load %arg13[%c0_38, %c0_39, %c0_40] : memref<2x1x32xf32, #tpu.memory_space<vmem>>, vector<1x1x32xf32>
    %82 = vector.shape_cast %81 : vector<1x1x32xf32> to vector<1x32xf32>
    %83 = vector.broadcast %82 : vector<1x32xf32> to vector<16x32xf32>
    %84 = arith.addf %80, %83 : vector<16x32xf32>
    %85 = arith.addf %84, %24 : vector<16x32xf32>
    %c0_41 = arith.constant 0 : index
    %c0_42 = arith.constant 0 : index
    %c0_43 = arith.constant 0 : index
    %86 = vector.load %arg14[%c0_41, %c0_42, %c0_43] : memref<2x1x32xf32, #tpu.memory_space<vmem>>, vector<1x1x32xf32>
    %87 = vector.shape_cast %86 : vector<1x1x32xf32> to vector<1x32xf32>
    %c0_44 = arith.constant 0 : index
    %c0_45 = arith.constant 0 : index
    %c0_46 = arith.constant 0 : index
    %88 = vector.load %arg15[%c0_44, %c0_45, %c0_46] : memref<2x1x32xf32, #tpu.memory_space<vmem>>, vector<1x1x32xf32>
    %89 = vector.shape_cast %88 : vector<1x1x32xf32> to vector<1x32xf32>
    %cst_47 = arith.constant dense<0.000000e+00> : vector<16xf32>
    %90 = vector.multi_reduction <add>, %85, %cst_47 [1] : vector<16x32xf32> to vector<16xf32>
    %91 = vector.shape_cast %90 : vector<16xf32> to vector<16x1xf32>
    %cst_48 = arith.constant 3.200000e+01 : f32
    %92 = vector.broadcast %cst_48 : f32 to vector<16x1xf32>
    %93 = arith.divf %91, %92 : vector<16x1xf32>
    %94 = vector.broadcast %93 : vector<16x1xf32> to vector<16x32xf32>
    %95 = arith.subf %85, %94 : vector<16x32xf32>
    %96 = arith.mulf %95, %95 : vector<16x32xf32>
    %cst_49 = arith.constant dense<0.000000e+00> : vector<16xf32>
    %97 = vector.multi_reduction <add>, %96, %cst_49 [1] : vector<16x32xf32> to vector<16xf32>
    %98 = vector.shape_cast %97 : vector<16xf32> to vector<16x1xf32>
    %cst_50 = arith.constant 3.200000e+01 : f32
    %99 = vector.broadcast %cst_50 : f32 to vector<16x1xf32>
    %100 = arith.divf %98, %99 : vector<16x1xf32>
    %101 = vector.broadcast %93 : vector<16x1xf32> to vector<16x32xf32>
    %102 = arith.subf %85, %101 : vector<16x32xf32>
    %cst_51 = arith.constant 9.99999996E-13 : f32
    %103 = vector.broadcast %cst_51 : f32 to vector<16x1xf32>
    %104 = arith.addf %100, %103 : vector<16x1xf32>
    %105 = math.rsqrt %104 : vector<16x1xf32>
    %106 = vector.broadcast %105 : vector<16x1xf32> to vector<16x32xf32>
    %107 = arith.mulf %102, %106 : vector<16x32xf32>
    %108 = vector.broadcast %87 : vector<1x32xf32> to vector<16x32xf32>
    %109 = arith.mulf %107, %108 : vector<16x32xf32>
    %110 = vector.broadcast %89 : vector<1x32xf32> to vector<16x32xf32>
    %111 = arith.addf %109, %110 : vector<16x32xf32>
    %c0_52 = arith.constant 0 : index
    %c0_53 = arith.constant 0 : index
    %c0_54 = arith.constant 0 : index
    %112 = vector.load %arg16[%c0_52, %c0_53, %c0_54] : memref<2x32x32xbf16, #tpu.memory_space<vmem>>, vector<1x32x32xbf16>
    %113 = vector.shape_cast %112 : vector<1x32x32xbf16> to vector<32x32xbf16>
    %114 = arith.truncf %111 : vector<16x32xf32> to vector<16x32xbf16>
    %cst_55 = arith.constant dense<0.000000e+00> : vector<16x32xf32>
    %115 = tpu.matmul %114, %113, %cst_55 {dimension_numbers = #tpu.dot_dimension_numbers<[1], [0], [0], [1], [0, 0, 1, 1], [], []>} : vector<16x32xbf16>, vector<32x32xbf16>, vector<16x32xf32> -> vector<16x32xf32>
    %c0_56 = arith.constant 0 : index
    %c0_57 = arith.constant 0 : index
    %c0_58 = arith.constant 0 : index
    %116 = vector.load %arg17[%c0_56, %c0_57, %c0_58] : memref<2x1x32xf32, #tpu.memory_space<vmem>>, vector<1x1x32xf32>
    %117 = vector.shape_cast %116 : vector<1x1x32xf32> to vector<1x32xf32>
    %118 = vector.broadcast %117 : vector<1x32xf32> to vector<16x32xf32>
    %119 = arith.addf %115, %118 : vector<16x32xf32>
    %c0_59 = arith.constant 0 : index
    %c0_60 = arith.constant 0 : index
    %c0_61 = arith.constant 0 : index
    %120 = vector.load %arg18[%c0_59, %c0_60, %c0_61] : memref<2x32x64xbf16, #tpu.memory_space<vmem>>, vector<1x32x64xbf16>
    %121 = vector.shape_cast %120 : vector<1x32x64xbf16> to vector<32x64xbf16>
    %122 = arith.truncf %31 : vector<32x32xf32> to vector<32x32xbf16>
    %cst_62 = arith.constant dense<0.000000e+00> : vector<32x64xf32>
    %123 = tpu.matmul %122, %121, %cst_62 {dimension_numbers = #tpu.dot_dimension_numbers<[1], [0], [0], [1], [0, 0, 1, 1], [], []>} : vector<32x32xbf16>, vector<32x64xbf16>, vector<32x64xf32> -> vector<32x64xf32>
    %c0_63 = arith.constant 0 : index
    %c0_64 = arith.constant 0 : index
    %c0_65 = arith.constant 0 : index
    %124 = vector.load %arg19[%c0_63, %c0_64, %c0_65] : memref<2x1x64xf32, #tpu.memory_space<vmem>>, vector<1x1x64xf32>
    %125 = vector.shape_cast %124 : vector<1x1x64xf32> to vector<1x64xf32>
    %126 = vector.broadcast %125 : vector<1x64xf32> to vector<32x64xf32>
    %127 = arith.addf %123, %126 : vector<32x64xf32>
    %128 = vector.extract_strided_slice %127 {offsets = [0, 0], sizes = [32, 32], strides = [1, 1]} : vector<32x64xf32> to vector<32x32xf32>
    %129 = vector.extract_strided_slice %127 {offsets = [0, 32], sizes = [32, 32], strides = [1, 1]} : vector<32x64xf32> to vector<32x32xf32>
    %130 = vector.shape_cast %119 : vector<16x32xf32> to vector<2x8x4x8xf32>
    %131 = tpu.transpose %130, [0, 2, 1, 3] : vector<2x8x4x8xf32> -> vector<2x4x8x8xf32>
    %132 = vector.shape_cast %131 : vector<2x4x8x8xf32> to vector<8x8x8xf32>
    %133 = arith.truncf %132 : vector<8x8x8xf32> to vector<8x8x8xbf16>
    %134 = vector.shape_cast %128 : vector<32x32xf32> to vector<2x16x4x8xf32>
    %135 = tpu.transpose %134, [0, 2, 1, 3] : vector<2x16x4x8xf32> -> vector<2x4x16x8xf32>
    %136 = vector.shape_cast %135 : vector<2x4x16x8xf32> to vector<8x16x8xf32>
    %137 = arith.truncf %136 : vector<8x16x8xf32> to vector<8x16x8xbf16>
    %138 = vector.shape_cast %129 : vector<32x32xf32> to vector<2x16x4x8xf32>
    %139 = tpu.transpose %138, [0, 2, 1, 3] : vector<2x16x4x8xf32> -> vector<2x4x16x8xf32>
    %140 = vector.shape_cast %139 : vector<2x4x16x8xf32> to vector<8x16x8xf32>
    %141 = arith.truncf %140 : vector<8x16x8xf32> to vector<8x16x8xbf16>
    "tpu.trace_start"() <{level = 10 : i32, message = "bqd,bkd->bqk"}> : () -> ()
    %cst_66 = arith.constant dense<0.000000e+00> : vector<8x8x16xf32>
    %142 = tpu.matmul %133, %137, %cst_66 {dimension_numbers = #tpu.dot_dimension_numbers<[2], [2], [1], [1], [0, 0, 0, 1, 1, 1], [0], [0]>} : vector<8x8x8xbf16>, vector<8x16x8xbf16>, vector<8x8x16xf32> -> vector<8x8x16xf32>
    "tpu.trace_stop"() : () -> ()
    %cst_67 = arith.constant 0.353553385 : f32
    %143 = vector.broadcast %cst_67 : f32 to vector<8x8x16xf32>
    %144 = arith.mulf %142, %143 : vector<8x8x16xf32>
    %145 = arith.addf %144, %33 : vector<8x8x16xf32>
    %cst_68 = arith.constant dense<0xFF800000> : vector<8x8xf32>
    %146 = vector.multi_reduction <maximumf>, %145, %cst_68 [2] : vector<8x8x16xf32> to vector<8x8xf32>
    %147 = vector.shape_cast %146 : vector<8x8xf32> to vector<8x8x1xf32>
    %148 = vector.broadcast %147 : vector<8x8x1xf32> to vector<8x8x16xf32>
    %149 = arith.subf %145, %148 : vector<8x8x16xf32>
    %150 = math.exp %149 : vector<8x8x16xf32>
    %cst_69 = arith.constant dense<0.000000e+00> : vector<8x8xf32>
    %151 = vector.multi_reduction <add>, %150, %cst_69 [2] : vector<8x8x16xf32> to vector<8x8xf32>
    %152 = vector.shape_cast %151 : vector<8x8xf32> to vector<8x8x1xf32>
    %153 = vector.broadcast %152 : vector<8x8x1xf32> to vector<8x8x16xf32>
    %154 = arith.divf %150, %153 : vector<8x8x16xf32>
    %155 = arith.truncf %154 : vector<8x8x16xf32> to vector<8x8x16xbf16>
    "tpu.trace_start"() <{level = 10 : i32, message = "bqk,bkd->bqd"}> : () -> ()
    %cst_70 = arith.constant dense<0.000000e+00> : vector<8x8x8xf32>
    %156 = tpu.matmul %155, %141, %cst_70 {dimension_numbers = #tpu.dot_dimension_numbers<[2], [1], [1], [2], [0, 0, 0, 1, 1, 2], [0], [0]>} : vector<8x8x16xbf16>, vector<8x16x8xbf16>, vector<8x8x8xf32> -> vector<8x8x8xf32>
    "tpu.trace_stop"() : () -> ()
    %157 = tpu.transpose %154, [1, 0, 2] : vector<8x8x16xf32> -> vector<8x8x16xf32>
    %158 = vector.shape_cast %157 : vector<8x8x16xf32> to vector<8x128xf32>
    %159 = vector.shape_cast %156 : vector<8x8x8xf32> to vector<2x4x8x8xf32>
    %160 = tpu.transpose %159, [0, 2, 1, 3] : vector<2x4x8x8xf32> -> vector<2x8x4x8xf32>
    %161 = vector.shape_cast %160 : vector<2x8x4x8xf32> to vector<16x32xf32>
    %c0_71 = arith.constant 0 : index
    %c0_72 = arith.constant 0 : index
    %c0_73 = arith.constant 0 : index
    %162 = vector.load %arg20[%c0_71, %c0_72, %c0_73] : memref<2x32x32xbf16, #tpu.memory_space<vmem>>, vector<1x32x32xbf16>
    %163 = vector.shape_cast %162 : vector<1x32x32xbf16> to vector<32x32xbf16>
    %164 = arith.truncf %161 : vector<16x32xf32> to vector<16x32xbf16>
    %cst_74 = arith.constant dense<0.000000e+00> : vector<16x32xf32>
    %165 = tpu.matmul %164, %163, %cst_74 {dimension_numbers = #tpu.dot_dimension_numbers<[1], [0], [0], [1], [0, 0, 1, 1], [], []>} : vector<16x32xbf16>, vector<32x32xbf16>, vector<16x32xf32> -> vector<16x32xf32>
    %c0_75 = arith.constant 0 : index
    %c0_76 = arith.constant 0 : index
    %c0_77 = arith.constant 0 : index
    %166 = vector.load %arg21[%c0_75, %c0_76, %c0_77] : memref<2x1x32xf32, #tpu.memory_space<vmem>>, vector<1x1x32xf32>
    %167 = vector.shape_cast %166 : vector<1x1x32xf32> to vector<1x32xf32>
    %168 = vector.broadcast %167 : vector<1x32xf32> to vector<16x32xf32>
    %169 = arith.addf %165, %168 : vector<16x32xf32>
    %170 = arith.addf %169, %111 : vector<16x32xf32>
    %c0_78 = arith.constant 0 : index
    %c0_79 = arith.constant 0 : index
    %c0_80 = arith.constant 0 : index
    %171 = vector.load %arg22[%c0_78, %c0_79, %c0_80] : memref<2x1x32xf32, #tpu.memory_space<vmem>>, vector<1x1x32xf32>
    %172 = vector.shape_cast %171 : vector<1x1x32xf32> to vector<1x32xf32>
    %c0_81 = arith.constant 0 : index
    %c0_82 = arith.constant 0 : index
    %c0_83 = arith.constant 0 : index
    %173 = vector.load %arg23[%c0_81, %c0_82, %c0_83] : memref<2x1x32xf32, #tpu.memory_space<vmem>>, vector<1x1x32xf32>
    %174 = vector.shape_cast %173 : vector<1x1x32xf32> to vector<1x32xf32>
    %cst_84 = arith.constant dense<0.000000e+00> : vector<16xf32>
    %175 = vector.multi_reduction <add>, %170, %cst_84 [1] : vector<16x32xf32> to vector<16xf32>
    %176 = vector.shape_cast %175 : vector<16xf32> to vector<16x1xf32>
    %cst_85 = arith.constant 3.200000e+01 : f32
    %177 = vector.broadcast %cst_85 : f32 to vector<16x1xf32>
    %178 = arith.divf %176, %177 : vector<16x1xf32>
    %179 = vector.broadcast %178 : vector<16x1xf32> to vector<16x32xf32>
    %180 = arith.subf %170, %179 : vector<16x32xf32>
    %181 = arith.mulf %180, %180 : vector<16x32xf32>
    %cst_86 = arith.constant dense<0.000000e+00> : vector<16xf32>
    %182 = vector.multi_reduction <add>, %181, %cst_86 [1] : vector<16x32xf32> to vector<16xf32>
    %183 = vector.shape_cast %182 : vector<16xf32> to vector<16x1xf32>
    %cst_87 = arith.constant 3.200000e+01 : f32
    %184 = vector.broadcast %cst_87 : f32 to vector<16x1xf32>
    %185 = arith.divf %183, %184 : vector<16x1xf32>
    %186 = vector.broadcast %178 : vector<16x1xf32> to vector<16x32xf32>
    %187 = arith.subf %170, %186 : vector<16x32xf32>
    %cst_88 = arith.constant 9.99999996E-13 : f32
    %188 = vector.broadcast %cst_88 : f32 to vector<16x1xf32>
    %189 = arith.addf %185, %188 : vector<16x1xf32>
    %190 = math.rsqrt %189 : vector<16x1xf32>
    %191 = vector.broadcast %190 : vector<16x1xf32> to vector<16x32xf32>
    %192 = arith.mulf %187, %191 : vector<16x32xf32>
    %193 = vector.broadcast %172 : vector<1x32xf32> to vector<16x32xf32>
    %194 = arith.mulf %192, %193 : vector<16x32xf32>
    %195 = vector.broadcast %174 : vector<1x32xf32> to vector<16x32xf32>
    %196 = arith.addf %194, %195 : vector<16x32xf32>
    %c0_89 = arith.constant 0 : index
    %c0_90 = arith.constant 0 : index
    %c0_91 = arith.constant 0 : index
    %197 = vector.load %arg24[%c0_89, %c0_90, %c0_91] : memref<2x32x128xbf16, #tpu.memory_space<vmem>>, vector<1x32x128xbf16>
    %198 = vector.shape_cast %197 : vector<1x32x128xbf16> to vector<32x128xbf16>
    %199 = arith.truncf %196 : vector<16x32xf32> to vector<16x32xbf16>
    %cst_92 = arith.constant dense<0.000000e+00> : vector<16x128xf32>
    %200 = tpu.matmul %199, %198, %cst_92 {dimension_numbers = #tpu.dot_dimension_numbers<[1], [0], [0], [1], [0, 0, 1, 1], [], []>} : vector<16x32xbf16>, vector<32x128xbf16>, vector<16x128xf32> -> vector<16x128xf32>
    %c0_93 = arith.constant 0 : index
    %c0_94 = arith.constant 0 : index
    %c0_95 = arith.constant 0 : index
    %201 = vector.load %arg25[%c0_93, %c0_94, %c0_95] : memref<2x1x128xf32, #tpu.memory_space<vmem>>, vector<1x1x128xf32>
    %202 = vector.shape_cast %201 : vector<1x1x128xf32> to vector<1x128xf32>
    %203 = vector.broadcast %202 : vector<1x128xf32> to vector<16x128xf32>
    %204 = arith.addf %200, %203 : vector<16x128xf32>
    %cst_96 = arith.constant 5.000000e-01 : f32
    %205 = vector.broadcast %cst_96 : f32 to vector<16x128xf32>
    %206 = arith.mulf %205, %204 : vector<16x128xf32>
    %cst_97 = arith.constant 0.707106769 : f32
    %207 = vector.broadcast %cst_97 : f32 to vector<16x128xf32>
    %208 = arith.mulf %204, %207 : vector<16x128xf32>
    %209 = math.erf %208 : vector<16x128xf32>
    %cst_98 = arith.constant 1.000000e+00 : f32
    %210 = vector.broadcast %cst_98 : f32 to vector<16x128xf32>
    %211 = arith.addf %210, %209 : vector<16x128xf32>
    %212 = arith.mulf %206, %211 : vector<16x128xf32>
    %c0_99 = arith.constant 0 : index
    %c0_100 = arith.constant 0 : index
    %c0_101 = arith.constant 0 : index
    %213 = vector.load %arg26[%c0_99, %c0_100, %c0_101] : memref<2x128x32xbf16, #tpu.memory_space<vmem>>, vector<1x128x32xbf16>
    %214 = vector.shape_cast %213 : vector<1x128x32xbf16> to vector<128x32xbf16>
    %215 = arith.truncf %212 : vector<16x128xf32> to vector<16x128xbf16>
    %cst_102 = arith.constant dense<0.000000e+00> : vector<16x32xf32>
    %216 = tpu.matmul %215, %214, %cst_102 {dimension_numbers = #tpu.dot_dimension_numbers<[1], [0], [0], [1], [0, 0, 1, 1], [], []>} : vector<16x128xbf16>, vector<128x32xbf16>, vector<16x32xf32> -> vector<16x32xf32>
    %c0_103 = arith.constant 0 : index
    %c0_104 = arith.constant 0 : index
    %c0_105 = arith.constant 0 : index
    %217 = vector.load %arg27[%c0_103, %c0_104, %c0_105] : memref<2x1x32xf32, #tpu.memory_space<vmem>>, vector<1x1x32xf32>
    %218 = vector.shape_cast %217 : vector<1x1x32xf32> to vector<1x32xf32>
    %219 = vector.broadcast %218 : vector<1x32xf32> to vector<16x32xf32>
    %220 = arith.addf %216, %219 : vector<16x32xf32>
    %221 = arith.addf %220, %196 : vector<16x32xf32>
    %c0_106 = arith.constant 0 : index
    %c0_107 = arith.constant 0 : index
    %c0_108 = arith.constant 0 : index
    %222 = vector.load %arg28[%c0_106, %c0_107, %c0_108] : memref<2x1x32xf32, #tpu.memory_space<vmem>>, vector<1x1x32xf32>
    %223 = vector.shape_cast %222 : vector<1x1x32xf32> to vector<1x32xf32>
    %c0_109 = arith.constant 0 : index
    %c0_110 = arith.constant 0 : index
    %c0_111 = arith.constant 0 : index
    %224 = vector.load %arg29[%c0_109, %c0_110, %c0_111] : memref<2x1x32xf32, #tpu.memory_space<vmem>>, vector<1x1x32xf32>
    %225 = vector.shape_cast %224 : vector<1x1x32xf32> to vector<1x32xf32>
    %cst_112 = arith.constant dense<0.000000e+00> : vector<16xf32>
    %226 = vector.multi_reduction <add>, %221, %cst_112 [1] : vector<16x32xf32> to vector<16xf32>
    %227 = vector.shape_cast %226 : vector<16xf32> to vector<16x1xf32>
    %cst_113 = arith.constant 3.200000e+01 : f32
    %228 = vector.broadcast %cst_113 : f32 to vector<16x1xf32>
    %229 = arith.divf %227, %228 : vector<16x1xf32>
    %230 = vector.broadcast %229 : vector<16x1xf32> to vector<16x32xf32>
    %231 = arith.subf %221, %230 : vector<16x32xf32>
    %232 = arith.mulf %231, %231 : vector<16x32xf32>
    %cst_114 = arith.constant dense<0.000000e+00> : vector<16xf32>
    %233 = vector.multi_reduction <add>, %232, %cst_114 [1] : vector<16x32xf32> to vector<16xf32>
    %234 = vector.shape_cast %233 : vector<16xf32> to vector<16x1xf32>
    %cst_115 = arith.constant 3.200000e+01 : f32
    %235 = vector.broadcast %cst_115 : f32 to vector<16x1xf32>
    %236 = arith.divf %234, %235 : vector<16x1xf32>
    %237 = vector.broadcast %229 : vector<16x1xf32> to vector<16x32xf32>
    %238 = arith.subf %221, %237 : vector<16x32xf32>
    %cst_116 = arith.constant 9.99999996E-13 : f32
    %239 = vector.broadcast %cst_116 : f32 to vector<16x1xf32>
    %240 = arith.addf %236, %239 : vector<16x1xf32>
    %241 = math.rsqrt %240 : vector<16x1xf32>
    %242 = vector.broadcast %241 : vector<16x1xf32> to vector<16x32xf32>
    %243 = arith.mulf %238, %242 : vector<16x32xf32>
    %244 = vector.broadcast %223 : vector<1x32xf32> to vector<16x32xf32>
    %245 = arith.mulf %243, %244 : vector<16x32xf32>
    %246 = vector.broadcast %225 : vector<1x32xf32> to vector<16x32xf32>
    %247 = arith.addf %245, %246 : vector<16x32xf32>
    %c1 = arith.constant 1 : index
    %c0_117 = arith.constant 0 : index
    %c0_118 = arith.constant 0 : index
    %248 = vector.load %arg10[%c1, %c0_117, %c0_118] : memref<2x32x96xbf16, #tpu.memory_space<vmem>>, vector<1x32x96xbf16>
    %249 = vector.shape_cast %248 : vector<1x32x96xbf16> to vector<32x96xbf16>
    %250 = arith.truncf %247 : vector<16x32xf32> to vector<16x32xbf16>
    %cst_119 = arith.constant dense<0.000000e+00> : vector<16x96xf32>
    %251 = tpu.matmul %250, %249, %cst_119 {dimension_numbers = #tpu.dot_dimension_numbers<[1], [0], [0], [1], [0, 0, 1, 1], [], []>} : vector<16x32xbf16>, vector<32x96xbf16>, vector<16x96xf32> -> vector<16x96xf32>
    %c1_120 = arith.constant 1 : index
    %c0_121 = arith.constant 0 : index
    %c0_122 = arith.constant 0 : index
    %252 = vector.load %arg11[%c1_120, %c0_121, %c0_122] : memref<2x1x96xf32, #tpu.memory_space<vmem>>, vector<1x1x96xf32>
    %253 = vector.shape_cast %252 : vector<1x1x96xf32> to vector<1x96xf32>
    %254 = vector.broadcast %253 : vector<1x96xf32> to vector<16x96xf32>
    %255 = arith.addf %251, %254 : vector<16x96xf32>
    %256 = vector.extract_strided_slice %255 {offsets = [0, 0], sizes = [16, 32], strides = [1, 1]} : vector<16x96xf32> to vector<16x32xf32>
    %257 = vector.extract_strided_slice %255 {offsets = [0, 32], sizes = [16, 32], strides = [1, 1]} : vector<16x96xf32> to vector<16x32xf32>
    %258 = vector.extract_strided_slice %255 {offsets = [0, 64], sizes = [16, 32], strides = [1, 1]} : vector<16x96xf32> to vector<16x32xf32>
    %259 = vector.shape_cast %256 : vector<16x32xf32> to vector<2x8x4x8xf32>
    %260 = tpu.transpose %259, [0, 2, 1, 3] : vector<2x8x4x8xf32> -> vector<2x4x8x8xf32>
    %261 = vector.shape_cast %260 : vector<2x4x8x8xf32> to vector<8x8x8xf32>
    %262 = arith.truncf %261 : vector<8x8x8xf32> to vector<8x8x8xbf16>
    %263 = vector.shape_cast %257 : vector<16x32xf32> to vector<2x8x4x8xf32>
    %264 = tpu.transpose %263, [0, 2, 1, 3] : vector<2x8x4x8xf32> -> vector<2x4x8x8xf32>
    %265 = vector.shape_cast %264 : vector<2x4x8x8xf32> to vector<8x8x8xf32>
    %266 = arith.truncf %265 : vector<8x8x8xf32> to vector<8x8x8xbf16>
    %267 = vector.shape_cast %258 : vector<16x32xf32> to vector<2x8x4x8xf32>
    %268 = tpu.transpose %267, [0, 2, 1, 3] : vector<2x8x4x8xf32> -> vector<2x4x8x8xf32>
    %269 = vector.shape_cast %268 : vector<2x4x8x8xf32> to vector<8x8x8xf32>
    %270 = arith.truncf %269 : vector<8x8x8xf32> to vector<8x8x8xbf16>
    "tpu.trace_start"() <{level = 10 : i32, message = "bqd,bkd->bqk"}> : () -> ()
    %cst_123 = arith.constant dense<0.000000e+00> : vector<8x8x8xf32>
    %271 = tpu.matmul %262, %266, %cst_123 {dimension_numbers = #tpu.dot_dimension_numbers<[2], [2], [1], [1], [0, 0, 0, 1, 1, 1], [0], [0]>} : vector<8x8x8xbf16>, vector<8x8x8xbf16>, vector<8x8x8xf32> -> vector<8x8x8xf32>
    "tpu.trace_stop"() : () -> ()
    %cst_124 = arith.constant 0.353553385 : f32
    %272 = vector.broadcast %cst_124 : f32 to vector<8x8x8xf32>
    %273 = arith.mulf %271, %272 : vector<8x8x8xf32>
    %274 = arith.addf %273, %32 : vector<8x8x8xf32>
    %cst_125 = arith.constant dense<0xFF800000> : vector<8x8xf32>
    %275 = vector.multi_reduction <maximumf>, %274, %cst_125 [2] : vector<8x8x8xf32> to vector<8x8xf32>
    %276 = vector.shape_cast %275 : vector<8x8xf32> to vector<8x8x1xf32>
    %277 = vector.broadcast %276 : vector<8x8x1xf32> to vector<8x8x8xf32>
    %278 = arith.subf %274, %277 : vector<8x8x8xf32>
    %279 = math.exp %278 : vector<8x8x8xf32>
    %cst_126 = arith.constant dense<0.000000e+00> : vector<8x8xf32>
    %280 = vector.multi_reduction <add>, %279, %cst_126 [2] : vector<8x8x8xf32> to vector<8x8xf32>
    %281 = vector.shape_cast %280 : vector<8x8xf32> to vector<8x8x1xf32>
    %282 = vector.broadcast %281 : vector<8x8x1xf32> to vector<8x8x8xf32>
    %283 = arith.divf %279, %282 : vector<8x8x8xf32>
    %284 = arith.truncf %283 : vector<8x8x8xf32> to vector<8x8x8xbf16>
    "tpu.trace_start"() <{level = 10 : i32, message = "bqk,bkd->bqd"}> : () -> ()
    %cst_127 = arith.constant dense<0.000000e+00> : vector<8x8x8xf32>
    %285 = tpu.matmul %284, %270, %cst_127 {dimension_numbers = #tpu.dot_dimension_numbers<[2], [1], [1], [2], [0, 0, 0, 1, 1, 2], [0], [0]>} : vector<8x8x8xbf16>, vector<8x8x8xbf16>, vector<8x8x8xf32> -> vector<8x8x8xf32>
    "tpu.trace_stop"() : () -> ()
    %286 = tpu.transpose %283, [1, 0, 2] : vector<8x8x8xf32> -> vector<8x8x8xf32>
    %287 = vector.shape_cast %286 : vector<8x8x8xf32> to vector<8x64xf32>
    %288 = vector.shape_cast %285 : vector<8x8x8xf32> to vector<2x4x8x8xf32>
    %289 = tpu.transpose %288, [0, 2, 1, 3] : vector<2x4x8x8xf32> -> vector<2x8x4x8xf32>
    %290 = vector.shape_cast %289 : vector<2x8x4x8xf32> to vector<16x32xf32>
    %c1_128 = arith.constant 1 : index
    %c0_129 = arith.constant 0 : index
    %c0_130 = arith.constant 0 : index
    %291 = vector.load %arg12[%c1_128, %c0_129, %c0_130] : memref<2x32x32xbf16, #tpu.memory_space<vmem>>, vector<1x32x32xbf16>
    %292 = vector.shape_cast %291 : vector<1x32x32xbf16> to vector<32x32xbf16>
    %293 = arith.truncf %290 : vector<16x32xf32> to vector<16x32xbf16>
    %cst_131 = arith.constant dense<0.000000e+00> : vector<16x32xf32>
    %294 = tpu.matmul %293, %292, %cst_131 {dimension_numbers = #tpu.dot_dimension_numbers<[1], [0], [0], [1], [0, 0, 1, 1], [], []>} : vector<16x32xbf16>, vector<32x32xbf16>, vector<16x32xf32> -> vector<16x32xf32>
    %c1_132 = arith.constant 1 : index
    %c0_133 = arith.constant 0 : index
    %c0_134 = arith.constant 0 : index
    %295 = vector.load %arg13[%c1_132, %c0_133, %c0_134] : memref<2x1x32xf32, #tpu.memory_space<vmem>>, vector<1x1x32xf32>
    %296 = vector.shape_cast %295 : vector<1x1x32xf32> to vector<1x32xf32>
    %297 = vector.broadcast %296 : vector<1x32xf32> to vector<16x32xf32>
    %298 = arith.addf %294, %297 : vector<16x32xf32>
    %299 = arith.addf %298, %247 : vector<16x32xf32>
    %c1_135 = arith.constant 1 : index
    %c0_136 = arith.constant 0 : index
    %c0_137 = arith.constant 0 : index
    %300 = vector.load %arg14[%c1_135, %c0_136, %c0_137] : memref<2x1x32xf32, #tpu.memory_space<vmem>>, vector<1x1x32xf32>
    %301 = vector.shape_cast %300 : vector<1x1x32xf32> to vector<1x32xf32>
    %c1_138 = arith.constant 1 : index
    %c0_139 = arith.constant 0 : index
    %c0_140 = arith.constant 0 : index
    %302 = vector.load %arg15[%c1_138, %c0_139, %c0_140] : memref<2x1x32xf32, #tpu.memory_space<vmem>>, vector<1x1x32xf32>
    %303 = vector.shape_cast %302 : vector<1x1x32xf32> to vector<1x32xf32>
    %cst_141 = arith.constant dense<0.000000e+00> : vector<16xf32>
    %304 = vector.multi_reduction <add>, %299, %cst_141 [1] : vector<16x32xf32> to vector<16xf32>
    %305 = vector.shape_cast %304 : vector<16xf32> to vector<16x1xf32>
    %cst_142 = arith.constant 3.200000e+01 : f32
    %306 = vector.broadcast %cst_142 : f32 to vector<16x1xf32>
    %307 = arith.divf %305, %306 : vector<16x1xf32>
    %308 = vector.broadcast %307 : vector<16x1xf32> to vector<16x32xf32>
    %309 = arith.subf %299, %308 : vector<16x32xf32>
    %310 = arith.mulf %309, %309 : vector<16x32xf32>
    %cst_143 = arith.constant dense<0.000000e+00> : vector<16xf32>
    %311 = vector.multi_reduction <add>, %310, %cst_143 [1] : vector<16x32xf32> to vector<16xf32>
    %312 = vector.shape_cast %311 : vector<16xf32> to vector<16x1xf32>
    %cst_144 = arith.constant 3.200000e+01 : f32
    %313 = vector.broadcast %cst_144 : f32 to vector<16x1xf32>
    %314 = arith.divf %312, %313 : vector<16x1xf32>
    %315 = vector.broadcast %307 : vector<16x1xf32> to vector<16x32xf32>
    %316 = arith.subf %299, %315 : vector<16x32xf32>
    %cst_145 = arith.constant 9.99999996E-13 : f32
    %317 = vector.broadcast %cst_145 : f32 to vector<16x1xf32>
    %318 = arith.addf %314, %317 : vector<16x1xf32>
    %319 = math.rsqrt %318 : vector<16x1xf32>
    %320 = vector.broadcast %319 : vector<16x1xf32> to vector<16x32xf32>
    %321 = arith.mulf %316, %320 : vector<16x32xf32>
    %322 = vector.broadcast %301 : vector<1x32xf32> to vector<16x32xf32>
    %323 = arith.mulf %321, %322 : vector<16x32xf32>
    %324 = vector.broadcast %303 : vector<1x32xf32> to vector<16x32xf32>
    %325 = arith.addf %323, %324 : vector<16x32xf32>
    %c1_146 = arith.constant 1 : index
    %c0_147 = arith.constant 0 : index
    %c0_148 = arith.constant 0 : index
    %326 = vector.load %arg16[%c1_146, %c0_147, %c0_148] : memref<2x32x32xbf16, #tpu.memory_space<vmem>>, vector<1x32x32xbf16>
    %327 = vector.shape_cast %326 : vector<1x32x32xbf16> to vector<32x32xbf16>
    %328 = arith.truncf %325 : vector<16x32xf32> to vector<16x32xbf16>
    %cst_149 = arith.constant dense<0.000000e+00> : vector<16x32xf32>
    %329 = tpu.matmul %328, %327, %cst_149 {dimension_numbers = #tpu.dot_dimension_numbers<[1], [0], [0], [1], [0, 0, 1, 1], [], []>} : vector<16x32xbf16>, vector<32x32xbf16>, vector<16x32xf32> -> vector<16x32xf32>
    %c1_150 = arith.constant 1 : index
    %c0_151 = arith.constant 0 : index
    %c0_152 = arith.constant 0 : index
    %330 = vector.load %arg17[%c1_150, %c0_151, %c0_152] : memref<2x1x32xf32, #tpu.memory_space<vmem>>, vector<1x1x32xf32>
    %331 = vector.shape_cast %330 : vector<1x1x32xf32> to vector<1x32xf32>
    %332 = vector.broadcast %331 : vector<1x32xf32> to vector<16x32xf32>
    %333 = arith.addf %329, %332 : vector<16x32xf32>
    %c1_153 = arith.constant 1 : index
    %c0_154 = arith.constant 0 : index
    %c0_155 = arith.constant 0 : index
    %334 = vector.load %arg18[%c1_153, %c0_154, %c0_155] : memref<2x32x64xbf16, #tpu.memory_space<vmem>>, vector<1x32x64xbf16>
    %335 = vector.shape_cast %334 : vector<1x32x64xbf16> to vector<32x64xbf16>
    %336 = arith.truncf %31 : vector<32x32xf32> to vector<32x32xbf16>
    %cst_156 = arith.constant dense<0.000000e+00> : vector<32x64xf32>
    %337 = tpu.matmul %336, %335, %cst_156 {dimension_numbers = #tpu.dot_dimension_numbers<[1], [0], [0], [1], [0, 0, 1, 1], [], []>} : vector<32x32xbf16>, vector<32x64xbf16>, vector<32x64xf32> -> vector<32x64xf32>
    %c1_157 = arith.constant 1 : index
    %c0_158 = arith.constant 0 : index
    %c0_159 = arith.constant 0 : index
    %338 = vector.load %arg19[%c1_157, %c0_158, %c0_159] : memref<2x1x64xf32, #tpu.memory_space<vmem>>, vector<1x1x64xf32>
    %339 = vector.shape_cast %338 : vector<1x1x64xf32> to vector<1x64xf32>
    %340 = vector.broadcast %339 : vector<1x64xf32> to vector<32x64xf32>
    %341 = arith.addf %337, %340 : vector<32x64xf32>
    %342 = vector.extract_strided_slice %341 {offsets = [0, 0], sizes = [32, 32], strides = [1, 1]} : vector<32x64xf32> to vector<32x32xf32>
    %343 = vector.extract_strided_slice %341 {offsets = [0, 32], sizes = [32, 32], strides = [1, 1]} : vector<32x64xf32> to vector<32x32xf32>
    %344 = vector.shape_cast %333 : vector<16x32xf32> to vector<2x8x4x8xf32>
    %345 = tpu.transpose %344, [0, 2, 1, 3] : vector<2x8x4x8xf32> -> vector<2x4x8x8xf32>
    %346 = vector.shape_cast %345 : vector<2x4x8x8xf32> to vector<8x8x8xf32>
    %347 = arith.truncf %346 : vector<8x8x8xf32> to vector<8x8x8xbf16>
    %348 = vector.shape_cast %342 : vector<32x32xf32> to vector<2x16x4x8xf32>
    %349 = tpu.transpose %348, [0, 2, 1, 3] : vector<2x16x4x8xf32> -> vector<2x4x16x8xf32>
    %350 = vector.shape_cast %349 : vector<2x4x16x8xf32> to vector<8x16x8xf32>
    %351 = arith.truncf %350 : vector<8x16x8xf32> to vector<8x16x8xbf16>
    %352 = vector.shape_cast %343 : vector<32x32xf32> to vector<2x16x4x8xf32>
    %353 = tpu.transpose %352, [0, 2, 1, 3] : vector<2x16x4x8xf32> -> vector<2x4x16x8xf32>
    %354 = vector.shape_cast %353 : vector<2x4x16x8xf32> to vector<8x16x8xf32>
    %355 = arith.truncf %354 : vector<8x16x8xf32> to vector<8x16x8xbf16>
    "tpu.trace_start"() <{level = 10 : i32, message = "bqd,bkd->bqk"}> : () -> ()
    %cst_160 = arith.constant dense<0.000000e+00> : vector<8x8x16xf32>
    %356 = tpu.matmul %347, %351, %cst_160 {dimension_numbers = #tpu.dot_dimension_numbers<[2], [2], [1], [1], [0, 0, 0, 1, 1, 1], [0], [0]>} : vector<8x8x8xbf16>, vector<8x16x8xbf16>, vector<8x8x16xf32> -> vector<8x8x16xf32>
    "tpu.trace_stop"() : () -> ()
    %cst_161 = arith.constant 0.353553385 : f32
    %357 = vector.broadcast %cst_161 : f32 to vector<8x8x16xf32>
    %358 = arith.mulf %356, %357 : vector<8x8x16xf32>
    %359 = arith.addf %358, %33 : vector<8x8x16xf32>
    %cst_162 = arith.constant dense<0xFF800000> : vector<8x8xf32>
    %360 = vector.multi_reduction <maximumf>, %359, %cst_162 [2] : vector<8x8x16xf32> to vector<8x8xf32>
    %361 = vector.shape_cast %360 : vector<8x8xf32> to vector<8x8x1xf32>
    %362 = vector.broadcast %361 : vector<8x8x1xf32> to vector<8x8x16xf32>
    %363 = arith.subf %359, %362 : vector<8x8x16xf32>
    %364 = math.exp %363 : vector<8x8x16xf32>
    %cst_163 = arith.constant dense<0.000000e+00> : vector<8x8xf32>
    %365 = vector.multi_reduction <add>, %364, %cst_163 [2] : vector<8x8x16xf32> to vector<8x8xf32>
    %366 = vector.shape_cast %365 : vector<8x8xf32> to vector<8x8x1xf32>
    %367 = vector.broadcast %366 : vector<8x8x1xf32> to vector<8x8x16xf32>
    %368 = arith.divf %364, %367 : vector<8x8x16xf32>
    %369 = arith.truncf %368 : vector<8x8x16xf32> to vector<8x8x16xbf16>
    "tpu.trace_start"() <{level = 10 : i32, message = "bqk,bkd->bqd"}> : () -> ()
    %cst_164 = arith.constant dense<0.000000e+00> : vector<8x8x8xf32>
    %370 = tpu.matmul %369, %355, %cst_164 {dimension_numbers = #tpu.dot_dimension_numbers<[2], [1], [1], [2], [0, 0, 0, 1, 1, 2], [0], [0]>} : vector<8x8x16xbf16>, vector<8x16x8xbf16>, vector<8x8x8xf32> -> vector<8x8x8xf32>
    "tpu.trace_stop"() : () -> ()
    %371 = tpu.transpose %368, [1, 0, 2] : vector<8x8x16xf32> -> vector<8x8x16xf32>
    %372 = vector.shape_cast %371 : vector<8x8x16xf32> to vector<8x128xf32>
    %373 = vector.shape_cast %370 : vector<8x8x8xf32> to vector<2x4x8x8xf32>
    %374 = tpu.transpose %373, [0, 2, 1, 3] : vector<2x4x8x8xf32> -> vector<2x8x4x8xf32>
    %375 = vector.shape_cast %374 : vector<2x8x4x8xf32> to vector<16x32xf32>
    %c1_165 = arith.constant 1 : index
    %c0_166 = arith.constant 0 : index
    %c0_167 = arith.constant 0 : index
    %376 = vector.load %arg20[%c1_165, %c0_166, %c0_167] : memref<2x32x32xbf16, #tpu.memory_space<vmem>>, vector<1x32x32xbf16>
    %377 = vector.shape_cast %376 : vector<1x32x32xbf16> to vector<32x32xbf16>
    %378 = arith.truncf %375 : vector<16x32xf32> to vector<16x32xbf16>
    %cst_168 = arith.constant dense<0.000000e+00> : vector<16x32xf32>
    %379 = tpu.matmul %378, %377, %cst_168 {dimension_numbers = #tpu.dot_dimension_numbers<[1], [0], [0], [1], [0, 0, 1, 1], [], []>} : vector<16x32xbf16>, vector<32x32xbf16>, vector<16x32xf32> -> vector<16x32xf32>
    %c1_169 = arith.constant 1 : index
    %c0_170 = arith.constant 0 : index
    %c0_171 = arith.constant 0 : index
    %380 = vector.load %arg21[%c1_169, %c0_170, %c0_171] : memref<2x1x32xf32, #tpu.memory_space<vmem>>, vector<1x1x32xf32>
    %381 = vector.shape_cast %380 : vector<1x1x32xf32> to vector<1x32xf32>
    %382 = vector.broadcast %381 : vector<1x32xf32> to vector<16x32xf32>
    %383 = arith.addf %379, %382 : vector<16x32xf32>
    %384 = arith.addf %383, %325 : vector<16x32xf32>
    %c1_172 = arith.constant 1 : index
    %c0_173 = arith.constant 0 : index
    %c0_174 = arith.constant 0 : index
    %385 = vector.load %arg22[%c1_172, %c0_173, %c0_174] : memref<2x1x32xf32, #tpu.memory_space<vmem>>, vector<1x1x32xf32>
    %386 = vector.shape_cast %385 : vector<1x1x32xf32> to vector<1x32xf32>
    %c1_175 = arith.constant 1 : index
    %c0_176 = arith.constant 0 : index
    %c0_177 = arith.constant 0 : index
    %387 = vector.load %arg23[%c1_175, %c0_176, %c0_177] : memref<2x1x32xf32, #tpu.memory_space<vmem>>, vector<1x1x32xf32>
    %388 = vector.shape_cast %387 : vector<1x1x32xf32> to vector<1x32xf32>
    %cst_178 = arith.constant dense<0.000000e+00> : vector<16xf32>
    %389 = vector.multi_reduction <add>, %384, %cst_178 [1] : vector<16x32xf32> to vector<16xf32>
    %390 = vector.shape_cast %389 : vector<16xf32> to vector<16x1xf32>
    %cst_179 = arith.constant 3.200000e+01 : f32
    %391 = vector.broadcast %cst_179 : f32 to vector<16x1xf32>
    %392 = arith.divf %390, %391 : vector<16x1xf32>
    %393 = vector.broadcast %392 : vector<16x1xf32> to vector<16x32xf32>
    %394 = arith.subf %384, %393 : vector<16x32xf32>
    %395 = arith.mulf %394, %394 : vector<16x32xf32>
    %cst_180 = arith.constant dense<0.000000e+00> : vector<16xf32>
    %396 = vector.multi_reduction <add>, %395, %cst_180 [1] : vector<16x32xf32> to vector<16xf32>
    %397 = vector.shape_cast %396 : vector<16xf32> to vector<16x1xf32>
    %cst_181 = arith.constant 3.200000e+01 : f32
    %398 = vector.broadcast %cst_181 : f32 to vector<16x1xf32>
    %399 = arith.divf %397, %398 : vector<16x1xf32>
    %400 = vector.broadcast %392 : vector<16x1xf32> to vector<16x32xf32>
    %401 = arith.subf %384, %400 : vector<16x32xf32>
    %cst_182 = arith.constant 9.99999996E-13 : f32
    %402 = vector.broadcast %cst_182 : f32 to vector<16x1xf32>
    %403 = arith.addf %399, %402 : vector<16x1xf32>
    %404 = math.rsqrt %403 : vector<16x1xf32>
    %405 = vector.broadcast %404 : vector<16x1xf32> to vector<16x32xf32>
    %406 = arith.mulf %401, %405 : vector<16x32xf32>
    %407 = vector.broadcast %386 : vector<1x32xf32> to vector<16x32xf32>
    %408 = arith.mulf %406, %407 : vector<16x32xf32>
    %409 = vector.broadcast %388 : vector<1x32xf32> to vector<16x32xf32>
    %410 = arith.addf %408, %409 : vector<16x32xf32>
    %c1_183 = arith.constant 1 : index
    %c0_184 = arith.constant 0 : index
    %c0_185 = arith.constant 0 : index
    %411 = vector.load %arg24[%c1_183, %c0_184, %c0_185] : memref<2x32x128xbf16, #tpu.memory_space<vmem>>, vector<1x32x128xbf16>
    %412 = vector.shape_cast %411 : vector<1x32x128xbf16> to vector<32x128xbf16>
    %413 = arith.truncf %410 : vector<16x32xf32> to vector<16x32xbf16>
    %cst_186 = arith.constant dense<0.000000e+00> : vector<16x128xf32>
    %414 = tpu.matmul %413, %412, %cst_186 {dimension_numbers = #tpu.dot_dimension_numbers<[1], [0], [0], [1], [0, 0, 1, 1], [], []>} : vector<16x32xbf16>, vector<32x128xbf16>, vector<16x128xf32> -> vector<16x128xf32>
    %c1_187 = arith.constant 1 : index
    %c0_188 = arith.constant 0 : index
    %c0_189 = arith.constant 0 : index
    %415 = vector.load %arg25[%c1_187, %c0_188, %c0_189] : memref<2x1x128xf32, #tpu.memory_space<vmem>>, vector<1x1x128xf32>
    %416 = vector.shape_cast %415 : vector<1x1x128xf32> to vector<1x128xf32>
    %417 = vector.broadcast %416 : vector<1x128xf32> to vector<16x128xf32>
    %418 = arith.addf %414, %417 : vector<16x128xf32>
    %cst_190 = arith.constant 5.000000e-01 : f32
    %419 = vector.broadcast %cst_190 : f32 to vector<16x128xf32>
    %420 = arith.mulf %419, %418 : vector<16x128xf32>
    %cst_191 = arith.constant 0.707106769 : f32
    %421 = vector.broadcast %cst_191 : f32 to vector<16x128xf32>
    %422 = arith.mulf %418, %421 : vector<16x128xf32>
    %423 = math.erf %422 : vector<16x128xf32>
    %cst_192 = arith.constant 1.000000e+00 : f32
    %424 = vector.broadcast %cst_192 : f32 to vector<16x128xf32>
    %425 = arith.addf %424, %423 : vector<16x128xf32>
    %426 = arith.mulf %420, %425 : vector<16x128xf32>
    %c1_193 = arith.constant 1 : index
    %c0_194 = arith.constant 0 : index
    %c0_195 = arith.constant 0 : index
    %427 = vector.load %arg26[%c1_193, %c0_194, %c0_195] : memref<2x128x32xbf16, #tpu.memory_space<vmem>>, vector<1x128x32xbf16>
    %428 = vector.shape_cast %427 : vector<1x128x32xbf16> to vector<128x32xbf16>
    %429 = arith.truncf %426 : vector<16x128xf32> to vector<16x128xbf16>
    %cst_196 = arith.constant dense<0.000000e+00> : vector<16x32xf32>
    %430 = tpu.matmul %429, %428, %cst_196 {dimension_numbers = #tpu.dot_dimension_numbers<[1], [0], [0], [1], [0, 0, 1, 1], [], []>} : vector<16x128xbf16>, vector<128x32xbf16>, vector<16x32xf32> -> vector<16x32xf32>
    %c1_197 = arith.constant 1 : index
    %c0_198 = arith.constant 0 : index
    %c0_199 = arith.constant 0 : index
    %431 = vector.load %arg27[%c1_197, %c0_198, %c0_199] : memref<2x1x32xf32, #tpu.memory_space<vmem>>, vector<1x1x32xf32>
    %432 = vector.shape_cast %431 : vector<1x1x32xf32> to vector<1x32xf32>
    %433 = vector.broadcast %432 : vector<1x32xf32> to vector<16x32xf32>
    %434 = arith.addf %430, %433 : vector<16x32xf32>
    %435 = arith.addf %434, %410 : vector<16x32xf32>
    %c1_200 = arith.constant 1 : index
    %c0_201 = arith.constant 0 : index
    %c0_202 = arith.constant 0 : index
    %436 = vector.load %arg28[%c1_200, %c0_201, %c0_202] : memref<2x1x32xf32, #tpu.memory_space<vmem>>, vector<1x1x32xf32>
    %437 = vector.shape_cast %436 : vector<1x1x32xf32> to vector<1x32xf32>
    %c1_203 = arith.constant 1 : index
    %c0_204 = arith.constant 0 : index
    %c0_205 = arith.constant 0 : index
    %438 = vector.load %arg29[%c1_203, %c0_204, %c0_205] : memref<2x1x32xf32, #tpu.memory_space<vmem>>, vector<1x1x32xf32>
    %439 = vector.shape_cast %438 : vector<1x1x32xf32> to vector<1x32xf32>
    %cst_206 = arith.constant dense<0.000000e+00> : vector<16xf32>
    %440 = vector.multi_reduction <add>, %435, %cst_206 [1] : vector<16x32xf32> to vector<16xf32>
    %441 = vector.shape_cast %440 : vector<16xf32> to vector<16x1xf32>
    %cst_207 = arith.constant 3.200000e+01 : f32
    %442 = vector.broadcast %cst_207 : f32 to vector<16x1xf32>
    %443 = arith.divf %441, %442 : vector<16x1xf32>
    %444 = vector.broadcast %443 : vector<16x1xf32> to vector<16x32xf32>
    %445 = arith.subf %435, %444 : vector<16x32xf32>
    %446 = arith.mulf %445, %445 : vector<16x32xf32>
    %cst_208 = arith.constant dense<0.000000e+00> : vector<16xf32>
    %447 = vector.multi_reduction <add>, %446, %cst_208 [1] : vector<16x32xf32> to vector<16xf32>
    %448 = vector.shape_cast %447 : vector<16xf32> to vector<16x1xf32>
    %cst_209 = arith.constant 3.200000e+01 : f32
    %449 = vector.broadcast %cst_209 : f32 to vector<16x1xf32>
    %450 = arith.divf %448, %449 : vector<16x1xf32>
    %451 = vector.broadcast %443 : vector<16x1xf32> to vector<16x32xf32>
    %452 = arith.subf %435, %451 : vector<16x32xf32>
    %cst_210 = arith.constant 9.99999996E-13 : f32
    %453 = vector.broadcast %cst_210 : f32 to vector<16x1xf32>
    %454 = arith.addf %450, %453 : vector<16x1xf32>
    %455 = math.rsqrt %454 : vector<16x1xf32>
    %456 = vector.broadcast %455 : vector<16x1xf32> to vector<16x32xf32>
    %457 = arith.mulf %452, %456 : vector<16x32xf32>
    %458 = vector.broadcast %437 : vector<1x32xf32> to vector<16x32xf32>
    %459 = arith.mulf %457, %458 : vector<16x32xf32>
    %460 = vector.broadcast %439 : vector<1x32xf32> to vector<16x32xf32>
    %461 = arith.addf %459, %460 : vector<16x32xf32>
    %c0_211 = arith.constant 0 : index
    %c0_212 = arith.constant 0 : index
    %462 = vector.load %arg8[%c0_211, %c0_212] : memref<32x128xbf16, #tpu.memory_space<vmem>>, vector<32x128xbf16>
    %463 = arith.truncf %461 : vector<16x32xf32> to vector<16x32xbf16>
    %cst_213 = arith.constant dense<0.000000e+00> : vector<16x128xf32>
    %464 = tpu.matmul %463, %462, %cst_213 {dimension_numbers = #tpu.dot_dimension_numbers<[1], [0], [0], [1], [0, 0, 1, 1], [], []>} : vector<16x32xbf16>, vector<32x128xbf16>, vector<16x128xf32> -> vector<16x128xf32>
    %c0_214 = arith.constant 0 : index
    %c0_215 = arith.constant 0 : index
    %465 = vector.load %arg9[%c0_214, %c0_215] : memref<1x128xf32, #tpu.memory_space<vmem>>, vector<1x128xf32>
    %466 = vector.broadcast %465 : vector<1x128xf32> to vector<16x128xf32>
    %467 = arith.addf %464, %466 : vector<16x128xf32>
    %c0_216 = arith.constant 0 : index
    %c0_217 = arith.constant 0 : index
    %468 = vector.load %arg30[%c0_216, %c0_217] : memref<16x128xf32, #tpu.memory_space<vmem>>, vector<16x128xf32>
    tpu.vector_store %arg30[%c0_216, %c0_217], %467 {strides = array<i32>} : memref<16x128xf32, #tpu.memory_space<vmem>>, vector<16x128xf32>,
    %469 = tpu.concatenate %73, %287 in 1 : vector<8x64xf32>, vector<8x64xf32> -> vector<8x128xf32>
    %c0_218 = arith.constant 0 : index
    %c0_219 = arith.constant 0 : index
    %470 = vector.load %arg31[%c0_218, %c0_219] : memref<8x128xf32, #tpu.memory_space<vmem>>, vector<8x128xf32>
    tpu.vector_store %arg31[%c0_218, %c0_219], %469 {strides = array<i32>} : memref<8x128xf32, #tpu.memory_space<vmem>>, vector<8x128xf32>,
    %471 = tpu.concatenate %158, %372 in 1 : vector<8x128xf32>, vector<8x128xf32> -> vector<8x256xf32>
    %c0_220 = arith.constant 0 : index
    %c0_221 = arith.constant 0 : index
    %472 = vector.load %arg32[%c0_220, %c0_221] : memref<8x256xf32, #tpu.memory_space<vmem>>, vector<8x256xf32>
    tpu.vector_store %arg32[%c0_220, %c0_221], %471 {strides = array<i32>} : memref<8x256xf32, #tpu.memory_space<vmem>>, vector<8x256xf32>,
    return
  }
}

</mosaic_0001>

<llo_original>
// kernel: bert_decoder_forward.1
$region0: #{bert_decoder_forward.1}
  #allocation0 [shape = 'u32[]', space=smem, size = 0x4, offset = 0x4, fixed_abs, tag = 'smem constant byte address 0x4 - core index']
  #allocation1 [shape = 'u32[144,128]{1,0:T(1,128)}', space=vmem, size = 0x12000, scoped, tag = 'internal scratch']
  %s0 = inlined_call_operand.smem [shape: u32[33], index: -1, kind: input, shape index: {}]
  %s1 = sld [smem:[%s0]]
  %s2 = scalar_lea.smem %s0, 1
  %s3 = sld [smem:[%s2]]
  %s4 = scalar_lea.smem %s0, 2
  %s5 = sld [smem:[%s4]]
  %s6 = scalar_lea.smem %s0, 3
  %s7 = sld [smem:[%s6]]
  %s8 = scalar_lea.smem %s0, 4
  %s9 = sld [smem:[%s8]]
  %s10 = scalar_lea.smem %s0, 5
  %s11 = sld [smem:[%s10]]
  %s12 = scalar_lea.smem %s0, 6
  %s13 = sld [smem:[%s12]]
  %s14 = scalar_lea.smem %s0, 7
  %s15 = sld [smem:[%s14]]
  %s16 = scalar_lea.smem %s0, 8
  %s17 = sld [smem:[%s16]]
  %s18 = scalar_lea.smem %s0, 9
  %s19 = sld [smem:[%s18]]
  %s20 = scalar_lea.smem %s0, 10
  %s21 = sld [smem:[%s20]]
  %s22 = scalar_lea.smem %s0, 11
  %s23 = sld [smem:[%s22]]
  %s24 = scalar_lea.smem %s0, 12
  %s25 = sld [smem:[%s24]]
  %s26 = scalar_lea.smem %s0, 13
  %s27 = sld [smem:[%s26]]
  %s28 = scalar_lea.smem %s0, 14
  %s29 = sld [smem:[%s28]]
  %s30 = scalar_lea.smem %s0, 15
  %s31 = sld [smem:[%s30]]
  %s32 = scalar_lea.smem %s0, 16
  %s33 = sld [smem:[%s32]]
  %s34 = scalar_lea.smem %s0, 17
  %s35 = sld [smem:[%s34]]
  %s36 = scalar_lea.smem %s0, 18
  %s37 = sld [smem:[%s36]]
  %s38 = scalar_lea.smem %s0, 19
  %s39 = sld [smem:[%s38]]
  %s40 = scalar_lea.smem %s0, 20
  %s41 = sld [smem:[%s40]]
  %s42 = scalar_lea.smem %s0, 21
  %s43 = sld [smem:[%s42]]
  %s44 = scalar_lea.smem %s0, 22
  %s45 = sld [smem:[%s44]]
  %s46 = scalar_lea.smem %s0, 23
  %s47 = sld [smem:[%s46]]
  %s48 = scalar_lea.smem %s0, 24
  %s49 = sld [smem:[%s48]]
  %s50 = scalar_lea.smem %s0, 25
  %s51 = sld [smem:[%s50]]
  %s52 = scalar_lea.smem %s0, 26
  %s53 = sld [smem:[%s52]]
  %s54 = scalar_lea.smem %s0, 27
  %s55 = sld [smem:[%s54]]
  %s56 = scalar_lea.smem %s0, 28
  %s57 = sld [smem:[%s56]]
  %s58 = scalar_lea.smem %s0, 29
  %s59 = sld [smem:[%s58]]
  %s60 = scalar_lea.smem %s0, 30
  %s61 = sld [smem:[%s60]]
  %s62 = scalar_lea.smem %s0, 31
  %s63 = sld [smem:[%s62]]
  %s64 = scalar_lea.smem %s0, 32
  %s65 = sld [smem:[%s64]]
  %66 = xla_tuple %s61, %s63, %s65
  %s67 = sld [smem:[#allocation0]]
  $region146: #{bert_decoder_forward.1} parent=0
    _
  %s69 = ssub.s32 1, %s67
  %s70 = scalar_select 0, %s69, %s67
  $region1: #{bert_decoder_forward.1} parent=0
    #allocation2 [shape = 'u8[8192]{0}', space=vmem, size = 0x2000, scoped, tag = 'output window, operand 0, single buffered']
    #allocation3 [shape = 's32[1]{0}', space=sflag, size = 0x4, scoped, tag = 'scoped memory for bert_decoder_forward.1']
    %71 = vsyncpa [#allocation3], 0
    // Predicated region
    $region2: #{bert_decoder_forward.1} parent=1 // pred_check
      _
    $region3: #{bert_decoder_forward.1} parent=1 // pred_check_branch
      %73 = sbr.rel (0) target = $region5
    $region4: #{bert_decoder_forward.1} parent=1 // pred_region
      _
    $region5: #{bert_decoder_forward.1} parent=1 // pred_fallthru
      _
    // Predicated region
    $region6: #{bert_decoder_forward.1} parent=1 // pred_check
      _
    $region7: #{bert_decoder_forward.1} parent=1 // pred_check_branch
      %75 = sbr.rel (0) target = $region9
    $region8: #{bert_decoder_forward.1} parent=1 // pred_region
      _
    $region9: #{bert_decoder_forward.1} parent=1 // pred_fallthru
      _
    // Predicated region
    $region10: #{bert_decoder_forward.1} parent=1 // pred_check
      _
    $region11: #{bert_decoder_forward.1} parent=1 // pred_check_branch
      %77 = sbr.rel (0) target = $region13
    $region12: #{bert_decoder_forward.1} parent=1 // pred_region
      _
    $region13: #{bert_decoder_forward.1} parent=1 // pred_fallthru
      _
    // Predicated region
    $region14: #{bert_decoder_forward.1} parent=1 // pred_check
      _
    $region15: #{bert_decoder_forward.1} parent=1 // pred_check_branch
      %79 = sbr.rel (0) target = $region17
    $region16: #{bert_decoder_forward.1} parent=1 // pred_region
      _
    $region17: #{bert_decoder_forward.1} parent=1 // pred_fallthru
      _
    // Predicated region
    $region18: #{bert_decoder_forward.1} parent=1 // pred_check
      _
    $region19: #{bert_decoder_forward.1} parent=1 // pred_check_branch
      %81 = sbr.rel (0) target = $region21
    $region20: #{bert_decoder_forward.1} parent=1 // pred_region
      _
    $region21: #{bert_decoder_forward.1} parent=1 // pred_fallthru
      _
    // Predicated region
    $region22: #{bert_decoder_forward.1} parent=1 // pred_check
      _
    $region23: #{bert_decoder_forward.1} parent=1 // pred_check_branch
      %83 = sbr.rel (0) target = $region25
    $region24: #{bert_decoder_forward.1} parent=1 // pred_region
      _
    $region25: #{bert_decoder_forward.1} parent=1 // pred_fallthru
      _
    // Predicated region
    $region26: #{bert_decoder_forward.1} parent=1 // pred_check
      _
    $region27: #{bert_decoder_forward.1} parent=1 // pred_check_branch
      %85 = sbr.rel (0) target = $region29
    $region28: #{bert_decoder_forward.1} parent=1 // pred_region
      _
    $region29: #{bert_decoder_forward.1} parent=1 // pred_fallthru
      _
    // Predicated region
    $region30: #{bert_decoder_forward.1} parent=1 // pred_check
      _
    $region31: #{bert_decoder_forward.1} parent=1 // pred_check_branch
      %87 = sbr.rel (0) target = $region33
    $region32: #{bert_decoder_forward.1} parent=1 // pred_region
      _
    $region33: #{bert_decoder_forward.1} parent=1 // pred_fallthru
      _
    // Predicated region
    $region34: #{bert_decoder_forward.1} parent=1 // pred_check
      _
    $region35: #{bert_decoder_forward.1} parent=1 // pred_check_branch
      %89 = sbr.rel (0) target = $region37
    $region36: #{bert_decoder_forward.1} parent=1 // pred_region
      _
    $region37: #{bert_decoder_forward.1} parent=1 // pred_fallthru
      _
    // Predicated region
    $region38: #{bert_decoder_forward.1} parent=1 // pred_check
      _
    $region39: #{bert_decoder_forward.1} parent=1 // pred_check_branch
      %91 = sbr.rel (0) target = $region41
    $region40: #{bert_decoder_forward.1} parent=1 // pred_region
      _
    $region41: #{bert_decoder_forward.1} parent=1 // pred_fallthru
      _
    // Predicated region
    $region42: #{bert_decoder_forward.1} parent=1 // pred_check
      _
    $region43: #{bert_decoder_forward.1} parent=1 // pred_check_branch
      %93 = sbr.rel (0) target = $region45
    $region44: #{bert_decoder_forward.1} parent=1 // pred_region
      _
    $region45: #{bert_decoder_forward.1} parent=1 // pred_fallthru
      _
    // Predicated region
    $region46: #{bert_decoder_forward.1} parent=1 // pred_check
      _
    $region47: #{bert_decoder_forward.1} parent=1 // pred_check_branch
      %95 = sbr.rel (0) target = $region49
    $region48: #{bert_decoder_forward.1} parent=1 // pred_region
      _
    $region49: #{bert_decoder_forward.1} parent=1 // pred_fallthru
      _
    // Predicated region
    $region50: #{bert_decoder_forward.1} parent=1 // pred_check
      _
    $region51: #{bert_decoder_forward.1} parent=1 // pred_check_branch
      %97 = sbr.rel (0) target = $region53
    $region52: #{bert_decoder_forward.1} parent=1 // pred_region
      _
    $region53: #{bert_decoder_forward.1} parent=1 // pred_fallthru
      _
    // Predicated region
    $region54: #{bert_decoder_forward.1} parent=1 // pred_check
      _
    $region55: #{bert_decoder_forward.1} parent=1 // pred_check_branch
      %99 = sbr.rel (0) target = $region57
    $region56: #{bert_decoder_forward.1} parent=1 // pred_region
      _
    $region57: #{bert_decoder_forward.1} parent=1 // pred_fallthru
      _
    // Predicated region
    $region58: #{bert_decoder_forward.1} parent=1 // pred_check
      _
    $region59: #{bert_decoder_forward.1} parent=1 // pred_check_branch
      %101 = sbr.rel (0) target = $region61
    $region60: #{bert_decoder_forward.1} parent=1 // pred_region
      _
    $region61: #{bert_decoder_forward.1} parent=1 // pred_fallthru
      _
    // Predicated region
    $region62: #{bert_decoder_forward.1} parent=1 // pred_check
      _
    $region63: #{bert_decoder_forward.1} parent=1 // pred_check_branch
      %103 = sbr.rel (0) target = $region65
    $region64: #{bert_decoder_forward.1} parent=1 // pred_region
      _
    $region65: #{bert_decoder_forward.1} parent=1 // pred_fallthru
      _
    // Predicated region
    $region66: #{bert_decoder_forward.1} parent=1 // pred_check
      _
    $region67: #{bert_decoder_forward.1} parent=1 // pred_check_branch
      %105 = sbr.rel (0) target = $region69
    $region68: #{bert_decoder_forward.1} parent=1 // pred_region
      _
    $region69: #{bert_decoder_forward.1} parent=1 // pred_fallthru
      _
    // Predicated region
    $region70: #{bert_decoder_forward.1} parent=1 // pred_check
      _
    $region71: #{bert_decoder_forward.1} parent=1 // pred_check_branch
      %107 = sbr.rel (0) target = $region73
    $region72: #{bert_decoder_forward.1} parent=1 // pred_region
      _
    $region73: #{bert_decoder_forward.1} parent=1 // pred_fallthru
      _
    // Predicated region
    $region74: #{bert_decoder_forward.1} parent=1 // pred_check
      _
    $region75: #{bert_decoder_forward.1} parent=1 // pred_check_branch
      %109 = sbr.rel (0) target = $region77
    $region76: #{bert_decoder_forward.1} parent=1 // pred_region
      _
    $region77: #{bert_decoder_forward.1} parent=1 // pred_fallthru
      _
    // Predicated region
    $region78: #{bert_decoder_forward.1} parent=1 // pred_check
      _
    $region79: #{bert_decoder_forward.1} parent=1 // pred_check_branch
      %111 = sbr.rel (0) target = $region81
    $region80: #{bert_decoder_forward.1} parent=1 // pred_region
      _
    $region81: #{bert_decoder_forward.1} parent=1 // pred_fallthru
      _
    // Predicated region
    $region82: #{bert_decoder_forward.1} parent=1 // pred_check
      _
    $region83: #{bert_decoder_forward.1} parent=1 // pred_check_branch
      %113 = sbr.rel (0) target = $region85
    $region84: #{bert_decoder_forward.1} parent=1 // pred_region
      _
    $region85: #{bert_decoder_forward.1} parent=1 // pred_fallthru
      _
    // Predicated region
    $region86: #{bert_decoder_forward.1} parent=1 // pred_check
      _
    $region87: #{bert_decoder_forward.1} parent=1 // pred_check_branch
      %115 = sbr.rel (0) target = $region89
    $region88: #{bert_decoder_forward.1} parent=1 // pred_region
      _
    $region89: #{bert_decoder_forward.1} parent=1 // pred_fallthru
      _
    // Predicated region
    $region90: #{bert_decoder_forward.1} parent=1 // pred_check
      _
    $region91: #{bert_decoder_forward.1} parent=1 // pred_check_branch
      %117 = sbr.rel (0) target = $region93
    $region92: #{bert_decoder_forward.1} parent=1 // pred_region
      _
    $region93: #{bert_decoder_forward.1} parent=1 // pred_fallthru
      _
    // Predicated region
    $region94: #{bert_decoder_forward.1} parent=1 // pred_check
      _
    $region95: #{bert_decoder_forward.1} parent=1 // pred_check_branch
      %119 = sbr.rel (0) target = $region97
    $region96: #{bert_decoder_forward.1} parent=1 // pred_region
      _
    $region97: #{bert_decoder_forward.1} parent=1 // pred_fallthru
      _
    // Predicated region
    $region98: #{bert_decoder_forward.1} parent=1 // pred_check
      _
    $region99: #{bert_decoder_forward.1} parent=1 // pred_check_branch
      %121 = sbr.rel (0) target = $region101
    $region100: #{bert_decoder_forward.1} parent=1 // pred_region
      _
    $region101: #{bert_decoder_forward.1} parent=1 // pred_fallthru
      _
    // Predicated region
    $region102: #{bert_decoder_forward.1} parent=1 // pred_check
      _
    $region103: #{bert_decoder_forward.1} parent=1 // pred_check_branch
      %123 = sbr.rel (0) target = $region105
    $region104: #{bert_decoder_forward.1} parent=1 // pred_region
      _
    $region105: #{bert_decoder_forward.1} parent=1 // pred_fallthru
      _
    // Predicated region
    $region106: #{bert_decoder_forward.1} parent=1 // pred_check
      _
    $region107: #{bert_decoder_forward.1} parent=1 // pred_check_branch
      %125 = sbr.rel (0) target = $region109
    $region108: #{bert_decoder_forward.1} parent=1 // pred_region
      _
    $region109: #{bert_decoder_forward.1} parent=1 // pred_fallthru
      _
    // Predicated region
    $region110: #{bert_decoder_forward.1} parent=1 // pred_check
      _
    $region111: #{bert_decoder_forward.1} parent=1 // pred_check_branch
      %127 = sbr.rel (0) target = $region113
    $region112: #{bert_decoder_forward.1} parent=1 // pred_region
      _
    $region113: #{bert_decoder_forward.1} parent=1 // pred_fallthru
      _
    // Predicated region
    $region114: #{bert_decoder_forward.1} parent=1 // pred_check
      _
    $region115: #{bert_decoder_forward.1} parent=1 // pred_check_branch
      %129 = sbr.rel (0) target = $region117
    $region116: #{bert_decoder_forward.1} parent=1 // pred_region
      _
    $region117: #{bert_decoder_forward.1} parent=1 // pred_fallthru
      _
    // Predicated region
    $region118: #{bert_decoder_forward.1} parent=1 // pred_check
      _
    $region119: #{bert_decoder_forward.1} parent=1 // pred_check_branch
      %131 = sbr.rel (0) target = $region121
    $region120: #{bert_decoder_forward.1} parent=1 // pred_region
      _
    $region121: #{bert_decoder_forward.1} parent=1 // pred_fallthru
      _
    %v133 = vld [vmem:[%s1] sm:$0xff]
    %v134 = vld [vmem:[%s1 + $0x8] sm:$0xff]
    %v135 = vld [vmem:[%s3] sm:$0x1]
    %v136 = vld [vmem:[%s5] sm:$0x1]
    %vm137 = vcmask 261120
    %v138 = vsel %vm137, %v133, 0.0
    %139 = vadd.xlane.f32.xlu0 %v138
    %v140 = vpop.xlane.xlu0 %139
    %v141 = vsel %vm137, %v134, 0.0
    %142 = vadd.xlane.f32.xlu0 %v141
    %v143 = vpop.xlane.xlu0 %142
    %v144 = vrcp.pop 32.0
    %v145 = vmul.f32 %v140, %v144
    %v146 = vmul.f32 %v143, %v144
    %v147 = vsub.f32 %v133, %v145
    %v148 = vsub.f32 %v134, %v146
    %v149 = vmul.f32 %v147, %v147
    %v150 = vmul.f32 %v148, %v148
    %v151 = vsel %vm137, %v149, 0.0
    %152 = vadd.xlane.f32.xlu0 %v151
    %v153 = vpop.xlane.xlu0 %152
    %v154 = vsel %vm137, %v150, 0.0
    %155 = vadd.xlane.f32.xlu0 %v154
    %v156 = vpop.xlane.xlu0 %155
    %v157 = vmul.f32 %v153, %v144
    %v158 = vmul.f32 %v156, %v144
    %v159 = vadd.f32 %v157, 1e-12
    %v160 = vadd.f32 %v158, 1e-12
    %v161 = vrsqrt.pop %v159
    %v162 = vrsqrt.pop %v160
    %v163 = vmul.f32 %v147, %v161
    %v164 = vmul.f32 %v148, %v162
    %v166 = vlaneseq
    %v167 = vshrl.u32 %v166, 7
    %v168 = vsub.s32 0, %v167
    %v169 = vrot.slane %v135, %v168
    %v171 = vmul.f32 %v163, %v169
    %v172 = vmul.f32 %v164, %v169
    %v174 = vlaneseq
    %v175 = vshrl.u32 %v174, 7
    %v176 = vsub.s32 0, %v175
    %v177 = vrot.slane %v136, %v176
    %v179 = vadd.f32 %v171, %v177
    %v180 = vadd.f32 %v172, %v177
    %v181 = vld [vmem:[%s7] sm:$0xff]
    %v182 = vld [vmem:[%s7 + $0x8] sm:$0xff]
    %v183 = vld [vmem:[%s7 + $0x10] sm:$0xff]
    %v184 = vld [vmem:[%s7 + $0x18] sm:$0xff]
    %v185 = vld [vmem:[%s9] sm:$0xf]
    %v186 = vld [vmem:[%s9 + $0x4] sm:$0xf]
    %v187 = vld [vmem:[%s9 + $0x8] sm:$0xf]
    %v188 = vld [vmem:[%s9 + $0xc] sm:$0xf]
    %v189 = vld [vmem:[%s9 + $0x10] sm:$0xf]
    %v190 = vld [vmem:[%s9 + $0x14] sm:$0xf]
    %v191 = vld [vmem:[%s9 + $0x18] sm:$0xf]
    %v192 = vld [vmem:[%s9 + $0x1c] sm:$0xf]
    %v193 = vpack.c.bf16 %v182, %v181
    %v194 = vpack.c.bf16 %v184, %v183
    %v195 = vld [vmem:[%s11] sm:$0x1]
    %v197 = vlaneseq
    %v198 = vshrl.u32 %v197, 7
    %v199 = vsub.s32 0, %v198
    %v200 = vrot.slane %v195, %v199
    %v210 = vunpack.c.l.b16 %v185
    %v211 = vunpack.c.l.b16 %v186
    %v212 = vunpack.c.l.b16 %v187
    %v213 = vunpack.c.l.b16 %v188
    %v214 = vunpack.c.l.b16 %v189
    %v215 = vunpack.c.l.b16 %v190
    %v216 = vunpack.c.l.b16 %v191
    %v217 = vunpack.c.l.b16 %v192
    %v218 = vpack.c.b16 %v211, %v210
    %v219 = vpack.c.b16 %v213, %v212
    %v220 = vpack.c.b16 %v215, %v214
    %v221 = vpack.c.b16 %v217, %v216
    %vm226 = vcmask 523264
    %v228 = vsel %vm226, %v193, 0
    %v231 = vsel %vm226, %v194, 0
    %233 = vmatprep.subr.bf16.mxu0 0
    %234 = vmatpush1.bf16.msra.mxu0 %v218
    %235 = vmatprep.subr.bf16.mxu0 0
    %236 = vmatpush1.bf16.msra.mxu0 %v219
    %237 = vmatprep.subr.bf16.mxu0 0
    %238 = vmatpush1.bf16.msra.mxu0 %v220
    %239 = vmatprep.subr.bf16.mxu0 0
    %240 = vmatpush1.bf16.msra.mxu0 %v221
    %241 = vmatprep.subr.bf16.mxu0 0
    %242 = vmatpush1.bf16.msra.mxu0 0
    %243 = vmatprep.subr.bf16.mxu0 0
    %244 = vmatpush1.bf16.msra.mxu0 0
    %245 = vmatprep.subr.bf16.mxu0 0
    %246 = vmatpush1.bf16.msra.mxu0 0
    %247 = vmatprep.subr.bf16.mxu0 0
    %248 = vmatpush1.bf16.msra.mxu0 0
    %249 = vmatprep.subr.bf16.mxu0 0
    %250 = vmatpush1.bf16.msra.mxu0 0
    %251 = vmatprep.subr.bf16.mxu0 0
    %252 = vmatpush1.bf16.msra.mxu0 0
    %253 = vmatprep.subr.bf16.mxu0 0
    %254 = vmatpush1.bf16.msra.mxu0 0
    %255 = vmatprep.subr.bf16.mxu0 0
    %256 = vmatpush1.bf16.msra.mxu0 0
    %257 = vmatprep.subr.bf16.mxu0 0
    %258 = vmatpush1.bf16.msra.mxu0 0
    %259 = vmatprep.subr.bf16.mxu0 0
    %260 = vmatpush1.bf16.msra.mxu0 0
    %261 = vmatprep.subr.bf16.mxu0 0
    %262 = vmatpush1.bf16.msra.mxu0 0
    %263 = vmatprep.subr.bf16.mxu0 0
    %264 = vmatpush1.bf16.msra.mxu0 0
    %265 = vmatprep.mubr.bf16.mxu0 0
    %266 = vmatmul.mubr.bf16.gmra.mrb[0].mxu0 %v228
    %v267 = vpop.f32.mrb[0].mxu0
    %v268 = vadd.f32 %v200, %v267
    %v269 = vpop.f32.mrb[0].mxu0
    %v270 = vpop.f32.mrb[0].mxu0
    %v271 = vadd.f32 %v200, %v270
    %v272 = vpop.f32.mrb[0].mxu0
    %273 = vmatprep.mubr.bf16.mxu0 0
    %274 = vmatmul.mubr.bf16.gmra.mrb[0].mxu0 %v231
    %v275 = vpop.f32.mrb[0].mxu0
    %v276 = vadd.f32 %v200, %v275
    %v277 = vpop.f32.mrb[0].mxu0
    %v278 = vpop.f32.mrb[0].mxu0
    %v279 = vadd.f32 %v200, %v278
    %v280 = vpop.f32.mrb[0].mxu0
    %281 = vdwg.mxu0
    %v282 = vld [vmem:[%s13] sm:$0xff]
    %v283 = vld [vmem:[%s13 + $0x8] sm:$0xff]
    %v284 = vld [vmem:[%s13 + $0x10] sm:$0xff]
    %v285 = vld [vmem:[%s13 + $0x18] sm:$0xff]
    %v286 = vld [vmem:[%s13 + $0x20] sm:$0xff]
    %v287 = vld [vmem:[%s13 + $0x28] sm:$0xff]
    %v288 = vld [vmem:[%s13 + $0x30] sm:$0xff]
    %v289 = vld [vmem:[%s13 + $0x38] sm:$0xff]
    %v290 = vld [vmem:[%s15] sm:$0xff]
    %v291 = vld [vmem:[%s15 + $0x8] sm:$0xff]
    %v292 = vld [vmem:[%s15 + $0x10] sm:$0xff]
    %v293 = vld [vmem:[%s15 + $0x18] sm:$0xff]
    %v294 = vld [vmem:[%s15 + $0x20] sm:$0xff]
    %v295 = vld [vmem:[%s15 + $0x28] sm:$0xff]
    %v296 = vld [vmem:[%s15 + $0x30] sm:$0xff]
    %v297 = vld [vmem:[%s15 + $0x38] sm:$0xff]
    %v298 = vld [vmem:[%s21] sm:$0xf]
    %v299 = vld [vmem:[%s21 + $0x4] sm:$0xf]
    %v300 = vld [vmem:[%s21 + $0x8] sm:$0xf]
    %v301 = vld [vmem:[%s21 + $0xc] sm:$0xf]
    %v302 = vpack.c.bf16 %v180, %v179
    %v303 = vld [vmem:[%s23] sm:$0x1]
    %v305 = vlaneseq
    %v306 = vshrl.u32 %v305, 7
    %v307 = vsub.s32 0, %v306
    %v308 = vrot.slane %v303, %v307
    %v314 = vunpack.c.l.b16 %v298
    %v315 = vunpack.c.l.b16 %v299
    %v316 = vunpack.c.l.b16 %v300
    %v317 = vunpack.c.l.b16 %v301
    %v318 = vpack.c.b16 %v315, %v314
    %v319 = vpack.c.b16 %v317, %v316
    %v323 = vsel %vm137, %v302, 0
    %325 = vmatprep.subr.bf16.mxu0 0
    %326 = vmatpush1.bf16.msra.mxu0 %v318
    %327 = vmatprep.subr.bf16.mxu0 0
    %328 = vmatpush1.bf16.msra.mxu0 %v319
    %329 = vmatprep.subr.bf16.mxu0 0
    %330 = vmatpush1.bf16.msra.mxu0 0
    %331 = vmatprep.subr.bf16.mxu0 0
    %332 = vmatpush1.bf16.msra.mxu0 0
    %333 = vmatprep.subr.bf16.mxu0 0
    %334 = vmatpush1.bf16.msra.mxu0 0
    %335 = vmatprep.subr.bf16.mxu0 0
    %336 = vmatpush1.bf16.msra.mxu0 0
    %337 = vmatprep.subr.bf16.mxu0 0
    %338 = vmatpush1.bf16.msra.mxu0 0
    %339 = vmatprep.subr.bf16.mxu0 0
    %340 = vmatpush1.bf16.msra.mxu0 0
    %341 = vmatprep.subr.bf16.mxu0 0
    %342 = vmatpush1.bf16.msra.mxu0 0
    %343 = vmatprep.subr.bf16.mxu0 0
    %344 = vmatpush1.bf16.msra.mxu0 0
    %345 = vmatprep.subr.bf16.mxu0 0
    %346 = vmatpush1.bf16.msra.mxu0 0
    %347 = vmatprep.subr.bf16.mxu0 0
    %348 = vmatpush1.bf16.msra.mxu0 0
    %349 = vmatprep.subr.bf16.mxu0 0
    %350 = vmatpush1.bf16.msra.mxu0 0
    %351 = vmatprep.subr.bf16.mxu0 0
    %352 = vmatpush1.bf16.msra.mxu0 0
    %353 = vmatprep.subr.bf16.mxu0 0
    %354 = vmatpush1.bf16.msra.mxu0 0
    %355 = vmatprep.subr.bf16.mxu0 0
    %356 = vmatpush1.bf16.msra.mxu0 0
    %357 = vmatprep.mubr.bf16.mxu0 0
    %358 = vmatmul.mubr.bf16.gmra.mrb[0].mxu0 %v323
    %v359 = vpop.f32.mrb[0].mxu0
    %v360 = vadd.f32 %v308, %v359
    %v361 = vpop.f32.mrb[0].mxu0
    %v362 = vpop.f32.mrb[0].mxu0
    %v363 = vadd.f32 %v308, %v362
    %v364 = vpop.f32.mrb[0].mxu0
    %365 = vdwg.mxu0
    %368 = vrot.lane.b32.xlu0 %v360, 120
    %v369 = vpop.permute.xlu0 %368
    %370 = vrot.lane.b32.xlu0 %v363, 120
    %v371 = vpop.permute.xlu0 %370
    %374 = vrot.lane.b32.xlu0 %v360, 112
    %v375 = vpop.permute.xlu0 %374
    %376 = vrot.lane.b32.xlu0 %v363, 112
    %v377 = vpop.permute.xlu0 %376
    %380 = vrot.lane.b32.xlu0 %v360, 104
    %v381 = vpop.permute.xlu0 %380
    %382 = vrot.lane.b32.xlu0 %v363, 104
    %v383 = vpop.permute.xlu0 %382
    %v386 = vcombine.low %v360, %v375
    %v387 = vcombine.high %v360, %v375
    %v389 = vunpack.c.l.s4 1983009808
    %v390 = vunpack.c.0.s8 %v389
    %v391 = vlaneseq
    %v392 = vshrl.u32 %v391, 7
    %v393 = vsub.s32 %v390, %v392
    %v394 = vrot.slane %v386, %v393
    %v396 = vunpack.c.l.s4 1983009808
    %v397 = vunpack.c.0.s8 %v396
    %v398 = vlaneseq
    %v399 = vshrl.u32 %v398, 7
    %v400 = vsub.s32 %v397, %v399
    %v401 = vrot.slane %v387, %v400
    %v402 = vcombine.low %v369, %v381
    %v403 = vcombine.high %v369, %v381
    %v405 = vunpack.c.l.s4 1983009808
    %v406 = vunpack.c.0.s8 %v405
    %v407 = vlaneseq
    %v408 = vshrl.u32 %v407, 7
    %v409 = vsub.s32 %v406, %v408
    %v410 = vrot.slane %v402, %v409
    %v412 = vunpack.c.l.s4 1983009808
    %v413 = vunpack.c.0.s8 %v412
    %v414 = vlaneseq
    %v415 = vshrl.u32 %v414, 7
    %v416 = vsub.s32 %v413, %v415
    %v417 = vrot.slane %v403, %v416
    %v418 = vcombine.low %v394, %v410
    %v419 = vcombine.high %v394, %v410
    %v421 = vunpack.c.l.s4 1934713408
    %v422 = vunpack.c.0.s8 %v421
    %v423 = vlaneseq
    %v424 = vshrl.u32 %v423, 7
    %v425 = vsub.s32 %v422, %v424
    %v426 = vrot.slane %v418, %v425
    %v428 = vunpack.c.l.s4 1934713408
    %v429 = vunpack.c.0.s8 %v428
    %v430 = vlaneseq
    %v431 = vshrl.u32 %v430, 7
    %v432 = vsub.s32 %v429, %v431
    %v433 = vrot.slane %v419, %v432
    %v434 = vcombine.low %v401, %v417
    %v435 = vcombine.high %v401, %v417
    %v437 = vunpack.c.l.s4 1934713408
    %v438 = vunpack.c.0.s8 %v437
    %v439 = vlaneseq
    %v440 = vshrl.u32 %v439, 7
    %v441 = vsub.s32 %v438, %v440
    %v442 = vrot.slane %v434, %v441
    %v444 = vunpack.c.l.s4 1934713408
    %v445 = vunpack.c.0.s8 %v444
    %v446 = vlaneseq
    %v447 = vshrl.u32 %v446, 7
    %v448 = vsub.s32 %v445, %v447
    %v449 = vrot.slane %v435, %v448
    %v450 = vcombine.high %v426, 0.0
    %v451 = vcombine.high %v433, 0.0
    %v452 = vcombine.high %v442, 0.0
    %v453 = vcombine.high %v449, 0.0
    %v454 = vcombine.low %v363, %v377
    %v455 = vcombine.high %v363, %v377
    %v457 = vunpack.c.l.s4 1983009808
    %v458 = vunpack.c.0.s8 %v457
    %v459 = vlaneseq
    %v460 = vshrl.u32 %v459, 7
    %v461 = vsub.s32 %v458, %v460
    %v462 = vrot.slane %v454, %v461
    %v464 = vunpack.c.l.s4 1983009808
    %v465 = vunpack.c.0.s8 %v464
    %v466 = vlaneseq
    %v467 = vshrl.u32 %v466, 7
    %v468 = vsub.s32 %v465, %v467
    %v469 = vrot.slane %v455, %v468
    %v470 = vcombine.low %v371, %v383
    %v471 = vcombine.high %v371, %v383
    %v473 = vunpack.c.l.s4 1983009808
    %v474 = vunpack.c.0.s8 %v473
    %v475 = vlaneseq
    %v476 = vshrl.u32 %v475, 7
    %v477 = vsub.s32 %v474, %v476
    %v478 = vrot.slane %v470, %v477
    %v480 = vunpack.c.l.s4 1983009808
    %v481 = vunpack.c.0.s8 %v480
    %v482 = vlaneseq
    %v483 = vshrl.u32 %v482, 7
    %v484 = vsub.s32 %v481, %v483
    %v485 = vrot.slane %v471, %v484
    %v486 = vcombine.low %v462, %v478
    %v487 = vcombine.high %v462, %v478
    %v489 = vunpack.c.l.s4 1934713408
    %v490 = vunpack.c.0.s8 %v489
    %v491 = vlaneseq
    %v492 = vshrl.u32 %v491, 7
    %v493 = vsub.s32 %v490, %v492
    %v494 = vrot.slane %v486, %v493
    %v496 = vunpack.c.l.s4 1934713408
    %v497 = vunpack.c.0.s8 %v496
    %v498 = vlaneseq
    %v499 = vshrl.u32 %v498, 7
    %v500 = vsub.s32 %v497, %v499
    %v501 = vrot.slane %v487, %v500
    %v502 = vcombine.low %v469, %v485
    %v503 = vcombine.high %v469, %v485
    %v505 = vunpack.c.l.s4 1934713408
    %v506 = vunpack.c.0.s8 %v505
    %v507 = vlaneseq
    %v508 = vshrl.u32 %v507, 7
    %v509 = vsub.s32 %v506, %v508
    %v510 = vrot.slane %v502, %v509
    %v512 = vunpack.c.l.s4 1934713408
    %v513 = vunpack.c.0.s8 %v512
    %v514 = vlaneseq
    %v515 = vshrl.u32 %v514, 7
    %v516 = vsub.s32 %v513, %v515
    %v517 = vrot.slane %v503, %v516
    %v518 = vcombine.high %v494, 0.0
    %v519 = vcombine.high %v501, 0.0
    %v520 = vcombine.high %v510, 0.0
    %v521 = vcombine.high %v517, 0.0
    %v522 = vcombine.low %v426, %v433
    %v524 = vunpack.c.l.s4 1983009808
    %v525 = vunpack.c.0.s8 %v524
    %v526 = vlaneseq
    %v527 = vshrl.u32 %v526, 7
    %v528 = vsub.s32 %v525, %v527
    %v529 = vrot.slane %v522, %v528
    %v530 = vcombine.low %v450, %v451
    %v532 = vunpack.c.l.s4 1983009808
    %v533 = vunpack.c.0.s8 %v532
    %v534 = vlaneseq
    %v535 = vshrl.u32 %v534, 7
    %v536 = vsub.s32 %v533, %v535
    %v537 = vrot.slane %v530, %v536
    %v538 = vcombine.low %v442, %v449
    %v540 = vunpack.c.l.s4 1983009808
    %v541 = vunpack.c.0.s8 %v540
    %v542 = vlaneseq
    %v543 = vshrl.u32 %v542, 7
    %v544 = vsub.s32 %v541, %v543
    %v545 = vrot.slane %v538, %v544
    %v546 = vcombine.low %v452, %v453
    %v548 = vunpack.c.l.s4 1983009808
    %v549 = vunpack.c.0.s8 %v548
    %v550 = vlaneseq
    %v551 = vshrl.u32 %v550, 7
    %v552 = vsub.s32 %v549, %v551
    %v553 = vrot.slane %v546, %v552
    %v554 = vcombine.low %v529, %v537
    %v555 = vcombine.high %v529, %v537
    %v557 = vunpack.c.l.s4 1934713408
    %v558 = vunpack.c.0.s8 %v557
    %v559 = vlaneseq
    %v560 = vshrl.u32 %v559, 7
    %v561 = vsub.s32 %v558, %v560
    %v562 = vrot.slane %v554, %v561
    %v564 = vunpack.c.l.s4 1934713408
    %v565 = vunpack.c.0.s8 %v564
    %v566 = vlaneseq
    %v567 = vshrl.u32 %v566, 7
    %v568 = vsub.s32 %v565, %v567
    %v569 = vrot.slane %v555, %v568
    %v570 = vcombine.low %v545, %v553
    %v571 = vcombine.high %v545, %v553
    %v573 = vunpack.c.l.s4 1934713408
    %v574 = vunpack.c.0.s8 %v573
    %v575 = vlaneseq
    %v576 = vshrl.u32 %v575, 7
    %v577 = vsub.s32 %v574, %v576
    %v578 = vrot.slane %v570, %v577
    %v580 = vunpack.c.l.s4 1934713408
    %v581 = vunpack.c.0.s8 %v580
    %v582 = vlaneseq
    %v583 = vshrl.u32 %v582, 7
    %v584 = vsub.s32 %v581, %v583
    %v585 = vrot.slane %v571, %v584
    %v586 = vcombine.low %v562, %v578
    %v587 = vcombine.high %v562, %v578
    %v588 = vcombine.low %v569, %v585
    %v589 = vcombine.high %v569, %v585
    %v590 = vcombine.low %v494, %v501
    %v592 = vunpack.c.l.s4 1983009808
    %v593 = vunpack.c.0.s8 %v592
    %v594 = vlaneseq
    %v595 = vshrl.u32 %v594, 7
    %v596 = vsub.s32 %v593, %v595
    %v597 = vrot.slane %v590, %v596
    %v598 = vcombine.low %v518, %v519
    %v600 = vunpack.c.l.s4 1983009808
    %v601 = vunpack.c.0.s8 %v600
    %v602 = vlaneseq
    %v603 = vshrl.u32 %v602, 7
    %v604 = vsub.s32 %v601, %v603
    %v605 = vrot.slane %v598, %v604
    %v606 = vcombine.low %v510, %v517
    %v608 = vunpack.c.l.s4 1983009808
    %v609 = vunpack.c.0.s8 %v608
    %v610 = vlaneseq
    %v611 = vshrl.u32 %v610, 7
    %v612 = vsub.s32 %v609, %v611
    %v613 = vrot.slane %v606, %v612
    %v614 = vcombine.low %v520, %v521
    %v616 = vunpack.c.l.s4 1983009808
    %v617 = vunpack.c.0.s8 %v616
    %v618 = vlaneseq
    %v619 = vshrl.u32 %v618, 7
    %v620 = vsub.s32 %v617, %v619
    %v621 = vrot.slane %v614, %v620
    %v622 = vcombine.low %v597, %v605
    %v623 = vcombine.high %v597, %v605
    %v625 = vunpack.c.l.s4 1934713408
    %v626 = vunpack.c.0.s8 %v625
    %v627 = vlaneseq
    %v628 = vshrl.u32 %v627, 7
    %v629 = vsub.s32 %v626, %v628
    %v630 = vrot.slane %v622, %v629
    %v632 = vunpack.c.l.s4 1934713408
    %v633 = vunpack.c.0.s8 %v632
    %v634 = vlaneseq
    %v635 = vshrl.u32 %v634, 7
    %v636 = vsub.s32 %v633, %v635
    %v637 = vrot.slane %v623, %v636
    %v638 = vcombine.low %v613, %v621
    %v639 = vcombine.high %v613, %v621
    %v641 = vunpack.c.l.s4 1934713408
    %v642 = vunpack.c.0.s8 %v641
    %v643 = vlaneseq
    %v644 = vshrl.u32 %v643, 7
    %v645 = vsub.s32 %v642, %v644
    %v646 = vrot.slane %v638, %v645
    %v648 = vunpack.c.l.s4 1934713408
    %v649 = vunpack.c.0.s8 %v648
    %v650 = vlaneseq
    %v651 = vshrl.u32 %v650, 7
    %v652 = vsub.s32 %v649, %v651
    %v653 = vrot.slane %v639, %v652
    %v654 = vcombine.low %v630, %v646
    %v655 = vcombine.high %v630, %v646
    %v656 = vcombine.low %v637, %v653
    %v657 = vcombine.high %v637, %v653
    %v658 = vpack.c.bf16 %v586, %v586
    %v659 = vpack.c.bf16 %v587, %v587
    %v660 = vpack.c.bf16 %v588, %v588
    %v661 = vpack.c.bf16 %v589, %v589
    %v662 = vpack.c.bf16 %v654, %v654
    %v663 = vpack.c.bf16 %v655, %v655
    %v664 = vpack.c.bf16 %v656, %v656
    %v665 = vpack.c.bf16 %v657, %v657
    %666 = vrot.lane.b32.xlu0 %v360, 96
    %v667 = vpop.permute.xlu0 %666
    %668 = vrot.lane.b32.xlu0 %v363, 96
    %v669 = vpop.permute.xlu0 %668
    %670 = vrot.lane.b32.xlu0 %v369, 96
    %v671 = vpop.permute.xlu0 %670
    %672 = vrot.lane.b32.xlu0 %v371, 96
    %v673 = vpop.permute.xlu0 %672
    %674 = vrot.lane.b32.xlu0 %v375, 96
    %v675 = vpop.permute.xlu0 %674
    %676 = vrot.lane.b32.xlu0 %v377, 96
    %v677 = vpop.permute.xlu0 %676
    %678 = vrot.lane.b32.xlu0 %v381, 96
    %v679 = vpop.permute.xlu0 %678
    %680 = vrot.lane.b32.xlu0 %v383, 96
    %v681 = vpop.permute.xlu0 %680
    %v690 = vcombine.low %v667, %v675
    %v691 = vcombine.high %v667, %v675
    %v693 = vunpack.c.l.s4 1983009808
    %v694 = vunpack.c.0.s8 %v693
    %v695 = vlaneseq
    %v696 = vshrl.u32 %v695, 7
    %v697 = vsub.s32 %v694, %v696
    %v698 = vrot.slane %v690, %v697
    %v700 = vunpack.c.l.s4 1983009808
    %v701 = vunpack.c.0.s8 %v700
    %v702 = vlaneseq
    %v703 = vshrl.u32 %v702, 7
    %v704 = vsub.s32 %v701, %v703
    %v705 = vrot.slane %v691, %v704
    %v706 = vcombine.low %v671, %v679
    %v707 = vcombine.high %v671, %v679
    %v709 = vunpack.c.l.s4 1983009808
    %v710 = vunpack.c.0.s8 %v709
    %v711 = vlaneseq
    %v712 = vshrl.u32 %v711, 7
    %v713 = vsub.s32 %v710, %v712
    %v714 = vrot.slane %v706, %v713
    %v716 = vunpack.c.l.s4 1983009808
    %v717 = vunpack.c.0.s8 %v716
    %v718 = vlaneseq
    %v719 = vshrl.u32 %v718, 7
    %v720 = vsub.s32 %v717, %v719
    %v721 = vrot.slane %v707, %v720
    %v722 = vcombine.low %v698, %v714
    %v723 = vcombine.high %v698, %v714
    %v725 = vunpack.c.l.s4 1934713408
    %v726 = vunpack.c.0.s8 %v725
    %v727 = vlaneseq
    %v728 = vshrl.u32 %v727, 7
    %v729 = vsub.s32 %v726, %v728
    %v730 = vrot.slane %v722, %v729
    %v732 = vunpack.c.l.s4 1934713408
    %v733 = vunpack.c.0.s8 %v732
    %v734 = vlaneseq
    %v735 = vshrl.u32 %v734, 7
    %v736 = vsub.s32 %v733, %v735
    %v737 = vrot.slane %v723, %v736
    %v738 = vcombine.low %v705, %v721
    %v739 = vcombine.high %v705, %v721
    %v741 = vunpack.c.l.s4 1934713408
    %v742 = vunpack.c.0.s8 %v741
    %v743 = vlaneseq
    %v744 = vshrl.u32 %v743, 7
    %v745 = vsub.s32 %v742, %v744
    %v746 = vrot.slane %v738, %v745
    %v748 = vunpack.c.l.s4 1934713408
    %v749 = vunpack.c.0.s8 %v748
    %v750 = vlaneseq
    %v751 = vshrl.u32 %v750, 7
    %v752 = vsub.s32 %v749, %v751
    %v753 = vrot.slane %v739, %v752
    %v754 = vcombine.high %v730, 0.0
    %v755 = vcombine.high %v737, 0.0
    %v756 = vcombine.high %v746, 0.0
    %v757 = vcombine.high %v753, 0.0
    %v758 = vcombine.low %v669, %v677
    %v759 = vcombine.high %v669, %v677
    %v761 = vunpack.c.l.s4 1983009808
    %v762 = vunpack.c.0.s8 %v761
    %v763 = vlaneseq
    %v764 = vshrl.u32 %v763, 7
    %v765 = vsub.s32 %v762, %v764
    %v766 = vrot.slane %v758, %v765
    %v768 = vunpack.c.l.s4 1983009808
    %v769 = vunpack.c.0.s8 %v768
    %v770 = vlaneseq
    %v771 = vshrl.u32 %v770, 7
    %v772 = vsub.s32 %v769, %v771
    %v773 = vrot.slane %v759, %v772
    %v774 = vcombine.low %v673, %v681
    %v775 = vcombine.high %v673, %v681
    %v777 = vunpack.c.l.s4 1983009808
    %v778 = vunpack.c.0.s8 %v777
    %v779 = vlaneseq
    %v780 = vshrl.u32 %v779, 7
    %v781 = vsub.s32 %v778, %v780
    %v782 = vrot.slane %v774, %v781
    %v784 = vunpack.c.l.s4 1983009808
    %v785 = vunpack.c.0.s8 %v784
    %v786 = vlaneseq
    %v787 = vshrl.u32 %v786, 7
    %v788 = vsub.s32 %v785, %v787
    %v789 = vrot.slane %v775, %v788
    %v790 = vcombine.low %v766, %v782
    %v791 = vcombine.high %v766, %v782
    %v793 = vunpack.c.l.s4 1934713408
    %v794 = vunpack.c.0.s8 %v793
    %v795 = vlaneseq
    %v796 = vshrl.u32 %v795, 7
    %v797 = vsub.s32 %v794, %v796
    %v798 = vrot.slane %v790, %v797
    %v800 = vunpack.c.l.s4 1934713408
    %v801 = vunpack.c.0.s8 %v800
    %v802 = vlaneseq
    %v803 = vshrl.u32 %v802, 7
    %v804 = vsub.s32 %v801, %v803
    %v805 = vrot.slane %v791, %v804
    %v806 = vcombine.low %v773, %v789
    %v807 = vcombine.high %v773, %v789
    %v809 = vunpack.c.l.s4 1934713408
    %v810 = vunpack.c.0.s8 %v809
    %v811 = vlaneseq
    %v812 = vshrl.u32 %v811, 7
    %v813 = vsub.s32 %v810, %v812
    %v814 = vrot.slane %v806, %v813
    %v816 = vunpack.c.l.s4 1934713408
    %v817 = vunpack.c.0.s8 %v816
    %v818 = vlaneseq
    %v819 = vshrl.u32 %v818, 7
    %v820 = vsub.s32 %v817, %v819
    %v821 = vrot.slane %v807, %v820
    %v822 = vcombine.high %v798, 0.0
    %v823 = vcombine.high %v805, 0.0
    %v824 = vcombine.high %v814, 0.0
    %v825 = vcombine.high %v821, 0.0
    %v826 = vcombine.low %v730, %v737
    %v828 = vunpack.c.l.s4 1983009808
    %v829 = vunpack.c.0.s8 %v828
    %v830 = vlaneseq
    %v831 = vshrl.u32 %v830, 7
    %v832 = vsub.s32 %v829, %v831
    %v833 = vrot.slane %v826, %v832
    %v834 = vcombine.low %v754, %v755
    %v836 = vunpack.c.l.s4 1983009808
    %v837 = vunpack.c.0.s8 %v836
    %v838 = vlaneseq
    %v839 = vshrl.u32 %v838, 7
    %v840 = vsub.s32 %v837, %v839
    %v841 = vrot.slane %v834, %v840
    %v842 = vcombine.low %v746, %v753
    %v844 = vunpack.c.l.s4 1983009808
    %v845 = vunpack.c.0.s8 %v844
    %v846 = vlaneseq
    %v847 = vshrl.u32 %v846, 7
    %v848 = vsub.s32 %v845, %v847
    %v849 = vrot.slane %v842, %v848
    %v850 = vcombine.low %v756, %v757
    %v852 = vunpack.c.l.s4 1983009808
    %v853 = vunpack.c.0.s8 %v852
    %v854 = vlaneseq
    %v855 = vshrl.u32 %v854, 7
    %v856 = vsub.s32 %v853, %v855
    %v857 = vrot.slane %v850, %v856
    %v858 = vcombine.low %v833, %v841
    %v859 = vcombine.high %v833, %v841
    %v861 = vunpack.c.l.s4 1934713408
    %v862 = vunpack.c.0.s8 %v861
    %v863 = vlaneseq
    %v864 = vshrl.u32 %v863, 7
    %v865 = vsub.s32 %v862, %v864
    %v866 = vrot.slane %v858, %v865
    %v868 = vunpack.c.l.s4 1934713408
    %v869 = vunpack.c.0.s8 %v868
    %v870 = vlaneseq
    %v871 = vshrl.u32 %v870, 7
    %v872 = vsub.s32 %v869, %v871
    %v873 = vrot.slane %v859, %v872
    %v874 = vcombine.low %v849, %v857
    %v875 = vcombine.high %v849, %v857
    %v877 = vunpack.c.l.s4 1934713408
    %v878 = vunpack.c.0.s8 %v877
    %v879 = vlaneseq
    %v880 = vshrl.u32 %v879, 7
    %v881 = vsub.s32 %v878, %v880
    %v882 = vrot.slane %v874, %v881
    %v884 = vunpack.c.l.s4 1934713408
    %v885 = vunpack.c.0.s8 %v884
    %v886 = vlaneseq
    %v887 = vshrl.u32 %v886, 7
    %v888 = vsub.s32 %v885, %v887
    %v889 = vrot.slane %v875, %v888
    %v890 = vcombine.low %v866, %v882
    %v891 = vcombine.high %v866, %v882
    %v892 = vcombine.low %v873, %v889
    %v893 = vcombine.high %v873, %v889
    %v894 = vcombine.low %v798, %v805
    %v896 = vunpack.c.l.s4 1983009808
    %v897 = vunpack.c.0.s8 %v896
    %v898 = vlaneseq
    %v899 = vshrl.u32 %v898, 7
    %v900 = vsub.s32 %v897, %v899
    %v901 = vrot.slane %v894, %v900
    %v902 = vcombine.low %v822, %v823
    %v904 = vunpack.c.l.s4 1983009808
    %v905 = vunpack.c.0.s8 %v904
    %v906 = vlaneseq
    %v907 = vshrl.u32 %v906, 7
    %v908 = vsub.s32 %v905, %v907
    %v909 = vrot.slane %v902, %v908
    %v910 = vcombine.low %v814, %v821
    %v912 = vunpack.c.l.s4 1983009808
    %v913 = vunpack.c.0.s8 %v912
    %v914 = vlaneseq
    %v915 = vshrl.u32 %v914, 7
    %v916 = vsub.s32 %v913, %v915
    %v917 = vrot.slane %v910, %v916
    %v918 = vcombine.low %v824, %v825
    %v920 = vunpack.c.l.s4 1983009808
    %v921 = vunpack.c.0.s8 %v920
    %v922 = vlaneseq
    %v923 = vshrl.u32 %v922, 7
    %v924 = vsub.s32 %v921, %v923
    %v925 = vrot.slane %v918, %v924
    %v926 = vcombine.low %v901, %v909
    %v927 = vcombine.high %v901, %v909
    %v929 = vunpack.c.l.s4 1934713408
    %v930 = vunpack.c.0.s8 %v929
    %v931 = vlaneseq
    %v932 = vshrl.u32 %v931, 7
    %v933 = vsub.s32 %v930, %v932
    %v934 = vrot.slane %v926, %v933
    %v936 = vunpack.c.l.s4 1934713408
    %v937 = vunpack.c.0.s8 %v936
    %v938 = vlaneseq
    %v939 = vshrl.u32 %v938, 7
    %v940 = vsub.s32 %v937, %v939
    %v941 = vrot.slane %v927, %v940
    %v942 = vcombine.low %v917, %v925
    %v943 = vcombine.high %v917, %v925
    %v945 = vunpack.c.l.s4 1934713408
    %v946 = vunpack.c.0.s8 %v945
    %v947 = vlaneseq
    %v948 = vshrl.u32 %v947, 7
    %v949 = vsub.s32 %v946, %v948
    %v950 = vrot.slane %v942, %v949
    %v952 = vunpack.c.l.s4 1934713408
    %v953 = vunpack.c.0.s8 %v952
    %v954 = vlaneseq
    %v955 = vshrl.u32 %v954, 7
    %v956 = vsub.s32 %v953, %v955
    %v957 = vrot.slane %v943, %v956
    %v958 = vcombine.low %v934, %v950
    %v959 = vcombine.high %v934, %v950
    %v960 = vcombine.low %v941, %v957
    %v961 = vcombine.high %v941, %v957
    %v962 = vpack.c.bf16 %v890, %v890
    %v963 = vpack.c.bf16 %v891, %v891
    %v964 = vpack.c.bf16 %v892, %v892
    %v965 = vpack.c.bf16 %v893, %v893
    %v966 = vpack.c.bf16 %v958, %v958
    %v967 = vpack.c.bf16 %v959, %v959
    %v968 = vpack.c.bf16 %v960, %v960
    %v969 = vpack.c.bf16 %v961, %v961
    %970 = vrot.lane.b32.xlu0 %v360, 64
    %v971 = vpop.permute.xlu0 %970
    %972 = vrot.lane.b32.xlu0 %v363, 64
    %v973 = vpop.permute.xlu0 %972
    %974 = vrot.lane.b32.xlu0 %v369, 64
    %v975 = vpop.permute.xlu0 %974
    %976 = vrot.lane.b32.xlu0 %v371, 64
    %v977 = vpop.permute.xlu0 %976
    %978 = vrot.lane.b32.xlu0 %v375, 64
    %v979 = vpop.permute.xlu0 %978
    %980 = vrot.lane.b32.xlu0 %v377, 64
    %v981 = vpop.permute.xlu0 %980
    %982 = vrot.lane.b32.xlu0 %v381, 64
    %v983 = vpop.permute.xlu0 %982
    %984 = vrot.lane.b32.xlu0 %v383, 64
    %v985 = vpop.permute.xlu0 %984
    %v994 = vcombine.low %v971, %v979
    %v995 = vcombine.high %v971, %v979
    %v997 = vunpack.c.l.s4 1983009808
    %v998 = vunpack.c.0.s8 %v997
    %v999 = vlaneseq
    %v1000 = vshrl.u32 %v999, 7
    %v1001 = vsub.s32 %v998, %v1000
    %v1002 = vrot.slane %v994, %v1001
    %v1004 = vunpack.c.l.s4 1983009808
    %v1005 = vunpack.c.0.s8 %v1004
    %v1006 = vlaneseq
    %v1007 = vshrl.u32 %v1006, 7
    %v1008 = vsub.s32 %v1005, %v1007
    %v1009 = vrot.slane %v995, %v1008
    %v1010 = vcombine.low %v975, %v983
    %v1011 = vcombine.high %v975, %v983
    %v1013 = vunpack.c.l.s4 1983009808
    %v1014 = vunpack.c.0.s8 %v1013
    %v1015 = vlaneseq
    %v1016 = vshrl.u32 %v1015, 7
    %v1017 = vsub.s32 %v1014, %v1016
    %v1018 = vrot.slane %v1010, %v1017
    %v1020 = vunpack.c.l.s4 1983009808
    %v1021 = vunpack.c.0.s8 %v1020
    %v1022 = vlaneseq
    %v1023 = vshrl.u32 %v1022, 7
    %v1024 = vsub.s32 %v1021, %v1023
    %v1025 = vrot.slane %v1011, %v1024
    %v1026 = vcombine.low %v1002, %v1018
    %v1027 = vcombine.high %v1002, %v1018
    %v1029 = vunpack.c.l.s4 1934713408
    %v1030 = vunpack.c.0.s8 %v1029
    %v1031 = vlaneseq
    %v1032 = vshrl.u32 %v1031, 7
    %v1033 = vsub.s32 %v1030, %v1032
    %v1034 = vrot.slane %v1026, %v1033
    %v1036 = vunpack.c.l.s4 1934713408
    %v1037 = vunpack.c.0.s8 %v1036
    %v1038 = vlaneseq
    %v1039 = vshrl.u32 %v1038, 7
    %v1040 = vsub.s32 %v1037, %v1039
    %v1041 = vrot.slane %v1027, %v1040
    %v1042 = vcombine.low %v1009, %v1025
    %v1043 = vcombine.high %v1009, %v1025
    %v1045 = vunpack.c.l.s4 1934713408
    %v1046 = vunpack.c.0.s8 %v1045
    %v1047 = vlaneseq
    %v1048 = vshrl.u32 %v1047, 7
    %v1049 = vsub.s32 %v1046, %v1048
    %v1050 = vrot.slane %v1042, %v1049
    %v1052 = vunpack.c.l.s4 1934713408
    %v1053 = vunpack.c.0.s8 %v1052
    %v1054 = vlaneseq
    %v1055 = vshrl.u32 %v1054, 7
    %v1056 = vsub.s32 %v1053, %v1055
    %v1057 = vrot.slane %v1043, %v1056
    %v1058 = vcombine.high %v1034, 0.0
    %v1059 = vcombine.high %v1041, 0.0
    %v1060 = vcombine.high %v1050, 0.0
    %v1061 = vcombine.high %v1057, 0.0
    %v1062 = vcombine.low %v973, %v981
    %v1063 = vcombine.high %v973, %v981
    %v1065 = vunpack.c.l.s4 1983009808
    %v1066 = vunpack.c.0.s8 %v1065
    %v1067 = vlaneseq
    %v1068 = vshrl.u32 %v1067, 7
    %v1069 = vsub.s32 %v1066, %v1068
    %v1070 = vrot.slane %v1062, %v1069
    %v1072 = vunpack.c.l.s4 1983009808
    %v1073 = vunpack.c.0.s8 %v1072
    %v1074 = vlaneseq
    %v1075 = vshrl.u32 %v1074, 7
    %v1076 = vsub.s32 %v1073, %v1075
    %v1077 = vrot.slane %v1063, %v1076
    %v1078 = vcombine.low %v977, %v985
    %v1079 = vcombine.high %v977, %v985
    %v1081 = vunpack.c.l.s4 1983009808
    %v1082 = vunpack.c.0.s8 %v1081
    %v1083 = vlaneseq
    %v1084 = vshrl.u32 %v1083, 7
    %v1085 = vsub.s32 %v1082, %v1084
    %v1086 = vrot.slane %v1078, %v1085
    %v1088 = vunpack.c.l.s4 1983009808
    %v1089 = vunpack.c.0.s8 %v1088
    %v1090 = vlaneseq
    %v1091 = vshrl.u32 %v1090, 7
    %v1092 = vsub.s32 %v1089, %v1091
    %v1093 = vrot.slane %v1079, %v1092
    %v1094 = vcombine.low %v1070, %v1086
    %v1095 = vcombine.high %v1070, %v1086
    %v1097 = vunpack.c.l.s4 1934713408
    %v1098 = vunpack.c.0.s8 %v1097
    %v1099 = vlaneseq
    %v1100 = vshrl.u32 %v1099, 7
    %v1101 = vsub.s32 %v1098, %v1100
    %v1102 = vrot.slane %v1094, %v1101
    %v1104 = vunpack.c.l.s4 1934713408
    %v1105 = vunpack.c.0.s8 %v1104
    %v1106 = vlaneseq
    %v1107 = vshrl.u32 %v1106, 7
    %v1108 = vsub.s32 %v1105, %v1107
    %v1109 = vrot.slane %v1095, %v1108
    %v1110 = vcombine.low %v1077, %v1093
    %v1111 = vcombine.high %v1077, %v1093
    %v1113 = vunpack.c.l.s4 1934713408
    %v1114 = vunpack.c.0.s8 %v1113
    %v1115 = vlaneseq
    %v1116 = vshrl.u32 %v1115, 7
    %v1117 = vsub.s32 %v1114, %v1116
    %v1118 = vrot.slane %v1110, %v1117
    %v1120 = vunpack.c.l.s4 1934713408
    %v1121 = vunpack.c.0.s8 %v1120
    %v1122 = vlaneseq
    %v1123 = vshrl.u32 %v1122, 7
    %v1124 = vsub.s32 %v1121, %v1123
    %v1125 = vrot.slane %v1111, %v1124
    %v1126 = vcombine.high %v1102, 0.0
    %v1127 = vcombine.high %v1109, 0.0
    %v1128 = vcombine.high %v1118, 0.0
    %v1129 = vcombine.high %v1125, 0.0
    %v1130 = vcombine.low %v1034, %v1041
    %v1132 = vunpack.c.l.s4 1983009808
    %v1133 = vunpack.c.0.s8 %v1132
    %v1134 = vlaneseq
    %v1135 = vshrl.u32 %v1134, 7
    %v1136 = vsub.s32 %v1133, %v1135
    %v1137 = vrot.slane %v1130, %v1136
    %v1138 = vcombine.low %v1058, %v1059
    %v1140 = vunpack.c.l.s4 1983009808
    %v1141 = vunpack.c.0.s8 %v1140
    %v1142 = vlaneseq
    %v1143 = vshrl.u32 %v1142, 7
    %v1144 = vsub.s32 %v1141, %v1143
    %v1145 = vrot.slane %v1138, %v1144
    %v1146 = vcombine.low %v1050, %v1057
    %v1148 = vunpack.c.l.s4 1983009808
    %v1149 = vunpack.c.0.s8 %v1148
    %v1150 = vlaneseq
    %v1151 = vshrl.u32 %v1150, 7
    %v1152 = vsub.s32 %v1149, %v1151
    %v1153 = vrot.slane %v1146, %v1152
    %v1154 = vcombine.low %v1060, %v1061
    %v1156 = vunpack.c.l.s4 1983009808
    %v1157 = vunpack.c.0.s8 %v1156
    %v1158 = vlaneseq
    %v1159 = vshrl.u32 %v1158, 7
    %v1160 = vsub.s32 %v1157, %v1159
    %v1161 = vrot.slane %v1154, %v1160
    %v1162 = vcombine.low %v1137, %v1145
    %v1163 = vcombine.high %v1137, %v1145
    %v1165 = vunpack.c.l.s4 1934713408
    %v1166 = vunpack.c.0.s8 %v1165
    %v1167 = vlaneseq
    %v1168 = vshrl.u32 %v1167, 7
    %v1169 = vsub.s32 %v1166, %v1168
    %v1170 = vrot.slane %v1162, %v1169
    %v1172 = vunpack.c.l.s4 1934713408
    %v1173 = vunpack.c.0.s8 %v1172
    %v1174 = vlaneseq
    %v1175 = vshrl.u32 %v1174, 7
    %v1176 = vsub.s32 %v1173, %v1175
    %v1177 = vrot.slane %v1163, %v1176
    %v1178 = vcombine.low %v1153, %v1161
    %v1179 = vcombine.high %v1153, %v1161
    %v1181 = vunpack.c.l.s4 1934713408
    %v1182 = vunpack.c.0.s8 %v1181
    %v1183 = vlaneseq
    %v1184 = vshrl.u32 %v1183, 7
    %v1185 = vsub.s32 %v1182, %v1184
    %v1186 = vrot.slane %v1178, %v1185
    %v1188 = vunpack.c.l.s4 1934713408
    %v1189 = vunpack.c.0.s8 %v1188
    %v1190 = vlaneseq
    %v1191 = vshrl.u32 %v1190, 7
    %v1192 = vsub.s32 %v1189, %v1191
    %v1193 = vrot.slane %v1179, %v1192
    %v1194 = vcombine.low %v1170, %v1186
    %v1195 = vcombine.high %v1170, %v1186
    %v1196 = vcombine.low %v1177, %v1193
    %v1197 = vcombine.high %v1177, %v1193
    %v1198 = vcombine.low %v1102, %v1109
    %v1200 = vunpack.c.l.s4 1983009808
    %v1201 = vunpack.c.0.s8 %v1200
    %v1202 = vlaneseq
    %v1203 = vshrl.u32 %v1202, 7
    %v1204 = vsub.s32 %v1201, %v1203
    %v1205 = vrot.slane %v1198, %v1204
    %v1206 = vcombine.low %v1126, %v1127
    %v1208 = vunpack.c.l.s4 1983009808
    %v1209 = vunpack.c.0.s8 %v1208
    %v1210 = vlaneseq
    %v1211 = vshrl.u32 %v1210, 7
    %v1212 = vsub.s32 %v1209, %v1211
    %v1213 = vrot.slane %v1206, %v1212
    %v1214 = vcombine.low %v1118, %v1125
    %v1216 = vunpack.c.l.s4 1983009808
    %v1217 = vunpack.c.0.s8 %v1216
    %v1218 = vlaneseq
    %v1219 = vshrl.u32 %v1218, 7
    %v1220 = vsub.s32 %v1217, %v1219
    %v1221 = vrot.slane %v1214, %v1220
    %v1222 = vcombine.low %v1128, %v1129
    %v1224 = vunpack.c.l.s4 1983009808
    %v1225 = vunpack.c.0.s8 %v1224
    %v1226 = vlaneseq
    %v1227 = vshrl.u32 %v1226, 7
    %v1228 = vsub.s32 %v1225, %v1227
    %v1229 = vrot.slane %v1222, %v1228
    %v1230 = vcombine.low %v1205, %v1213
    %v1231 = vcombine.high %v1205, %v1213
    %v1233 = vunpack.c.l.s4 1934713408
    %v1234 = vunpack.c.0.s8 %v1233
    %v1235 = vlaneseq
    %v1236 = vshrl.u32 %v1235, 7
    %v1237 = vsub.s32 %v1234, %v1236
    %v1238 = vrot.slane %v1230, %v1237
    %v1240 = vunpack.c.l.s4 1934713408
    %v1241 = vunpack.c.0.s8 %v1240
    %v1242 = vlaneseq
    %v1243 = vshrl.u32 %v1242, 7
    %v1244 = vsub.s32 %v1241, %v1243
    %v1245 = vrot.slane %v1231, %v1244
    %v1246 = vcombine.low %v1221, %v1229
    %v1247 = vcombine.high %v1221, %v1229
    %v1249 = vunpack.c.l.s4 1934713408
    %v1250 = vunpack.c.0.s8 %v1249
    %v1251 = vlaneseq
    %v1252 = vshrl.u32 %v1251, 7
    %v1253 = vsub.s32 %v1250, %v1252
    %v1254 = vrot.slane %v1246, %v1253
    %v1256 = vunpack.c.l.s4 1934713408
    %v1257 = vunpack.c.0.s8 %v1256
    %v1258 = vlaneseq
    %v1259 = vshrl.u32 %v1258, 7
    %v1260 = vsub.s32 %v1257, %v1259
    %v1261 = vrot.slane %v1247, %v1260
    %v1262 = vcombine.low %v1238, %v1254
    %v1263 = vcombine.high %v1238, %v1254
    %v1264 = vcombine.low %v1245, %v1261
    %v1265 = vcombine.high %v1245, %v1261
    %v1266 = vpack.c.bf16 %v1194, %v1194
    %v1267 = vpack.c.bf16 %v1195, %v1195
    %v1268 = vpack.c.bf16 %v1196, %v1196
    %v1269 = vpack.c.bf16 %v1197, %v1197
    %v1270 = vpack.c.bf16 %v1262, %v1262
    %v1271 = vpack.c.bf16 %v1263, %v1263
    %v1272 = vpack.c.bf16 %v1264, %v1264
    %v1273 = vpack.c.bf16 %v1265, %v1265
    %vm1274 = vcmask 64512
    %v1276 = vsel %vm1274, %v658, 0
    %v1279 = vsel %vm1274, %v962, 0
    %1281 = vmatprep.subr.bf16.mxu0 0
    %1282 = vmatpush1.bf16.xpose.msra.mxu0 %v1279
    %1283 = vmatprep.subr.bf16.mxu0 0
    %1284 = vmatpush1.bf16.xpose.msra.mxu0 0
    %1285 = vmatprep.subr.bf16.mxu0 0
    %1286 = vmatpush1.bf16.xpose.msra.mxu0 0
    %1287 = vmatprep.subr.bf16.mxu0 0
    %1288 = vmatpush1.bf16.xpose.msra.mxu0 0
    %1289 = vmatprep.subr.bf16.mxu0 0
    %1290 = vmatpush1.bf16.xpose.msra.mxu0 0
    %1291 = vmatprep.subr.bf16.mxu0 0
    %1292 = vmatpush1.bf16.xpose.msra.mxu0 0
    %1293 = vmatprep.subr.bf16.mxu0 0
    %1294 = vmatpush1.bf16.xpose.msra.mxu0 0
    %1295 = vmatprep.subr.bf16.mxu0 0
    %1296 = vmatpush1.bf16.xpose.msra.mxu0 0
    %1297 = vmatprep.subr.bf16.mxu0 0
    %1298 = vmatpush1.bf16.xpose.msra.mxu0 0
    %1299 = vmatprep.subr.bf16.mxu0 0
    %1300 = vmatpush1.bf16.xpose.msra.mxu0 0
    %1301 = vmatprep.subr.bf16.mxu0 0
    %1302 = vmatpush1.bf16.xpose.msra.mxu0 0
    %1303 = vmatprep.subr.bf16.mxu0 0
    %1304 = vmatpush1.bf16.xpose.msra.mxu0 0
    %1305 = vmatprep.subr.bf16.mxu0 0
    %1306 = vmatpush1.bf16.xpose.msra.mxu0 0
    %1307 = vmatprep.subr.bf16.mxu0 0
    %1308 = vmatpush1.bf16.xpose.msra.mxu0 0
    %1309 = vmatprep.subr.bf16.mxu0 0
    %1310 = vmatpush1.bf16.xpose.msra.mxu0 0
    %1311 = vmatprep.subr.bf16.mxu0 0
    %1312 = vmatpush1.bf16.xpose.msra.mxu0 0
    %1313 = vmatprep.mubr.bf16.mxu0 0
    %1314 = vmatmul.mubr.bf16.gmra.mrb[0].mxu0 %v1276
    %v1315 = vpop.f32.mrb[0].mxu0
    %v1316 = vadd.f32 0.0, %v1315
    %v1317 = vpop.f32.mrb[0].mxu0
    %v1318 = vpop.f32.mrb[0].mxu0
    %v1319 = vpop.f32.mrb[0].mxu0
    %1320 = vdwg.mxu0
    %v1322 = vsel %vm1274, %v659, 0
    %v1325 = vsel %vm1274, %v963, 0
    %1327 = vmatprep.subr.bf16.mxu0 0
    %1328 = vmatpush1.bf16.xpose.msra.mxu0 %v1325
    %1329 = vmatprep.subr.bf16.mxu0 0
    %1330 = vmatpush1.bf16.xpose.msra.mxu0 0
    %1331 = vmatprep.subr.bf16.mxu0 0
    %1332 = vmatpush1.bf16.xpose.msra.mxu0 0
    %1333 = vmatprep.subr.bf16.mxu0 0
    %1334 = vmatpush1.bf16.xpose.msra.mxu0 0
    %1335 = vmatprep.subr.bf16.mxu0 0
    %1336 = vmatpush1.bf16.xpose.msra.mxu0 0
    %1337 = vmatprep.subr.bf16.mxu0 0
    %1338 = vmatpush1.bf16.xpose.msra.mxu0 0
    %1339 = vmatprep.subr.bf16.mxu0 0
    %1340 = vmatpush1.bf16.xpose.msra.mxu0 0
    %1341 = vmatprep.subr.bf16.mxu0 0
    %1342 = vmatpush1.bf16.xpose.msra.mxu0 0
    %1343 = vmatprep.subr.bf16.mxu0 0
    %1344 = vmatpush1.bf16.xpose.msra.mxu0 0
    %1345 = vmatprep.subr.bf16.mxu0 0
    %1346 = vmatpush1.bf16.xpose.msra.mxu0 0
    %1347 = vmatprep.subr.bf16.mxu0 0
    %1348 = vmatpush1.bf16.xpose.msra.mxu0 0
    %1349 = vmatprep.subr.bf16.mxu0 0
    %1350 = vmatpush1.bf16.xpose.msra.mxu0 0
    %1351 = vmatprep.subr.bf16.mxu0 0
    %1352 = vmatpush1.bf16.xpose.msra.mxu0 0
    %1353 = vmatprep.subr.bf16.mxu0 0
    %1354 = vmatpush1.bf16.xpose.msra.mxu0 0
    %1355 = vmatprep.subr.bf16.mxu0 0
    %1356 = vmatpush1.bf16.xpose.msra.mxu0 0
    %1357 = vmatprep.subr.bf16.mxu0 0
    %1358 = vmatpush1.bf16.xpose.msra.mxu0 0
    %1359 = vmatprep.mubr.bf16.mxu0 0
    %1360 = vmatmul.mubr.bf16.gmra.mrb[0].mxu0 %v1322
    %v1361 = vpop.f32.mrb[0].mxu0
    %v1362 = vadd.f32 0.0, %v1361
    %v1363 = vpop.f32.mrb[0].mxu0
    %v1364 = vpop.f32.mrb[0].mxu0
    %v1365 = vpop.f32.mrb[0].mxu0
    %1366 = vdwg.mxu0
    %v1368 = vsel %vm1274, %v660, 0
    %v1371 = vsel %vm1274, %v964, 0
    %1373 = vmatprep.subr.bf16.mxu0 0
    %1374 = vmatpush1.bf16.xpose.msra.mxu0 %v1371
    %1375 = vmatprep.subr.bf16.mxu0 0
    %1376 = vmatpush1.bf16.xpose.msra.mxu0 0
    %1377 = vmatprep.subr.bf16.mxu0 0
    %1378 = vmatpush1.bf16.xpose.msra.mxu0 0
    %1379 = vmatprep.subr.bf16.mxu0 0
    %1380 = vmatpush1.bf16.xpose.msra.mxu0 0
    %1381 = vmatprep.subr.bf16.mxu0 0
    %1382 = vmatpush1.bf16.xpose.msra.mxu0 0
    %1383 = vmatprep.subr.bf16.mxu0 0
    %1384 = vmatpush1.bf16.xpose.msra.mxu0 0
    %1385 = vmatprep.subr.bf16.mxu0 0
    %1386 = vmatpush1.bf16.xpose.msra.mxu0 0
    %1387 = vmatprep.subr.bf16.mxu0 0
    %1388 = vmatpush1.bf16.xpose.msra.mxu0 0
    %1389 = vmatprep.subr.bf16.mxu0 0
    %1390 = vmatpush1.bf16.xpose.msra.mxu0 0
    %1391 = vmatprep.subr.bf16.mxu0 0
    %1392 = vmatpush1.bf16.xpose.msra.mxu0 0
    %1393 = vmatprep.subr.bf16.mxu0 0
    %1394 = vmatpush1.bf16.xpose.msra.mxu0 0
    %1395 = vmatprep.subr.bf16.mxu0 0
    %1396 = vmatpush1.bf16.xpose.msra.mxu0 0
    %1397 = vmatprep.subr.bf16.mxu0 0
    %1398 = vmatpush1.bf16.xpose.msra.mxu0 0
    %1399 = vmatprep.subr.bf16.mxu0 0
    %1400 = vmatpush1.bf16.xpose.msra.mxu0 0
    %1401 = vmatprep.subr.bf16.mxu0 0
    %1402 = vmatpush1.bf16.xpose.msra.mxu0 0
    %1403 = vmatprep.subr.bf16.mxu0 0
    %1404 = vmatpush1.bf16.xpose.msra.mxu0 0
    %1405 = vmatprep.mubr.bf16.mxu0 0
    %1406 = vmatmul.mubr.bf16.gmra.mrb[0].mxu0 %v1368
    %v1407 = vpop.f32.mrb[0].mxu0
    %v1408 = vadd.f32 0.0, %v1407
    %v1409 = vpop.f32.mrb[0].mxu0
    %v1410 = vpop.f32.mrb[0].mxu0
    %v1411 = vpop.f32.mrb[0].mxu0
    %1412 = vdwg.mxu0
    %v1414 = vsel %vm1274, %v661, 0
    %v1417 = vsel %vm1274, %v965, 0
    %1419 = vmatprep.subr.bf16.mxu0 0
    %1420 = vmatpush1.bf16.xpose.msra.mxu0 %v1417
    %1421 = vmatprep.subr.bf16.mxu0 0
    %1422 = vmatpush1.bf16.xpose.msra.mxu0 0
    %1423 = vmatprep.subr.bf16.mxu0 0
    %1424 = vmatpush1.bf16.xpose.msra.mxu0 0
    %1425 = vmatprep.subr.bf16.mxu0 0
    %1426 = vmatpush1.bf16.xpose.msra.mxu0 0
    %1427 = vmatprep.subr.bf16.mxu0 0
    %1428 = vmatpush1.bf16.xpose.msra.mxu0 0
    %1429 = vmatprep.subr.bf16.mxu0 0
    %1430 = vmatpush1.bf16.xpose.msra.mxu0 0
    %1431 = vmatprep.subr.bf16.mxu0 0
    %1432 = vmatpush1.bf16.xpose.msra.mxu0 0
    %1433 = vmatprep.subr.bf16.mxu0 0
    %1434 = vmatpush1.bf16.xpose.msra.mxu0 0
    %1435 = vmatprep.subr.bf16.mxu0 0
    %1436 = vmatpush1.bf16.xpose.msra.mxu0 0
    %1437 = vmatprep.subr.bf16.mxu0 0
    %1438 = vmatpush1.bf16.xpose.msra.mxu0 0
    %1439 = vmatprep.subr.bf16.mxu0 0
    %1440 = vmatpush1.bf16.xpose.msra.mxu0 0
    %1441 = vmatprep.subr.bf16.mxu0 0
    %1442 = vmatpush1.bf16.xpose.msra.mxu0 0
    %1443 = vmatprep.subr.bf16.mxu0 0
    %1444 = vmatpush1.bf16.xpose.msra.mxu0 0
    %1445 = vmatprep.subr.bf16.mxu0 0
    %1446 = vmatpush1.bf16.xpose.msra.mxu0 0
    %1447 = vmatprep.subr.bf16.mxu0 0
    %1448 = vmatpush1.bf16.xpose.msra.mxu0 0
    %1449 = vmatprep.subr.bf16.mxu0 0
    %1450 = vmatpush1.bf16.xpose.msra.mxu0 0
    %1451 = vmatprep.mubr.bf16.mxu0 0
    %1452 = vmatmul.mubr.bf16.gmra.mrb[0].mxu0 %v1414
    %v1453 = vpop.f32.mrb[0].mxu0
    %v1454 = vadd.f32 0.0, %v1453
    %v1455 = vpop.f32.mrb[0].mxu0
    %v1456 = vpop.f32.mrb[0].mxu0
    %v1457 = vpop.f32.mrb[0].mxu0
    %1458 = vdwg.mxu0
    %v1460 = vsel %vm1274, %v662, 0
    %v1463 = vsel %vm1274, %v966, 0
    %1465 = vmatprep.subr.bf16.mxu0 0
    %1466 = vmatpush1.bf16.xpose.msra.mxu0 %v1463
    %1467 = vmatprep.subr.bf16.mxu0 0
    %1468 = vmatpush1.bf16.xpose.msra.mxu0 0
    %1469 = vmatprep.subr.bf16.mxu0 0
    %1470 = vmatpush1.bf16.xpose.msra.mxu0 0
    %1471 = vmatprep.subr.bf16.mxu0 0
    %1472 = vmatpush1.bf16.xpose.msra.mxu0 0
    %1473 = vmatprep.subr.bf16.mxu0 0
    %1474 = vmatpush1.bf16.xpose.msra.mxu0 0
    %1475 = vmatprep.subr.bf16.mxu0 0
    %1476 = vmatpush1.bf16.xpose.msra.mxu0 0
    %1477 = vmatprep.subr.bf16.mxu0 0
    %1478 = vmatpush1.bf16.xpose.msra.mxu0 0
    %1479 = vmatprep.subr.bf16.mxu0 0
    %1480 = vmatpush1.bf16.xpose.msra.mxu0 0
    %1481 = vmatprep.subr.bf16.mxu0 0
    %1482 = vmatpush1.bf16.xpose.msra.mxu0 0
    %1483 = vmatprep.subr.bf16.mxu0 0
    %1484 = vmatpush1.bf16.xpose.msra.mxu0 0
    %1485 = vmatprep.subr.bf16.mxu0 0
    %1486 = vmatpush1.bf16.xpose.msra.mxu0 0
    %1487 = vmatprep.subr.bf16.mxu0 0
    %1488 = vmatpush1.bf16.xpose.msra.mxu0 0
    %1489 = vmatprep.subr.bf16.mxu0 0
    %1490 = vmatpush1.bf16.xpose.msra.mxu0 0
    %1491 = vmatprep.subr.bf16.mxu0 0
    %1492 = vmatpush1.bf16.xpose.msra.mxu0 0
    %1493 = vmatprep.subr.bf16.mxu0 0
    %1494 = vmatpush1.bf16.xpose.msra.mxu0 0
    %1495 = vmatprep.subr.bf16.mxu0 0
    %1496 = vmatpush1.bf16.xpose.msra.mxu0 0
    %1497 = vmatprep.mubr.bf16.mxu0 0
    %1498 = vmatmul.mubr.bf16.gmra.mrb[0].mxu0 %v1460
    %v1499 = vpop.f32.mrb[0].mxu0
    %v1500 = vadd.f32 0.0, %v1499
    %v1501 = vpop.f32.mrb[0].mxu0
    %v1502 = vpop.f32.mrb[0].mxu0
    %v1503 = vpop.f32.mrb[0].mxu0
    %1504 = vdwg.mxu0
    %v1506 = vsel %vm1274, %v663, 0
    %v1509 = vsel %vm1274, %v967, 0
    %1511 = vmatprep.subr.bf16.mxu0 0
    %1512 = vmatpush1.bf16.xpose.msra.mxu0 %v1509
    %1513 = vmatprep.subr.bf16.mxu0 0
    %1514 = vmatpush1.bf16.xpose.msra.mxu0 0
    %1515 = vmatprep.subr.bf16.mxu0 0
    %1516 = vmatpush1.bf16.xpose.msra.mxu0 0
    %1517 = vmatprep.subr.bf16.mxu0 0
    %1518 = vmatpush1.bf16.xpose.msra.mxu0 0
    %1519 = vmatprep.subr.bf16.mxu0 0
    %1520 = vmatpush1.bf16.xpose.msra.mxu0 0
    %1521 = vmatprep.subr.bf16.mxu0 0
    %1522 = vmatpush1.bf16.xpose.msra.mxu0 0
    %1523 = vmatprep.subr.bf16.mxu0 0
    %1524 = vmatpush1.bf16.xpose.msra.mxu0 0
    %1525 = vmatprep.subr.bf16.mxu0 0
    %1526 = vmatpush1.bf16.xpose.msra.mxu0 0
    %1527 = vmatprep.subr.bf16.mxu0 0
    %1528 = vmatpush1.bf16.xpose.msra.mxu0 0
    %1529 = vmatprep.subr.bf16.mxu0 0
    %1530 = vmatpush1.bf16.xpose.msra.mxu0 0
    %1531 = vmatprep.subr.bf16.mxu0 0
    %1532 = vmatpush1.bf16.xpose.msra.mxu0 0
    %1533 = vmatprep.subr.bf16.mxu0 0
    %1534 = vmatpush1.bf16.xpose.msra.mxu0 0
    %1535 = vmatprep.subr.bf16.mxu0 0
    %1536 = vmatpush1.bf16.xpose.msra.mxu0 0
    %1537 = vmatprep.subr.bf16.mxu0 0
    %1538 = vmatpush1.bf16.xpose.msra.mxu0 0
    %1539 = vmatprep.subr.bf16.mxu0 0
    %1540 = vmatpush1.bf16.xpose.msra.mxu0 0
    %1541 = vmatprep.subr.bf16.mxu0 0
    %1542 = vmatpush1.bf16.xpose.msra.mxu0 0
    %1543 = vmatprep.mubr.bf16.mxu0 0
    %1544 = vmatmul.mubr.bf16.gmra.mrb[0].mxu0 %v1506
    %v1545 = vpop.f32.mrb[0].mxu0
    %v1546 = vadd.f32 0.0, %v1545
    %v1547 = vpop.f32.mrb[0].mxu0
    %v1548 = vpop.f32.mrb[0].mxu0
    %v1549 = vpop.f32.mrb[0].mxu0
    %1550 = vdwg.mxu0
    %v1552 = vsel %vm1274, %v664, 0
    %v1555 = vsel %vm1274, %v968, 0
    %1557 = vmatprep.subr.bf16.mxu0 0
    %1558 = vmatpush1.bf16.xpose.msra.mxu0 %v1555
    %1559 = vmatprep.subr.bf16.mxu0 0
    %1560 = vmatpush1.bf16.xpose.msra.mxu0 0
    %1561 = vmatprep.subr.bf16.mxu0 0
    %1562 = vmatpush1.bf16.xpose.msra.mxu0 0
    %1563 = vmatprep.subr.bf16.mxu0 0
    %1564 = vmatpush1.bf16.xpose.msra.mxu0 0
    %1565 = vmatprep.subr.bf16.mxu0 0
    %1566 = vmatpush1.bf16.xpose.msra.mxu0 0
    %1567 = vmatprep.subr.bf16.mxu0 0
    %1568 = vmatpush1.bf16.xpose.msra.mxu0 0
    %1569 = vmatprep.subr.bf16.mxu0 0
    %1570 = vmatpush1.bf16.xpose.msra.mxu0 0
    %1571 = vmatprep.subr.bf16.mxu0 0
    %1572 = vmatpush1.bf16.xpose.msra.mxu0 0
    %1573 = vmatprep.subr.bf16.mxu0 0
    %1574 = vmatpush1.bf16.xpose.msra.mxu0 0
    %1575 = vmatprep.subr.bf16.mxu0 0
    %1576 = vmatpush1.bf16.xpose.msra.mxu0 0
    %1577 = vmatprep.subr.bf16.mxu0 0
    %1578 = vmatpush1.bf16.xpose.msra.mxu0 0
    %1579 = vmatprep.subr.bf16.mxu0 0
    %1580 = vmatpush1.bf16.xpose.msra.mxu0 0
    %1581 = vmatprep.subr.bf16.mxu0 0
    %1582 = vmatpush1.bf16.xpose.msra.mxu0 0
    %1583 = vmatprep.subr.bf16.mxu0 0
    %1584 = vmatpush1.bf16.xpose.msra.mxu0 0
    %1585 = vmatprep.subr.bf16.mxu0 0
    %1586 = vmatpush1.bf16.xpose.msra.mxu0 0
    %1587 = vmatprep.subr.bf16.mxu0 0
    %1588 = vmatpush1.bf16.xpose.msra.mxu0 0
    %1589 = vmatprep.mubr.bf16.mxu0 0
    %1590 = vmatmul.mubr.bf16.gmra.mrb[0].mxu0 %v1552
    %v1591 = vpop.f32.mrb[0].mxu0
    %v1592 = vadd.f32 0.0, %v1591
    %v1593 = vpop.f32.mrb[0].mxu0
    %v1594 = vpop.f32.mrb[0].mxu0
    %v1595 = vpop.f32.mrb[0].mxu0
    %1596 = vdwg.mxu0
    %v1598 = vsel %vm1274, %v665, 0
    %v1601 = vsel %vm1274, %v969, 0
    %1603 = vmatprep.subr.bf16.mxu0 0
    %1604 = vmatpush1.bf16.xpose.msra.mxu0 %v1601
    %1605 = vmatprep.subr.bf16.mxu0 0
    %1606 = vmatpush1.bf16.xpose.msra.mxu0 0
    %1607 = vmatprep.subr.bf16.mxu0 0
    %1608 = vmatpush1.bf16.xpose.msra.mxu0 0
    %1609 = vmatprep.subr.bf16.mxu0 0
    %1610 = vmatpush1.bf16.xpose.msra.mxu0 0
    %1611 = vmatprep.subr.bf16.mxu0 0
    %1612 = vmatpush1.bf16.xpose.msra.mxu0 0
    %1613 = vmatprep.subr.bf16.mxu0 0
    %1614 = vmatpush1.bf16.xpose.msra.mxu0 0
    %1615 = vmatprep.subr.bf16.mxu0 0
    %1616 = vmatpush1.bf16.xpose.msra.mxu0 0
    %1617 = vmatprep.subr.bf16.mxu0 0
    %1618 = vmatpush1.bf16.xpose.msra.mxu0 0
    %1619 = vmatprep.subr.bf16.mxu0 0
    %1620 = vmatpush1.bf16.xpose.msra.mxu0 0
    %1621 = vmatprep.subr.bf16.mxu0 0
    %1622 = vmatpush1.bf16.xpose.msra.mxu0 0
    %1623 = vmatprep.subr.bf16.mxu0 0
    %1624 = vmatpush1.bf16.xpose.msra.mxu0 0
    %1625 = vmatprep.subr.bf16.mxu0 0
    %1626 = vmatpush1.bf16.xpose.msra.mxu0 0
    %1627 = vmatprep.subr.bf16.mxu0 0
    %1628 = vmatpush1.bf16.xpose.msra.mxu0 0
    %1629 = vmatprep.subr.bf16.mxu0 0
    %1630 = vmatpush1.bf16.xpose.msra.mxu0 0
    %1631 = vmatprep.subr.bf16.mxu0 0
    %1632 = vmatpush1.bf16.xpose.msra.mxu0 0
    %1633 = vmatprep.subr.bf16.mxu0 0
    %1634 = vmatpush1.bf16.xpose.msra.mxu0 0
    %1635 = vmatprep.mubr.bf16.mxu0 0
    %1636 = vmatmul.mubr.bf16.gmra.mrb[0].mxu0 %v1598
    %v1637 = vpop.f32.mrb[0].mxu0
    %v1638 = vadd.f32 0.0, %v1637
    %v1639 = vpop.f32.mrb[0].mxu0
    %v1640 = vpop.f32.mrb[0].mxu0
    %v1641 = vpop.f32.mrb[0].mxu0
    %1642 = vdwg.mxu0
    %v1643 = vmul.f32 %v1316, 0.35355338
    %v1644 = vmul.f32 %v1362, 0.35355338
    %v1645 = vmul.f32 %v1408, 0.35355338
    %v1646 = vmul.f32 %v1454, 0.35355338
    %v1647 = vmul.f32 %v1500, 0.35355338
    %v1648 = vmul.f32 %v1546, 0.35355338
    %v1649 = vmul.f32 %v1592, 0.35355338
    %v1650 = vmul.f32 %v1638, 0.35355338
    %v1651 = vadd.f32 %v1643, %v282
    %v1652 = vadd.f32 %v1644, %v283
    %v1653 = vadd.f32 %v1645, %v284
    %v1654 = vadd.f32 %v1646, %v285
    %v1655 = vadd.f32 %v1647, %v286
    %v1656 = vadd.f32 %v1648, %v287
    %v1657 = vadd.f32 %v1649, %v288
    %v1658 = vadd.f32 %v1650, %v289
    %v1659 = vsel %vm1274, %v1651, -inf
    %1660 = vmax.xlane.f32.xlu0 %v1659
    %v1661 = vpop.xlane.xlu0 %1660
    %v1662 = vsel %vm1274, %v1652, -inf
    %1663 = vmax.xlane.f32.xlu0 %v1662
    %v1664 = vpop.xlane.xlu0 %1663
    %v1665 = vsel %vm1274, %v1653, -inf
    %1666 = vmax.xlane.f32.xlu0 %v1665
    %v1667 = vpop.xlane.xlu0 %1666
    %v1668 = vsel %vm1274, %v1654, -inf
    %1669 = vmax.xlane.f32.xlu0 %v1668
    %v1670 = vpop.xlane.xlu0 %1669
    %v1671 = vsel %vm1274, %v1655, -inf
    %1672 = vmax.xlane.f32.xlu0 %v1671
    %v1673 = vpop.xlane.xlu0 %1672
    %v1674 = vsel %vm1274, %v1656, -inf
    %1675 = vmax.xlane.f32.xlu0 %v1674
    %v1676 = vpop.xlane.xlu0 %1675
    %v1677 = vsel %vm1274, %v1657, -inf
    %1678 = vmax.xlane.f32.xlu0 %v1677
    %v1679 = vpop.xlane.xlu0 %1678
    %v1680 = vsel %vm1274, %v1658, -inf
    %1681 = vmax.xlane.f32.xlu0 %v1680
    %v1682 = vpop.xlane.xlu0 %1681
    %v1683 = vsub.f32 %v1651, %v1661
    %v1684 = vsub.f32 %v1652, %v1664
    %v1685 = vsub.f32 %v1653, %v1667
    %v1686 = vsub.f32 %v1654, %v1670
    %v1687 = vsub.f32 %v1655, %v1673
    %v1688 = vsub.f32 %v1656, %v1676
    %v1689 = vsub.f32 %v1657, %v1679
    %v1690 = vsub.f32 %v1658, %v1682
    %v1691 = vmul.f32 %v1683, 1.442695
    %v1692 = vpow.pop %v1691
    %v1693 = vmul.f32 %v1684, 1.442695
    %v1694 = vpow.pop %v1693
    %v1695 = vmul.f32 %v1685, 1.442695
    %v1696 = vpow.pop %v1695
    %v1697 = vmul.f32 %v1686, 1.442695
    %v1698 = vpow.pop %v1697
    %v1699 = vmul.f32 %v1687, 1.442695
    %v1700 = vpow.pop %v1699
    %v1701 = vmul.f32 %v1688, 1.442695
    %v1702 = vpow.pop %v1701
    %v1703 = vmul.f32 %v1689, 1.442695
    %v1704 = vpow.pop %v1703
    %v1705 = vmul.f32 %v1690, 1.442695
    %v1706 = vpow.pop %v1705
    %v1707 = vsel %vm1274, %v1692, 0.0
    %1708 = vadd.xlane.f32.xlu0 %v1707
    %v1709 = vpop.xlane.xlu0 %1708
    %v1710 = vsel %vm1274, %v1694, 0.0
    %1711 = vadd.xlane.f32.xlu0 %v1710
    %v1712 = vpop.xlane.xlu0 %1711
    %v1713 = vsel %vm1274, %v1696, 0.0
    %1714 = vadd.xlane.f32.xlu0 %v1713
    %v1715 = vpop.xlane.xlu0 %1714
    %v1716 = vsel %vm1274, %v1698, 0.0
    %1717 = vadd.xlane.f32.xlu0 %v1716
    %v1718 = vpop.xlane.xlu0 %1717
    %v1719 = vsel %vm1274, %v1700, 0.0
    %1720 = vadd.xlane.f32.xlu0 %v1719
    %v1721 = vpop.xlane.xlu0 %1720
    %v1722 = vsel %vm1274, %v1702, 0.0
    %1723 = vadd.xlane.f32.xlu0 %v1722
    %v1724 = vpop.xlane.xlu0 %1723
    %v1725 = vsel %vm1274, %v1704, 0.0
    %1726 = vadd.xlane.f32.xlu0 %v1725
    %v1727 = vpop.xlane.xlu0 %1726
    %v1728 = vsel %vm1274, %v1706, 0.0
    %1729 = vadd.xlane.f32.xlu0 %v1728
    %v1730 = vpop.xlane.xlu0 %1729
    %v1731 = vrcp.pop %v1709
    %v1732 = vmul.f32 %v1692, %v1731
    %v1733 = vrcp.pop %v1712
    %v1734 = vmul.f32 %v1694, %v1733
    %v1735 = vrcp.pop %v1715
    %v1736 = vmul.f32 %v1696, %v1735
    %v1737 = vrcp.pop %v1718
    %v1738 = vmul.f32 %v1698, %v1737
    %v1739 = vrcp.pop %v1721
    %v1740 = vmul.f32 %v1700, %v1739
    %v1741 = vrcp.pop %v1724
    %v1742 = vmul.f32 %v1702, %v1741
    %v1743 = vrcp.pop %v1727
    %v1744 = vmul.f32 %v1704, %v1743
    %v1745 = vrcp.pop %v1730
    %v1746 = vmul.f32 %v1706, %v1745
    %v1747 = vpack.c.bf16 %v1732, %v1732
    %v1748 = vpack.c.bf16 %v1734, %v1734
    %v1749 = vpack.c.bf16 %v1736, %v1736
    %v1750 = vpack.c.bf16 %v1738, %v1738
    %v1751 = vpack.c.bf16 %v1740, %v1740
    %v1752 = vpack.c.bf16 %v1742, %v1742
    %v1753 = vpack.c.bf16 %v1744, %v1744
    %v1754 = vpack.c.bf16 %v1746, %v1746
    %v1756 = vsel %vm1274, %v1747, 0
    %vm1758 = vcmask 1043456
    %v1760 = vsel %vm1758, %v1266, 0
    %1762 = vmatprep.subr.bf16.mxu0 0
    %1763 = vmatpush1.bf16.msra.mxu0 %v1760
    %1764 = vmatprep.subr.bf16.mxu0 0
    %1765 = vmatpush1.bf16.msra.mxu0 0
    %1766 = vmatprep.subr.bf16.mxu0 0
    %1767 = vmatpush1.bf16.msra.mxu0 0
    %1768 = vmatprep.subr.bf16.mxu0 0
    %1769 = vmatpush1.bf16.msra.mxu0 0
    %1770 = vmatprep.subr.bf16.mxu0 0
    %1771 = vmatpush1.bf16.msra.mxu0 0
    %1772 = vmatprep.subr.bf16.mxu0 0
    %1773 = vmatpush1.bf16.msra.mxu0 0
    %1774 = vmatprep.subr.bf16.mxu0 0
    %1775 = vmatpush1.bf16.msra.mxu0 0
    %1776 = vmatprep.subr.bf16.mxu0 0
    %1777 = vmatpush1.bf16.msra.mxu0 0
    %1778 = vmatprep.subr.bf16.mxu0 0
    %1779 = vmatpush1.bf16.msra.mxu0 0
    %1780 = vmatprep.subr.bf16.mxu0 0
    %1781 = vmatpush1.bf16.msra.mxu0 0
    %1782 = vmatprep.subr.bf16.mxu0 0
    %1783 = vmatpush1.bf16.msra.mxu0 0
    %1784 = vmatprep.subr.bf16.mxu0 0
    %1785 = vmatpush1.bf16.msra.mxu0 0
    %1786 = vmatprep.subr.bf16.mxu0 0
    %1787 = vmatpush1.bf16.msra.mxu0 0
    %1788 = vmatprep.subr.bf16.mxu0 0
    %1789 = vmatpush1.bf16.msra.mxu0 0
    %1790 = vmatprep.subr.bf16.mxu0 0
    %1791 = vmatpush1.bf16.msra.mxu0 0
    %1792 = vmatprep.subr.bf16.mxu0 0
    %1793 = vmatpush1.bf16.msra.mxu0 0
    %1794 = vmatprep.mubr.bf16.mxu0 0
    %1795 = vmatmul.mubr.bf16.gmra.mrb[0].mxu0 %v1756
    %v1796 = vpop.f32.mrb[0].mxu0
    %v1797 = vadd.f32 0.0, %v1796
    %v1798 = vpop.f32.mrb[0].mxu0
    %v1799 = vpop.f32.mrb[0].mxu0
    %v1800 = vpop.f32.mrb[0].mxu0
    %1801 = vdwg.mxu0
    %v1803 = vsel %vm1274, %v1748, 0
    %v1806 = vsel %vm1758, %v1267, 0
    %1808 = vmatprep.subr.bf16.mxu0 0
    %1809 = vmatpush1.bf16.msra.mxu0 %v1806
    %1810 = vmatprep.subr.bf16.mxu0 0
    %1811 = vmatpush1.bf16.msra.mxu0 0
    %1812 = vmatprep.subr.bf16.mxu0 0
    %1813 = vmatpush1.bf16.msra.mxu0 0
    %1814 = vmatprep.subr.bf16.mxu0 0
    %1815 = vmatpush1.bf16.msra.mxu0 0
    %1816 = vmatprep.subr.bf16.mxu0 0
    %1817 = vmatpush1.bf16.msra.mxu0 0
    %1818 = vmatprep.subr.bf16.mxu0 0
    %1819 = vmatpush1.bf16.msra.mxu0 0
    %1820 = vmatprep.subr.bf16.mxu0 0
    %1821 = vmatpush1.bf16.msra.mxu0 0
    %1822 = vmatprep.subr.bf16.mxu0 0
    %1823 = vmatpush1.bf16.msra.mxu0 0
    %1824 = vmatprep.subr.bf16.mxu0 0
    %1825 = vmatpush1.bf16.msra.mxu0 0
    %1826 = vmatprep.subr.bf16.mxu0 0
    %1827 = vmatpush1.bf16.msra.mxu0 0
    %1828 = vmatprep.subr.bf16.mxu0 0
    %1829 = vmatpush1.bf16.msra.mxu0 0
    %1830 = vmatprep.subr.bf16.mxu0 0
    %1831 = vmatpush1.bf16.msra.mxu0 0
    %1832 = vmatprep.subr.bf16.mxu0 0
    %1833 = vmatpush1.bf16.msra.mxu0 0
    %1834 = vmatprep.subr.bf16.mxu0 0
    %1835 = vmatpush1.bf16.msra.mxu0 0
    %1836 = vmatprep.subr.bf16.mxu0 0
    %1837 = vmatpush1.bf16.msra.mxu0 0
    %1838 = vmatprep.subr.bf16.mxu0 0
    %1839 = vmatpush1.bf16.msra.mxu0 0
    %1840 = vmatprep.mubr.bf16.mxu0 0
    %1841 = vmatmul.mubr.bf16.gmra.mrb[0].mxu0 %v1803
    %v1842 = vpop.f32.mrb[0].mxu0
    %v1843 = vadd.f32 0.0, %v1842
    %v1844 = vpop.f32.mrb[0].mxu0
    %v1845 = vpop.f32.mrb[0].mxu0
    %v1846 = vpop.f32.mrb[0].mxu0
    %1847 = vdwg.mxu0
    %v1849 = vsel %vm1274, %v1749, 0
    %v1852 = vsel %vm1758, %v1268, 0
    %1854 = vmatprep.subr.bf16.mxu0 0
    %1855 = vmatpush1.bf16.msra.mxu0 %v1852
    %1856 = vmatprep.subr.bf16.mxu0 0
    %1857 = vmatpush1.bf16.msra.mxu0 0
    %1858 = vmatprep.subr.bf16.mxu0 0
    %1859 = vmatpush1.bf16.msra.mxu0 0
    %1860 = vmatprep.subr.bf16.mxu0 0
    %1861 = vmatpush1.bf16.msra.mxu0 0
    %1862 = vmatprep.subr.bf16.mxu0 0
    %1863 = vmatpush1.bf16.msra.mxu0 0
    %1864 = vmatprep.subr.bf16.mxu0 0
    %1865 = vmatpush1.bf16.msra.mxu0 0
    %1866 = vmatprep.subr.bf16.mxu0 0
    %1867 = vmatpush1.bf16.msra.mxu0 0
    %1868 = vmatprep.subr.bf16.mxu0 0
    %1869 = vmatpush1.bf16.msra.mxu0 0
    %1870 = vmatprep.subr.bf16.mxu0 0
    %1871 = vmatpush1.bf16.msra.mxu0 0
    %1872 = vmatprep.subr.bf16.mxu0 0
    %1873 = vmatpush1.bf16.msra.mxu0 0
    %1874 = vmatprep.subr.bf16.mxu0 0
    %1875 = vmatpush1.bf16.msra.mxu0 0
    %1876 = vmatprep.subr.bf16.mxu0 0
    %1877 = vmatpush1.bf16.msra.mxu0 0
    %1878 = vmatprep.subr.bf16.mxu0 0
    %1879 = vmatpush1.bf16.msra.mxu0 0
    %1880 = vmatprep.subr.bf16.mxu0 0
    %1881 = vmatpush1.bf16.msra.mxu0 0
    %1882 = vmatprep.subr.bf16.mxu0 0
    %1883 = vmatpush1.bf16.msra.mxu0 0
    %1884 = vmatprep.subr.bf16.mxu0 0
    %1885 = vmatpush1.bf16.msra.mxu0 0
    %1886 = vmatprep.mubr.bf16.mxu0 0
    %1887 = vmatmul.mubr.bf16.gmra.mrb[0].mxu0 %v1849
    %v1888 = vpop.f32.mrb[0].mxu0
    %v1889 = vadd.f32 0.0, %v1888
    %v1890 = vpop.f32.mrb[0].mxu0
    %v1891 = vpop.f32.mrb[0].mxu0
    %v1892 = vpop.f32.mrb[0].mxu0
    %1893 = vdwg.mxu0
    %v1895 = vsel %vm1274, %v1750, 0
    %v1898 = vsel %vm1758, %v1269, 0
    %1900 = vmatprep.subr.bf16.mxu0 0
    %1901 = vmatpush1.bf16.msra.mxu0 %v1898
    %1902 = vmatprep.subr.bf16.mxu0 0
    %1903 = vmatpush1.bf16.msra.mxu0 0
    %1904 = vmatprep.subr.bf16.mxu0 0
    %1905 = vmatpush1.bf16.msra.mxu0 0
    %1906 = vmatprep.subr.bf16.mxu0 0
    %1907 = vmatpush1.bf16.msra.mxu0 0
    %1908 = vmatprep.subr.bf16.mxu0 0
    %1909 = vmatpush1.bf16.msra.mxu0 0
    %1910 = vmatprep.subr.bf16.mxu0 0
    %1911 = vmatpush1.bf16.msra.mxu0 0
    %1912 = vmatprep.subr.bf16.mxu0 0
    %1913 = vmatpush1.bf16.msra.mxu0 0
    %1914 = vmatprep.subr.bf16.mxu0 0
    %1915 = vmatpush1.bf16.msra.mxu0 0
    %1916 = vmatprep.subr.bf16.mxu0 0
    %1917 = vmatpush1.bf16.msra.mxu0 0
    %1918 = vmatprep.subr.bf16.mxu0 0
    %1919 = vmatpush1.bf16.msra.mxu0 0
    %1920 = vmatprep.subr.bf16.mxu0 0
    %1921 = vmatpush1.bf16.msra.mxu0 0
    %1922 = vmatprep.subr.bf16.mxu0 0
    %1923 = vmatpush1.bf16.msra.mxu0 0
    %1924 = vmatprep.subr.bf16.mxu0 0
    %1925 = vmatpush1.bf16.msra.mxu0 0
    %1926 = vmatprep.subr.bf16.mxu0 0
    %1927 = vmatpush1.bf16.msra.mxu0 0
    %1928 = vmatprep.subr.bf16.mxu0 0
    %1929 = vmatpush1.bf16.msra.mxu0 0
    %1930 = vmatprep.subr.bf16.mxu0 0
    %1931 = vmatpush1.bf16.msra.mxu0 0
    %1932 = vmatprep.mubr.bf16.mxu0 0
    %1933 = vmatmul.mubr.bf16.gmra.mrb[0].mxu0 %v1895
    %v1934 = vpop.f32.mrb[0].mxu0
    %v1935 = vadd.f32 0.0, %v1934
    %v1936 = vpop.f32.mrb[0].mxu0
    %v1937 = vpop.f32.mrb[0].mxu0
    %v1938 = vpop.f32.mrb[0].mxu0
    %1939 = vdwg.mxu0
    %v1941 = vsel %vm1274, %v1751, 0
    %v1944 = vsel %vm1758, %v1270, 0
    %1946 = vmatprep.subr.bf16.mxu0 0
    %1947 = vmatpush1.bf16.msra.mxu0 %v1944
    %1948 = vmatprep.subr.bf16.mxu0 0
    %1949 = vmatpush1.bf16.msra.mxu0 0
    %1950 = vmatprep.subr.bf16.mxu0 0
    %1951 = vmatpush1.bf16.msra.mxu0 0
    %1952 = vmatprep.subr.bf16.mxu0 0
    %1953 = vmatpush1.bf16.msra.mxu0 0
    %1954 = vmatprep.subr.bf16.mxu0 0
    %1955 = vmatpush1.bf16.msra.mxu0 0
    %1956 = vmatprep.subr.bf16.mxu0 0
    %1957 = vmatpush1.bf16.msra.mxu0 0
    %1958 = vmatprep.subr.bf16.mxu0 0
    %1959 = vmatpush1.bf16.msra.mxu0 0
    %1960 = vmatprep.subr.bf16.mxu0 0
    %1961 = vmatpush1.bf16.msra.mxu0 0
    %1962 = vmatprep.subr.bf16.mxu0 0
    %1963 = vmatpush1.bf16.msra.mxu0 0
    %1964 = vmatprep.subr.bf16.mxu0 0
    %1965 = vmatpush1.bf16.msra.mxu0 0
    %1966 = vmatprep.subr.bf16.mxu0 0
    %1967 = vmatpush1.bf16.msra.mxu0 0
    %1968 = vmatprep.subr.bf16.mxu0 0
    %1969 = vmatpush1.bf16.msra.mxu0 0
    %1970 = vmatprep.subr.bf16.mxu0 0
    %1971 = vmatpush1.bf16.msra.mxu0 0
    %1972 = vmatprep.subr.bf16.mxu0 0
    %1973 = vmatpush1.bf16.msra.mxu0 0
    %1974 = vmatprep.subr.bf16.mxu0 0
    %1975 = vmatpush1.bf16.msra.mxu0 0
    %1976 = vmatprep.subr.bf16.mxu0 0
    %1977 = vmatpush1.bf16.msra.mxu0 0
    %1978 = vmatprep.mubr.bf16.mxu0 0
    %1979 = vmatmul.mubr.bf16.gmra.mrb[0].mxu0 %v1941
    %v1980 = vpop.f32.mrb[0].mxu0
    %v1981 = vadd.f32 0.0, %v1980
    %v1982 = vpop.f32.mrb[0].mxu0
    %v1983 = vpop.f32.mrb[0].mxu0
    %v1984 = vpop.f32.mrb[0].mxu0
    %1985 = vdwg.mxu0
    %v1987 = vsel %vm1274, %v1752, 0
    %v1990 = vsel %vm1758, %v1271, 0
    %1992 = vmatprep.subr.bf16.mxu0 0
    %1993 = vmatpush1.bf16.msra.mxu0 %v1990
    %1994 = vmatprep.subr.bf16.mxu0 0
    %1995 = vmatpush1.bf16.msra.mxu0 0
    %1996 = vmatprep.subr.bf16.mxu0 0
    %1997 = vmatpush1.bf16.msra.mxu0 0
    %1998 = vmatprep.subr.bf16.mxu0 0
    %1999 = vmatpush1.bf16.msra.mxu0 0
    %2000 = vmatprep.subr.bf16.mxu0 0
    %2001 = vmatpush1.bf16.msra.mxu0 0
    %2002 = vmatprep.subr.bf16.mxu0 0
    %2003 = vmatpush1.bf16.msra.mxu0 0
    %2004 = vmatprep.subr.bf16.mxu0 0
    %2005 = vmatpush1.bf16.msra.mxu0 0
    %2006 = vmatprep.subr.bf16.mxu0 0
    %2007 = vmatpush1.bf16.msra.mxu0 0
    %2008 = vmatprep.subr.bf16.mxu0 0
    %2009 = vmatpush1.bf16.msra.mxu0 0
    %2010 = vmatprep.subr.bf16.mxu0 0
    %2011 = vmatpush1.bf16.msra.mxu0 0
    %2012 = vmatprep.subr.bf16.mxu0 0
    %2013 = vmatpush1.bf16.msra.mxu0 0
    %2014 = vmatprep.subr.bf16.mxu0 0
    %2015 = vmatpush1.bf16.msra.mxu0 0
    %2016 = vmatprep.subr.bf16.mxu0 0
    %2017 = vmatpush1.bf16.msra.mxu0 0
    %2018 = vmatprep.subr.bf16.mxu0 0
    %2019 = vmatpush1.bf16.msra.mxu0 0
    %2020 = vmatprep.subr.bf16.mxu0 0
    %2021 = vmatpush1.bf16.msra.mxu0 0
    %2022 = vmatprep.subr.bf16.mxu0 0
    %2023 = vmatpush1.bf16.msra.mxu0 0
    %2024 = vmatprep.mubr.bf16.mxu0 0
    %2025 = vmatmul.mubr.bf16.gmra.mrb[0].mxu0 %v1987
    %v2026 = vpop.f32.mrb[0].mxu0
    %v2027 = vadd.f32 0.0, %v2026
    %v2028 = vpop.f32.mrb[0].mxu0
    %v2029 = vpop.f32.mrb[0].mxu0
    %v2030 = vpop.f32.mrb[0].mxu0
    %2031 = vdwg.mxu0
    %v2033 = vsel %vm1274, %v1753, 0
    %v2036 = vsel %vm1758, %v1272, 0
    %2038 = vmatprep.subr.bf16.mxu0 0
    %2039 = vmatpush1.bf16.msra.mxu0 %v2036
    %2040 = vmatprep.subr.bf16.mxu0 0
    %2041 = vmatpush1.bf16.msra.mxu0 0
    %2042 = vmatprep.subr.bf16.mxu0 0
    %2043 = vmatpush1.bf16.msra.mxu0 0
    %2044 = vmatprep.subr.bf16.mxu0 0
    %2045 = vmatpush1.bf16.msra.mxu0 0
    %2046 = vmatprep.subr.bf16.mxu0 0
    %2047 = vmatpush1.bf16.msra.mxu0 0
    %2048 = vmatprep.subr.bf16.mxu0 0
    %2049 = vmatpush1.bf16.msra.mxu0 0
    %2050 = vmatprep.subr.bf16.mxu0 0
    %2051 = vmatpush1.bf16.msra.mxu0 0
    %2052 = vmatprep.subr.bf16.mxu0 0
    %2053 = vmatpush1.bf16.msra.mxu0 0
    %2054 = vmatprep.subr.bf16.mxu0 0
    %2055 = vmatpush1.bf16.msra.mxu0 0
    %2056 = vmatprep.subr.bf16.mxu0 0
    %2057 = vmatpush1.bf16.msra.mxu0 0
    %2058 = vmatprep.subr.bf16.mxu0 0
    %2059 = vmatpush1.bf16.msra.mxu0 0
    %2060 = vmatprep.subr.bf16.mxu0 0
    %2061 = vmatpush1.bf16.msra.mxu0 0
    %2062 = vmatprep.subr.bf16.mxu0 0
    %2063 = vmatpush1.bf16.msra.mxu0 0
    %2064 = vmatprep.subr.bf16.mxu0 0
    %2065 = vmatpush1.bf16.msra.mxu0 0
    %2066 = vmatprep.subr.bf16.mxu0 0
    %2067 = vmatpush1.bf16.msra.mxu0 0
    %2068 = vmatprep.subr.bf16.mxu0 0
    %2069 = vmatpush1.bf16.msra.mxu0 0
    %2070 = vmatprep.mubr.bf16.mxu0 0
    %2071 = vmatmul.mubr.bf16.gmra.mrb[0].mxu0 %v2033
    %v2072 = vpop.f32.mrb[0].mxu0
    %v2073 = vadd.f32 0.0, %v2072
    %v2074 = vpop.f32.mrb[0].mxu0
    %v2075 = vpop.f32.mrb[0].mxu0
    %v2076 = vpop.f32.mrb[0].mxu0
    %2077 = vdwg.mxu0
    %v2079 = vsel %vm1274, %v1754, 0
    %v2082 = vsel %vm1758, %v1273, 0
    %2084 = vmatprep.subr.bf16.mxu0 0
    %2085 = vmatpush1.bf16.msra.mxu0 %v2082
    %2086 = vmatprep.subr.bf16.mxu0 0
    %2087 = vmatpush1.bf16.msra.mxu0 0
    %2088 = vmatprep.subr.bf16.mxu0 0
    %2089 = vmatpush1.bf16.msra.mxu0 0
    %2090 = vmatprep.subr.bf16.mxu0 0
    %2091 = vmatpush1.bf16.msra.mxu0 0
    %2092 = vmatprep.subr.bf16.mxu0 0
    %2093 = vmatpush1.bf16.msra.mxu0 0
    %2094 = vmatprep.subr.bf16.mxu0 0
    %2095 = vmatpush1.bf16.msra.mxu0 0
    %2096 = vmatprep.subr.bf16.mxu0 0
    %2097 = vmatpush1.bf16.msra.mxu0 0
    %2098 = vmatprep.subr.bf16.mxu0 0
    %2099 = vmatpush1.bf16.msra.mxu0 0
    %2100 = vmatprep.subr.bf16.mxu0 0
    %2101 = vmatpush1.bf16.msra.mxu0 0
    %2102 = vmatprep.subr.bf16.mxu0 0
    %2103 = vmatpush1.bf16.msra.mxu0 0
    %2104 = vmatprep.subr.bf16.mxu0 0
    %2105 = vmatpush1.bf16.msra.mxu0 0
    %2106 = vmatprep.subr.bf16.mxu0 0
    %2107 = vmatpush1.bf16.msra.mxu0 0
    %2108 = vmatprep.subr.bf16.mxu0 0
    %2109 = vmatpush1.bf16.msra.mxu0 0
    %2110 = vmatprep.subr.bf16.mxu0 0
    %2111 = vmatpush1.bf16.msra.mxu0 0
    %2112 = vmatprep.subr.bf16.mxu0 0
    %2113 = vmatpush1.bf16.msra.mxu0 0
    %2114 = vmatprep.subr.bf16.mxu0 0
    %2115 = vmatpush1.bf16.msra.mxu0 0
    %2116 = vmatprep.mubr.bf16.mxu0 0
    %2117 = vmatmul.mubr.bf16.gmra.mrb[0].mxu0 %v2079
    %v2118 = vpop.f32.mrb[0].mxu0
    %v2119 = vadd.f32 0.0, %v2118
    %v2120 = vpop.f32.mrb[0].mxu0
    %v2121 = vpop.f32.mrb[0].mxu0
    %v2122 = vpop.f32.mrb[0].mxu0
    %2123 = vdwg.mxu0
    %v2124 = vcombine.low %v1732, %v1736
    %v2125 = vcombine.high %v1732, %v1736
    %v2127 = vunpack.c.l.s4 1983009808
    %v2128 = vunpack.c.0.s8 %v2127
    %v2129 = vlaneseq
    %v2130 = vshrl.u32 %v2129, 7
    %v2131 = vsub.s32 %v2128, %v2130
    %v2132 = vrot.slane %v2124, %v2131
    %v2134 = vunpack.c.l.s4 1983009808
    %v2135 = vunpack.c.0.s8 %v2134
    %v2136 = vlaneseq
    %v2137 = vshrl.u32 %v2136, 7
    %v2138 = vsub.s32 %v2135, %v2137
    %v2139 = vrot.slane %v2125, %v2138
    %v2140 = vcombine.low %v1734, %v1738
    %v2141 = vcombine.high %v1734, %v1738
    %v2143 = vunpack.c.l.s4 1983009808
    %v2144 = vunpack.c.0.s8 %v2143
    %v2145 = vlaneseq
    %v2146 = vshrl.u32 %v2145, 7
    %v2147 = vsub.s32 %v2144, %v2146
    %v2148 = vrot.slane %v2140, %v2147
    %v2150 = vunpack.c.l.s4 1983009808
    %v2151 = vunpack.c.0.s8 %v2150
    %v2152 = vlaneseq
    %v2153 = vshrl.u32 %v2152, 7
    %v2154 = vsub.s32 %v2151, %v2153
    %v2155 = vrot.slane %v2141, %v2154
    %v2156 = vcombine.low %v1740, %v1744
    %v2157 = vcombine.high %v1740, %v1744
    %v2159 = vunpack.c.l.s4 1983009808
    %v2160 = vunpack.c.0.s8 %v2159
    %v2161 = vlaneseq
    %v2162 = vshrl.u32 %v2161, 7
    %v2163 = vsub.s32 %v2160, %v2162
    %v2164 = vrot.slane %v2156, %v2163
    %v2166 = vunpack.c.l.s4 1983009808
    %v2167 = vunpack.c.0.s8 %v2166
    %v2168 = vlaneseq
    %v2169 = vshrl.u32 %v2168, 7
    %v2170 = vsub.s32 %v2167, %v2169
    %v2171 = vrot.slane %v2157, %v2170
    %v2172 = vcombine.low %v1742, %v1746
    %v2173 = vcombine.high %v1742, %v1746
    %v2175 = vunpack.c.l.s4 1983009808
    %v2176 = vunpack.c.0.s8 %v2175
    %v2177 = vlaneseq
    %v2178 = vshrl.u32 %v2177, 7
    %v2179 = vsub.s32 %v2176, %v2178
    %v2180 = vrot.slane %v2172, %v2179
    %v2182 = vunpack.c.l.s4 1983009808
    %v2183 = vunpack.c.0.s8 %v2182
    %v2184 = vlaneseq
    %v2185 = vshrl.u32 %v2184, 7
    %v2186 = vsub.s32 %v2183, %v2185
    %v2187 = vrot.slane %v2173, %v2186
    %v2188 = vcombine.low %v2132, %v2148
    %v2189 = vcombine.high %v2132, %v2148
    %v2191 = vunpack.c.l.s4 1934713408
    %v2192 = vunpack.c.0.s8 %v2191
    %v2193 = vlaneseq
    %v2194 = vshrl.u32 %v2193, 7
    %v2195 = vsub.s32 %v2192, %v2194
    %v2196 = vrot.slane %v2188, %v2195
    %v2198 = vunpack.c.l.s4 1934713408
    %v2199 = vunpack.c.0.s8 %v2198
    %v2200 = vlaneseq
    %v2201 = vshrl.u32 %v2200, 7
    %v2202 = vsub.s32 %v2199, %v2201
    %v2203 = vrot.slane %v2189, %v2202
    %v2204 = vcombine.low %v2139, %v2155
    %v2205 = vcombine.high %v2139, %v2155
    %v2207 = vunpack.c.l.s4 1934713408
    %v2208 = vunpack.c.0.s8 %v2207
    %v2209 = vlaneseq
    %v2210 = vshrl.u32 %v2209, 7
    %v2211 = vsub.s32 %v2208, %v2210
    %v2212 = vrot.slane %v2204, %v2211
    %v2214 = vunpack.c.l.s4 1934713408
    %v2215 = vunpack.c.0.s8 %v2214
    %v2216 = vlaneseq
    %v2217 = vshrl.u32 %v2216, 7
    %v2218 = vsub.s32 %v2215, %v2217
    %v2219 = vrot.slane %v2205, %v2218
    %v2220 = vcombine.low %v2164, %v2180
    %v2221 = vcombine.high %v2164, %v2180
    %v2223 = vunpack.c.l.s4 1934713408
    %v2224 = vunpack.c.0.s8 %v2223
    %v2225 = vlaneseq
    %v2226 = vshrl.u32 %v2225, 7
    %v2227 = vsub.s32 %v2224, %v2226
    %v2228 = vrot.slane %v2220, %v2227
    %v2230 = vunpack.c.l.s4 1934713408
    %v2231 = vunpack.c.0.s8 %v2230
    %v2232 = vlaneseq
    %v2233 = vshrl.u32 %v2232, 7
    %v2234 = vsub.s32 %v2231, %v2233
    %v2235 = vrot.slane %v2221, %v2234
    %v2236 = vcombine.low %v2171, %v2187
    %v2237 = vcombine.high %v2171, %v2187
    %v2239 = vunpack.c.l.s4 1934713408
    %v2240 = vunpack.c.0.s8 %v2239
    %v2241 = vlaneseq
    %v2242 = vshrl.u32 %v2241, 7
    %v2243 = vsub.s32 %v2240, %v2242
    %v2244 = vrot.slane %v2236, %v2243
    %v2246 = vunpack.c.l.s4 1934713408
    %v2247 = vunpack.c.0.s8 %v2246
    %v2248 = vlaneseq
    %v2249 = vshrl.u32 %v2248, 7
    %v2250 = vsub.s32 %v2247, %v2249
    %v2251 = vrot.slane %v2237, %v2250
    %v2252 = vcombine.low %v2196, %v2228
    %v2253 = vcombine.high %v2196, %v2228
    %v2254 = vcombine.low %v2203, %v2235
    %v2255 = vcombine.high %v2203, %v2235
    %v2256 = vcombine.low %v2212, %v2244
    %v2257 = vcombine.high %v2212, %v2244
    %v2258 = vcombine.low %v2219, %v2251
    %v2259 = vcombine.high %v2219, %v2251
    %v2260 = vcombine.low %v2252, %v2254
    %v2261 = vcombine.high %v2252, %v2254
    %v2263 = vunpack.c.l.s4 1983009808
    %v2264 = vunpack.c.0.s8 %v2263
    %v2265 = vlaneseq
    %v2266 = vshrl.u32 %v2265, 7
    %v2267 = vsub.s32 %v2264, %v2266
    %v2268 = vrot.slane %v2260, %v2267
    %v2270 = vunpack.c.l.s4 1983009808
    %v2271 = vunpack.c.0.s8 %v2270
    %v2272 = vlaneseq
    %v2273 = vshrl.u32 %v2272, 7
    %v2274 = vsub.s32 %v2271, %v2273
    %v2275 = vrot.slane %v2261, %v2274
    %v2276 = vcombine.low %v2253, %v2255
    %v2277 = vcombine.high %v2253, %v2255
    %v2279 = vunpack.c.l.s4 1983009808
    %v2280 = vunpack.c.0.s8 %v2279
    %v2281 = vlaneseq
    %v2282 = vshrl.u32 %v2281, 7
    %v2283 = vsub.s32 %v2280, %v2282
    %v2284 = vrot.slane %v2276, %v2283
    %v2286 = vunpack.c.l.s4 1983009808
    %v2287 = vunpack.c.0.s8 %v2286
    %v2288 = vlaneseq
    %v2289 = vshrl.u32 %v2288, 7
    %v2290 = vsub.s32 %v2287, %v2289
    %v2291 = vrot.slane %v2277, %v2290
    %v2292 = vcombine.low %v2256, %v2258
    %v2293 = vcombine.high %v2256, %v2258
    %v2295 = vunpack.c.l.s4 1983009808
    %v2296 = vunpack.c.0.s8 %v2295
    %v2297 = vlaneseq
    %v2298 = vshrl.u32 %v2297, 7
    %v2299 = vsub.s32 %v2296, %v2298
    %v2300 = vrot.slane %v2292, %v2299
    %v2302 = vunpack.c.l.s4 1983009808
    %v2303 = vunpack.c.0.s8 %v2302
    %v2304 = vlaneseq
    %v2305 = vshrl.u32 %v2304, 7
    %v2306 = vsub.s32 %v2303, %v2305
    %v2307 = vrot.slane %v2293, %v2306
    %v2308 = vcombine.low %v2257, %v2259
    %v2309 = vcombine.high %v2257, %v2259
    %v2311 = vunpack.c.l.s4 1983009808
    %v2312 = vunpack.c.0.s8 %v2311
    %v2313 = vlaneseq
    %v2314 = vshrl.u32 %v2313, 7
    %v2315 = vsub.s32 %v2312, %v2314
    %v2316 = vrot.slane %v2308, %v2315
    %v2318 = vunpack.c.l.s4 1983009808
    %v2319 = vunpack.c.0.s8 %v2318
    %v2320 = vlaneseq
    %v2321 = vshrl.u32 %v2320, 7
    %v2322 = vsub.s32 %v2319, %v2321
    %v2323 = vrot.slane %v2309, %v2322
    %v2324 = vcombine.low %v2268, %v2284
    %v2325 = vcombine.high %v2268, %v2284
    %v2327 = vunpack.c.l.s4 1934713408
    %v2328 = vunpack.c.0.s8 %v2327
    %v2329 = vlaneseq
    %v2330 = vshrl.u32 %v2329, 7
    %v2331 = vsub.s32 %v2328, %v2330
    %v2332 = vrot.slane %v2324, %v2331
    %v2334 = vunpack.c.l.s4 1934713408
    %v2335 = vunpack.c.0.s8 %v2334
    %v2336 = vlaneseq
    %v2337 = vshrl.u32 %v2336, 7
    %v2338 = vsub.s32 %v2335, %v2337
    %v2339 = vrot.slane %v2325, %v2338
    %v2340 = vcombine.low %v2275, %v2291
    %v2341 = vcombine.high %v2275, %v2291
    %v2343 = vunpack.c.l.s4 1934713408
    %v2344 = vunpack.c.0.s8 %v2343
    %v2345 = vlaneseq
    %v2346 = vshrl.u32 %v2345, 7
    %v2347 = vsub.s32 %v2344, %v2346
    %v2348 = vrot.slane %v2340, %v2347
    %v2350 = vunpack.c.l.s4 1934713408
    %v2351 = vunpack.c.0.s8 %v2350
    %v2352 = vlaneseq
    %v2353 = vshrl.u32 %v2352, 7
    %v2354 = vsub.s32 %v2351, %v2353
    %v2355 = vrot.slane %v2341, %v2354
    %v2356 = vcombine.low %v2300, %v2316
    %v2357 = vcombine.high %v2300, %v2316
    %v2359 = vunpack.c.l.s4 1934713408
    %v2360 = vunpack.c.0.s8 %v2359
    %v2361 = vlaneseq
    %v2362 = vshrl.u32 %v2361, 7
    %v2363 = vsub.s32 %v2360, %v2362
    %v2364 = vrot.slane %v2356, %v2363
    %v2366 = vunpack.c.l.s4 1934713408
    %v2367 = vunpack.c.0.s8 %v2366
    %v2368 = vlaneseq
    %v2369 = vshrl.u32 %v2368, 7
    %v2370 = vsub.s32 %v2367, %v2369
    %v2371 = vrot.slane %v2357, %v2370
    %v2372 = vcombine.low %v2307, %v2323
    %v2373 = vcombine.high %v2307, %v2323
    %v2375 = vunpack.c.l.s4 1934713408
    %v2376 = vunpack.c.0.s8 %v2375
    %v2377 = vlaneseq
    %v2378 = vshrl.u32 %v2377, 7
    %v2379 = vsub.s32 %v2376, %v2378
    %v2380 = vrot.slane %v2372, %v2379
    %v2382 = vunpack.c.l.s4 1934713408
    %v2383 = vunpack.c.0.s8 %v2382
    %v2384 = vlaneseq
    %v2385 = vshrl.u32 %v2384, 7
    %v2386 = vsub.s32 %v2383, %v2385
    %v2387 = vrot.slane %v2373, %v2386
    %v2388 = vcombine.low %v2332, %v2364
    %v2389 = vcombine.high %v2332, %v2364
    %v2390 = vcombine.low %v2339, %v2371
    %v2391 = vcombine.high %v2339, %v2371
    %v2392 = vcombine.low %v2348, %v2380
    %v2393 = vcombine.high %v2348, %v2380
    %v2394 = vcombine.low %v2355, %v2387
    %v2395 = vcombine.high %v2355, %v2387
    %2397 = vrot.lane.b32.xlu0 %v2389, 8
    %v2398 = vpop.permute.xlu0 %2397
    %2401 = vrot.lane.b32.xlu0 %v2390, 16
    %v2402 = vpop.permute.xlu0 %2401
    %2405 = vrot.lane.b32.xlu0 %v2391, 24
    %v2406 = vpop.permute.xlu0 %2405
    %2409 = vrot.lane.b32.xlu0 %v2392, 32
    %v2410 = vpop.permute.xlu0 %2409
    %2413 = vrot.lane.b32.xlu0 %v2393, 40
    %v2414 = vpop.permute.xlu0 %2413
    %2417 = vrot.lane.b32.xlu0 %v2394, 48
    %v2418 = vpop.permute.xlu0 %2417
    %2421 = vrot.lane.b32.xlu0 %v2395, 56
    %v2422 = vpop.permute.xlu0 %2421
    %v2424 = vsel %vm1274, %v2388, %v2398
    %vm2425 = vcmask 130048
    %v2426 = vsel %vm2425, %v2424, %v2402
    %vm2427 = vcmask 195584
    %v2428 = vsel %vm2427, %v2426, %v2406
    %v2429 = vsel %vm137, %v2428, %v2410
    %vm2430 = vcmask 326656
    %v2431 = vsel %vm2430, %v2429, %v2414
    %vm2432 = vcmask 392192
    %v2433 = vsel %vm2432, %v2431, %v2418
    %vm2434 = vcmask 457728
    %v2435 = vsel %vm2434, %v2433, %v2422
    %v2436 = vcombine.low %v1797, %v1889
    %v2437 = vcombine.high %v1797, %v1889
    %v2439 = vunpack.c.l.s4 1983009808
    %v2440 = vunpack.c.0.s8 %v2439
    %v2441 = vlaneseq
    %v2442 = vshrl.u32 %v2441, 7
    %v2443 = vsub.s32 %v2440, %v2442
    %v2444 = vrot.slane %v2436, %v2443
    %v2446 = vunpack.c.l.s4 1983009808
    %v2447 = vunpack.c.0.s8 %v2446
    %v2448 = vlaneseq
    %v2449 = vshrl.u32 %v2448, 7
    %v2450 = vsub.s32 %v2447, %v2449
    %v2451 = vrot.slane %v2437, %v2450
    %v2452 = vcombine.low %v1843, %v1935
    %v2453 = vcombine.high %v1843, %v1935
    %v2455 = vunpack.c.l.s4 1983009808
    %v2456 = vunpack.c.0.s8 %v2455
    %v2457 = vlaneseq
    %v2458 = vshrl.u32 %v2457, 7
    %v2459 = vsub.s32 %v2456, %v2458
    %v2460 = vrot.slane %v2452, %v2459
    %v2462 = vunpack.c.l.s4 1983009808
    %v2463 = vunpack.c.0.s8 %v2462
    %v2464 = vlaneseq
    %v2465 = vshrl.u32 %v2464, 7
    %v2466 = vsub.s32 %v2463, %v2465
    %v2467 = vrot.slane %v2453, %v2466
    %v2468 = vcombine.low %v2444, %v2460
    %v2469 = vcombine.high %v2444, %v2460
    %v2471 = vunpack.c.l.s4 1934713408
    %v2472 = vunpack.c.0.s8 %v2471
    %v2473 = vlaneseq
    %v2474 = vshrl.u32 %v2473, 7
    %v2475 = vsub.s32 %v2472, %v2474
    %v2476 = vrot.slane %v2468, %v2475
    %v2478 = vunpack.c.l.s4 1934713408
    %v2479 = vunpack.c.0.s8 %v2478
    %v2480 = vlaneseq
    %v2481 = vshrl.u32 %v2480, 7
    %v2482 = vsub.s32 %v2479, %v2481
    %v2483 = vrot.slane %v2469, %v2482
    %v2484 = vcombine.low %v2451, %v2467
    %v2485 = vcombine.high %v2451, %v2467
    %v2487 = vunpack.c.l.s4 1934713408
    %v2488 = vunpack.c.0.s8 %v2487
    %v2489 = vlaneseq
    %v2490 = vshrl.u32 %v2489, 7
    %v2491 = vsub.s32 %v2488, %v2490
    %v2492 = vrot.slane %v2484, %v2491
    %v2494 = vunpack.c.l.s4 1934713408
    %v2495 = vunpack.c.0.s8 %v2494
    %v2496 = vlaneseq
    %v2497 = vshrl.u32 %v2496, 7
    %v2498 = vsub.s32 %v2495, %v2497
    %v2499 = vrot.slane %v2485, %v2498
    %v2500 = vcombine.high %v2476, 0.0
    %v2501 = vcombine.high %v2483, 0.0
    %v2502 = vcombine.high %v2492, 0.0
    %v2503 = vcombine.high %v2499, 0.0
    %v2504 = vcombine.low %v1981, %v2073
    %v2505 = vcombine.high %v1981, %v2073
    %v2507 = vunpack.c.l.s4 1983009808
    %v2508 = vunpack.c.0.s8 %v2507
    %v2509 = vlaneseq
    %v2510 = vshrl.u32 %v2509, 7
    %v2511 = vsub.s32 %v2508, %v2510
    %v2512 = vrot.slane %v2504, %v2511
    %v2514 = vunpack.c.l.s4 1983009808
    %v2515 = vunpack.c.0.s8 %v2514
    %v2516 = vlaneseq
    %v2517 = vshrl.u32 %v2516, 7
    %v2518 = vsub.s32 %v2515, %v2517
    %v2519 = vrot.slane %v2505, %v2518
    %v2520 = vcombine.low %v2027, %v2119
    %v2521 = vcombine.high %v2027, %v2119
    %v2523 = vunpack.c.l.s4 1983009808
    %v2524 = vunpack.c.0.s8 %v2523
    %v2525 = vlaneseq
    %v2526 = vshrl.u32 %v2525, 7
    %v2527 = vsub.s32 %v2524, %v2526
    %v2528 = vrot.slane %v2520, %v2527
    %v2530 = vunpack.c.l.s4 1983009808
    %v2531 = vunpack.c.0.s8 %v2530
    %v2532 = vlaneseq
    %v2533 = vshrl.u32 %v2532, 7
    %v2534 = vsub.s32 %v2531, %v2533
    %v2535 = vrot.slane %v2521, %v2534
    %v2536 = vcombine.low %v2512, %v2528
    %v2537 = vcombine.high %v2512, %v2528
    %v2539 = vunpack.c.l.s4 1934713408
    %v2540 = vunpack.c.0.s8 %v2539
    %v2541 = vlaneseq
    %v2542 = vshrl.u32 %v2541, 7
    %v2543 = vsub.s32 %v2540, %v2542
    %v2544 = vrot.slane %v2536, %v2543
    %v2546 = vunpack.c.l.s4 1934713408
    %v2547 = vunpack.c.0.s8 %v2546
    %v2548 = vlaneseq
    %v2549 = vshrl.u32 %v2548, 7
    %v2550 = vsub.s32 %v2547, %v2549
    %v2551 = vrot.slane %v2537, %v2550
    %v2552 = vcombine.low %v2519, %v2535
    %v2553 = vcombine.high %v2519, %v2535
    %v2555 = vunpack.c.l.s4 1934713408
    %v2556 = vunpack.c.0.s8 %v2555
    %v2557 = vlaneseq
    %v2558 = vshrl.u32 %v2557, 7
    %v2559 = vsub.s32 %v2556, %v2558
    %v2560 = vrot.slane %v2552, %v2559
    %v2562 = vunpack.c.l.s4 1934713408
    %v2563 = vunpack.c.0.s8 %v2562
    %v2564 = vlaneseq
    %v2565 = vshrl.u32 %v2564, 7
    %v2566 = vsub.s32 %v2563, %v2565
    %v2567 = vrot.slane %v2553, %v2566
    %v2568 = vcombine.high %v2544, 0.0
    %v2569 = vcombine.high %v2551, 0.0
    %v2570 = vcombine.high %v2560, 0.0
    %v2571 = vcombine.high %v2567, 0.0
    %v2572 = vcombine.low %v2476, %v2483
    %v2574 = vunpack.c.l.s4 1983009808
    %v2575 = vunpack.c.0.s8 %v2574
    %v2576 = vlaneseq
    %v2577 = vshrl.u32 %v2576, 7
    %v2578 = vsub.s32 %v2575, %v2577
    %v2579 = vrot.slane %v2572, %v2578
    %v2580 = vcombine.low %v2500, %v2501
    %v2582 = vunpack.c.l.s4 1983009808
    %v2583 = vunpack.c.0.s8 %v2582
    %v2584 = vlaneseq
    %v2585 = vshrl.u32 %v2584, 7
    %v2586 = vsub.s32 %v2583, %v2585
    %v2587 = vrot.slane %v2580, %v2586
    %v2588 = vcombine.low %v2492, %v2499
    %v2590 = vunpack.c.l.s4 1983009808
    %v2591 = vunpack.c.0.s8 %v2590
    %v2592 = vlaneseq
    %v2593 = vshrl.u32 %v2592, 7
    %v2594 = vsub.s32 %v2591, %v2593
    %v2595 = vrot.slane %v2588, %v2594
    %v2596 = vcombine.low %v2502, %v2503
    %v2598 = vunpack.c.l.s4 1983009808
    %v2599 = vunpack.c.0.s8 %v2598
    %v2600 = vlaneseq
    %v2601 = vshrl.u32 %v2600, 7
    %v2602 = vsub.s32 %v2599, %v2601
    %v2603 = vrot.slane %v2596, %v2602
    %v2604 = vcombine.low %v2579, %v2587
    %v2605 = vcombine.high %v2579, %v2587
    %v2607 = vunpack.c.l.s4 1934713408
    %v2608 = vunpack.c.0.s8 %v2607
    %v2609 = vlaneseq
    %v2610 = vshrl.u32 %v2609, 7
    %v2611 = vsub.s32 %v2608, %v2610
    %v2612 = vrot.slane %v2604, %v2611
    %v2614 = vunpack.c.l.s4 1934713408
    %v2615 = vunpack.c.0.s8 %v2614
    %v2616 = vlaneseq
    %v2617 = vshrl.u32 %v2616, 7
    %v2618 = vsub.s32 %v2615, %v2617
    %v2619 = vrot.slane %v2605, %v2618
    %v2620 = vcombine.low %v2595, %v2603
    %v2621 = vcombine.high %v2595, %v2603
    %v2623 = vunpack.c.l.s4 1934713408
    %v2624 = vunpack.c.0.s8 %v2623
    %v2625 = vlaneseq
    %v2626 = vshrl.u32 %v2625, 7
    %v2627 = vsub.s32 %v2624, %v2626
    %v2628 = vrot.slane %v2620, %v2627
    %v2630 = vunpack.c.l.s4 1934713408
    %v2631 = vunpack.c.0.s8 %v2630
    %v2632 = vlaneseq
    %v2633 = vshrl.u32 %v2632, 7
    %v2634 = vsub.s32 %v2631, %v2633
    %v2635 = vrot.slane %v2621, %v2634
    %v2636 = vcombine.low %v2612, %v2628
    %v2637 = vcombine.high %v2612, %v2628
    %v2638 = vcombine.low %v2619, %v2635
    %v2639 = vcombine.high %v2619, %v2635
    %v2640 = vcombine.low %v2544, %v2551
    %v2642 = vunpack.c.l.s4 1983009808
    %v2643 = vunpack.c.0.s8 %v2642
    %v2644 = vlaneseq
    %v2645 = vshrl.u32 %v2644, 7
    %v2646 = vsub.s32 %v2643, %v2645
    %v2647 = vrot.slane %v2640, %v2646
    %v2648 = vcombine.low %v2568, %v2569
    %v2650 = vunpack.c.l.s4 1983009808
    %v2651 = vunpack.c.0.s8 %v2650
    %v2652 = vlaneseq
    %v2653 = vshrl.u32 %v2652, 7
    %v2654 = vsub.s32 %v2651, %v2653
    %v2655 = vrot.slane %v2648, %v2654
    %v2656 = vcombine.low %v2560, %v2567
    %v2658 = vunpack.c.l.s4 1983009808
    %v2659 = vunpack.c.0.s8 %v2658
    %v2660 = vlaneseq
    %v2661 = vshrl.u32 %v2660, 7
    %v2662 = vsub.s32 %v2659, %v2661
    %v2663 = vrot.slane %v2656, %v2662
    %v2664 = vcombine.low %v2570, %v2571
    %v2666 = vunpack.c.l.s4 1983009808
    %v2667 = vunpack.c.0.s8 %v2666
    %v2668 = vlaneseq
    %v2669 = vshrl.u32 %v2668, 7
    %v2670 = vsub.s32 %v2667, %v2669
    %v2671 = vrot.slane %v2664, %v2670
    %v2672 = vcombine.low %v2647, %v2655
    %v2673 = vcombine.high %v2647, %v2655
    %v2675 = vunpack.c.l.s4 1934713408
    %v2676 = vunpack.c.0.s8 %v2675
    %v2677 = vlaneseq
    %v2678 = vshrl.u32 %v2677, 7
    %v2679 = vsub.s32 %v2676, %v2678
    %v2680 = vrot.slane %v2672, %v2679
    %v2682 = vunpack.c.l.s4 1934713408
    %v2683 = vunpack.c.0.s8 %v2682
    %v2684 = vlaneseq
    %v2685 = vshrl.u32 %v2684, 7
    %v2686 = vsub.s32 %v2683, %v2685
    %v2687 = vrot.slane %v2673, %v2686
    %v2688 = vcombine.low %v2663, %v2671
    %v2689 = vcombine.high %v2663, %v2671
    %v2691 = vunpack.c.l.s4 1934713408
    %v2692 = vunpack.c.0.s8 %v2691
    %v2693 = vlaneseq
    %v2694 = vshrl.u32 %v2693, 7
    %v2695 = vsub.s32 %v2692, %v2694
    %v2696 = vrot.slane %v2688, %v2695
    %v2698 = vunpack.c.l.s4 1934713408
    %v2699 = vunpack.c.0.s8 %v2698
    %v2700 = vlaneseq
    %v2701 = vshrl.u32 %v2700, 7
    %v2702 = vsub.s32 %v2699, %v2701
    %v2703 = vrot.slane %v2689, %v2702
    %v2704 = vcombine.low %v2680, %v2696
    %v2705 = vcombine.high %v2680, %v2696
    %v2706 = vcombine.low %v2687, %v2703
    %v2707 = vcombine.high %v2687, %v2703
    %2710 = vrot.lane.b32.xlu0 %v2637, 8
    %v2711 = vpop.permute.xlu0 %2710
    %2712 = vrot.lane.b32.xlu0 %v2705, 8
    %v2713 = vpop.permute.xlu0 %2712
    %2718 = vrot.lane.b32.xlu0 %v2638, 16
    %v2719 = vpop.permute.xlu0 %2718
    %2720 = vrot.lane.b32.xlu0 %v2706, 16
    %v2721 = vpop.permute.xlu0 %2720
    %2726 = vrot.lane.b32.xlu0 %v2639, 24
    %v2727 = vpop.permute.xlu0 %2726
    %2728 = vrot.lane.b32.xlu0 %v2707, 24
    %v2729 = vpop.permute.xlu0 %2728
    %v2732 = vsel %vm1274, %v2636, %v2711
    %v2733 = vsel %vm1274, %v2704, %v2713
    %v2734 = vsel %vm2425, %v2732, %v2719
    %v2735 = vsel %vm2425, %v2733, %v2721
    %v2736 = vsel %vm2427, %v2734, %v2727
    %v2737 = vsel %vm2427, %v2735, %v2729
    %v2738 = vld [vmem:[%s25] sm:$0xf]
    %v2739 = vld [vmem:[%s25 + $0x4] sm:$0xf]
    %v2740 = vld [vmem:[%s25 + $0x8] sm:$0xf]
    %v2741 = vld [vmem:[%s25 + $0xc] sm:$0xf]
    %v2742 = vpack.c.bf16 %v2737, %v2736
    %v2743 = vld [vmem:[%s27] sm:$0x1]
    %v2745 = vlaneseq
    %v2746 = vshrl.u32 %v2745, 7
    %v2747 = vsub.s32 0, %v2746
    %v2748 = vrot.slane %v2743, %v2747
    %v2754 = vunpack.c.l.b16 %v2738
    %v2755 = vunpack.c.l.b16 %v2739
    %v2756 = vunpack.c.l.b16 %v2740
    %v2757 = vunpack.c.l.b16 %v2741
    %v2758 = vpack.c.b16 %v2755, %v2754
    %v2759 = vpack.c.b16 %v2757, %v2756
    %v2763 = vsel %vm137, %v2742, 0
    %2765 = vmatprep.subr.bf16.mxu0 0
    %2766 = vmatpush1.bf16.msra.mxu0 %v2758
    %2767 = vmatprep.subr.bf16.mxu0 0
    %2768 = vmatpush1.bf16.msra.mxu0 %v2759
    %2769 = vmatprep.subr.bf16.mxu0 0
    %2770 = vmatpush1.bf16.msra.mxu0 0
    %2771 = vmatprep.subr.bf16.mxu0 0
    %2772 = vmatpush1.bf16.msra.mxu0 0
    %2773 = vmatprep.subr.bf16.mxu0 0
    %2774 = vmatpush1.bf16.msra.mxu0 0
    %2775 = vmatprep.subr.bf16.mxu0 0
    %2776 = vmatpush1.bf16.msra.mxu0 0
    %2777 = vmatprep.subr.bf16.mxu0 0
    %2778 = vmatpush1.bf16.msra.mxu0 0
    %2779 = vmatprep.subr.bf16.mxu0 0
    %2780 = vmatpush1.bf16.msra.mxu0 0
    %2781 = vmatprep.subr.bf16.mxu0 0
    %2782 = vmatpush1.bf16.msra.mxu0 0
    %2783 = vmatprep.subr.bf16.mxu0 0
    %2784 = vmatpush1.bf16.msra.mxu0 0
    %2785 = vmatprep.subr.bf16.mxu0 0
    %2786 = vmatpush1.bf16.msra.mxu0 0
    %2787 = vmatprep.subr.bf16.mxu0 0
    %2788 = vmatpush1.bf16.msra.mxu0 0
    %2789 = vmatprep.subr.bf16.mxu0 0
    %2790 = vmatpush1.bf16.msra.mxu0 0
    %2791 = vmatprep.subr.bf16.mxu0 0
    %2792 = vmatpush1.bf16.msra.mxu0 0
    %2793 = vmatprep.subr.bf16.mxu0 0
    %2794 = vmatpush1.bf16.msra.mxu0 0
    %2795 = vmatprep.subr.bf16.mxu0 0
    %2796 = vmatpush1.bf16.msra.mxu0 0
    %2797 = vmatprep.mubr.bf16.mxu0 0
    %2798 = vmatmul.mubr.bf16.gmra.mrb[0].mxu0 %v2763
    %v2799 = vpop.f32.mrb[0].mxu0
    %v2800 = vadd.f32 %v2748, %v2799
    %v2801 = vpop.f32.mrb[0].mxu0
    %v2802 = vpop.f32.mrb[0].mxu0
    %v2803 = vadd.f32 %v2748, %v2802
    %v2804 = vpop.f32.mrb[0].mxu0
    %2805 = vdwg.mxu0
    %v2806 = vadd.f32 %v2800, %v179
    %v2807 = vadd.f32 %v2803, %v180
    %v2808 = vld [vmem:[%s29] sm:$0x1]
    %v2809 = vld [vmem:[%s31] sm:$0x1]
    %v2810 = vsel %vm137, %v2806, 0.0
    %2811 = vadd.xlane.f32.xlu0 %v2810
    %v2812 = vpop.xlane.xlu0 %2811
    %v2813 = vsel %vm137, %v2807, 0.0
    %2814 = vadd.xlane.f32.xlu0 %v2813
    %v2815 = vpop.xlane.xlu0 %2814
    %v2816 = vmul.f32 %v2812, %v144
    %v2817 = vmul.f32 %v2815, %v144
    %v2818 = vsub.f32 %v2806, %v2816
    %v2819 = vsub.f32 %v2807, %v2817
    %v2820 = vmul.f32 %v2818, %v2818
    %v2821 = vmul.f32 %v2819, %v2819
    %v2822 = vsel %vm137, %v2820, 0.0
    %2823 = vadd.xlane.f32.xlu0 %v2822
    %v2824 = vpop.xlane.xlu0 %2823
    %v2825 = vsel %vm137, %v2821, 0.0
    %2826 = vadd.xlane.f32.xlu0 %v2825
    %v2827 = vpop.xlane.xlu0 %2826
    %v2828 = vmul.f32 %v2824, %v144
    %v2829 = vmul.f32 %v2827, %v144
    %v2830 = vadd.f32 %v2828, 1e-12
    %v2831 = vadd.f32 %v2829, 1e-12
    %v2832 = vrsqrt.pop %v2830
    %v2833 = vrsqrt.pop %v2831
    %v2834 = vmul.f32 %v2818, %v2832
    %v2835 = vmul.f32 %v2819, %v2833
    %v2837 = vlaneseq
    %v2838 = vshrl.u32 %v2837, 7
    %v2839 = vsub.s32 0, %v2838
    %v2840 = vrot.slane %v2808, %v2839
    %v2842 = vmul.f32 %v2834, %v2840
    %v2843 = vmul.f32 %v2835, %v2840
    %v2845 = vlaneseq
    %v2846 = vshrl.u32 %v2845, 7
    %v2847 = vsub.s32 0, %v2846
    %v2848 = vrot.slane %v2809, %v2847
    %v2850 = vadd.f32 %v2842, %v2848
    %v2851 = vadd.f32 %v2843, %v2848
    %v2852 = vld [vmem:[%s33] sm:$0xf]
    %v2853 = vld [vmem:[%s33 + $0x4] sm:$0xf]
    %v2854 = vld [vmem:[%s33 + $0x8] sm:$0xf]
    %v2855 = vld [vmem:[%s33 + $0xc] sm:$0xf]
    %v2856 = vpack.c.bf16 %v2851, %v2850
    %v2857 = vld [vmem:[%s35] sm:$0x1]
    %v2859 = vlaneseq
    %v2860 = vshrl.u32 %v2859, 7
    %v2861 = vsub.s32 0, %v2860
    %v2862 = vrot.slane %v2857, %v2861
    %v2868 = vunpack.c.l.b16 %v2852
    %v2869 = vunpack.c.l.b16 %v2853
    %v2870 = vunpack.c.l.b16 %v2854
    %v2871 = vunpack.c.l.b16 %v2855
    %v2872 = vpack.c.b16 %v2869, %v2868
    %v2873 = vpack.c.b16 %v2871, %v2870
    %v2877 = vsel %vm137, %v2856, 0
    %2879 = vmatprep.subr.bf16.mxu0 0
    %2880 = vmatpush1.bf16.msra.mxu0 %v2872
    %2881 = vmatprep.subr.bf16.mxu0 0
    %2882 = vmatpush1.bf16.msra.mxu0 %v2873
    %2883 = vmatprep.subr.bf16.mxu0 0
    %2884 = vmatpush1.bf16.msra.mxu0 0
    %2885 = vmatprep.subr.bf16.mxu0 0
    %2886 = vmatpush1.bf16.msra.mxu0 0
    %2887 = vmatprep.subr.bf16.mxu0 0
    %2888 = vmatpush1.bf16.msra.mxu0 0
    %2889 = vmatprep.subr.bf16.mxu0 0
    %2890 = vmatpush1.bf16.msra.mxu0 0
    %2891 = vmatprep.subr.bf16.mxu0 0
    %2892 = vmatpush1.bf16.msra.mxu0 0
    %2893 = vmatprep.subr.bf16.mxu0 0
    %2894 = vmatpush1.bf16.msra.mxu0 0
    %2895 = vmatprep.subr.bf16.mxu0 0
    %2896 = vmatpush1.bf16.msra.mxu0 0
    %2897 = vmatprep.subr.bf16.mxu0 0
    %2898 = vmatpush1.bf16.msra.mxu0 0
    %2899 = vmatprep.subr.bf16.mxu0 0
    %2900 = vmatpush1.bf16.msra.mxu0 0
    %2901 = vmatprep.subr.bf16.mxu0 0
    %2902 = vmatpush1.bf16.msra.mxu0 0
    %2903 = vmatprep.subr.bf16.mxu0 0
    %2904 = vmatpush1.bf16.msra.mxu0 0
    %2905 = vmatprep.subr.bf16.mxu0 0
    %2906 = vmatpush1.bf16.msra.mxu0 0
    %2907 = vmatprep.subr.bf16.mxu0 0
    %2908 = vmatpush1.bf16.msra.mxu0 0
    %2909 = vmatprep.subr.bf16.mxu0 0
    %2910 = vmatpush1.bf16.msra.mxu0 0
    %2911 = vmatprep.mubr.bf16.mxu0 0
    %2912 = vmatmul.mubr.bf16.gmra.mrb[0].mxu0 %v2877
    %v2913 = vpop.f32.mrb[0].mxu0
    %v2914 = vadd.f32 %v2862, %v2913
    %v2915 = vpop.f32.mrb[0].mxu0
    %v2916 = vpop.f32.mrb[0].mxu0
    %v2917 = vadd.f32 %v2862, %v2916
    %v2918 = vpop.f32.mrb[0].mxu0
    %2919 = vdwg.mxu0
    %v2920 = vld [vmem:[%s37] sm:$0xf]
    %v2921 = vld [vmem:[%s37 + $0x4] sm:$0xf]
    %v2922 = vld [vmem:[%s37 + $0x8] sm:$0xf]
    %v2923 = vld [vmem:[%s37 + $0xc] sm:$0xf]
    %v2924 = vpack.c.bf16 %v271, %v268
    %v2925 = vpack.c.bf16 %v279, %v276
    %v2926 = vld [vmem:[%s39] sm:$0x1]
    %v2928 = vlaneseq
    %v2929 = vshrl.u32 %v2928, 7
    %v2930 = vsub.s32 0, %v2929
    %v2931 = vrot.slane %v2926, %v2930
    %v2937 = vunpack.c.l.b16 %v2920
    %v2938 = vunpack.c.l.b16 %v2921
    %v2939 = vunpack.c.l.b16 %v2922
    %v2940 = vunpack.c.l.b16 %v2923
    %v2941 = vpack.c.b16 %v2938, %v2937
    %v2942 = vpack.c.b16 %v2940, %v2939
    %v2946 = vsel %vm137, %v2924, 0
    %v2949 = vsel %vm137, %v2925, 0
    %2951 = vmatprep.subr.bf16.mxu0 0
    %2952 = vmatpush1.bf16.msra.mxu0 %v2941
    %2953 = vmatprep.subr.bf16.mxu0 0
    %2954 = vmatpush1.bf16.msra.mxu0 %v2942
    %2955 = vmatprep.subr.bf16.mxu0 0
    %2956 = vmatpush1.bf16.msra.mxu0 0
    %2957 = vmatprep.subr.bf16.mxu0 0
    %2958 = vmatpush1.bf16.msra.mxu0 0
    %2959 = vmatprep.subr.bf16.mxu0 0
    %2960 = vmatpush1.bf16.msra.mxu0 0
    %2961 = vmatprep.subr.bf16.mxu0 0
    %2962 = vmatpush1.bf16.msra.mxu0 0
    %2963 = vmatprep.subr.bf16.mxu0 0
    %2964 = vmatpush1.bf16.msra.mxu0 0
    %2965 = vmatprep.subr.bf16.mxu0 0
    %2966 = vmatpush1.bf16.msra.mxu0 0
    %2967 = vmatprep.subr.bf16.mxu0 0
    %2968 = vmatpush1.bf16.msra.mxu0 0
    %2969 = vmatprep.subr.bf16.mxu0 0
    %2970 = vmatpush1.bf16.msra.mxu0 0
    %2971 = vmatprep.subr.bf16.mxu0 0
    %2972 = vmatpush1.bf16.msra.mxu0 0
    %2973 = vmatprep.subr.bf16.mxu0 0
    %2974 = vmatpush1.bf16.msra.mxu0 0
    %2975 = vmatprep.subr.bf16.mxu0 0
    %2976 = vmatpush1.bf16.msra.mxu0 0
    %2977 = vmatprep.subr.bf16.mxu0 0
    %2978 = vmatpush1.bf16.msra.mxu0 0
    %2979 = vmatprep.subr.bf16.mxu0 0
    %2980 = vmatpush1.bf16.msra.mxu0 0
    %2981 = vmatprep.subr.bf16.mxu0 0
    %2982 = vmatpush1.bf16.msra.mxu0 0
    %2983 = vmatprep.mubr.bf16.mxu0 0
    %2984 = vmatmul.mubr.bf16.gmra.mrb[0].mxu0 %v2946
    %v2985 = vpop.f32.mrb[0].mxu0
    %v2986 = vadd.f32 %v2931, %v2985
    %v2987 = vpop.f32.mrb[0].mxu0
    %v2988 = vpop.f32.mrb[0].mxu0
    %v2989 = vadd.f32 %v2931, %v2988
    %v2990 = vpop.f32.mrb[0].mxu0
    %2991 = vmatprep.mubr.bf16.mxu0 0
    %2992 = vmatmul.mubr.bf16.gmra.mrb[0].mxu0 %v2949
    %v2993 = vpop.f32.mrb[0].mxu0
    %v2994 = vadd.f32 %v2931, %v2993
    %v2995 = vpop.f32.mrb[0].mxu0
    %v2996 = vpop.f32.mrb[0].mxu0
    %v2997 = vadd.f32 %v2931, %v2996
    %v2998 = vpop.f32.mrb[0].mxu0
    %2999 = vdwg.mxu0
    %3002 = vrot.lane.b32.xlu0 %v2914, 120
    %v3003 = vpop.permute.xlu0 %3002
    %3004 = vrot.lane.b32.xlu0 %v2917, 120
    %v3005 = vpop.permute.xlu0 %3004
    %3008 = vrot.lane.b32.xlu0 %v2914, 112
    %v3009 = vpop.permute.xlu0 %3008
    %3010 = vrot.lane.b32.xlu0 %v2917, 112
    %v3011 = vpop.permute.xlu0 %3010
    %3014 = vrot.lane.b32.xlu0 %v2914, 104
    %v3015 = vpop.permute.xlu0 %3014
    %3016 = vrot.lane.b32.xlu0 %v2917, 104
    %v3017 = vpop.permute.xlu0 %3016
    %v3020 = vcombine.low %v2914, %v3009
    %v3021 = vcombine.high %v2914, %v3009
    %v3023 = vunpack.c.l.s4 1983009808
    %v3024 = vunpack.c.0.s8 %v3023
    %v3025 = vlaneseq
    %v3026 = vshrl.u32 %v3025, 7
    %v3027 = vsub.s32 %v3024, %v3026
    %v3028 = vrot.slane %v3020, %v3027
    %v3030 = vunpack.c.l.s4 1983009808
    %v3031 = vunpack.c.0.s8 %v3030
    %v3032 = vlaneseq
    %v3033 = vshrl.u32 %v3032, 7
    %v3034 = vsub.s32 %v3031, %v3033
    %v3035 = vrot.slane %v3021, %v3034
    %v3036 = vcombine.low %v3003, %v3015
    %v3037 = vcombine.high %v3003, %v3015
    %v3039 = vunpack.c.l.s4 1983009808
    %v3040 = vunpack.c.0.s8 %v3039
    %v3041 = vlaneseq
    %v3042 = vshrl.u32 %v3041, 7
    %v3043 = vsub.s32 %v3040, %v3042
    %v3044 = vrot.slane %v3036, %v3043
    %v3046 = vunpack.c.l.s4 1983009808
    %v3047 = vunpack.c.0.s8 %v3046
    %v3048 = vlaneseq
    %v3049 = vshrl.u32 %v3048, 7
    %v3050 = vsub.s32 %v3047, %v3049
    %v3051 = vrot.slane %v3037, %v3050
    %v3052 = vcombine.low %v3028, %v3044
    %v3053 = vcombine.high %v3028, %v3044
    %v3055 = vunpack.c.l.s4 1934713408
    %v3056 = vunpack.c.0.s8 %v3055
    %v3057 = vlaneseq
    %v3058 = vshrl.u32 %v3057, 7
    %v3059 = vsub.s32 %v3056, %v3058
    %v3060 = vrot.slane %v3052, %v3059
    %v3062 = vunpack.c.l.s4 1934713408
    %v3063 = vunpack.c.0.s8 %v3062
    %v3064 = vlaneseq
    %v3065 = vshrl.u32 %v3064, 7
    %v3066 = vsub.s32 %v3063, %v3065
    %v3067 = vrot.slane %v3053, %v3066
    %v3068 = vcombine.low %v3035, %v3051
    %v3069 = vcombine.high %v3035, %v3051
    %v3071 = vunpack.c.l.s4 1934713408
    %v3072 = vunpack.c.0.s8 %v3071
    %v3073 = vlaneseq
    %v3074 = vshrl.u32 %v3073, 7
    %v3075 = vsub.s32 %v3072, %v3074
    %v3076 = vrot.slane %v3068, %v3075
    %v3078 = vunpack.c.l.s4 1934713408
    %v3079 = vunpack.c.0.s8 %v3078
    %v3080 = vlaneseq
    %v3081 = vshrl.u32 %v3080, 7
    %v3082 = vsub.s32 %v3079, %v3081
    %v3083 = vrot.slane %v3069, %v3082
    %v3084 = vcombine.high %v3060, 0.0
    %v3085 = vcombine.high %v3067, 0.0
    %v3086 = vcombine.high %v3076, 0.0
    %v3087 = vcombine.high %v3083, 0.0
    %v3088 = vcombine.low %v2917, %v3011
    %v3089 = vcombine.high %v2917, %v3011
    %v3091 = vunpack.c.l.s4 1983009808
    %v3092 = vunpack.c.0.s8 %v3091
    %v3093 = vlaneseq
    %v3094 = vshrl.u32 %v3093, 7
    %v3095 = vsub.s32 %v3092, %v3094
    %v3096 = vrot.slane %v3088, %v3095
    %v3098 = vunpack.c.l.s4 1983009808
    %v3099 = vunpack.c.0.s8 %v3098
    %v3100 = vlaneseq
    %v3101 = vshrl.u32 %v3100, 7
    %v3102 = vsub.s32 %v3099, %v3101
    %v3103 = vrot.slane %v3089, %v3102
    %v3104 = vcombine.low %v3005, %v3017
    %v3105 = vcombine.high %v3005, %v3017
    %v3107 = vunpack.c.l.s4 1983009808
    %v3108 = vunpack.c.0.s8 %v3107
    %v3109 = vlaneseq
    %v3110 = vshrl.u32 %v3109, 7
    %v3111 = vsub.s32 %v3108, %v3110
    %v3112 = vrot.slane %v3104, %v3111
    %v3114 = vunpack.c.l.s4 1983009808
    %v3115 = vunpack.c.0.s8 %v3114
    %v3116 = vlaneseq
    %v3117 = vshrl.u32 %v3116, 7
    %v3118 = vsub.s32 %v3115, %v3117
    %v3119 = vrot.slane %v3105, %v3118
    %v3120 = vcombine.low %v3096, %v3112
    %v3121 = vcombine.high %v3096, %v3112
    %v3123 = vunpack.c.l.s4 1934713408
    %v3124 = vunpack.c.0.s8 %v3123
    %v3125 = vlaneseq
    %v3126 = vshrl.u32 %v3125, 7
    %v3127 = vsub.s32 %v3124, %v3126
    %v3128 = vrot.slane %v3120, %v3127
    %v3130 = vunpack.c.l.s4 1934713408
    %v3131 = vunpack.c.0.s8 %v3130
    %v3132 = vlaneseq
    %v3133 = vshrl.u32 %v3132, 7
    %v3134 = vsub.s32 %v3131, %v3133
    %v3135 = vrot.slane %v3121, %v3134
    %v3136 = vcombine.low %v3103, %v3119
    %v3137 = vcombine.high %v3103, %v3119
    %v3139 = vunpack.c.l.s4 1934713408
    %v3140 = vunpack.c.0.s8 %v3139
    %v3141 = vlaneseq
    %v3142 = vshrl.u32 %v3141, 7
    %v3143 = vsub.s32 %v3140, %v3142
    %v3144 = vrot.slane %v3136, %v3143
    %v3146 = vunpack.c.l.s4 1934713408
    %v3147 = vunpack.c.0.s8 %v3146
    %v3148 = vlaneseq
    %v3149 = vshrl.u32 %v3148, 7
    %v3150 = vsub.s32 %v3147, %v3149
    %v3151 = vrot.slane %v3137, %v3150
    %v3152 = vcombine.high %v3128, 0.0
    %v3153 = vcombine.high %v3135, 0.0
    %v3154 = vcombine.high %v3144, 0.0
    %v3155 = vcombine.high %v3151, 0.0
    %v3156 = vcombine.low %v3060, %v3067
    %v3158 = vunpack.c.l.s4 1983009808
    %v3159 = vunpack.c.0.s8 %v3158
    %v3160 = vlaneseq
    %v3161 = vshrl.u32 %v3160, 7
    %v3162 = vsub.s32 %v3159, %v3161
    %v3163 = vrot.slane %v3156, %v3162
    %v3164 = vcombine.low %v3084, %v3085
    %v3166 = vunpack.c.l.s4 1983009808
    %v3167 = vunpack.c.0.s8 %v3166
    %v3168 = vlaneseq
    %v3169 = vshrl.u32 %v3168, 7
    %v3170 = vsub.s32 %v3167, %v3169
    %v3171 = vrot.slane %v3164, %v3170
    %v3172 = vcombine.low %v3076, %v3083
    %v3174 = vunpack.c.l.s4 1983009808
    %v3175 = vunpack.c.0.s8 %v3174
    %v3176 = vlaneseq
    %v3177 = vshrl.u32 %v3176, 7
    %v3178 = vsub.s32 %v3175, %v3177
    %v3179 = vrot.slane %v3172, %v3178
    %v3180 = vcombine.low %v3086, %v3087
    %v3182 = vunpack.c.l.s4 1983009808
    %v3183 = vunpack.c.0.s8 %v3182
    %v3184 = vlaneseq
    %v3185 = vshrl.u32 %v3184, 7
    %v3186 = vsub.s32 %v3183, %v3185
    %v3187 = vrot.slane %v3180, %v3186
    %v3188 = vcombine.low %v3163, %v3171
    %v3189 = vcombine.high %v3163, %v3171
    %v3191 = vunpack.c.l.s4 1934713408
    %v3192 = vunpack.c.0.s8 %v3191
    %v3193 = vlaneseq
    %v3194 = vshrl.u32 %v3193, 7
    %v3195 = vsub.s32 %v3192, %v3194
    %v3196 = vrot.slane %v3188, %v3195
    %v3198 = vunpack.c.l.s4 1934713408
    %v3199 = vunpack.c.0.s8 %v3198
    %v3200 = vlaneseq
    %v3201 = vshrl.u32 %v3200, 7
    %v3202 = vsub.s32 %v3199, %v3201
    %v3203 = vrot.slane %v3189, %v3202
    %v3204 = vcombine.low %v3179, %v3187
    %v3205 = vcombine.high %v3179, %v3187
    %v3207 = vunpack.c.l.s4 1934713408
    %v3208 = vunpack.c.0.s8 %v3207
    %v3209 = vlaneseq
    %v3210 = vshrl.u32 %v3209, 7
    %v3211 = vsub.s32 %v3208, %v3210
    %v3212 = vrot.slane %v3204, %v3211
    %v3214 = vunpack.c.l.s4 1934713408
    %v3215 = vunpack.c.0.s8 %v3214
    %v3216 = vlaneseq
    %v3217 = vshrl.u32 %v3216, 7
    %v3218 = vsub.s32 %v3215, %v3217
    %v3219 = vrot.slane %v3205, %v3218
    %v3220 = vcombine.low %v3196, %v3212
    %v3221 = vcombine.high %v3196, %v3212
    %v3222 = vcombine.low %v3203, %v3219
    %v3223 = vcombine.high %v3203, %v3219
    %v3224 = vcombine.low %v3128, %v3135
    %v3226 = vunpack.c.l.s4 1983009808
    %v3227 = vunpack.c.0.s8 %v3226
    %v3228 = vlaneseq
    %v3229 = vshrl.u32 %v3228, 7
    %v3230 = vsub.s32 %v3227, %v3229
    %v3231 = vrot.slane %v3224, %v3230
    %v3232 = vcombine.low %v3152, %v3153
    %v3234 = vunpack.c.l.s4 1983009808
    %v3235 = vunpack.c.0.s8 %v3234
    %v3236 = vlaneseq
    %v3237 = vshrl.u32 %v3236, 7
    %v3238 = vsub.s32 %v3235, %v3237
    %v3239 = vrot.slane %v3232, %v3238
    %v3240 = vcombine.low %v3144, %v3151
    %v3242 = vunpack.c.l.s4 1983009808
    %v3243 = vunpack.c.0.s8 %v3242
    %v3244 = vlaneseq
    %v3245 = vshrl.u32 %v3244, 7
    %v3246 = vsub.s32 %v3243, %v3245
    %v3247 = vrot.slane %v3240, %v3246
    %v3248 = vcombine.low %v3154, %v3155
    %v3250 = vunpack.c.l.s4 1983009808
    %v3251 = vunpack.c.0.s8 %v3250
    %v3252 = vlaneseq
    %v3253 = vshrl.u32 %v3252, 7
    %v3254 = vsub.s32 %v3251, %v3253
    %v3255 = vrot.slane %v3248, %v3254
    %v3256 = vcombine.low %v3231, %v3239
    %v3257 = vcombine.high %v3231, %v3239
    %v3259 = vunpack.c.l.s4 1934713408
    %v3260 = vunpack.c.0.s8 %v3259
    %v3261 = vlaneseq
    %v3262 = vshrl.u32 %v3261, 7
    %v3263 = vsub.s32 %v3260, %v3262
    %v3264 = vrot.slane %v3256, %v3263
    %v3266 = vunpack.c.l.s4 1934713408
    %v3267 = vunpack.c.0.s8 %v3266
    %v3268 = vlaneseq
    %v3269 = vshrl.u32 %v3268, 7
    %v3270 = vsub.s32 %v3267, %v3269
    %v3271 = vrot.slane %v3257, %v3270
    %v3272 = vcombine.low %v3247, %v3255
    %v3273 = vcombine.high %v3247, %v3255
    %v3275 = vunpack.c.l.s4 1934713408
    %v3276 = vunpack.c.0.s8 %v3275
    %v3277 = vlaneseq
    %v3278 = vshrl.u32 %v3277, 7
    %v3279 = vsub.s32 %v3276, %v3278
    %v3280 = vrot.slane %v3272, %v3279
    %v3282 = vunpack.c.l.s4 1934713408
    %v3283 = vunpack.c.0.s8 %v3282
    %v3284 = vlaneseq
    %v3285 = vshrl.u32 %v3284, 7
    %v3286 = vsub.s32 %v3283, %v3285
    %v3287 = vrot.slane %v3273, %v3286
    %v3288 = vcombine.low %v3264, %v3280
    %v3289 = vcombine.high %v3264, %v3280
    %v3290 = vcombine.low %v3271, %v3287
    %v3291 = vcombine.high %v3271, %v3287
    %v3292 = vpack.c.bf16 %v3220, %v3220
    %v3293 = vpack.c.bf16 %v3221, %v3221
    %v3294 = vpack.c.bf16 %v3222, %v3222
    %v3295 = vpack.c.bf16 %v3223, %v3223
    %v3296 = vpack.c.bf16 %v3288, %v3288
    %v3297 = vpack.c.bf16 %v3289, %v3289
    %v3298 = vpack.c.bf16 %v3290, %v3290
    %v3299 = vpack.c.bf16 %v3291, %v3291
    %3304 = vrot.lane.b32.xlu0 %v2986, 120
    %v3305 = vpop.permute.xlu0 %3304
    %3306 = vrot.lane.b32.xlu0 %v2989, 120
    %v3307 = vpop.permute.xlu0 %3306
    %3308 = vrot.lane.b32.xlu0 %v2994, 120
    %v3309 = vpop.permute.xlu0 %3308
    %3310 = vrot.lane.b32.xlu0 %v2997, 120
    %v3311 = vpop.permute.xlu0 %3310
    %3316 = vrot.lane.b32.xlu0 %v2986, 112
    %v3317 = vpop.permute.xlu0 %3316
    %3318 = vrot.lane.b32.xlu0 %v2989, 112
    %v3319 = vpop.permute.xlu0 %3318
    %3320 = vrot.lane.b32.xlu0 %v2994, 112
    %v3321 = vpop.permute.xlu0 %3320
    %3322 = vrot.lane.b32.xlu0 %v2997, 112
    %v3323 = vpop.permute.xlu0 %3322
    %3328 = vrot.lane.b32.xlu0 %v2986, 104
    %v3329 = vpop.permute.xlu0 %3328
    %3330 = vrot.lane.b32.xlu0 %v2989, 104
    %v3331 = vpop.permute.xlu0 %3330
    %3332 = vrot.lane.b32.xlu0 %v2994, 104
    %v3333 = vpop.permute.xlu0 %3332
    %3334 = vrot.lane.b32.xlu0 %v2997, 104
    %v3335 = vpop.permute.xlu0 %3334
    %v3340 = vcombine.low %v2986, %v3317
    %v3341 = vcombine.high %v2986, %v3317
    %v3343 = vunpack.c.l.s4 1983009808
    %v3344 = vunpack.c.0.s8 %v3343
    %v3345 = vlaneseq
    %v3346 = vshrl.u32 %v3345, 7
    %v3347 = vsub.s32 %v3344, %v3346
    %v3348 = vrot.slane %v3340, %v3347
    %v3350 = vunpack.c.l.s4 1983009808
    %v3351 = vunpack.c.0.s8 %v3350
    %v3352 = vlaneseq
    %v3353 = vshrl.u32 %v3352, 7
    %v3354 = vsub.s32 %v3351, %v3353
    %v3355 = vrot.slane %v3341, %v3354
    %v3356 = vcombine.low %v3305, %v3329
    %v3357 = vcombine.high %v3305, %v3329
    %v3359 = vunpack.c.l.s4 1983009808
    %v3360 = vunpack.c.0.s8 %v3359
    %v3361 = vlaneseq
    %v3362 = vshrl.u32 %v3361, 7
    %v3363 = vsub.s32 %v3360, %v3362
    %v3364 = vrot.slane %v3356, %v3363
    %v3366 = vunpack.c.l.s4 1983009808
    %v3367 = vunpack.c.0.s8 %v3366
    %v3368 = vlaneseq
    %v3369 = vshrl.u32 %v3368, 7
    %v3370 = vsub.s32 %v3367, %v3369
    %v3371 = vrot.slane %v3357, %v3370
    %v3372 = vcombine.low %v3348, %v3364
    %v3373 = vcombine.high %v3348, %v3364
    %v3375 = vunpack.c.l.s4 1934713408
    %v3376 = vunpack.c.0.s8 %v3375
    %v3377 = vlaneseq
    %v3378 = vshrl.u32 %v3377, 7
    %v3379 = vsub.s32 %v3376, %v3378
    %v3380 = vrot.slane %v3372, %v3379
    %v3382 = vunpack.c.l.s4 1934713408
    %v3383 = vunpack.c.0.s8 %v3382
    %v3384 = vlaneseq
    %v3385 = vshrl.u32 %v3384, 7
    %v3386 = vsub.s32 %v3383, %v3385
    %v3387 = vrot.slane %v3373, %v3386
    %v3388 = vcombine.low %v3355, %v3371
    %v3389 = vcombine.high %v3355, %v3371
    %v3391 = vunpack.c.l.s4 1934713408
    %v3392 = vunpack.c.0.s8 %v3391
    %v3393 = vlaneseq
    %v3394 = vshrl.u32 %v3393, 7
    %v3395 = vsub.s32 %v3392, %v3394
    %v3396 = vrot.slane %v3388, %v3395
    %v3398 = vunpack.c.l.s4 1934713408
    %v3399 = vunpack.c.0.s8 %v3398
    %v3400 = vlaneseq
    %v3401 = vshrl.u32 %v3400, 7
    %v3402 = vsub.s32 %v3399, %v3401
    %v3403 = vrot.slane %v3389, %v3402
    %v3404 = vcombine.high %v3380, 0.0
    %v3405 = vcombine.high %v3387, 0.0
    %v3406 = vcombine.high %v3396, 0.0
    %v3407 = vcombine.high %v3403, 0.0
    %v3408 = vcombine.low %v2989, %v3319
    %v3409 = vcombine.high %v2989, %v3319
    %v3411 = vunpack.c.l.s4 1983009808
    %v3412 = vunpack.c.0.s8 %v3411
    %v3413 = vlaneseq
    %v3414 = vshrl.u32 %v3413, 7
    %v3415 = vsub.s32 %v3412, %v3414
    %v3416 = vrot.slane %v3408, %v3415
    %v3418 = vunpack.c.l.s4 1983009808
    %v3419 = vunpack.c.0.s8 %v3418
    %v3420 = vlaneseq
    %v3421 = vshrl.u32 %v3420, 7
    %v3422 = vsub.s32 %v3419, %v3421
    %v3423 = vrot.slane %v3409, %v3422
    %v3424 = vcombine.low %v3307, %v3331
    %v3425 = vcombine.high %v3307, %v3331
    %v3427 = vunpack.c.l.s4 1983009808
    %v3428 = vunpack.c.0.s8 %v3427
    %v3429 = vlaneseq
    %v3430 = vshrl.u32 %v3429, 7
    %v3431 = vsub.s32 %v3428, %v3430
    %v3432 = vrot.slane %v3424, %v3431
    %v3434 = vunpack.c.l.s4 1983009808
    %v3435 = vunpack.c.0.s8 %v3434
    %v3436 = vlaneseq
    %v3437 = vshrl.u32 %v3436, 7
    %v3438 = vsub.s32 %v3435, %v3437
    %v3439 = vrot.slane %v3425, %v3438
    %v3440 = vcombine.low %v3416, %v3432
    %v3441 = vcombine.high %v3416, %v3432
    %v3443 = vunpack.c.l.s4 1934713408
    %v3444 = vunpack.c.0.s8 %v3443
    %v3445 = vlaneseq
    %v3446 = vshrl.u32 %v3445, 7
    %v3447 = vsub.s32 %v3444, %v3446
    %v3448 = vrot.slane %v3440, %v3447
    %v3450 = vunpack.c.l.s4 1934713408
    %v3451 = vunpack.c.0.s8 %v3450
    %v3452 = vlaneseq
    %v3453 = vshrl.u32 %v3452, 7
    %v3454 = vsub.s32 %v3451, %v3453
    %v3455 = vrot.slane %v3441, %v3454
    %v3456 = vcombine.low %v3423, %v3439
    %v3457 = vcombine.high %v3423, %v3439
    %v3459 = vunpack.c.l.s4 1934713408
    %v3460 = vunpack.c.0.s8 %v3459
    %v3461 = vlaneseq
    %v3462 = vshrl.u32 %v3461, 7
    %v3463 = vsub.s32 %v3460, %v3462
    %v3464 = vrot.slane %v3456, %v3463
    %v3466 = vunpack.c.l.s4 1934713408
    %v3467 = vunpack.c.0.s8 %v3466
    %v3468 = vlaneseq
    %v3469 = vshrl.u32 %v3468, 7
    %v3470 = vsub.s32 %v3467, %v3469
    %v3471 = vrot.slane %v3457, %v3470
    %v3472 = vcombine.high %v3448, 0.0
    %v3473 = vcombine.high %v3455, 0.0
    %v3474 = vcombine.high %v3464, 0.0
    %v3475 = vcombine.high %v3471, 0.0
    %v3476 = vcombine.low %v2994, %v3321
    %v3477 = vcombine.high %v2994, %v3321
    %v3479 = vunpack.c.l.s4 1983009808
    %v3480 = vunpack.c.0.s8 %v3479
    %v3481 = vlaneseq
    %v3482 = vshrl.u32 %v3481, 7
    %v3483 = vsub.s32 %v3480, %v3482
    %v3484 = vrot.slane %v3476, %v3483
    %v3486 = vunpack.c.l.s4 1983009808
    %v3487 = vunpack.c.0.s8 %v3486
    %v3488 = vlaneseq
    %v3489 = vshrl.u32 %v3488, 7
    %v3490 = vsub.s32 %v3487, %v3489
    %v3491 = vrot.slane %v3477, %v3490
    %v3492 = vcombine.low %v3309, %v3333
    %v3493 = vcombine.high %v3309, %v3333
    %v3495 = vunpack.c.l.s4 1983009808
    %v3496 = vunpack.c.0.s8 %v3495
    %v3497 = vlaneseq
    %v3498 = vshrl.u32 %v3497, 7
    %v3499 = vsub.s32 %v3496, %v3498
    %v3500 = vrot.slane %v3492, %v3499
    %v3502 = vunpack.c.l.s4 1983009808
    %v3503 = vunpack.c.0.s8 %v3502
    %v3504 = vlaneseq
    %v3505 = vshrl.u32 %v3504, 7
    %v3506 = vsub.s32 %v3503, %v3505
    %v3507 = vrot.slane %v3493, %v3506
    %v3508 = vcombine.low %v3484, %v3500
    %v3509 = vcombine.high %v3484, %v3500
    %v3511 = vunpack.c.l.s4 1934713408
    %v3512 = vunpack.c.0.s8 %v3511
    %v3513 = vlaneseq
    %v3514 = vshrl.u32 %v3513, 7
    %v3515 = vsub.s32 %v3512, %v3514
    %v3516 = vrot.slane %v3508, %v3515
    %v3518 = vunpack.c.l.s4 1934713408
    %v3519 = vunpack.c.0.s8 %v3518
    %v3520 = vlaneseq
    %v3521 = vshrl.u32 %v3520, 7
    %v3522 = vsub.s32 %v3519, %v3521
    %v3523 = vrot.slane %v3509, %v3522
    %v3524 = vcombine.low %v3491, %v3507
    %v3525 = vcombine.high %v3491, %v3507
    %v3527 = vunpack.c.l.s4 1934713408
    %v3528 = vunpack.c.0.s8 %v3527
    %v3529 = vlaneseq
    %v3530 = vshrl.u32 %v3529, 7
    %v3531 = vsub.s32 %v3528, %v3530
    %v3532 = vrot.slane %v3524, %v3531
    %v3534 = vunpack.c.l.s4 1934713408
    %v3535 = vunpack.c.0.s8 %v3534
    %v3536 = vlaneseq
    %v3537 = vshrl.u32 %v3536, 7
    %v3538 = vsub.s32 %v3535, %v3537
    %v3539 = vrot.slane %v3525, %v3538
    %v3540 = vcombine.high %v3516, 0.0
    %v3541 = vcombine.high %v3523, 0.0
    %v3542 = vcombine.high %v3532, 0.0
    %v3543 = vcombine.high %v3539, 0.0
    %v3544 = vcombine.low %v2997, %v3323
    %v3545 = vcombine.high %v2997, %v3323
    %v3547 = vunpack.c.l.s4 1983009808
    %v3548 = vunpack.c.0.s8 %v3547
    %v3549 = vlaneseq
    %v3550 = vshrl.u32 %v3549, 7
    %v3551 = vsub.s32 %v3548, %v3550
    %v3552 = vrot.slane %v3544, %v3551
    %v3554 = vunpack.c.l.s4 1983009808
    %v3555 = vunpack.c.0.s8 %v3554
    %v3556 = vlaneseq
    %v3557 = vshrl.u32 %v3556, 7
    %v3558 = vsub.s32 %v3555, %v3557
    %v3559 = vrot.slane %v3545, %v3558
    %v3560 = vcombine.low %v3311, %v3335
    %v3561 = vcombine.high %v3311, %v3335
    %v3563 = vunpack.c.l.s4 1983009808
    %v3564 = vunpack.c.0.s8 %v3563
    %v3565 = vlaneseq
    %v3566 = vshrl.u32 %v3565, 7
    %v3567 = vsub.s32 %v3564, %v3566
    %v3568 = vrot.slane %v3560, %v3567
    %v3570 = vunpack.c.l.s4 1983009808
    %v3571 = vunpack.c.0.s8 %v3570
    %v3572 = vlaneseq
    %v3573 = vshrl.u32 %v3572, 7
    %v3574 = vsub.s32 %v3571, %v3573
    %v3575 = vrot.slane %v3561, %v3574
    %v3576 = vcombine.low %v3552, %v3568
    %v3577 = vcombine.high %v3552, %v3568
    %v3579 = vunpack.c.l.s4 1934713408
    %v3580 = vunpack.c.0.s8 %v3579
    %v3581 = vlaneseq
    %v3582 = vshrl.u32 %v3581, 7
    %v3583 = vsub.s32 %v3580, %v3582
    %v3584 = vrot.slane %v3576, %v3583
    %v3586 = vunpack.c.l.s4 1934713408
    %v3587 = vunpack.c.0.s8 %v3586
    %v3588 = vlaneseq
    %v3589 = vshrl.u32 %v3588, 7
    %v3590 = vsub.s32 %v3587, %v3589
    %v3591 = vrot.slane %v3577, %v3590
    %v3592 = vcombine.low %v3559, %v3575
    %v3593 = vcombine.high %v3559, %v3575
    %v3595 = vunpack.c.l.s4 1934713408
    %v3596 = vunpack.c.0.s8 %v3595
    %v3597 = vlaneseq
    %v3598 = vshrl.u32 %v3597, 7
    %v3599 = vsub.s32 %v3596, %v3598
    %v3600 = vrot.slane %v3592, %v3599
    %v3602 = vunpack.c.l.s4 1934713408
    %v3603 = vunpack.c.0.s8 %v3602
    %v3604 = vlaneseq
    %v3605 = vshrl.u32 %v3604, 7
    %v3606 = vsub.s32 %v3603, %v3605
    %v3607 = vrot.slane %v3593, %v3606
    %v3608 = vcombine.high %v3584, 0.0
    %v3609 = vcombine.high %v3591, 0.0
    %v3610 = vcombine.high %v3600, 0.0
    %v3611 = vcombine.high %v3607, 0.0
    %v3612 = vcombine.low %v3380, %v3387
    %v3614 = vunpack.c.l.s4 1983009808
    %v3615 = vunpack.c.0.s8 %v3614
    %v3616 = vlaneseq
    %v3617 = vshrl.u32 %v3616, 7
    %v3618 = vsub.s32 %v3615, %v3617
    %v3619 = vrot.slane %v3612, %v3618
    %v3620 = vcombine.low %v3404, %v3405
    %v3622 = vunpack.c.l.s4 1983009808
    %v3623 = vunpack.c.0.s8 %v3622
    %v3624 = vlaneseq
    %v3625 = vshrl.u32 %v3624, 7
    %v3626 = vsub.s32 %v3623, %v3625
    %v3627 = vrot.slane %v3620, %v3626
    %v3628 = vcombine.low %v3396, %v3403
    %v3630 = vunpack.c.l.s4 1983009808
    %v3631 = vunpack.c.0.s8 %v3630
    %v3632 = vlaneseq
    %v3633 = vshrl.u32 %v3632, 7
    %v3634 = vsub.s32 %v3631, %v3633
    %v3635 = vrot.slane %v3628, %v3634
    %v3636 = vcombine.low %v3406, %v3407
    %v3638 = vunpack.c.l.s4 1983009808
    %v3639 = vunpack.c.0.s8 %v3638
    %v3640 = vlaneseq
    %v3641 = vshrl.u32 %v3640, 7
    %v3642 = vsub.s32 %v3639, %v3641
    %v3643 = vrot.slane %v3636, %v3642
    %v3644 = vcombine.low %v3619, %v3627
    %v3645 = vcombine.high %v3619, %v3627
    %v3647 = vunpack.c.l.s4 1934713408
    %v3648 = vunpack.c.0.s8 %v3647
    %v3649 = vlaneseq
    %v3650 = vshrl.u32 %v3649, 7
    %v3651 = vsub.s32 %v3648, %v3650
    %v3652 = vrot.slane %v3644, %v3651
    %v3654 = vunpack.c.l.s4 1934713408
    %v3655 = vunpack.c.0.s8 %v3654
    %v3656 = vlaneseq
    %v3657 = vshrl.u32 %v3656, 7
    %v3658 = vsub.s32 %v3655, %v3657
    %v3659 = vrot.slane %v3645, %v3658
    %v3660 = vcombine.low %v3635, %v3643
    %v3661 = vcombine.high %v3635, %v3643
    %v3663 = vunpack.c.l.s4 1934713408
    %v3664 = vunpack.c.0.s8 %v3663
    %v3665 = vlaneseq
    %v3666 = vshrl.u32 %v3665, 7
    %v3667 = vsub.s32 %v3664, %v3666
    %v3668 = vrot.slane %v3660, %v3667
    %v3670 = vunpack.c.l.s4 1934713408
    %v3671 = vunpack.c.0.s8 %v3670
    %v3672 = vlaneseq
    %v3673 = vshrl.u32 %v3672, 7
    %v3674 = vsub.s32 %v3671, %v3673
    %v3675 = vrot.slane %v3661, %v3674
    %v3676 = vcombine.low %v3652, %v3668
    %v3677 = vcombine.high %v3652, %v3668
    %v3678 = vcombine.low %v3659, %v3675
    %v3679 = vcombine.high %v3659, %v3675
    %v3680 = vcombine.low %v3448, %v3455
    %v3682 = vunpack.c.l.s4 1983009808
    %v3683 = vunpack.c.0.s8 %v3682
    %v3684 = vlaneseq
    %v3685 = vshrl.u32 %v3684, 7
    %v3686 = vsub.s32 %v3683, %v3685
    %v3687 = vrot.slane %v3680, %v3686
    %v3688 = vcombine.low %v3472, %v3473
    %v3690 = vunpack.c.l.s4 1983009808
    %v3691 = vunpack.c.0.s8 %v3690
    %v3692 = vlaneseq
    %v3693 = vshrl.u32 %v3692, 7
    %v3694 = vsub.s32 %v3691, %v3693
    %v3695 = vrot.slane %v3688, %v3694
    %v3696 = vcombine.low %v3464, %v3471
    %v3698 = vunpack.c.l.s4 1983009808
    %v3699 = vunpack.c.0.s8 %v3698
    %v3700 = vlaneseq
    %v3701 = vshrl.u32 %v3700, 7
    %v3702 = vsub.s32 %v3699, %v3701
    %v3703 = vrot.slane %v3696, %v3702
    %v3704 = vcombine.low %v3474, %v3475
    %v3706 = vunpack.c.l.s4 1983009808
    %v3707 = vunpack.c.0.s8 %v3706
    %v3708 = vlaneseq
    %v3709 = vshrl.u32 %v3708, 7
    %v3710 = vsub.s32 %v3707, %v3709
    %v3711 = vrot.slane %v3704, %v3710
    %v3712 = vcombine.low %v3687, %v3695
    %v3713 = vcombine.high %v3687, %v3695
    %v3715 = vunpack.c.l.s4 1934713408
    %v3716 = vunpack.c.0.s8 %v3715
    %v3717 = vlaneseq
    %v3718 = vshrl.u32 %v3717, 7
    %v3719 = vsub.s32 %v3716, %v3718
    %v3720 = vrot.slane %v3712, %v3719
    %v3722 = vunpack.c.l.s4 1934713408
    %v3723 = vunpack.c.0.s8 %v3722
    %v3724 = vlaneseq
    %v3725 = vshrl.u32 %v3724, 7
    %v3726 = vsub.s32 %v3723, %v3725
    %v3727 = vrot.slane %v3713, %v3726
    %v3728 = vcombine.low %v3703, %v3711
    %v3729 = vcombine.high %v3703, %v3711
    %v3731 = vunpack.c.l.s4 1934713408
    %v3732 = vunpack.c.0.s8 %v3731
    %v3733 = vlaneseq
    %v3734 = vshrl.u32 %v3733, 7
    %v3735 = vsub.s32 %v3732, %v3734
    %v3736 = vrot.slane %v3728, %v3735
    %v3738 = vunpack.c.l.s4 1934713408
    %v3739 = vunpack.c.0.s8 %v3738
    %v3740 = vlaneseq
    %v3741 = vshrl.u32 %v3740, 7
    %v3742 = vsub.s32 %v3739, %v3741
    %v3743 = vrot.slane %v3729, %v3742
    %v3744 = vcombine.low %v3720, %v3736
    %v3745 = vcombine.high %v3720, %v3736
    %v3746 = vcombine.low %v3727, %v3743
    %v3747 = vcombine.high %v3727, %v3743
    %v3748 = vcombine.low %v3516, %v3523
    %v3750 = vunpack.c.l.s4 1983009808
    %v3751 = vunpack.c.0.s8 %v3750
    %v3752 = vlaneseq
    %v3753 = vshrl.u32 %v3752, 7
    %v3754 = vsub.s32 %v3751, %v3753
    %v3755 = vrot.slane %v3748, %v3754
    %v3756 = vcombine.low %v3540, %v3541
    %v3758 = vunpack.c.l.s4 1983009808
    %v3759 = vunpack.c.0.s8 %v3758
    %v3760 = vlaneseq
    %v3761 = vshrl.u32 %v3760, 7
    %v3762 = vsub.s32 %v3759, %v3761
    %v3763 = vrot.slane %v3756, %v3762
    %v3764 = vcombine.low %v3532, %v3539
    %v3766 = vunpack.c.l.s4 1983009808
    %v3767 = vunpack.c.0.s8 %v3766
    %v3768 = vlaneseq
    %v3769 = vshrl.u32 %v3768, 7
    %v3770 = vsub.s32 %v3767, %v3769
    %v3771 = vrot.slane %v3764, %v3770
    %v3772 = vcombine.low %v3542, %v3543
    %v3774 = vunpack.c.l.s4 1983009808
    %v3775 = vunpack.c.0.s8 %v3774
    %v3776 = vlaneseq
    %v3777 = vshrl.u32 %v3776, 7
    %v3778 = vsub.s32 %v3775, %v3777
    %v3779 = vrot.slane %v3772, %v3778
    %v3780 = vcombine.low %v3755, %v3763
    %v3781 = vcombine.high %v3755, %v3763
    %v3783 = vunpack.c.l.s4 1934713408
    %v3784 = vunpack.c.0.s8 %v3783
    %v3785 = vlaneseq
    %v3786 = vshrl.u32 %v3785, 7
    %v3787 = vsub.s32 %v3784, %v3786
    %v3788 = vrot.slane %v3780, %v3787
    %v3790 = vunpack.c.l.s4 1934713408
    %v3791 = vunpack.c.0.s8 %v3790
    %v3792 = vlaneseq
    %v3793 = vshrl.u32 %v3792, 7
    %v3794 = vsub.s32 %v3791, %v3793
    %v3795 = vrot.slane %v3781, %v3794
    %v3796 = vcombine.low %v3771, %v3779
    %v3797 = vcombine.high %v3771, %v3779
    %v3799 = vunpack.c.l.s4 1934713408
    %v3800 = vunpack.c.0.s8 %v3799
    %v3801 = vlaneseq
    %v3802 = vshrl.u32 %v3801, 7
    %v3803 = vsub.s32 %v3800, %v3802
    %v3804 = vrot.slane %v3796, %v3803
    %v3806 = vunpack.c.l.s4 1934713408
    %v3807 = vunpack.c.0.s8 %v3806
    %v3808 = vlaneseq
    %v3809 = vshrl.u32 %v3808, 7
    %v3810 = vsub.s32 %v3807, %v3809
    %v3811 = vrot.slane %v3797, %v3810
    %v3812 = vcombine.low %v3788, %v3804
    %v3813 = vcombine.high %v3788, %v3804
    %v3814 = vcombine.low %v3795, %v3811
    %v3815 = vcombine.high %v3795, %v3811
    %v3816 = vcombine.low %v3584, %v3591
    %v3818 = vunpack.c.l.s4 1983009808
    %v3819 = vunpack.c.0.s8 %v3818
    %v3820 = vlaneseq
    %v3821 = vshrl.u32 %v3820, 7
    %v3822 = vsub.s32 %v3819, %v3821
    %v3823 = vrot.slane %v3816, %v3822
    %v3824 = vcombine.low %v3608, %v3609
    %v3826 = vunpack.c.l.s4 1983009808
    %v3827 = vunpack.c.0.s8 %v3826
    %v3828 = vlaneseq
    %v3829 = vshrl.u32 %v3828, 7
    %v3830 = vsub.s32 %v3827, %v3829
    %v3831 = vrot.slane %v3824, %v3830
    %v3832 = vcombine.low %v3600, %v3607
    %v3834 = vunpack.c.l.s4 1983009808
    %v3835 = vunpack.c.0.s8 %v3834
    %v3836 = vlaneseq
    %v3837 = vshrl.u32 %v3836, 7
    %v3838 = vsub.s32 %v3835, %v3837
    %v3839 = vrot.slane %v3832, %v3838
    %v3840 = vcombine.low %v3610, %v3611
    %v3842 = vunpack.c.l.s4 1983009808
    %v3843 = vunpack.c.0.s8 %v3842
    %v3844 = vlaneseq
    %v3845 = vshrl.u32 %v3844, 7
    %v3846 = vsub.s32 %v3843, %v3845
    %v3847 = vrot.slane %v3840, %v3846
    %v3848 = vcombine.low %v3823, %v3831
    %v3849 = vcombine.high %v3823, %v3831
    %v3851 = vunpack.c.l.s4 1934713408
    %v3852 = vunpack.c.0.s8 %v3851
    %v3853 = vlaneseq
    %v3854 = vshrl.u32 %v3853, 7
    %v3855 = vsub.s32 %v3852, %v3854
    %v3856 = vrot.slane %v3848, %v3855
    %v3858 = vunpack.c.l.s4 1934713408
    %v3859 = vunpack.c.0.s8 %v3858
    %v3860 = vlaneseq
    %v3861 = vshrl.u32 %v3860, 7
    %v3862 = vsub.s32 %v3859, %v3861
    %v3863 = vrot.slane %v3849, %v3862
    %v3864 = vcombine.low %v3839, %v3847
    %v3865 = vcombine.high %v3839, %v3847
    %v3867 = vunpack.c.l.s4 1934713408
    %v3868 = vunpack.c.0.s8 %v3867
    %v3869 = vlaneseq
    %v3870 = vshrl.u32 %v3869, 7
    %v3871 = vsub.s32 %v3868, %v3870
    %v3872 = vrot.slane %v3864, %v3871
    %v3874 = vunpack.c.l.s4 1934713408
    %v3875 = vunpack.c.0.s8 %v3874
    %v3876 = vlaneseq
    %v3877 = vshrl.u32 %v3876, 7
    %v3878 = vsub.s32 %v3875, %v3877
    %v3879 = vrot.slane %v3865, %v3878
    %v3880 = vcombine.low %v3856, %v3872
    %v3881 = vcombine.high %v3856, %v3872
    %v3882 = vcombine.low %v3863, %v3879
    %v3883 = vcombine.high %v3863, %v3879
    %v3884 = vpack.c.bf16 %v3744, %v3676
    %v3885 = vpack.c.bf16 %v3745, %v3677
    %v3886 = vpack.c.bf16 %v3746, %v3678
    %v3887 = vpack.c.bf16 %v3747, %v3679
    %v3888 = vpack.c.bf16 %v3880, %v3812
    %v3889 = vpack.c.bf16 %v3881, %v3813
    %v3890 = vpack.c.bf16 %v3882, %v3814
    %v3891 = vpack.c.bf16 %v3883, %v3815
    %3892 = vrot.lane.b32.xlu0 %v2986, 96
    %v3893 = vpop.permute.xlu0 %3892
    %3894 = vrot.lane.b32.xlu0 %v2989, 96
    %v3895 = vpop.permute.xlu0 %3894
    %3896 = vrot.lane.b32.xlu0 %v2994, 96
    %v3897 = vpop.permute.xlu0 %3896
    %3898 = vrot.lane.b32.xlu0 %v2997, 96
    %v3899 = vpop.permute.xlu0 %3898
    %3900 = vrot.lane.b32.xlu0 %v3305, 96
    %v3901 = vpop.permute.xlu0 %3900
    %3902 = vrot.lane.b32.xlu0 %v3307, 96
    %v3903 = vpop.permute.xlu0 %3902
    %3904 = vrot.lane.b32.xlu0 %v3309, 96
    %v3905 = vpop.permute.xlu0 %3904
    %3906 = vrot.lane.b32.xlu0 %v3311, 96
    %v3907 = vpop.permute.xlu0 %3906
    %3908 = vrot.lane.b32.xlu0 %v3317, 96
    %v3909 = vpop.permute.xlu0 %3908
    %3910 = vrot.lane.b32.xlu0 %v3319, 96
    %v3911 = vpop.permute.xlu0 %3910
    %3912 = vrot.lane.b32.xlu0 %v3321, 96
    %v3913 = vpop.permute.xlu0 %3912
    %3914 = vrot.lane.b32.xlu0 %v3323, 96
    %v3915 = vpop.permute.xlu0 %3914
    %3916 = vrot.lane.b32.xlu0 %v3329, 96
    %v3917 = vpop.permute.xlu0 %3916
    %3918 = vrot.lane.b32.xlu0 %v3331, 96
    %v3919 = vpop.permute.xlu0 %3918
    %3920 = vrot.lane.b32.xlu0 %v3333, 96
    %v3921 = vpop.permute.xlu0 %3920
    %3922 = vrot.lane.b32.xlu0 %v3335, 96
    %v3923 = vpop.permute.xlu0 %3922
    %v3940 = vcombine.low %v3893, %v3909
    %v3941 = vcombine.high %v3893, %v3909
    %v3943 = vunpack.c.l.s4 1983009808
    %v3944 = vunpack.c.0.s8 %v3943
    %v3945 = vlaneseq
    %v3946 = vshrl.u32 %v3945, 7
    %v3947 = vsub.s32 %v3944, %v3946
    %v3948 = vrot.slane %v3940, %v3947
    %v3950 = vunpack.c.l.s4 1983009808
    %v3951 = vunpack.c.0.s8 %v3950
    %v3952 = vlaneseq
    %v3953 = vshrl.u32 %v3952, 7
    %v3954 = vsub.s32 %v3951, %v3953
    %v3955 = vrot.slane %v3941, %v3954
    %v3956 = vcombine.low %v3901, %v3917
    %v3957 = vcombine.high %v3901, %v3917
    %v3959 = vunpack.c.l.s4 1983009808
    %v3960 = vunpack.c.0.s8 %v3959
    %v3961 = vlaneseq
    %v3962 = vshrl.u32 %v3961, 7
    %v3963 = vsub.s32 %v3960, %v3962
    %v3964 = vrot.slane %v3956, %v3963
    %v3966 = vunpack.c.l.s4 1983009808
    %v3967 = vunpack.c.0.s8 %v3966
    %v3968 = vlaneseq
    %v3969 = vshrl.u32 %v3968, 7
    %v3970 = vsub.s32 %v3967, %v3969
    %v3971 = vrot.slane %v3957, %v3970
    %v3972 = vcombine.low %v3948, %v3964
    %v3973 = vcombine.high %v3948, %v3964
    %v3975 = vunpack.c.l.s4 1934713408
    %v3976 = vunpack.c.0.s8 %v3975
    %v3977 = vlaneseq
    %v3978 = vshrl.u32 %v3977, 7
    %v3979 = vsub.s32 %v3976, %v3978
    %v3980 = vrot.slane %v3972, %v3979
    %v3982 = vunpack.c.l.s4 1934713408
    %v3983 = vunpack.c.0.s8 %v3982
    %v3984 = vlaneseq
    %v3985 = vshrl.u32 %v3984, 7
    %v3986 = vsub.s32 %v3983, %v3985
    %v3987 = vrot.slane %v3973, %v3986
    %v3988 = vcombine.low %v3955, %v3971
    %v3989 = vcombine.high %v3955, %v3971
    %v3991 = vunpack.c.l.s4 1934713408
    %v3992 = vunpack.c.0.s8 %v3991
    %v3993 = vlaneseq
    %v3994 = vshrl.u32 %v3993, 7
    %v3995 = vsub.s32 %v3992, %v3994
    %v3996 = vrot.slane %v3988, %v3995
    %v3998 = vunpack.c.l.s4 1934713408
    %v3999 = vunpack.c.0.s8 %v3998
    %v4000 = vlaneseq
    %v4001 = vshrl.u32 %v4000, 7
    %v4002 = vsub.s32 %v3999, %v4001
    %v4003 = vrot.slane %v3989, %v4002
    %v4004 = vcombine.high %v3980, 0.0
    %v4005 = vcombine.high %v3987, 0.0
    %v4006 = vcombine.high %v3996, 0.0
    %v4007 = vcombine.high %v4003, 0.0
    %v4008 = vcombine.low %v3895, %v3911
    %v4009 = vcombine.high %v3895, %v3911
    %v4011 = vunpack.c.l.s4 1983009808
    %v4012 = vunpack.c.0.s8 %v4011
    %v4013 = vlaneseq
    %v4014 = vshrl.u32 %v4013, 7
    %v4015 = vsub.s32 %v4012, %v4014
    %v4016 = vrot.slane %v4008, %v4015
    %v4018 = vunpack.c.l.s4 1983009808
    %v4019 = vunpack.c.0.s8 %v4018
    %v4020 = vlaneseq
    %v4021 = vshrl.u32 %v4020, 7
    %v4022 = vsub.s32 %v4019, %v4021
    %v4023 = vrot.slane %v4009, %v4022
    %v4024 = vcombine.low %v3903, %v3919
    %v4025 = vcombine.high %v3903, %v3919
    %v4027 = vunpack.c.l.s4 1983009808
    %v4028 = vunpack.c.0.s8 %v4027
    %v4029 = vlaneseq
    %v4030 = vshrl.u32 %v4029, 7
    %v4031 = vsub.s32 %v4028, %v4030
    %v4032 = vrot.slane %v4024, %v4031
    %v4034 = vunpack.c.l.s4 1983009808
    %v4035 = vunpack.c.0.s8 %v4034
    %v4036 = vlaneseq
    %v4037 = vshrl.u32 %v4036, 7
    %v4038 = vsub.s32 %v4035, %v4037
    %v4039 = vrot.slane %v4025, %v4038
    %v4040 = vcombine.low %v4016, %v4032
    %v4041 = vcombine.high %v4016, %v4032
    %v4043 = vunpack.c.l.s4 1934713408
    %v4044 = vunpack.c.0.s8 %v4043
    %v4045 = vlaneseq
    %v4046 = vshrl.u32 %v4045, 7
    %v4047 = vsub.s32 %v4044, %v4046
    %v4048 = vrot.slane %v4040, %v4047
    %v4050 = vunpack.c.l.s4 1934713408
    %v4051 = vunpack.c.0.s8 %v4050
    %v4052 = vlaneseq
    %v4053 = vshrl.u32 %v4052, 7
    %v4054 = vsub.s32 %v4051, %v4053
    %v4055 = vrot.slane %v4041, %v4054
    %v4056 = vcombine.low %v4023, %v4039
    %v4057 = vcombine.high %v4023, %v4039
    %v4059 = vunpack.c.l.s4 1934713408
    %v4060 = vunpack.c.0.s8 %v4059
    %v4061 = vlaneseq
    %v4062 = vshrl.u32 %v4061, 7
    %v4063 = vsub.s32 %v4060, %v4062
    %v4064 = vrot.slane %v4056, %v4063
    %v4066 = vunpack.c.l.s4 1934713408
    %v4067 = vunpack.c.0.s8 %v4066
    %v4068 = vlaneseq
    %v4069 = vshrl.u32 %v4068, 7
    %v4070 = vsub.s32 %v4067, %v4069
    %v4071 = vrot.slane %v4057, %v4070
    %v4072 = vcombine.high %v4048, 0.0
    %v4073 = vcombine.high %v4055, 0.0
    %v4074 = vcombine.high %v4064, 0.0
    %v4075 = vcombine.high %v4071, 0.0
    %v4076 = vcombine.low %v3897, %v3913
    %v4077 = vcombine.high %v3897, %v3913
    %v4079 = vunpack.c.l.s4 1983009808
    %v4080 = vunpack.c.0.s8 %v4079
    %v4081 = vlaneseq
    %v4082 = vshrl.u32 %v4081, 7
    %v4083 = vsub.s32 %v4080, %v4082
    %v4084 = vrot.slane %v4076, %v4083
    %v4086 = vunpack.c.l.s4 1983009808
    %v4087 = vunpack.c.0.s8 %v4086
    %v4088 = vlaneseq
    %v4089 = vshrl.u32 %v4088, 7
    %v4090 = vsub.s32 %v4087, %v4089
    %v4091 = vrot.slane %v4077, %v4090
    %v4092 = vcombine.low %v3905, %v3921
    %v4093 = vcombine.high %v3905, %v3921
    %v4095 = vunpack.c.l.s4 1983009808
    %v4096 = vunpack.c.0.s8 %v4095
    %v4097 = vlaneseq
    %v4098 = vshrl.u32 %v4097, 7
    %v4099 = vsub.s32 %v4096, %v4098
    %v4100 = vrot.slane %v4092, %v4099
    %v4102 = vunpack.c.l.s4 1983009808
    %v4103 = vunpack.c.0.s8 %v4102
    %v4104 = vlaneseq
    %v4105 = vshrl.u32 %v4104, 7
    %v4106 = vsub.s32 %v4103, %v4105
    %v4107 = vrot.slane %v4093, %v4106
    %v4108 = vcombine.low %v4084, %v4100
    %v4109 = vcombine.high %v4084, %v4100
    %v4111 = vunpack.c.l.s4 1934713408
    %v4112 = vunpack.c.0.s8 %v4111
    %v4113 = vlaneseq
    %v4114 = vshrl.u32 %v4113, 7
    %v4115 = vsub.s32 %v4112, %v4114
    %v4116 = vrot.slane %v4108, %v4115
    %v4118 = vunpack.c.l.s4 1934713408
    %v4119 = vunpack.c.0.s8 %v4118
    %v4120 = vlaneseq
    %v4121 = vshrl.u32 %v4120, 7
    %v4122 = vsub.s32 %v4119, %v4121
    %v4123 = vrot.slane %v4109, %v4122
    %v4124 = vcombine.low %v4091, %v4107
    %v4125 = vcombine.high %v4091, %v4107
    %v4127 = vunpack.c.l.s4 1934713408
    %v4128 = vunpack.c.0.s8 %v4127
    %v4129 = vlaneseq
    %v4130 = vshrl.u32 %v4129, 7
    %v4131 = vsub.s32 %v4128, %v4130
    %v4132 = vrot.slane %v4124, %v4131
    %v4134 = vunpack.c.l.s4 1934713408
    %v4135 = vunpack.c.0.s8 %v4134
    %v4136 = vlaneseq
    %v4137 = vshrl.u32 %v4136, 7
    %v4138 = vsub.s32 %v4135, %v4137
    %v4139 = vrot.slane %v4125, %v4138
    %v4140 = vcombine.high %v4116, 0.0
    %v4141 = vcombine.high %v4123, 0.0
    %v4142 = vcombine.high %v4132, 0.0
    %v4143 = vcombine.high %v4139, 0.0
    %v4144 = vcombine.low %v3899, %v3915
    %v4145 = vcombine.high %v3899, %v3915
    %v4147 = vunpack.c.l.s4 1983009808
    %v4148 = vunpack.c.0.s8 %v4147
    %v4149 = vlaneseq
    %v4150 = vshrl.u32 %v4149, 7
    %v4151 = vsub.s32 %v4148, %v4150
    %v4152 = vrot.slane %v4144, %v4151
    %v4154 = vunpack.c.l.s4 1983009808
    %v4155 = vunpack.c.0.s8 %v4154
    %v4156 = vlaneseq
    %v4157 = vshrl.u32 %v4156, 7
    %v4158 = vsub.s32 %v4155, %v4157
    %v4159 = vrot.slane %v4145, %v4158
    %v4160 = vcombine.low %v3907, %v3923
    %v4161 = vcombine.high %v3907, %v3923
    %v4163 = vunpack.c.l.s4 1983009808
    %v4164 = vunpack.c.0.s8 %v4163
    %v4165 = vlaneseq
    %v4166 = vshrl.u32 %v4165, 7
    %v4167 = vsub.s32 %v4164, %v4166
    %v4168 = vrot.slane %v4160, %v4167
    %v4170 = vunpack.c.l.s4 1983009808
    %v4171 = vunpack.c.0.s8 %v4170
    %v4172 = vlaneseq
    %v4173 = vshrl.u32 %v4172, 7
    %v4174 = vsub.s32 %v4171, %v4173
    %v4175 = vrot.slane %v4161, %v4174
    %v4176 = vcombine.low %v4152, %v4168
    %v4177 = vcombine.high %v4152, %v4168
    %v4179 = vunpack.c.l.s4 1934713408
    %v4180 = vunpack.c.0.s8 %v4179
    %v4181 = vlaneseq
    %v4182 = vshrl.u32 %v4181, 7
    %v4183 = vsub.s32 %v4180, %v4182
    %v4184 = vrot.slane %v4176, %v4183
    %v4186 = vunpack.c.l.s4 1934713408
    %v4187 = vunpack.c.0.s8 %v4186
    %v4188 = vlaneseq
    %v4189 = vshrl.u32 %v4188, 7
    %v4190 = vsub.s32 %v4187, %v4189
    %v4191 = vrot.slane %v4177, %v4190
    %v4192 = vcombine.low %v4159, %v4175
    %v4193 = vcombine.high %v4159, %v4175
    %v4195 = vunpack.c.l.s4 1934713408
    %v4196 = vunpack.c.0.s8 %v4195
    %v4197 = vlaneseq
    %v4198 = vshrl.u32 %v4197, 7
    %v4199 = vsub.s32 %v4196, %v4198
    %v4200 = vrot.slane %v4192, %v4199
    %v4202 = vunpack.c.l.s4 1934713408
    %v4203 = vunpack.c.0.s8 %v4202
    %v4204 = vlaneseq
    %v4205 = vshrl.u32 %v4204, 7
    %v4206 = vsub.s32 %v4203, %v4205
    %v4207 = vrot.slane %v4193, %v4206
    %v4208 = vcombine.high %v4184, 0.0
    %v4209 = vcombine.high %v4191, 0.0
    %v4210 = vcombine.high %v4200, 0.0
    %v4211 = vcombine.high %v4207, 0.0
    %v4212 = vcombine.low %v3980, %v3987
    %v4214 = vunpack.c.l.s4 1983009808
    %v4215 = vunpack.c.0.s8 %v4214
    %v4216 = vlaneseq
    %v4217 = vshrl.u32 %v4216, 7
    %v4218 = vsub.s32 %v4215, %v4217
    %v4219 = vrot.slane %v4212, %v4218
    %v4220 = vcombine.low %v4004, %v4005
    %v4222 = vunpack.c.l.s4 1983009808
    %v4223 = vunpack.c.0.s8 %v4222
    %v4224 = vlaneseq
    %v4225 = vshrl.u32 %v4224, 7
    %v4226 = vsub.s32 %v4223, %v4225
    %v4227 = vrot.slane %v4220, %v4226
    %v4228 = vcombine.low %v3996, %v4003
    %v4230 = vunpack.c.l.s4 1983009808
    %v4231 = vunpack.c.0.s8 %v4230
    %v4232 = vlaneseq
    %v4233 = vshrl.u32 %v4232, 7
    %v4234 = vsub.s32 %v4231, %v4233
    %v4235 = vrot.slane %v4228, %v4234
    %v4236 = vcombine.low %v4006, %v4007
    %v4238 = vunpack.c.l.s4 1983009808
    %v4239 = vunpack.c.0.s8 %v4238
    %v4240 = vlaneseq
    %v4241 = vshrl.u32 %v4240, 7
    %v4242 = vsub.s32 %v4239, %v4241
    %v4243 = vrot.slane %v4236, %v4242
    %v4244 = vcombine.low %v4219, %v4227
    %v4245 = vcombine.high %v4219, %v4227
    %v4247 = vunpack.c.l.s4 1934713408
    %v4248 = vunpack.c.0.s8 %v4247
    %v4249 = vlaneseq
    %v4250 = vshrl.u32 %v4249, 7
    %v4251 = vsub.s32 %v4248, %v4250
    %v4252 = vrot.slane %v4244, %v4251
    %v4254 = vunpack.c.l.s4 1934713408
    %v4255 = vunpack.c.0.s8 %v4254
    %v4256 = vlaneseq
    %v4257 = vshrl.u32 %v4256, 7
    %v4258 = vsub.s32 %v4255, %v4257
    %v4259 = vrot.slane %v4245, %v4258
    %v4260 = vcombine.low %v4235, %v4243
    %v4261 = vcombine.high %v4235, %v4243
    %v4263 = vunpack.c.l.s4 1934713408
    %v4264 = vunpack.c.0.s8 %v4263
    %v4265 = vlaneseq
    %v4266 = vshrl.u32 %v4265, 7
    %v4267 = vsub.s32 %v4264, %v4266
    %v4268 = vrot.slane %v4260, %v4267
    %v4270 = vunpack.c.l.s4 1934713408
    %v4271 = vunpack.c.0.s8 %v4270
    %v4272 = vlaneseq
    %v4273 = vshrl.u32 %v4272, 7
    %v4274 = vsub.s32 %v4271, %v4273
    %v4275 = vrot.slane %v4261, %v4274
    %v4276 = vcombine.low %v4252, %v4268
    %v4277 = vcombine.high %v4252, %v4268
    %v4278 = vcombine.low %v4259, %v4275
    %v4279 = vcombine.high %v4259, %v4275
    %v4280 = vcombine.low %v4048, %v4055
    %v4282 = vunpack.c.l.s4 1983009808
    %v4283 = vunpack.c.0.s8 %v4282
    %v4284 = vlaneseq
    %v4285 = vshrl.u32 %v4284, 7
    %v4286 = vsub.s32 %v4283, %v4285
    %v4287 = vrot.slane %v4280, %v4286
    %v4288 = vcombine.low %v4072, %v4073
    %v4290 = vunpack.c.l.s4 1983009808
    %v4291 = vunpack.c.0.s8 %v4290
    %v4292 = vlaneseq
    %v4293 = vshrl.u32 %v4292, 7
    %v4294 = vsub.s32 %v4291, %v4293
    %v4295 = vrot.slane %v4288, %v4294
    %v4296 = vcombine.low %v4064, %v4071
    %v4298 = vunpack.c.l.s4 1983009808
    %v4299 = vunpack.c.0.s8 %v4298
    %v4300 = vlaneseq
    %v4301 = vshrl.u32 %v4300, 7
    %v4302 = vsub.s32 %v4299, %v4301
    %v4303 = vrot.slane %v4296, %v4302
    %v4304 = vcombine.low %v4074, %v4075
    %v4306 = vunpack.c.l.s4 1983009808
    %v4307 = vunpack.c.0.s8 %v4306
    %v4308 = vlaneseq
    %v4309 = vshrl.u32 %v4308, 7
    %v4310 = vsub.s32 %v4307, %v4309
    %v4311 = vrot.slane %v4304, %v4310
    %v4312 = vcombine.low %v4287, %v4295
    %v4313 = vcombine.high %v4287, %v4295
    %v4315 = vunpack.c.l.s4 1934713408
    %v4316 = vunpack.c.0.s8 %v4315
    %v4317 = vlaneseq
    %v4318 = vshrl.u32 %v4317, 7
    %v4319 = vsub.s32 %v4316, %v4318
    %v4320 = vrot.slane %v4312, %v4319
    %v4322 = vunpack.c.l.s4 1934713408
    %v4323 = vunpack.c.0.s8 %v4322
    %v4324 = vlaneseq
    %v4325 = vshrl.u32 %v4324, 7
    %v4326 = vsub.s32 %v4323, %v4325
    %v4327 = vrot.slane %v4313, %v4326
    %v4328 = vcombine.low %v4303, %v4311
    %v4329 = vcombine.high %v4303, %v4311
    %v4331 = vunpack.c.l.s4 1934713408
    %v4332 = vunpack.c.0.s8 %v4331
    %v4333 = vlaneseq
    %v4334 = vshrl.u32 %v4333, 7
    %v4335 = vsub.s32 %v4332, %v4334
    %v4336 = vrot.slane %v4328, %v4335
    %v4338 = vunpack.c.l.s4 1934713408
    %v4339 = vunpack.c.0.s8 %v4338
    %v4340 = vlaneseq
    %v4341 = vshrl.u32 %v4340, 7
    %v4342 = vsub.s32 %v4339, %v4341
    %v4343 = vrot.slane %v4329, %v4342
    %v4344 = vcombine.low %v4320, %v4336
    %v4345 = vcombine.high %v4320, %v4336
    %v4346 = vcombine.low %v4327, %v4343
    %v4347 = vcombine.high %v4327, %v4343
    %v4348 = vcombine.low %v4116, %v4123
    %v4350 = vunpack.c.l.s4 1983009808
    %v4351 = vunpack.c.0.s8 %v4350
    %v4352 = vlaneseq
    %v4353 = vshrl.u32 %v4352, 7
    %v4354 = vsub.s32 %v4351, %v4353
    %v4355 = vrot.slane %v4348, %v4354
    %v4356 = vcombine.low %v4140, %v4141
    %v4358 = vunpack.c.l.s4 1983009808
    %v4359 = vunpack.c.0.s8 %v4358
    %v4360 = vlaneseq
    %v4361 = vshrl.u32 %v4360, 7
    %v4362 = vsub.s32 %v4359, %v4361
    %v4363 = vrot.slane %v4356, %v4362
    %v4364 = vcombine.low %v4132, %v4139
    %v4366 = vunpack.c.l.s4 1983009808
    %v4367 = vunpack.c.0.s8 %v4366
    %v4368 = vlaneseq
    %v4369 = vshrl.u32 %v4368, 7
    %v4370 = vsub.s32 %v4367, %v4369
    %v4371 = vrot.slane %v4364, %v4370
    %v4372 = vcombine.low %v4142, %v4143
    %v4374 = vunpack.c.l.s4 1983009808
    %v4375 = vunpack.c.0.s8 %v4374
    %v4376 = vlaneseq
    %v4377 = vshrl.u32 %v4376, 7
    %v4378 = vsub.s32 %v4375, %v4377
    %v4379 = vrot.slane %v4372, %v4378
    %v4380 = vcombine.low %v4355, %v4363
    %v4381 = vcombine.high %v4355, %v4363
    %v4383 = vunpack.c.l.s4 1934713408
    %v4384 = vunpack.c.0.s8 %v4383
    %v4385 = vlaneseq
    %v4386 = vshrl.u32 %v4385, 7
    %v4387 = vsub.s32 %v4384, %v4386
    %v4388 = vrot.slane %v4380, %v4387
    %v4390 = vunpack.c.l.s4 1934713408
    %v4391 = vunpack.c.0.s8 %v4390
    %v4392 = vlaneseq
    %v4393 = vshrl.u32 %v4392, 7
    %v4394 = vsub.s32 %v4391, %v4393
    %v4395 = vrot.slane %v4381, %v4394
    %v4396 = vcombine.low %v4371, %v4379
    %v4397 = vcombine.high %v4371, %v4379
    %v4399 = vunpack.c.l.s4 1934713408
    %v4400 = vunpack.c.0.s8 %v4399
    %v4401 = vlaneseq
    %v4402 = vshrl.u32 %v4401, 7
    %v4403 = vsub.s32 %v4400, %v4402
    %v4404 = vrot.slane %v4396, %v4403
    %v4406 = vunpack.c.l.s4 1934713408
    %v4407 = vunpack.c.0.s8 %v4406
    %v4408 = vlaneseq
    %v4409 = vshrl.u32 %v4408, 7
    %v4410 = vsub.s32 %v4407, %v4409
    %v4411 = vrot.slane %v4397, %v4410
    %v4412 = vcombine.low %v4388, %v4404
    %v4413 = vcombine.high %v4388, %v4404
    %v4414 = vcombine.low %v4395, %v4411
    %v4415 = vcombine.high %v4395, %v4411
    %v4416 = vcombine.low %v4184, %v4191
    %v4418 = vunpack.c.l.s4 1983009808
    %v4419 = vunpack.c.0.s8 %v4418
    %v4420 = vlaneseq
    %v4421 = vshrl.u32 %v4420, 7
    %v4422 = vsub.s32 %v4419, %v4421
    %v4423 = vrot.slane %v4416, %v4422
    %v4424 = vcombine.low %v4208, %v4209
    %v4426 = vunpack.c.l.s4 1983009808
    %v4427 = vunpack.c.0.s8 %v4426
    %v4428 = vlaneseq
    %v4429 = vshrl.u32 %v4428, 7
    %v4430 = vsub.s32 %v4427, %v4429
    %v4431 = vrot.slane %v4424, %v4430
    %v4432 = vcombine.low %v4200, %v4207
    %v4434 = vunpack.c.l.s4 1983009808
    %v4435 = vunpack.c.0.s8 %v4434
    %v4436 = vlaneseq
    %v4437 = vshrl.u32 %v4436, 7
    %v4438 = vsub.s32 %v4435, %v4437
    %v4439 = vrot.slane %v4432, %v4438
    %v4440 = vcombine.low %v4210, %v4211
    %v4442 = vunpack.c.l.s4 1983009808
    %v4443 = vunpack.c.0.s8 %v4442
    %v4444 = vlaneseq
    %v4445 = vshrl.u32 %v4444, 7
    %v4446 = vsub.s32 %v4443, %v4445
    %v4447 = vrot.slane %v4440, %v4446
    %v4448 = vcombine.low %v4423, %v4431
    %v4449 = vcombine.high %v4423, %v4431
    %v4451 = vunpack.c.l.s4 1934713408
    %v4452 = vunpack.c.0.s8 %v4451
    %v4453 = vlaneseq
    %v4454 = vshrl.u32 %v4453, 7
    %v4455 = vsub.s32 %v4452, %v4454
    %v4456 = vrot.slane %v4448, %v4455
    %v4458 = vunpack.c.l.s4 1934713408
    %v4459 = vunpack.c.0.s8 %v4458
    %v4460 = vlaneseq
    %v4461 = vshrl.u32 %v4460, 7
    %v4462 = vsub.s32 %v4459, %v4461
    %v4463 = vrot.slane %v4449, %v4462
    %v4464 = vcombine.low %v4439, %v4447
    %v4465 = vcombine.high %v4439, %v4447
    %v4467 = vunpack.c.l.s4 1934713408
    %v4468 = vunpack.c.0.s8 %v4467
    %v4469 = vlaneseq
    %v4470 = vshrl.u32 %v4469, 7
    %v4471 = vsub.s32 %v4468, %v4470
    %v4472 = vrot.slane %v4464, %v4471
    %v4474 = vunpack.c.l.s4 1934713408
    %v4475 = vunpack.c.0.s8 %v4474
    %v4476 = vlaneseq
    %v4477 = vshrl.u32 %v4476, 7
    %v4478 = vsub.s32 %v4475, %v4477
    %v4479 = vrot.slane %v4465, %v4478
    %v4480 = vcombine.low %v4456, %v4472
    %v4481 = vcombine.high %v4456, %v4472
    %v4482 = vcombine.low %v4463, %v4479
    %v4483 = vcombine.high %v4463, %v4479
    %v4484 = vpack.c.bf16 %v4344, %v4276
    %v4485 = vpack.c.bf16 %v4345, %v4277
    %v4486 = vpack.c.bf16 %v4346, %v4278
    %v4487 = vpack.c.bf16 %v4347, %v4279
    %v4488 = vpack.c.bf16 %v4480, %v4412
    %v4489 = vpack.c.bf16 %v4481, %v4413
    %v4490 = vpack.c.bf16 %v4482, %v4414
    %v4491 = vpack.c.bf16 %v4483, %v4415
    %v4493 = vsel %vm1274, %v3292, 0
    %v4496 = vsel %vm1274, %v3884, 0
    %4498 = vmatprep.subr.bf16.mxu0 0
    %4499 = vmatpush1.bf16.xpose.msra.mxu0 %v4496
    %4500 = vmatprep.subr.bf16.mxu0 0
    %4501 = vmatpush1.bf16.xpose.msra.mxu0 0
    %4502 = vmatprep.subr.bf16.mxu0 0
    %4503 = vmatpush1.bf16.xpose.msra.mxu0 0
    %4504 = vmatprep.subr.bf16.mxu0 0
    %4505 = vmatpush1.bf16.xpose.msra.mxu0 0
    %4506 = vmatprep.subr.bf16.mxu0 0
    %4507 = vmatpush1.bf16.xpose.msra.mxu0 0
    %4508 = vmatprep.subr.bf16.mxu0 0
    %4509 = vmatpush1.bf16.xpose.msra.mxu0 0
    %4510 = vmatprep.subr.bf16.mxu0 0
    %4511 = vmatpush1.bf16.xpose.msra.mxu0 0
    %4512 = vmatprep.subr.bf16.mxu0 0
    %4513 = vmatpush1.bf16.xpose.msra.mxu0 0
    %4514 = vmatprep.subr.bf16.mxu0 0
    %4515 = vmatpush1.bf16.xpose.msra.mxu0 0
    %4516 = vmatprep.subr.bf16.mxu0 0
    %4517 = vmatpush1.bf16.xpose.msra.mxu0 0
    %4518 = vmatprep.subr.bf16.mxu0 0
    %4519 = vmatpush1.bf16.xpose.msra.mxu0 0
    %4520 = vmatprep.subr.bf16.mxu0 0
    %4521 = vmatpush1.bf16.xpose.msra.mxu0 0
    %4522 = vmatprep.subr.bf16.mxu0 0
    %4523 = vmatpush1.bf16.xpose.msra.mxu0 0
    %4524 = vmatprep.subr.bf16.mxu0 0
    %4525 = vmatpush1.bf16.xpose.msra.mxu0 0
    %4526 = vmatprep.subr.bf16.mxu0 0
    %4527 = vmatpush1.bf16.xpose.msra.mxu0 0
    %4528 = vmatprep.subr.bf16.mxu0 0
    %4529 = vmatpush1.bf16.xpose.msra.mxu0 0
    %4530 = vmatprep.mubr.bf16.mxu0 0
    %4531 = vmatmul.mubr.bf16.gmra.mrb[0].mxu0 %v4493
    %v4532 = vpop.f32.mrb[0].mxu0
    %v4533 = vadd.f32 0.0, %v4532
    %v4534 = vpop.f32.mrb[0].mxu0
    %v4535 = vpop.f32.mrb[0].mxu0
    %v4536 = vpop.f32.mrb[0].mxu0
    %4537 = vdwg.mxu0
    %v4539 = vsel %vm1274, %v3293, 0
    %v4542 = vsel %vm1274, %v3885, 0
    %4544 = vmatprep.subr.bf16.mxu0 0
    %4545 = vmatpush1.bf16.xpose.msra.mxu0 %v4542
    %4546 = vmatprep.subr.bf16.mxu0 0
    %4547 = vmatpush1.bf16.xpose.msra.mxu0 0
    %4548 = vmatprep.subr.bf16.mxu0 0
    %4549 = vmatpush1.bf16.xpose.msra.mxu0 0
    %4550 = vmatprep.subr.bf16.mxu0 0
    %4551 = vmatpush1.bf16.xpose.msra.mxu0 0
    %4552 = vmatprep.subr.bf16.mxu0 0
    %4553 = vmatpush1.bf16.xpose.msra.mxu0 0
    %4554 = vmatprep.subr.bf16.mxu0 0
    %4555 = vmatpush1.bf16.xpose.msra.mxu0 0
    %4556 = vmatprep.subr.bf16.mxu0 0
    %4557 = vmatpush1.bf16.xpose.msra.mxu0 0
    %4558 = vmatprep.subr.bf16.mxu0 0
    %4559 = vmatpush1.bf16.xpose.msra.mxu0 0
    %4560 = vmatprep.subr.bf16.mxu0 0
    %4561 = vmatpush1.bf16.xpose.msra.mxu0 0
    %4562 = vmatprep.subr.bf16.mxu0 0
    %4563 = vmatpush1.bf16.xpose.msra.mxu0 0
    %4564 = vmatprep.subr.bf16.mxu0 0
    %4565 = vmatpush1.bf16.xpose.msra.mxu0 0
    %4566 = vmatprep.subr.bf16.mxu0 0
    %4567 = vmatpush1.bf16.xpose.msra.mxu0 0
    %4568 = vmatprep.subr.bf16.mxu0 0
    %4569 = vmatpush1.bf16.xpose.msra.mxu0 0
    %4570 = vmatprep.subr.bf16.mxu0 0
    %4571 = vmatpush1.bf16.xpose.msra.mxu0 0
    %4572 = vmatprep.subr.bf16.mxu0 0
    %4573 = vmatpush1.bf16.xpose.msra.mxu0 0
    %4574 = vmatprep.subr.bf16.mxu0 0
    %4575 = vmatpush1.bf16.xpose.msra.mxu0 0
    %4576 = vmatprep.mubr.bf16.mxu0 0
    %4577 = vmatmul.mubr.bf16.gmra.mrb[0].mxu0 %v4539
    %v4578 = vpop.f32.mrb[0].mxu0
    %v4579 = vadd.f32 0.0, %v4578
    %v4580 = vpop.f32.mrb[0].mxu0
    %v4581 = vpop.f32.mrb[0].mxu0
    %v4582 = vpop.f32.mrb[0].mxu0
    %4583 = vdwg.mxu0
    %v4585 = vsel %vm1274, %v3294, 0
    %v4588 = vsel %vm1274, %v3886, 0
    %4590 = vmatprep.subr.bf16.mxu0 0
    %4591 = vmatpush1.bf16.xpose.msra.mxu0 %v4588
    %4592 = vmatprep.subr.bf16.mxu0 0
    %4593 = vmatpush1.bf16.xpose.msra.mxu0 0
    %4594 = vmatprep.subr.bf16.mxu0 0
    %4595 = vmatpush1.bf16.xpose.msra.mxu0 0
    %4596 = vmatprep.subr.bf16.mxu0 0
    %4597 = vmatpush1.bf16.xpose.msra.mxu0 0
    %4598 = vmatprep.subr.bf16.mxu0 0
    %4599 = vmatpush1.bf16.xpose.msra.mxu0 0
    %4600 = vmatprep.subr.bf16.mxu0 0
    %4601 = vmatpush1.bf16.xpose.msra.mxu0 0
    %4602 = vmatprep.subr.bf16.mxu0 0
    %4603 = vmatpush1.bf16.xpose.msra.mxu0 0
    %4604 = vmatprep.subr.bf16.mxu0 0
    %4605 = vmatpush1.bf16.xpose.msra.mxu0 0
    %4606 = vmatprep.subr.bf16.mxu0 0
    %4607 = vmatpush1.bf16.xpose.msra.mxu0 0
    %4608 = vmatprep.subr.bf16.mxu0 0
    %4609 = vmatpush1.bf16.xpose.msra.mxu0 0
    %4610 = vmatprep.subr.bf16.mxu0 0
    %4611 = vmatpush1.bf16.xpose.msra.mxu0 0
    %4612 = vmatprep.subr.bf16.mxu0 0
    %4613 = vmatpush1.bf16.xpose.msra.mxu0 0
    %4614 = vmatprep.subr.bf16.mxu0 0
    %4615 = vmatpush1.bf16.xpose.msra.mxu0 0
    %4616 = vmatprep.subr.bf16.mxu0 0
    %4617 = vmatpush1.bf16.xpose.msra.mxu0 0
    %4618 = vmatprep.subr.bf16.mxu0 0
    %4619 = vmatpush1.bf16.xpose.msra.mxu0 0
    %4620 = vmatprep.subr.bf16.mxu0 0
    %4621 = vmatpush1.bf16.xpose.msra.mxu0 0
    %4622 = vmatprep.mubr.bf16.mxu0 0
    %4623 = vmatmul.mubr.bf16.gmra.mrb[0].mxu0 %v4585
    %v4624 = vpop.f32.mrb[0].mxu0
    %v4625 = vadd.f32 0.0, %v4624
    %v4626 = vpop.f32.mrb[0].mxu0
    %v4627 = vpop.f32.mrb[0].mxu0
    %v4628 = vpop.f32.mrb[0].mxu0
    %4629 = vdwg.mxu0
    %v4631 = vsel %vm1274, %v3295, 0
    %v4634 = vsel %vm1274, %v3887, 0
    %4636 = vmatprep.subr.bf16.mxu0 0
    %4637 = vmatpush1.bf16.xpose.msra.mxu0 %v4634
    %4638 = vmatprep.subr.bf16.mxu0 0
    %4639 = vmatpush1.bf16.xpose.msra.mxu0 0
    %4640 = vmatprep.subr.bf16.mxu0 0
    %4641 = vmatpush1.bf16.xpose.msra.mxu0 0
    %4642 = vmatprep.subr.bf16.mxu0 0
    %4643 = vmatpush1.bf16.xpose.msra.mxu0 0
    %4644 = vmatprep.subr.bf16.mxu0 0
    %4645 = vmatpush1.bf16.xpose.msra.mxu0 0
    %4646 = vmatprep.subr.bf16.mxu0 0
    %4647 = vmatpush1.bf16.xpose.msra.mxu0 0
    %4648 = vmatprep.subr.bf16.mxu0 0
    %4649 = vmatpush1.bf16.xpose.msra.mxu0 0
    %4650 = vmatprep.subr.bf16.mxu0 0
    %4651 = vmatpush1.bf16.xpose.msra.mxu0 0
    %4652 = vmatprep.subr.bf16.mxu0 0
    %4653 = vmatpush1.bf16.xpose.msra.mxu0 0
    %4654 = vmatprep.subr.bf16.mxu0 0
    %4655 = vmatpush1.bf16.xpose.msra.mxu0 0
    %4656 = vmatprep.subr.bf16.mxu0 0
    %4657 = vmatpush1.bf16.xpose.msra.mxu0 0
    %4658 = vmatprep.subr.bf16.mxu0 0
    %4659 = vmatpush1.bf16.xpose.msra.mxu0 0
    %4660 = vmatprep.subr.bf16.mxu0 0
    %4661 = vmatpush1.bf16.xpose.msra.mxu0 0
    %4662 = vmatprep.subr.bf16.mxu0 0
    %4663 = vmatpush1.bf16.xpose.msra.mxu0 0
    %4664 = vmatprep.subr.bf16.mxu0 0
    %4665 = vmatpush1.bf16.xpose.msra.mxu0 0
    %4666 = vmatprep.subr.bf16.mxu0 0
    %4667 = vmatpush1.bf16.xpose.msra.mxu0 0
    %4668 = vmatprep.mubr.bf16.mxu0 0
    %4669 = vmatmul.mubr.bf16.gmra.mrb[0].mxu0 %v4631
    %v4670 = vpop.f32.mrb[0].mxu0
    %v4671 = vadd.f32 0.0, %v4670
    %v4672 = vpop.f32.mrb[0].mxu0
    %v4673 = vpop.f32.mrb[0].mxu0
    %v4674 = vpop.f32.mrb[0].mxu0
    %4675 = vdwg.mxu0
    %v4677 = vsel %vm1274, %v3296, 0
    %v4680 = vsel %vm1274, %v3888, 0
    %4682 = vmatprep.subr.bf16.mxu0 0
    %4683 = vmatpush1.bf16.xpose.msra.mxu0 %v4680
    %4684 = vmatprep.subr.bf16.mxu0 0
    %4685 = vmatpush1.bf16.xpose.msra.mxu0 0
    %4686 = vmatprep.subr.bf16.mxu0 0
    %4687 = vmatpush1.bf16.xpose.msra.mxu0 0
    %4688 = vmatprep.subr.bf16.mxu0 0
    %4689 = vmatpush1.bf16.xpose.msra.mxu0 0
    %4690 = vmatprep.subr.bf16.mxu0 0
    %4691 = vmatpush1.bf16.xpose.msra.mxu0 0
    %4692 = vmatprep.subr.bf16.mxu0 0
    %4693 = vmatpush1.bf16.xpose.msra.mxu0 0
    %4694 = vmatprep.subr.bf16.mxu0 0
    %4695 = vmatpush1.bf16.xpose.msra.mxu0 0
    %4696 = vmatprep.subr.bf16.mxu0 0
    %4697 = vmatpush1.bf16.xpose.msra.mxu0 0
    %4698 = vmatprep.subr.bf16.mxu0 0
    %4699 = vmatpush1.bf16.xpose.msra.mxu0 0
    %4700 = vmatprep.subr.bf16.mxu0 0
    %4701 = vmatpush1.bf16.xpose.msra.mxu0 0
    %4702 = vmatprep.subr.bf16.mxu0 0
    %4703 = vmatpush1.bf16.xpose.msra.mxu0 0
    %4704 = vmatprep.subr.bf16.mxu0 0
    %4705 = vmatpush1.bf16.xpose.msra.mxu0 0
    %4706 = vmatprep.subr.bf16.mxu0 0
    %4707 = vmatpush1.bf16.xpose.msra.mxu0 0
    %4708 = vmatprep.subr.bf16.mxu0 0
    %4709 = vmatpush1.bf16.xpose.msra.mxu0 0
    %4710 = vmatprep.subr.bf16.mxu0 0
    %4711 = vmatpush1.bf16.xpose.msra.mxu0 0
    %4712 = vmatprep.subr.bf16.mxu0 0
    %4713 = vmatpush1.bf16.xpose.msra.mxu0 0
    %4714 = vmatprep.mubr.bf16.mxu0 0
    %4715 = vmatmul.mubr.bf16.gmra.mrb[0].mxu0 %v4677
    %v4716 = vpop.f32.mrb[0].mxu0
    %v4717 = vadd.f32 0.0, %v4716
    %v4718 = vpop.f32.mrb[0].mxu0
    %v4719 = vpop.f32.mrb[0].mxu0
    %v4720 = vpop.f32.mrb[0].mxu0
    %4721 = vdwg.mxu0
    %v4723 = vsel %vm1274, %v3297, 0
    %v4726 = vsel %vm1274, %v3889, 0
    %4728 = vmatprep.subr.bf16.mxu0 0
    %4729 = vmatpush1.bf16.xpose.msra.mxu0 %v4726
    %4730 = vmatprep.subr.bf16.mxu0 0
    %4731 = vmatpush1.bf16.xpose.msra.mxu0 0
    %4732 = vmatprep.subr.bf16.mxu0 0
    %4733 = vmatpush1.bf16.xpose.msra.mxu0 0
    %4734 = vmatprep.subr.bf16.mxu0 0
    %4735 = vmatpush1.bf16.xpose.msra.mxu0 0
    %4736 = vmatprep.subr.bf16.mxu0 0
    %4737 = vmatpush1.bf16.xpose.msra.mxu0 0
    %4738 = vmatprep.subr.bf16.mxu0 0
    %4739 = vmatpush1.bf16.xpose.msra.mxu0 0
    %4740 = vmatprep.subr.bf16.mxu0 0
    %4741 = vmatpush1.bf16.xpose.msra.mxu0 0
    %4742 = vmatprep.subr.bf16.mxu0 0
    %4743 = vmatpush1.bf16.xpose.msra.mxu0 0
    %4744 = vmatprep.subr.bf16.mxu0 0
    %4745 = vmatpush1.bf16.xpose.msra.mxu0 0
    %4746 = vmatprep.subr.bf16.mxu0 0
    %4747 = vmatpush1.bf16.xpose.msra.mxu0 0
    %4748 = vmatprep.subr.bf16.mxu0 0
    %4749 = vmatpush1.bf16.xpose.msra.mxu0 0
    %4750 = vmatprep.subr.bf16.mxu0 0
    %4751 = vmatpush1.bf16.xpose.msra.mxu0 0
    %4752 = vmatprep.subr.bf16.mxu0 0
    %4753 = vmatpush1.bf16.xpose.msra.mxu0 0
    %4754 = vmatprep.subr.bf16.mxu0 0
    %4755 = vmatpush1.bf16.xpose.msra.mxu0 0
    %4756 = vmatprep.subr.bf16.mxu0 0
    %4757 = vmatpush1.bf16.xpose.msra.mxu0 0
    %4758 = vmatprep.subr.bf16.mxu0 0
    %4759 = vmatpush1.bf16.xpose.msra.mxu0 0
    %4760 = vmatprep.mubr.bf16.mxu0 0
    %4761 = vmatmul.mubr.bf16.gmra.mrb[0].mxu0 %v4723
    %v4762 = vpop.f32.mrb[0].mxu0
    %v4763 = vadd.f32 0.0, %v4762
    %v4764 = vpop.f32.mrb[0].mxu0
    %v4765 = vpop.f32.mrb[0].mxu0
    %v4766 = vpop.f32.mrb[0].mxu0
    %4767 = vdwg.mxu0
    %v4769 = vsel %vm1274, %v3298, 0
    %v4772 = vsel %vm1274, %v3890, 0
    %4774 = vmatprep.subr.bf16.mxu0 0
    %4775 = vmatpush1.bf16.xpose.msra.mxu0 %v4772
    %4776 = vmatprep.subr.bf16.mxu0 0
    %4777 = vmatpush1.bf16.xpose.msra.mxu0 0
    %4778 = vmatprep.subr.bf16.mxu0 0
    %4779 = vmatpush1.bf16.xpose.msra.mxu0 0
    %4780 = vmatprep.subr.bf16.mxu0 0
    %4781 = vmatpush1.bf16.xpose.msra.mxu0 0
    %4782 = vmatprep.subr.bf16.mxu0 0
    %4783 = vmatpush1.bf16.xpose.msra.mxu0 0
    %4784 = vmatprep.subr.bf16.mxu0 0
    %4785 = vmatpush1.bf16.xpose.msra.mxu0 0
    %4786 = vmatprep.subr.bf16.mxu0 0
    %4787 = vmatpush1.bf16.xpose.msra.mxu0 0
    %4788 = vmatprep.subr.bf16.mxu0 0
    %4789 = vmatpush1.bf16.xpose.msra.mxu0 0
    %4790 = vmatprep.subr.bf16.mxu0 0
    %4791 = vmatpush1.bf16.xpose.msra.mxu0 0
    %4792 = vmatprep.subr.bf16.mxu0 0
    %4793 = vmatpush1.bf16.xpose.msra.mxu0 0
    %4794 = vmatprep.subr.bf16.mxu0 0
    %4795 = vmatpush1.bf16.xpose.msra.mxu0 0
    %4796 = vmatprep.subr.bf16.mxu0 0
    %4797 = vmatpush1.bf16.xpose.msra.mxu0 0
    %4798 = vmatprep.subr.bf16.mxu0 0
    %4799 = vmatpush1.bf16.xpose.msra.mxu0 0
    %4800 = vmatprep.subr.bf16.mxu0 0
    %4801 = vmatpush1.bf16.xpose.msra.mxu0 0
    %4802 = vmatprep.subr.bf16.mxu0 0
    %4803 = vmatpush1.bf16.xpose.msra.mxu0 0
    %4804 = vmatprep.subr.bf16.mxu0 0
    %4805 = vmatpush1.bf16.xpose.msra.mxu0 0
    %4806 = vmatprep.mubr.bf16.mxu0 0
    %4807 = vmatmul.mubr.bf16.gmra.mrb[0].mxu0 %v4769
    %v4808 = vpop.f32.mrb[0].mxu0
    %v4809 = vadd.f32 0.0, %v4808
    %v4810 = vpop.f32.mrb[0].mxu0
    %v4811 = vpop.f32.mrb[0].mxu0
    %v4812 = vpop.f32.mrb[0].mxu0
    %4813 = vdwg.mxu0
    %v4815 = vsel %vm1274, %v3299, 0
    %v4818 = vsel %vm1274, %v3891, 0
    %4820 = vmatprep.subr.bf16.mxu0 0
    %4821 = vmatpush1.bf16.xpose.msra.mxu0 %v4818
    %4822 = vmatprep.subr.bf16.mxu0 0
    %4823 = vmatpush1.bf16.xpose.msra.mxu0 0
    %4824 = vmatprep.subr.bf16.mxu0 0
    %4825 = vmatpush1.bf16.xpose.msra.mxu0 0
    %4826 = vmatprep.subr.bf16.mxu0 0
    %4827 = vmatpush1.bf16.xpose.msra.mxu0 0
    %4828 = vmatprep.subr.bf16.mxu0 0
    %4829 = vmatpush1.bf16.xpose.msra.mxu0 0
    %4830 = vmatprep.subr.bf16.mxu0 0
    %4831 = vmatpush1.bf16.xpose.msra.mxu0 0
    %4832 = vmatprep.subr.bf16.mxu0 0
    %4833 = vmatpush1.bf16.xpose.msra.mxu0 0
    %4834 = vmatprep.subr.bf16.mxu0 0
    %4835 = vmatpush1.bf16.xpose.msra.mxu0 0
    %4836 = vmatprep.subr.bf16.mxu0 0
    %4837 = vmatpush1.bf16.xpose.msra.mxu0 0
    %4838 = vmatprep.subr.bf16.mxu0 0
    %4839 = vmatpush1.bf16.xpose.msra.mxu0 0
    %4840 = vmatprep.subr.bf16.mxu0 0
    %4841 = vmatpush1.bf16.xpose.msra.mxu0 0
    %4842 = vmatprep.subr.bf16.mxu0 0
    %4843 = vmatpush1.bf16.xpose.msra.mxu0 0
    %4844 = vmatprep.subr.bf16.mxu0 0
    %4845 = vmatpush1.bf16.xpose.msra.mxu0 0
    %4846 = vmatprep.subr.bf16.mxu0 0
    %4847 = vmatpush1.bf16.xpose.msra.mxu0 0
    %4848 = vmatprep.subr.bf16.mxu0 0
    %4849 = vmatpush1.bf16.xpose.msra.mxu0 0
    %4850 = vmatprep.subr.bf16.mxu0 0
    %4851 = vmatpush1.bf16.xpose.msra.mxu0 0
    %4852 = vmatprep.mubr.bf16.mxu0 0
    %4853 = vmatmul.mubr.bf16.gmra.mrb[0].mxu0 %v4815
    %v4854 = vpop.f32.mrb[0].mxu0
    %v4855 = vadd.f32 0.0, %v4854
    %v4856 = vpop.f32.mrb[0].mxu0
    %v4857 = vpop.f32.mrb[0].mxu0
    %v4858 = vpop.f32.mrb[0].mxu0
    %4859 = vdwg.mxu0
    %v4860 = vmul.f32 %v4533, 0.35355338
    %v4861 = vmul.f32 %v4579, 0.35355338
    %v4862 = vmul.f32 %v4625, 0.35355338
    %v4863 = vmul.f32 %v4671, 0.35355338
    %v4864 = vmul.f32 %v4717, 0.35355338
    %v4865 = vmul.f32 %v4763, 0.35355338
    %v4866 = vmul.f32 %v4809, 0.35355338
    %v4867 = vmul.f32 %v4855, 0.35355338
    %v4868 = vadd.f32 %v4860, %v290
    %v4869 = vadd.f32 %v4861, %v291
    %v4870 = vadd.f32 %v4862, %v292
    %v4871 = vadd.f32 %v4863, %v293
    %v4872 = vadd.f32 %v4864, %v294
    %v4873 = vadd.f32 %v4865, %v295
    %v4874 = vadd.f32 %v4866, %v296
    %v4875 = vadd.f32 %v4867, %v297
    %v4876 = vsel %vm2425, %v4868, -inf
    %4877 = vmax.xlane.f32.xlu0 %v4876
    %v4878 = vpop.xlane.xlu0 %4877
    %v4879 = vsel %vm2425, %v4869, -inf
    %4880 = vmax.xlane.f32.xlu0 %v4879
    %v4881 = vpop.xlane.xlu0 %4880
    %v4882 = vsel %vm2425, %v4870, -inf
    %4883 = vmax.xlane.f32.xlu0 %v4882
    %v4884 = vpop.xlane.xlu0 %4883
    %v4885 = vsel %vm2425, %v4871, -inf
    %4886 = vmax.xlane.f32.xlu0 %v4885
    %v4887 = vpop.xlane.xlu0 %4886
    %v4888 = vsel %vm2425, %v4872, -inf
    %4889 = vmax.xlane.f32.xlu0 %v4888
    %v4890 = vpop.xlane.xlu0 %4889
    %v4891 = vsel %vm2425, %v4873, -inf
    %4892 = vmax.xlane.f32.xlu0 %v4891
    %v4893 = vpop.xlane.xlu0 %4892
    %v4894 = vsel %vm2425, %v4874, -inf
    %4895 = vmax.xlane.f32.xlu0 %v4894
    %v4896 = vpop.xlane.xlu0 %4895
    %v4897 = vsel %vm2425, %v4875, -inf
    %4898 = vmax.xlane.f32.xlu0 %v4897
    %v4899 = vpop.xlane.xlu0 %4898
    %v4900 = vsub.f32 %v4868, %v4878
    %v4901 = vsub.f32 %v4869, %v4881
    %v4902 = vsub.f32 %v4870, %v4884
    %v4903 = vsub.f32 %v4871, %v4887
    %v4904 = vsub.f32 %v4872, %v4890
    %v4905 = vsub.f32 %v4873, %v4893
    %v4906 = vsub.f32 %v4874, %v4896
    %v4907 = vsub.f32 %v4875, %v4899
    %v4908 = vmul.f32 %v4900, 1.442695
    %v4909 = vpow.pop %v4908
    %v4910 = vmul.f32 %v4901, 1.442695
    %v4911 = vpow.pop %v4910
    %v4912 = vmul.f32 %v4902, 1.442695
    %v4913 = vpow.pop %v4912
    %v4914 = vmul.f32 %v4903, 1.442695
    %v4915 = vpow.pop %v4914
    %v4916 = vmul.f32 %v4904, 1.442695
    %v4917 = vpow.pop %v4916
    %v4918 = vmul.f32 %v4905, 1.442695
    %v4919 = vpow.pop %v4918
    %v4920 = vmul.f32 %v4906, 1.442695
    %v4921 = vpow.pop %v4920
    %v4922 = vmul.f32 %v4907, 1.442695
    %v4923 = vpow.pop %v4922
    %v4924 = vsel %vm2425, %v4909, 0.0
    %4925 = vadd.xlane.f32.xlu0 %v4924
    %v4926 = vpop.xlane.xlu0 %4925
    %v4927 = vsel %vm2425, %v4911, 0.0
    %4928 = vadd.xlane.f32.xlu0 %v4927
    %v4929 = vpop.xlane.xlu0 %4928
    %v4930 = vsel %vm2425, %v4913, 0.0
    %4931 = vadd.xlane.f32.xlu0 %v4930
    %v4932 = vpop.xlane.xlu0 %4931
    %v4933 = vsel %vm2425, %v4915, 0.0
    %4934 = vadd.xlane.f32.xlu0 %v4933
    %v4935 = vpop.xlane.xlu0 %4934
    %v4936 = vsel %vm2425, %v4917, 0.0
    %4937 = vadd.xlane.f32.xlu0 %v4936
    %v4938 = vpop.xlane.xlu0 %4937
    %v4939 = vsel %vm2425, %v4919, 0.0
    %4940 = vadd.xlane.f32.xlu0 %v4939
    %v4941 = vpop.xlane.xlu0 %4940
    %v4942 = vsel %vm2425, %v4921, 0.0
    %4943 = vadd.xlane.f32.xlu0 %v4942
    %v4944 = vpop.xlane.xlu0 %4943
    %v4945 = vsel %vm2425, %v4923, 0.0
    %4946 = vadd.xlane.f32.xlu0 %v4945
    %v4947 = vpop.xlane.xlu0 %4946
    %v4948 = vrcp.pop %v4926
    %v4949 = vmul.f32 %v4909, %v4948
    %v4950 = vrcp.pop %v4929
    %v4951 = vmul.f32 %v4911, %v4950
    %v4952 = vrcp.pop %v4932
    %v4953 = vmul.f32 %v4913, %v4952
    %v4954 = vrcp.pop %v4935
    %v4955 = vmul.f32 %v4915, %v4954
    %v4956 = vrcp.pop %v4938
    %v4957 = vmul.f32 %v4917, %v4956
    %v4958 = vrcp.pop %v4941
    %v4959 = vmul.f32 %v4919, %v4958
    %v4960 = vrcp.pop %v4944
    %v4961 = vmul.f32 %v4921, %v4960
    %v4962 = vrcp.pop %v4947
    %v4963 = vmul.f32 %v4923, %v4962
    %v4964 = vpack.c.bf16 %v4949, %v4949
    %v4965 = vpack.c.bf16 %v4951, %v4951
    %v4966 = vpack.c.bf16 %v4953, %v4953
    %v4967 = vpack.c.bf16 %v4955, %v4955
    %v4968 = vpack.c.bf16 %v4957, %v4957
    %v4969 = vpack.c.bf16 %v4959, %v4959
    %v4970 = vpack.c.bf16 %v4961, %v4961
    %v4971 = vpack.c.bf16 %v4963, %v4963
    %v4973 = vsel %vm2425, %v4964, 0
    %4975 = vmatprep.subr.bf16.mxu0 0
    %4976 = vmatpush1.bf16.msra.mxu0 %v4484
    %4977 = vmatprep.subr.bf16.mxu0 0
    %4978 = vmatpush1.bf16.msra.mxu0 0
    %4979 = vmatprep.subr.bf16.mxu0 0
    %4980 = vmatpush1.bf16.msra.mxu0 0
    %4981 = vmatprep.subr.bf16.mxu0 0
    %4982 = vmatpush1.bf16.msra.mxu0 0
    %4983 = vmatprep.subr.bf16.mxu0 0
    %4984 = vmatpush1.bf16.msra.mxu0 0
    %4985 = vmatprep.subr.bf16.mxu0 0
    %4986 = vmatpush1.bf16.msra.mxu0 0
    %4987 = vmatprep.subr.bf16.mxu0 0
    %4988 = vmatpush1.bf16.msra.mxu0 0
    %4989 = vmatprep.subr.bf16.mxu0 0
    %4990 = vmatpush1.bf16.msra.mxu0 0
    %4991 = vmatprep.subr.bf16.mxu0 0
    %4992 = vmatpush1.bf16.msra.mxu0 0
    %4993 = vmatprep.subr.bf16.mxu0 0
    %4994 = vmatpush1.bf16.msra.mxu0 0
    %4995 = vmatprep.subr.bf16.mxu0 0
    %4996 = vmatpush1.bf16.msra.mxu0 0
    %4997 = vmatprep.subr.bf16.mxu0 0
    %4998 = vmatpush1.bf16.msra.mxu0 0
    %4999 = vmatprep.subr.bf16.mxu0 0
    %5000 = vmatpush1.bf16.msra.mxu0 0
    %5001 = vmatprep.subr.bf16.mxu0 0
    %5002 = vmatpush1.bf16.msra.mxu0 0
    %5003 = vmatprep.subr.bf16.mxu0 0
    %5004 = vmatpush1.bf16.msra.mxu0 0
    %5005 = vmatprep.subr.bf16.mxu0 0
    %5006 = vmatpush1.bf16.msra.mxu0 0
    %5007 = vmatprep.mubr.bf16.mxu0 0
    %5008 = vmatmul.mubr.bf16.gmra.mrb[0].mxu0 %v4973
    %v5009 = vpop.f32.mrb[0].mxu0
    %v5010 = vadd.f32 0.0, %v5009
    %v5011 = vpop.f32.mrb[0].mxu0
    %v5012 = vpop.f32.mrb[0].mxu0
    %v5013 = vpop.f32.mrb[0].mxu0
    %5014 = vdwg.mxu0
    %v5016 = vsel %vm2425, %v4965, 0
    %5018 = vmatprep.subr.bf16.mxu0 0
    %5019 = vmatpush1.bf16.msra.mxu0 %v4485
    %5020 = vmatprep.subr.bf16.mxu0 0
    %5021 = vmatpush1.bf16.msra.mxu0 0
    %5022 = vmatprep.subr.bf16.mxu0 0
    %5023 = vmatpush1.bf16.msra.mxu0 0
    %5024 = vmatprep.subr.bf16.mxu0 0
    %5025 = vmatpush1.bf16.msra.mxu0 0
    %5026 = vmatprep.subr.bf16.mxu0 0
    %5027 = vmatpush1.bf16.msra.mxu0 0
    %5028 = vmatprep.subr.bf16.mxu0 0
    %5029 = vmatpush1.bf16.msra.mxu0 0
    %5030 = vmatprep.subr.bf16.mxu0 0
    %5031 = vmatpush1.bf16.msra.mxu0 0
    %5032 = vmatprep.subr.bf16.mxu0 0
    %5033 = vmatpush1.bf16.msra.mxu0 0
    %5034 = vmatprep.subr.bf16.mxu0 0
    %5035 = vmatpush1.bf16.msra.mxu0 0
    %5036 = vmatprep.subr.bf16.mxu0 0
    %5037 = vmatpush1.bf16.msra.mxu0 0
    %5038 = vmatprep.subr.bf16.mxu0 0
    %5039 = vmatpush1.bf16.msra.mxu0 0
    %5040 = vmatprep.subr.bf16.mxu0 0
    %5041 = vmatpush1.bf16.msra.mxu0 0
    %5042 = vmatprep.subr.bf16.mxu0 0
    %5043 = vmatpush1.bf16.msra.mxu0 0
    %5044 = vmatprep.subr.bf16.mxu0 0
    %5045 = vmatpush1.bf16.msra.mxu0 0
    %5046 = vmatprep.subr.bf16.mxu0 0
    %5047 = vmatpush1.bf16.msra.mxu0 0
    %5048 = vmatprep.subr.bf16.mxu0 0
    %5049 = vmatpush1.bf16.msra.mxu0 0
    %5050 = vmatprep.mubr.bf16.mxu0 0
    %5051 = vmatmul.mubr.bf16.gmra.mrb[0].mxu0 %v5016
    %v5052 = vpop.f32.mrb[0].mxu0
    %v5053 = vadd.f32 0.0, %v5052
    %v5054 = vpop.f32.mrb[0].mxu0
    %v5055 = vpop.f32.mrb[0].mxu0
    %v5056 = vpop.f32.mrb[0].mxu0
    %5057 = vdwg.mxu0
    %v5059 = vsel %vm2425, %v4966, 0
    %5061 = vmatprep.subr.bf16.mxu0 0
    %5062 = vmatpush1.bf16.msra.mxu0 %v4486
    %5063 = vmatprep.subr.bf16.mxu0 0
    %5064 = vmatpush1.bf16.msra.mxu0 0
    %5065 = vmatprep.subr.bf16.mxu0 0
    %5066 = vmatpush1.bf16.msra.mxu0 0
    %5067 = vmatprep.subr.bf16.mxu0 0
    %5068 = vmatpush1.bf16.msra.mxu0 0
    %5069 = vmatprep.subr.bf16.mxu0 0
    %5070 = vmatpush1.bf16.msra.mxu0 0
    %5071 = vmatprep.subr.bf16.mxu0 0
    %5072 = vmatpush1.bf16.msra.mxu0 0
    %5073 = vmatprep.subr.bf16.mxu0 0
    %5074 = vmatpush1.bf16.msra.mxu0 0
    %5075 = vmatprep.subr.bf16.mxu0 0
    %5076 = vmatpush1.bf16.msra.mxu0 0
    %5077 = vmatprep.subr.bf16.mxu0 0
    %5078 = vmatpush1.bf16.msra.mxu0 0
    %5079 = vmatprep.subr.bf16.mxu0 0
    %5080 = vmatpush1.bf16.msra.mxu0 0
    %5081 = vmatprep.subr.bf16.mxu0 0
    %5082 = vmatpush1.bf16.msra.mxu0 0
    %5083 = vmatprep.subr.bf16.mxu0 0
    %5084 = vmatpush1.bf16.msra.mxu0 0
    %5085 = vmatprep.subr.bf16.mxu0 0
    %5086 = vmatpush1.bf16.msra.mxu0 0
    %5087 = vmatprep.subr.bf16.mxu0 0
    %5088 = vmatpush1.bf16.msra.mxu0 0
    %5089 = vmatprep.subr.bf16.mxu0 0
    %5090 = vmatpush1.bf16.msra.mxu0 0
    %5091 = vmatprep.subr.bf16.mxu0 0
    %5092 = vmatpush1.bf16.msra.mxu0 0
    %5093 = vmatprep.mubr.bf16.mxu0 0
    %5094 = vmatmul.mubr.bf16.gmra.mrb[0].mxu0 %v5059
    %v5095 = vpop.f32.mrb[0].mxu0
    %v5096 = vadd.f32 0.0, %v5095
    %v5097 = vpop.f32.mrb[0].mxu0
    %v5098 = vpop.f32.mrb[0].mxu0
    %v5099 = vpop.f32.mrb[0].mxu0
    %5100 = vdwg.mxu0
    %v5102 = vsel %vm2425, %v4967, 0
    %5104 = vmatprep.subr.bf16.mxu0 0
    %5105 = vmatpush1.bf16.msra.mxu0 %v4487
    %5106 = vmatprep.subr.bf16.mxu0 0
    %5107 = vmatpush1.bf16.msra.mxu0 0
    %5108 = vmatprep.subr.bf16.mxu0 0
    %5109 = vmatpush1.bf16.msra.mxu0 0
    %5110 = vmatprep.subr.bf16.mxu0 0
    %5111 = vmatpush1.bf16.msra.mxu0 0
    %5112 = vmatprep.subr.bf16.mxu0 0
    %5113 = vmatpush1.bf16.msra.mxu0 0
    %5114 = vmatprep.subr.bf16.mxu0 0
    %5115 = vmatpush1.bf16.msra.mxu0 0
    %5116 = vmatprep.subr.bf16.mxu0 0
    %5117 = vmatpush1.bf16.msra.mxu0 0
    %5118 = vmatprep.subr.bf16.mxu0 0
    %5119 = vmatpush1.bf16.msra.mxu0 0
    %5120 = vmatprep.subr.bf16.mxu0 0
    %5121 = vmatpush1.bf16.msra.mxu0 0
    %5122 = vmatprep.subr.bf16.mxu0 0
    %5123 = vmatpush1.bf16.msra.mxu0 0
    %5124 = vmatprep.subr.bf16.mxu0 0
    %5125 = vmatpush1.bf16.msra.mxu0 0
    %5126 = vmatprep.subr.bf16.mxu0 0
    %5127 = vmatpush1.bf16.msra.mxu0 0
    %5128 = vmatprep.subr.bf16.mxu0 0
    %5129 = vmatpush1.bf16.msra.mxu0 0
    %5130 = vmatprep.subr.bf16.mxu0 0
    %5131 = vmatpush1.bf16.msra.mxu0 0
    %5132 = vmatprep.subr.bf16.mxu0 0
    %5133 = vmatpush1.bf16.msra.mxu0 0
    %5134 = vmatprep.subr.bf16.mxu0 0
    %5135 = vmatpush1.bf16.msra.mxu0 0
    %5136 = vmatprep.mubr.bf16.mxu0 0
    %5137 = vmatmul.mubr.bf16.gmra.mrb[0].mxu0 %v5102
    %v5138 = vpop.f32.mrb[0].mxu0
    %v5139 = vadd.f32 0.0, %v5138
    %v5140 = vpop.f32.mrb[0].mxu0
    %v5141 = vpop.f32.mrb[0].mxu0
    %v5142 = vpop.f32.mrb[0].mxu0
    %5143 = vdwg.mxu0
    %v5145 = vsel %vm2425, %v4968, 0
    %5147 = vmatprep.subr.bf16.mxu0 0
    %5148 = vmatpush1.bf16.msra.mxu0 %v4488
    %5149 = vmatprep.subr.bf16.mxu0 0
    %5150 = vmatpush1.bf16.msra.mxu0 0
    %5151 = vmatprep.subr.bf16.mxu0 0
    %5152 = vmatpush1.bf16.msra.mxu0 0
    %5153 = vmatprep.subr.bf16.mxu0 0
    %5154 = vmatpush1.bf16.msra.mxu0 0
    %5155 = vmatprep.subr.bf16.mxu0 0
    %5156 = vmatpush1.bf16.msra.mxu0 0
    %5157 = vmatprep.subr.bf16.mxu0 0
    %5158 = vmatpush1.bf16.msra.mxu0 0
    %5159 = vmatprep.subr.bf16.mxu0 0
    %5160 = vmatpush1.bf16.msra.mxu0 0
    %5161 = vmatprep.subr.bf16.mxu0 0
    %5162 = vmatpush1.bf16.msra.mxu0 0
    %5163 = vmatprep.subr.bf16.mxu0 0
    %5164 = vmatpush1.bf16.msra.mxu0 0
    %5165 = vmatprep.subr.bf16.mxu0 0
    %5166 = vmatpush1.bf16.msra.mxu0 0
    %5167 = vmatprep.subr.bf16.mxu0 0
    %5168 = vmatpush1.bf16.msra.mxu0 0
    %5169 = vmatprep.subr.bf16.mxu0 0
    %5170 = vmatpush1.bf16.msra.mxu0 0
    %5171 = vmatprep.subr.bf16.mxu0 0
    %5172 = vmatpush1.bf16.msra.mxu0 0
    %5173 = vmatprep.subr.bf16.mxu0 0
    %5174 = vmatpush1.bf16.msra.mxu0 0
    %5175 = vmatprep.subr.bf16.mxu0 0
    %5176 = vmatpush1.bf16.msra.mxu0 0
    %5177 = vmatprep.subr.bf16.mxu0 0
    %5178 = vmatpush1.bf16.msra.mxu0 0
    %5179 = vmatprep.mubr.bf16.mxu0 0
    %5180 = vmatmul.mubr.bf16.gmra.mrb[0].mxu0 %v5145
    %v5181 = vpop.f32.mrb[0].mxu0
    %v5182 = vadd.f32 0.0, %v5181
    %v5183 = vpop.f32.mrb[0].mxu0
    %v5184 = vpop.f32.mrb[0].mxu0
    %v5185 = vpop.f32.mrb[0].mxu0
    %5186 = vdwg.mxu0
    %v5188 = vsel %vm2425, %v4969, 0
    %5190 = vmatprep.subr.bf16.mxu0 0
    %5191 = vmatpush1.bf16.msra.mxu0 %v4489
    %5192 = vmatprep.subr.bf16.mxu0 0
    %5193 = vmatpush1.bf16.msra.mxu0 0
    %5194 = vmatprep.subr.bf16.mxu0 0
    %5195 = vmatpush1.bf16.msra.mxu0 0
    %5196 = vmatprep.subr.bf16.mxu0 0
    %5197 = vmatpush1.bf16.msra.mxu0 0
    %5198 = vmatprep.subr.bf16.mxu0 0
    %5199 = vmatpush1.bf16.msra.mxu0 0
    %5200 = vmatprep.subr.bf16.mxu0 0
    %5201 = vmatpush1.bf16.msra.mxu0 0
    %5202 = vmatprep.subr.bf16.mxu0 0
    %5203 = vmatpush1.bf16.msra.mxu0 0
    %5204 = vmatprep.subr.bf16.mxu0 0
    %5205 = vmatpush1.bf16.msra.mxu0 0
    %5206 = vmatprep.subr.bf16.mxu0 0
    %5207 = vmatpush1.bf16.msra.mxu0 0
    %5208 = vmatprep.subr.bf16.mxu0 0
    %5209 = vmatpush1.bf16.msra.mxu0 0
    %5210 = vmatprep.subr.bf16.mxu0 0
    %5211 = vmatpush1.bf16.msra.mxu0 0
    %5212 = vmatprep.subr.bf16.mxu0 0
    %5213 = vmatpush1.bf16.msra.mxu0 0
    %5214 = vmatprep.subr.bf16.mxu0 0
    %5215 = vmatpush1.bf16.msra.mxu0 0
    %5216 = vmatprep.subr.bf16.mxu0 0
    %5217 = vmatpush1.bf16.msra.mxu0 0
    %5218 = vmatprep.subr.bf16.mxu0 0
    %5219 = vmatpush1.bf16.msra.mxu0 0
    %5220 = vmatprep.subr.bf16.mxu0 0
    %5221 = vmatpush1.bf16.msra.mxu0 0
    %5222 = vmatprep.mubr.bf16.mxu0 0
    %5223 = vmatmul.mubr.bf16.gmra.mrb[0].mxu0 %v5188
    %v5224 = vpop.f32.mrb[0].mxu0
    %v5225 = vadd.f32 0.0, %v5224
    %v5226 = vpop.f32.mrb[0].mxu0
    %v5227 = vpop.f32.mrb[0].mxu0
    %v5228 = vpop.f32.mrb[0].mxu0
    %5229 = vdwg.mxu0
    %v5231 = vsel %vm2425, %v4970, 0
    %5233 = vmatprep.subr.bf16.mxu0 0
    %5234 = vmatpush1.bf16.msra.mxu0 %v4490
    %5235 = vmatprep.subr.bf16.mxu0 0
    %5236 = vmatpush1.bf16.msra.mxu0 0
    %5237 = vmatprep.subr.bf16.mxu0 0
    %5238 = vmatpush1.bf16.msra.mxu0 0
    %5239 = vmatprep.subr.bf16.mxu0 0
    %5240 = vmatpush1.bf16.msra.mxu0 0
    %5241 = vmatprep.subr.bf16.mxu0 0
    %5242 = vmatpush1.bf16.msra.mxu0 0
    %5243 = vmatprep.subr.bf16.mxu0 0
    %5244 = vmatpush1.bf16.msra.mxu0 0
    %5245 = vmatprep.subr.bf16.mxu0 0
    %5246 = vmatpush1.bf16.msra.mxu0 0
    %5247 = vmatprep.subr.bf16.mxu0 0
    %5248 = vmatpush1.bf16.msra.mxu0 0
    %5249 = vmatprep.subr.bf16.mxu0 0
    %5250 = vmatpush1.bf16.msra.mxu0 0
    %5251 = vmatprep.subr.bf16.mxu0 0
    %5252 = vmatpush1.bf16.msra.mxu0 0
    %5253 = vmatprep.subr.bf16.mxu0 0
    %5254 = vmatpush1.bf16.msra.mxu0 0
    %5255 = vmatprep.subr.bf16.mxu0 0
    %5256 = vmatpush1.bf16.msra.mxu0 0
    %5257 = vmatprep.subr.bf16.mxu0 0
    %5258 = vmatpush1.bf16.msra.mxu0 0
    %5259 = vmatprep.subr.bf16.mxu0 0
    %5260 = vmatpush1.bf16.msra.mxu0 0
    %5261 = vmatprep.subr.bf16.mxu0 0
    %5262 = vmatpush1.bf16.msra.mxu0 0
    %5263 = vmatprep.subr.bf16.mxu0 0
    %5264 = vmatpush1.bf16.msra.mxu0 0
    %5265 = vmatprep.mubr.bf16.mxu0 0
    %5266 = vmatmul.mubr.bf16.gmra.mrb[0].mxu0 %v5231
    %v5267 = vpop.f32.mrb[0].mxu0
    %v5268 = vadd.f32 0.0, %v5267
    %v5269 = vpop.f32.mrb[0].mxu0
    %v5270 = vpop.f32.mrb[0].mxu0
    %v5271 = vpop.f32.mrb[0].mxu0
    %5272 = vdwg.mxu0
    %v5274 = vsel %vm2425, %v4971, 0
    %5276 = vmatprep.subr.bf16.mxu0 0
    %5277 = vmatpush1.bf16.msra.mxu0 %v4491
    %5278 = vmatprep.subr.bf16.mxu0 0
    %5279 = vmatpush1.bf16.msra.mxu0 0
    %5280 = vmatprep.subr.bf16.mxu0 0
    %5281 = vmatpush1.bf16.msra.mxu0 0
    %5282 = vmatprep.subr.bf16.mxu0 0
    %5283 = vmatpush1.bf16.msra.mxu0 0
    %5284 = vmatprep.subr.bf16.mxu0 0
    %5285 = vmatpush1.bf16.msra.mxu0 0
    %5286 = vmatprep.subr.bf16.mxu0 0
    %5287 = vmatpush1.bf16.msra.mxu0 0
    %5288 = vmatprep.subr.bf16.mxu0 0
    %5289 = vmatpush1.bf16.msra.mxu0 0
    %5290 = vmatprep.subr.bf16.mxu0 0
    %5291 = vmatpush1.bf16.msra.mxu0 0
    %5292 = vmatprep.subr.bf16.mxu0 0
    %5293 = vmatpush1.bf16.msra.mxu0 0
    %5294 = vmatprep.subr.bf16.mxu0 0
    %5295 = vmatpush1.bf16.msra.mxu0 0
    %5296 = vmatprep.subr.bf16.mxu0 0
    %5297 = vmatpush1.bf16.msra.mxu0 0
    %5298 = vmatprep.subr.bf16.mxu0 0
    %5299 = vmatpush1.bf16.msra.mxu0 0
    %5300 = vmatprep.subr.bf16.mxu0 0
    %5301 = vmatpush1.bf16.msra.mxu0 0
    %5302 = vmatprep.subr.bf16.mxu0 0
    %5303 = vmatpush1.bf16.msra.mxu0 0
    %5304 = vmatprep.subr.bf16.mxu0 0
    %5305 = vmatpush1.bf16.msra.mxu0 0
    %5306 = vmatprep.subr.bf16.mxu0 0
    %5307 = vmatpush1.bf16.msra.mxu0 0
    %5308 = vmatprep.mubr.bf16.mxu0 0
    %5309 = vmatmul.mubr.bf16.gmra.mrb[0].mxu0 %v5274
    %v5310 = vpop.f32.mrb[0].mxu0
    %v5311 = vadd.f32 0.0, %v5310
    %v5312 = vpop.f32.mrb[0].mxu0
    %v5313 = vpop.f32.mrb[0].mxu0
    %v5314 = vpop.f32.mrb[0].mxu0
    %5315 = vdwg.mxu0
    %v5316 = vcombine.low %v4949, %v4953
    %v5317 = vcombine.high %v4949, %v4953
    %v5319 = vunpack.c.l.s4 1983009808
    %v5320 = vunpack.c.0.s8 %v5319
    %v5321 = vlaneseq
    %v5322 = vshrl.u32 %v5321, 7
    %v5323 = vsub.s32 %v5320, %v5322
    %v5324 = vrot.slane %v5316, %v5323
    %v5326 = vunpack.c.l.s4 1983009808
    %v5327 = vunpack.c.0.s8 %v5326
    %v5328 = vlaneseq
    %v5329 = vshrl.u32 %v5328, 7
    %v5330 = vsub.s32 %v5327, %v5329
    %v5331 = vrot.slane %v5317, %v5330
    %v5332 = vcombine.low %v4951, %v4955
    %v5333 = vcombine.high %v4951, %v4955
    %v5335 = vunpack.c.l.s4 1983009808
    %v5336 = vunpack.c.0.s8 %v5335
    %v5337 = vlaneseq
    %v5338 = vshrl.u32 %v5337, 7
    %v5339 = vsub.s32 %v5336, %v5338
    %v5340 = vrot.slane %v5332, %v5339
    %v5342 = vunpack.c.l.s4 1983009808
    %v5343 = vunpack.c.0.s8 %v5342
    %v5344 = vlaneseq
    %v5345 = vshrl.u32 %v5344, 7
    %v5346 = vsub.s32 %v5343, %v5345
    %v5347 = vrot.slane %v5333, %v5346
    %v5348 = vcombine.low %v4957, %v4961
    %v5349 = vcombine.high %v4957, %v4961
    %v5351 = vunpack.c.l.s4 1983009808
    %v5352 = vunpack.c.0.s8 %v5351
    %v5353 = vlaneseq
    %v5354 = vshrl.u32 %v5353, 7
    %v5355 = vsub.s32 %v5352, %v5354
    %v5356 = vrot.slane %v5348, %v5355
    %v5358 = vunpack.c.l.s4 1983009808
    %v5359 = vunpack.c.0.s8 %v5358
    %v5360 = vlaneseq
    %v5361 = vshrl.u32 %v5360, 7
    %v5362 = vsub.s32 %v5359, %v5361
    %v5363 = vrot.slane %v5349, %v5362
    %v5364 = vcombine.low %v4959, %v4963
    %v5365 = vcombine.high %v4959, %v4963
    %v5367 = vunpack.c.l.s4 1983009808
    %v5368 = vunpack.c.0.s8 %v5367
    %v5369 = vlaneseq
    %v5370 = vshrl.u32 %v5369, 7
    %v5371 = vsub.s32 %v5368, %v5370
    %v5372 = vrot.slane %v5364, %v5371
    %v5374 = vunpack.c.l.s4 1983009808
    %v5375 = vunpack.c.0.s8 %v5374
    %v5376 = vlaneseq
    %v5377 = vshrl.u32 %v5376, 7
    %v5378 = vsub.s32 %v5375, %v5377
    %v5379 = vrot.slane %v5365, %v5378
    %v5380 = vcombine.low %v5324, %v5340
    %v5381 = vcombine.high %v5324, %v5340
    %v5383 = vunpack.c.l.s4 1934713408
    %v5384 = vunpack.c.0.s8 %v5383
    %v5385 = vlaneseq
    %v5386 = vshrl.u32 %v5385, 7
    %v5387 = vsub.s32 %v5384, %v5386
    %v5388 = vrot.slane %v5380, %v5387
    %v5390 = vunpack.c.l.s4 1934713408
    %v5391 = vunpack.c.0.s8 %v5390
    %v5392 = vlaneseq
    %v5393 = vshrl.u32 %v5392, 7
    %v5394 = vsub.s32 %v5391, %v5393
    %v5395 = vrot.slane %v5381, %v5394
    %v5396 = vcombine.low %v5331, %v5347
    %v5397 = vcombine.high %v5331, %v5347
    %v5399 = vunpack.c.l.s4 1934713408
    %v5400 = vunpack.c.0.s8 %v5399
    %v5401 = vlaneseq
    %v5402 = vshrl.u32 %v5401, 7
    %v5403 = vsub.s32 %v5400, %v5402
    %v5404 = vrot.slane %v5396, %v5403
    %v5406 = vunpack.c.l.s4 1934713408
    %v5407 = vunpack.c.0.s8 %v5406
    %v5408 = vlaneseq
    %v5409 = vshrl.u32 %v5408, 7
    %v5410 = vsub.s32 %v5407, %v5409
    %v5411 = vrot.slane %v5397, %v5410
    %v5412 = vcombine.low %v5356, %v5372
    %v5413 = vcombine.high %v5356, %v5372
    %v5415 = vunpack.c.l.s4 1934713408
    %v5416 = vunpack.c.0.s8 %v5415
    %v5417 = vlaneseq
    %v5418 = vshrl.u32 %v5417, 7
    %v5419 = vsub.s32 %v5416, %v5418
    %v5420 = vrot.slane %v5412, %v5419
    %v5422 = vunpack.c.l.s4 1934713408
    %v5423 = vunpack.c.0.s8 %v5422
    %v5424 = vlaneseq
    %v5425 = vshrl.u32 %v5424, 7
    %v5426 = vsub.s32 %v5423, %v5425
    %v5427 = vrot.slane %v5413, %v5426
    %v5428 = vcombine.low %v5363, %v5379
    %v5429 = vcombine.high %v5363, %v5379
    %v5431 = vunpack.c.l.s4 1934713408
    %v5432 = vunpack.c.0.s8 %v5431
    %v5433 = vlaneseq
    %v5434 = vshrl.u32 %v5433, 7
    %v5435 = vsub.s32 %v5432, %v5434
    %v5436 = vrot.slane %v5428, %v5435
    %v5438 = vunpack.c.l.s4 1934713408
    %v5439 = vunpack.c.0.s8 %v5438
    %v5440 = vlaneseq
    %v5441 = vshrl.u32 %v5440, 7
    %v5442 = vsub.s32 %v5439, %v5441
    %v5443 = vrot.slane %v5429, %v5442
    %v5444 = vcombine.low %v5388, %v5420
    %v5445 = vcombine.high %v5388, %v5420
    %v5446 = vcombine.low %v5395, %v5427
    %v5447 = vcombine.high %v5395, %v5427
    %v5448 = vcombine.low %v5404, %v5436
    %v5449 = vcombine.high %v5404, %v5436
    %v5450 = vcombine.low %v5411, %v5443
    %v5451 = vcombine.high %v5411, %v5443
    %v5452 = vcombine.low %v5444, %v5446
    %v5453 = vcombine.high %v5444, %v5446
    %v5455 = vunpack.c.l.s4 1983009808
    %v5456 = vunpack.c.0.s8 %v5455
    %v5457 = vlaneseq
    %v5458 = vshrl.u32 %v5457, 7
    %v5459 = vsub.s32 %v5456, %v5458
    %v5460 = vrot.slane %v5452, %v5459
    %v5462 = vunpack.c.l.s4 1983009808
    %v5463 = vunpack.c.0.s8 %v5462
    %v5464 = vlaneseq
    %v5465 = vshrl.u32 %v5464, 7
    %v5466 = vsub.s32 %v5463, %v5465
    %v5467 = vrot.slane %v5453, %v5466
    %v5468 = vcombine.low %v5445, %v5447
    %v5469 = vcombine.high %v5445, %v5447
    %v5471 = vunpack.c.l.s4 1983009808
    %v5472 = vunpack.c.0.s8 %v5471
    %v5473 = vlaneseq
    %v5474 = vshrl.u32 %v5473, 7
    %v5475 = vsub.s32 %v5472, %v5474
    %v5476 = vrot.slane %v5468, %v5475
    %v5478 = vunpack.c.l.s4 1983009808
    %v5479 = vunpack.c.0.s8 %v5478
    %v5480 = vlaneseq
    %v5481 = vshrl.u32 %v5480, 7
    %v5482 = vsub.s32 %v5479, %v5481
    %v5483 = vrot.slane %v5469, %v5482
    %v5484 = vcombine.low %v5448, %v5450
    %v5485 = vcombine.high %v5448, %v5450
    %v5487 = vunpack.c.l.s4 1983009808
    %v5488 = vunpack.c.0.s8 %v5487
    %v5489 = vlaneseq
    %v5490 = vshrl.u32 %v5489, 7
    %v5491 = vsub.s32 %v5488, %v5490
    %v5492 = vrot.slane %v5484, %v5491
    %v5494 = vunpack.c.l.s4 1983009808
    %v5495 = vunpack.c.0.s8 %v5494
    %v5496 = vlaneseq
    %v5497 = vshrl.u32 %v5496, 7
    %v5498 = vsub.s32 %v5495, %v5497
    %v5499 = vrot.slane %v5485, %v5498
    %v5500 = vcombine.low %v5449, %v5451
    %v5501 = vcombine.high %v5449, %v5451
    %v5503 = vunpack.c.l.s4 1983009808
    %v5504 = vunpack.c.0.s8 %v5503
    %v5505 = vlaneseq
    %v5506 = vshrl.u32 %v5505, 7
    %v5507 = vsub.s32 %v5504, %v5506
    %v5508 = vrot.slane %v5500, %v5507
    %v5510 = vunpack.c.l.s4 1983009808
    %v5511 = vunpack.c.0.s8 %v5510
    %v5512 = vlaneseq
    %v5513 = vshrl.u32 %v5512, 7
    %v5514 = vsub.s32 %v5511, %v5513
    %v5515 = vrot.slane %v5501, %v5514
    %v5516 = vcombine.low %v5460, %v5476
    %v5517 = vcombine.high %v5460, %v5476
    %v5519 = vunpack.c.l.s4 1934713408
    %v5520 = vunpack.c.0.s8 %v5519
    %v5521 = vlaneseq
    %v5522 = vshrl.u32 %v5521, 7
    %v5523 = vsub.s32 %v5520, %v5522
    %v5524 = vrot.slane %v5516, %v5523
    %v5526 = vunpack.c.l.s4 1934713408
    %v5527 = vunpack.c.0.s8 %v5526
    %v5528 = vlaneseq
    %v5529 = vshrl.u32 %v5528, 7
    %v5530 = vsub.s32 %v5527, %v5529
    %v5531 = vrot.slane %v5517, %v5530
    %v5532 = vcombine.low %v5467, %v5483
    %v5533 = vcombine.high %v5467, %v5483
    %v5535 = vunpack.c.l.s4 1934713408
    %v5536 = vunpack.c.0.s8 %v5535
    %v5537 = vlaneseq
    %v5538 = vshrl.u32 %v5537, 7
    %v5539 = vsub.s32 %v5536, %v5538
    %v5540 = vrot.slane %v5532, %v5539
    %v5542 = vunpack.c.l.s4 1934713408
    %v5543 = vunpack.c.0.s8 %v5542
    %v5544 = vlaneseq
    %v5545 = vshrl.u32 %v5544, 7
    %v5546 = vsub.s32 %v5543, %v5545
    %v5547 = vrot.slane %v5533, %v5546
    %v5548 = vcombine.low %v5492, %v5508
    %v5549 = vcombine.high %v5492, %v5508
    %v5551 = vunpack.c.l.s4 1934713408
    %v5552 = vunpack.c.0.s8 %v5551
    %v5553 = vlaneseq
    %v5554 = vshrl.u32 %v5553, 7
    %v5555 = vsub.s32 %v5552, %v5554
    %v5556 = vrot.slane %v5548, %v5555
    %v5558 = vunpack.c.l.s4 1934713408
    %v5559 = vunpack.c.0.s8 %v5558
    %v5560 = vlaneseq
    %v5561 = vshrl.u32 %v5560, 7
    %v5562 = vsub.s32 %v5559, %v5561
    %v5563 = vrot.slane %v5549, %v5562
    %v5564 = vcombine.low %v5499, %v5515
    %v5565 = vcombine.high %v5499, %v5515
    %v5567 = vunpack.c.l.s4 1934713408
    %v5568 = vunpack.c.0.s8 %v5567
    %v5569 = vlaneseq
    %v5570 = vshrl.u32 %v5569, 7
    %v5571 = vsub.s32 %v5568, %v5570
    %v5572 = vrot.slane %v5564, %v5571
    %v5574 = vunpack.c.l.s4 1934713408
    %v5575 = vunpack.c.0.s8 %v5574
    %v5576 = vlaneseq
    %v5577 = vshrl.u32 %v5576, 7
    %v5578 = vsub.s32 %v5575, %v5577
    %v5579 = vrot.slane %v5565, %v5578
    %v5580 = vcombine.low %v5524, %v5556
    %v5581 = vcombine.high %v5524, %v5556
    %v5582 = vcombine.low %v5531, %v5563
    %v5583 = vcombine.high %v5531, %v5563
    %v5584 = vcombine.low %v5540, %v5572
    %v5585 = vcombine.high %v5540, %v5572
    %v5586 = vcombine.low %v5547, %v5579
    %v5587 = vcombine.high %v5547, %v5579
    %5589 = vrot.lane.b32.xlu0 %v5581, 16
    %v5590 = vpop.permute.xlu0 %5589
    %5593 = vrot.lane.b32.xlu0 %v5582, 32
    %v5594 = vpop.permute.xlu0 %5593
    %5597 = vrot.lane.b32.xlu0 %v5583, 48
    %v5598 = vpop.permute.xlu0 %5597
    %5601 = vrot.lane.b32.xlu0 %v5584, 64
    %v5602 = vpop.permute.xlu0 %5601
    %5605 = vrot.lane.b32.xlu0 %v5585, 80
    %v5606 = vpop.permute.xlu0 %5605
    %5609 = vrot.lane.b32.xlu0 %v5586, 96
    %v5610 = vpop.permute.xlu0 %5609
    %5613 = vrot.lane.b32.xlu0 %v5587, 112
    %v5614 = vpop.permute.xlu0 %5613
    %v5616 = vsel %vm2425, %v5580, %v5590
    %v5617 = vsel %vm137, %v5616, %v5594
    %v5618 = vsel %vm2432, %v5617, %v5598
    %v5619 = vsel %vm226, %v5618, %v5602
    %vm5620 = vcmask 654336
    %v5621 = vsel %vm5620, %v5619, %v5606
    %vm5622 = vcmask 785408
    %v5623 = vsel %vm5622, %v5621, %v5610
    %vm5624 = vcmask 916480
    %v5625 = vsel %vm5624, %v5623, %v5614
    %v5626 = vcombine.low %v5010, %v5096
    %v5627 = vcombine.high %v5010, %v5096
    %v5629 = vunpack.c.l.s4 1983009808
    %v5630 = vunpack.c.0.s8 %v5629
    %v5631 = vlaneseq
    %v5632 = vshrl.u32 %v5631, 7
    %v5633 = vsub.s32 %v5630, %v5632
    %v5634 = vrot.slane %v5626, %v5633
    %v5636 = vunpack.c.l.s4 1983009808
    %v5637 = vunpack.c.0.s8 %v5636
    %v5638 = vlaneseq
    %v5639 = vshrl.u32 %v5638, 7
    %v5640 = vsub.s32 %v5637, %v5639
    %v5641 = vrot.slane %v5627, %v5640
    %v5642 = vcombine.low %v5053, %v5139
    %v5643 = vcombine.high %v5053, %v5139
    %v5645 = vunpack.c.l.s4 1983009808
    %v5646 = vunpack.c.0.s8 %v5645
    %v5647 = vlaneseq
    %v5648 = vshrl.u32 %v5647, 7
    %v5649 = vsub.s32 %v5646, %v5648
    %v5650 = vrot.slane %v5642, %v5649
    %v5652 = vunpack.c.l.s4 1983009808
    %v5653 = vunpack.c.0.s8 %v5652
    %v5654 = vlaneseq
    %v5655 = vshrl.u32 %v5654, 7
    %v5656 = vsub.s32 %v5653, %v5655
    %v5657 = vrot.slane %v5643, %v5656
    %v5658 = vcombine.low %v5634, %v5650
    %v5659 = vcombine.high %v5634, %v5650
    %v5661 = vunpack.c.l.s4 1934713408
    %v5662 = vunpack.c.0.s8 %v5661
    %v5663 = vlaneseq
    %v5664 = vshrl.u32 %v5663, 7
    %v5665 = vsub.s32 %v5662, %v5664
    %v5666 = vrot.slane %v5658, %v5665
    %v5668 = vunpack.c.l.s4 1934713408
    %v5669 = vunpack.c.0.s8 %v5668
    %v5670 = vlaneseq
    %v5671 = vshrl.u32 %v5670, 7
    %v5672 = vsub.s32 %v5669, %v5671
    %v5673 = vrot.slane %v5659, %v5672
    %v5674 = vcombine.low %v5641, %v5657
    %v5675 = vcombine.high %v5641, %v5657
    %v5677 = vunpack.c.l.s4 1934713408
    %v5678 = vunpack.c.0.s8 %v5677
    %v5679 = vlaneseq
    %v5680 = vshrl.u32 %v5679, 7
    %v5681 = vsub.s32 %v5678, %v5680
    %v5682 = vrot.slane %v5674, %v5681
    %v5684 = vunpack.c.l.s4 1934713408
    %v5685 = vunpack.c.0.s8 %v5684
    %v5686 = vlaneseq
    %v5687 = vshrl.u32 %v5686, 7
    %v5688 = vsub.s32 %v5685, %v5687
    %v5689 = vrot.slane %v5675, %v5688
    %v5690 = vcombine.high %v5666, 0.0
    %v5691 = vcombine.high %v5673, 0.0
    %v5692 = vcombine.high %v5682, 0.0
    %v5693 = vcombine.high %v5689, 0.0
    %v5694 = vcombine.low %v5182, %v5268
    %v5695 = vcombine.high %v5182, %v5268
    %v5697 = vunpack.c.l.s4 1983009808
    %v5698 = vunpack.c.0.s8 %v5697
    %v5699 = vlaneseq
    %v5700 = vshrl.u32 %v5699, 7
    %v5701 = vsub.s32 %v5698, %v5700
    %v5702 = vrot.slane %v5694, %v5701
    %v5704 = vunpack.c.l.s4 1983009808
    %v5705 = vunpack.c.0.s8 %v5704
    %v5706 = vlaneseq
    %v5707 = vshrl.u32 %v5706, 7
    %v5708 = vsub.s32 %v5705, %v5707
    %v5709 = vrot.slane %v5695, %v5708
    %v5710 = vcombine.low %v5225, %v5311
    %v5711 = vcombine.high %v5225, %v5311
    %v5713 = vunpack.c.l.s4 1983009808
    %v5714 = vunpack.c.0.s8 %v5713
    %v5715 = vlaneseq
    %v5716 = vshrl.u32 %v5715, 7
    %v5717 = vsub.s32 %v5714, %v5716
    %v5718 = vrot.slane %v5710, %v5717
    %v5720 = vunpack.c.l.s4 1983009808
    %v5721 = vunpack.c.0.s8 %v5720
    %v5722 = vlaneseq
    %v5723 = vshrl.u32 %v5722, 7
    %v5724 = vsub.s32 %v5721, %v5723
    %v5725 = vrot.slane %v5711, %v5724
    %v5726 = vcombine.low %v5702, %v5718
    %v5727 = vcombine.high %v5702, %v5718
    %v5729 = vunpack.c.l.s4 1934713408
    %v5730 = vunpack.c.0.s8 %v5729
    %v5731 = vlaneseq
    %v5732 = vshrl.u32 %v5731, 7
    %v5733 = vsub.s32 %v5730, %v5732
    %v5734 = vrot.slane %v5726, %v5733
    %v5736 = vunpack.c.l.s4 1934713408
    %v5737 = vunpack.c.0.s8 %v5736
    %v5738 = vlaneseq
    %v5739 = vshrl.u32 %v5738, 7
    %v5740 = vsub.s32 %v5737, %v5739
    %v5741 = vrot.slane %v5727, %v5740
    %v5742 = vcombine.low %v5709, %v5725
    %v5743 = vcombine.high %v5709, %v5725
    %v5745 = vunpack.c.l.s4 1934713408
    %v5746 = vunpack.c.0.s8 %v5745
    %v5747 = vlaneseq
    %v5748 = vshrl.u32 %v5747, 7
    %v5749 = vsub.s32 %v5746, %v5748
    %v5750 = vrot.slane %v5742, %v5749
    %v5752 = vunpack.c.l.s4 1934713408
    %v5753 = vunpack.c.0.s8 %v5752
    %v5754 = vlaneseq
    %v5755 = vshrl.u32 %v5754, 7
    %v5756 = vsub.s32 %v5753, %v5755
    %v5757 = vrot.slane %v5743, %v5756
    %v5758 = vcombine.high %v5734, 0.0
    %v5759 = vcombine.high %v5741, 0.0
    %v5760 = vcombine.high %v5750, 0.0
    %v5761 = vcombine.high %v5757, 0.0
    %v5762 = vcombine.low %v5666, %v5673
    %v5764 = vunpack.c.l.s4 1983009808
    %v5765 = vunpack.c.0.s8 %v5764
    %v5766 = vlaneseq
    %v5767 = vshrl.u32 %v5766, 7
    %v5768 = vsub.s32 %v5765, %v5767
    %v5769 = vrot.slane %v5762, %v5768
    %v5770 = vcombine.low %v5690, %v5691
    %v5772 = vunpack.c.l.s4 1983009808
    %v5773 = vunpack.c.0.s8 %v5772
    %v5774 = vlaneseq
    %v5775 = vshrl.u32 %v5774, 7
    %v5776 = vsub.s32 %v5773, %v5775
    %v5777 = vrot.slane %v5770, %v5776
    %v5778 = vcombine.low %v5682, %v5689
    %v5780 = vunpack.c.l.s4 1983009808
    %v5781 = vunpack.c.0.s8 %v5780
    %v5782 = vlaneseq
    %v5783 = vshrl.u32 %v5782, 7
    %v5784 = vsub.s32 %v5781, %v5783
    %v5785 = vrot.slane %v5778, %v5784
    %v5786 = vcombine.low %v5692, %v5693
    %v5788 = vunpack.c.l.s4 1983009808
    %v5789 = vunpack.c.0.s8 %v5788
    %v5790 = vlaneseq
    %v5791 = vshrl.u32 %v5790, 7
    %v5792 = vsub.s32 %v5789, %v5791
    %v5793 = vrot.slane %v5786, %v5792
    %v5794 = vcombine.low %v5769, %v5777
    %v5795 = vcombine.high %v5769, %v5777
    %v5797 = vunpack.c.l.s4 1934713408
    %v5798 = vunpack.c.0.s8 %v5797
    %v5799 = vlaneseq
    %v5800 = vshrl.u32 %v5799, 7
    %v5801 = vsub.s32 %v5798, %v5800
    %v5802 = vrot.slane %v5794, %v5801
    %v5804 = vunpack.c.l.s4 1934713408
    %v5805 = vunpack.c.0.s8 %v5804
    %v5806 = vlaneseq
    %v5807 = vshrl.u32 %v5806, 7
    %v5808 = vsub.s32 %v5805, %v5807
    %v5809 = vrot.slane %v5795, %v5808
    %v5810 = vcombine.low %v5785, %v5793
    %v5811 = vcombine.high %v5785, %v5793
    %v5813 = vunpack.c.l.s4 1934713408
    %v5814 = vunpack.c.0.s8 %v5813
    %v5815 = vlaneseq
    %v5816 = vshrl.u32 %v5815, 7
    %v5817 = vsub.s32 %v5814, %v5816
    %v5818 = vrot.slane %v5810, %v5817
    %v5820 = vunpack.c.l.s4 1934713408
    %v5821 = vunpack.c.0.s8 %v5820
    %v5822 = vlaneseq
    %v5823 = vshrl.u32 %v5822, 7
    %v5824 = vsub.s32 %v5821, %v5823
    %v5825 = vrot.slane %v5811, %v5824
    %v5826 = vcombine.low %v5802, %v5818
    %v5827 = vcombine.high %v5802, %v5818
    %v5828 = vcombine.low %v5809, %v5825
    %v5829 = vcombine.high %v5809, %v5825
    %v5830 = vcombine.low %v5734, %v5741
    %v5832 = vunpack.c.l.s4 1983009808
    %v5833 = vunpack.c.0.s8 %v5832
    %v5834 = vlaneseq
    %v5835 = vshrl.u32 %v5834, 7
    %v5836 = vsub.s32 %v5833, %v5835
    %v5837 = vrot.slane %v5830, %v5836
    %v5838 = vcombine.low %v5758, %v5759
    %v5840 = vunpack.c.l.s4 1983009808
    %v5841 = vunpack.c.0.s8 %v5840
    %v5842 = vlaneseq
    %v5843 = vshrl.u32 %v5842, 7
    %v5844 = vsub.s32 %v5841, %v5843
    %v5845 = vrot.slane %v5838, %v5844
    %v5846 = vcombine.low %v5750, %v5757
    %v5848 = vunpack.c.l.s4 1983009808
    %v5849 = vunpack.c.0.s8 %v5848
    %v5850 = vlaneseq
    %v5851 = vshrl.u32 %v5850, 7
    %v5852 = vsub.s32 %v5849, %v5851
    %v5853 = vrot.slane %v5846, %v5852
    %v5854 = vcombine.low %v5760, %v5761
    %v5856 = vunpack.c.l.s4 1983009808
    %v5857 = vunpack.c.0.s8 %v5856
    %v5858 = vlaneseq
    %v5859 = vshrl.u32 %v5858, 7
    %v5860 = vsub.s32 %v5857, %v5859
    %v5861 = vrot.slane %v5854, %v5860
    %v5862 = vcombine.low %v5837, %v5845
    %v5863 = vcombine.high %v5837, %v5845
    %v5865 = vunpack.c.l.s4 1934713408
    %v5866 = vunpack.c.0.s8 %v5865
    %v5867 = vlaneseq
    %v5868 = vshrl.u32 %v5867, 7
    %v5869 = vsub.s32 %v5866, %v5868
    %v5870 = vrot.slane %v5862, %v5869
    %v5872 = vunpack.c.l.s4 1934713408
    %v5873 = vunpack.c.0.s8 %v5872
    %v5874 = vlaneseq
    %v5875 = vshrl.u32 %v5874, 7
    %v5876 = vsub.s32 %v5873, %v5875
    %v5877 = vrot.slane %v5863, %v5876
    %v5878 = vcombine.low %v5853, %v5861
    %v5879 = vcombine.high %v5853, %v5861
    %v5881 = vunpack.c.l.s4 1934713408
    %v5882 = vunpack.c.0.s8 %v5881
    %v5883 = vlaneseq
    %v5884 = vshrl.u32 %v5883, 7
    %v5885 = vsub.s32 %v5882, %v5884
    %v5886 = vrot.slane %v5878, %v5885
    %v5888 = vunpack.c.l.s4 1934713408
    %v5889 = vunpack.c.0.s8 %v5888
    %v5890 = vlaneseq
    %v5891 = vshrl.u32 %v5890, 7
    %v5892 = vsub.s32 %v5889, %v5891
    %v5893 = vrot.slane %v5879, %v5892
    %v5894 = vcombine.low %v5870, %v5886
    %v5895 = vcombine.high %v5870, %v5886
    %v5896 = vcombine.low %v5877, %v5893
    %v5897 = vcombine.high %v5877, %v5893
    %5900 = vrot.lane.b32.xlu0 %v5827, 8
    %v5901 = vpop.permute.xlu0 %5900
    %5902 = vrot.lane.b32.xlu0 %v5895, 8
    %v5903 = vpop.permute.xlu0 %5902
    %5908 = vrot.lane.b32.xlu0 %v5828, 16
    %v5909 = vpop.permute.xlu0 %5908
    %5910 = vrot.lane.b32.xlu0 %v5896, 16
    %v5911 = vpop.permute.xlu0 %5910
    %5916 = vrot.lane.b32.xlu0 %v5829, 24
    %v5917 = vpop.permute.xlu0 %5916
    %5918 = vrot.lane.b32.xlu0 %v5897, 24
    %v5919 = vpop.permute.xlu0 %5918
    %v5922 = vsel %vm1274, %v5826, %v5901
    %v5923 = vsel %vm1274, %v5894, %v5903
    %v5924 = vsel %vm2425, %v5922, %v5909
    %v5925 = vsel %vm2425, %v5923, %v5911
    %v5926 = vsel %vm2427, %v5924, %v5917
    %v5927 = vsel %vm2427, %v5925, %v5919
    %v5928 = vld [vmem:[%s41] sm:$0xf]
    %v5929 = vld [vmem:[%s41 + $0x4] sm:$0xf]
    %v5930 = vld [vmem:[%s41 + $0x8] sm:$0xf]
    %v5931 = vld [vmem:[%s41 + $0xc] sm:$0xf]
    %v5932 = vpack.c.bf16 %v5927, %v5926
    %v5933 = vld [vmem:[%s43] sm:$0x1]
    %v5935 = vlaneseq
    %v5936 = vshrl.u32 %v5935, 7
    %v5937 = vsub.s32 0, %v5936
    %v5938 = vrot.slane %v5933, %v5937
    %v5944 = vunpack.c.l.b16 %v5928
    %v5945 = vunpack.c.l.b16 %v5929
    %v5946 = vunpack.c.l.b16 %v5930
    %v5947 = vunpack.c.l.b16 %v5931
    %v5948 = vpack.c.b16 %v5945, %v5944
    %v5949 = vpack.c.b16 %v5947, %v5946
    %v5953 = vsel %vm137, %v5932, 0
    %5955 = vmatprep.subr.bf16.mxu0 0
    %5956 = vmatpush1.bf16.msra.mxu0 %v5948
    %5957 = vmatprep.subr.bf16.mxu0 0
    %5958 = vmatpush1.bf16.msra.mxu0 %v5949
    %5959 = vmatprep.subr.bf16.mxu0 0
    %5960 = vmatpush1.bf16.msra.mxu0 0
    %5961 = vmatprep.subr.bf16.mxu0 0
    %5962 = vmatpush1.bf16.msra.mxu0 0
    %5963 = vmatprep.subr.bf16.mxu0 0
    %5964 = vmatpush1.bf16.msra.mxu0 0
    %5965 = vmatprep.subr.bf16.mxu0 0
    %5966 = vmatpush1.bf16.msra.mxu0 0
    %5967 = vmatprep.subr.bf16.mxu0 0
    %5968 = vmatpush1.bf16.msra.mxu0 0
    %5969 = vmatprep.subr.bf16.mxu0 0
    %5970 = vmatpush1.bf16.msra.mxu0 0
    %5971 = vmatprep.subr.bf16.mxu0 0
    %5972 = vmatpush1.bf16.msra.mxu0 0
    %5973 = vmatprep.subr.bf16.mxu0 0
    %5974 = vmatpush1.bf16.msra.mxu0 0
    %5975 = vmatprep.subr.bf16.mxu0 0
    %5976 = vmatpush1.bf16.msra.mxu0 0
    %5977 = vmatprep.subr.bf16.mxu0 0
    %5978 = vmatpush1.bf16.msra.mxu0 0
    %5979 = vmatprep.subr.bf16.mxu0 0
    %5980 = vmatpush1.bf16.msra.mxu0 0
    %5981 = vmatprep.subr.bf16.mxu0 0
    %5982 = vmatpush1.bf16.msra.mxu0 0
    %5983 = vmatprep.subr.bf16.mxu0 0
    %5984 = vmatpush1.bf16.msra.mxu0 0
    %5985 = vmatprep.subr.bf16.mxu0 0
    %5986 = vmatpush1.bf16.msra.mxu0 0
    %5987 = vmatprep.mubr.bf16.mxu0 0
    %5988 = vmatmul.mubr.bf16.gmra.mrb[0].mxu0 %v5953
    %v5989 = vpop.f32.mrb[0].mxu0
    %v5990 = vadd.f32 %v5938, %v5989
    %v5991 = vpop.f32.mrb[0].mxu0
    %v5992 = vpop.f32.mrb[0].mxu0
    %v5993 = vadd.f32 %v5938, %v5992
    %v5994 = vpop.f32.mrb[0].mxu0
    %5995 = vdwg.mxu0
    %v5996 = vadd.f32 %v5990, %v2850
    %v5997 = vadd.f32 %v5993, %v2851
    %v5998 = vld [vmem:[%s45] sm:$0x1]
    %v5999 = vld [vmem:[%s47] sm:$0x1]
    %v6000 = vsel %vm137, %v5996, 0.0
    %6001 = vadd.xlane.f32.xlu0 %v6000
    %v6002 = vpop.xlane.xlu0 %6001
    %v6003 = vsel %vm137, %v5997, 0.0
    %6004 = vadd.xlane.f32.xlu0 %v6003
    %v6005 = vpop.xlane.xlu0 %6004
    %v6006 = vmul.f32 %v6002, %v144
    %v6007 = vmul.f32 %v6005, %v144
    %v6008 = vsub.f32 %v5996, %v6006
    %v6009 = vsub.f32 %v5997, %v6007
    %v6010 = vmul.f32 %v6008, %v6008
    %v6011 = vmul.f32 %v6009, %v6009
    %v6012 = vsel %vm137, %v6010, 0.0
    %6013 = vadd.xlane.f32.xlu0 %v6012
    %v6014 = vpop.xlane.xlu0 %6013
    %v6015 = vsel %vm137, %v6011, 0.0
    %6016 = vadd.xlane.f32.xlu0 %v6015
    %v6017 = vpop.xlane.xlu0 %6016
    %v6018 = vmul.f32 %v6014, %v144
    %v6019 = vmul.f32 %v6017, %v144
    %v6020 = vadd.f32 %v6018, 1e-12
    %v6021 = vadd.f32 %v6019, 1e-12
    %v6022 = vrsqrt.pop %v6020
    %v6023 = vrsqrt.pop %v6021
    %v6024 = vmul.f32 %v6008, %v6022
    %v6025 = vmul.f32 %v6009, %v6023
    %v6027 = vlaneseq
    %v6028 = vshrl.u32 %v6027, 7
    %v6029 = vsub.s32 0, %v6028
    %v6030 = vrot.slane %v5998, %v6029
    %v6032 = vmul.f32 %v6024, %v6030
    %v6033 = vmul.f32 %v6025, %v6030
    %v6035 = vlaneseq
    %v6036 = vshrl.u32 %v6035, 7
    %v6037 = vsub.s32 0, %v6036
    %v6038 = vrot.slane %v5999, %v6037
    %v6040 = vadd.f32 %v6032, %v6038
    %v6041 = vadd.f32 %v6033, %v6038
    %v6042 = vld [vmem:[%s49] sm:$0xf]
    %v6043 = vld [vmem:[%s49 + $0x4] sm:$0xf]
    %v6044 = vld [vmem:[%s49 + $0x8] sm:$0xf]
    %v6045 = vld [vmem:[%s49 + $0xc] sm:$0xf]
    %v6046 = vpack.c.bf16 %v6041, %v6040
    %v6047 = vld [vmem:[%s51] sm:$0x1]
    %v6049 = vlaneseq
    %v6050 = vshrl.u32 %v6049, 7
    %v6051 = vsub.s32 0, %v6050
    %v6052 = vrot.slane %v6047, %v6051
    %v6058 = vunpack.c.l.b16 %v6042
    %v6059 = vunpack.c.l.b16 %v6043
    %v6060 = vunpack.c.l.b16 %v6044
    %v6061 = vunpack.c.l.b16 %v6045
    %v6062 = vpack.c.b16 %v6059, %v6058
    %v6063 = vpack.c.b16 %v6061, %v6060
    %v6067 = vsel %vm137, %v6046, 0
    %6069 = vmatprep.subr.bf16.mxu0 0
    %6070 = vmatpush1.bf16.msra.mxu0 %v6062
    %6071 = vmatprep.subr.bf16.mxu0 0
    %6072 = vmatpush1.bf16.msra.mxu0 %v6063
    %6073 = vmatprep.subr.bf16.mxu0 0
    %6074 = vmatpush1.bf16.msra.mxu0 0
    %6075 = vmatprep.subr.bf16.mxu0 0
    %6076 = vmatpush1.bf16.msra.mxu0 0
    %6077 = vmatprep.subr.bf16.mxu0 0
    %6078 = vmatpush1.bf16.msra.mxu0 0
    %6079 = vmatprep.subr.bf16.mxu0 0
    %6080 = vmatpush1.bf16.msra.mxu0 0
    %6081 = vmatprep.subr.bf16.mxu0 0
    %6082 = vmatpush1.bf16.msra.mxu0 0
    %6083 = vmatprep.subr.bf16.mxu0 0
    %6084 = vmatpush1.bf16.msra.mxu0 0
    %6085 = vmatprep.subr.bf16.mxu0 0
    %6086 = vmatpush1.bf16.msra.mxu0 0
    %6087 = vmatprep.subr.bf16.mxu0 0
    %6088 = vmatpush1.bf16.msra.mxu0 0
    %6089 = vmatprep.subr.bf16.mxu0 0
    %6090 = vmatpush1.bf16.msra.mxu0 0
    %6091 = vmatprep.subr.bf16.mxu0 0
    %6092 = vmatpush1.bf16.msra.mxu0 0
    %6093 = vmatprep.subr.bf16.mxu0 0
    %6094 = vmatpush1.bf16.msra.mxu0 0
    %6095 = vmatprep.subr.bf16.mxu0 0
    %6096 = vmatpush1.bf16.msra.mxu0 0
    %6097 = vmatprep.subr.bf16.mxu0 0
    %6098 = vmatpush1.bf16.msra.mxu0 0
    %6099 = vmatprep.subr.bf16.mxu0 0
    %6100 = vmatpush1.bf16.msra.mxu0 0
    %6101 = vmatprep.mubr.bf16.mxu0 0
    %6102 = vmatmul.mubr.bf16.gmra.mrb[0].mxu0 %v6067
    %v6103 = vpop.f32.mrb[0].mxu0
    %v6104 = vadd.f32 %v6052, %v6103
    %v6105 = vpop.f32.mrb[0].mxu0
    %v6106 = vpop.f32.mrb[0].mxu0
    %v6107 = vadd.f32 %v6052, %v6106
    %v6108 = vpop.f32.mrb[0].mxu0
    %6109 = vdwg.mxu0
    %v6110 = vmul.f32 %v6104, 0.5
    %v6111 = vmul.f32 %v6107, 0.5
    %v6112 = vmul.f32 %v6104, 0.70710677
    %v6113 = vmul.f32 %v6107, 0.70710677
    %v6114 = verf.f32.pop %v6112
    %v6115 = verf.f32.pop %v6113
    %v6116 = vadd.f32 %v6114, 1.0
    %v6117 = vadd.f32 %v6115, 1.0
    %v6118 = vmul.f32 %v6110, %v6116
    %v6119 = vmul.f32 %v6111, %v6117
    %v6120 = vld [vmem:[%s53] sm:$0xf]
    %v6121 = vld [vmem:[%s53 + $0x4] sm:$0xf]
    %v6122 = vld [vmem:[%s53 + $0x8] sm:$0xf]
    %v6123 = vld [vmem:[%s53 + $0xc] sm:$0xf]
    %v6124 = vld [vmem:[%s53 + $0x10] sm:$0xf]
    %v6125 = vld [vmem:[%s53 + $0x14] sm:$0xf]
    %v6126 = vld [vmem:[%s53 + $0x18] sm:$0xf]
    %v6127 = vld [vmem:[%s53 + $0x1c] sm:$0xf]
    %v6128 = vld [vmem:[%s53 + $0x20] sm:$0xf]
    %v6129 = vld [vmem:[%s53 + $0x24] sm:$0xf]
    %v6130 = vld [vmem:[%s53 + $0x28] sm:$0xf]
    %v6131 = vld [vmem:[%s53 + $0x2c] sm:$0xf]
    %v6132 = vld [vmem:[%s53 + $0x30] sm:$0xf]
    %v6133 = vld [vmem:[%s53 + $0x34] sm:$0xf]
    %v6134 = vld [vmem:[%s53 + $0x38] sm:$0xf]
    %v6135 = vld [vmem:[%s53 + $0x3c] sm:$0xf]
    %v6136 = vpack.c.bf16 %v6119, %v6118
    %v6137 = vld [vmem:[%s55] sm:$0x1]
    %v6139 = vlaneseq
    %v6140 = vshrl.u32 %v6139, 7
    %v6141 = vsub.s32 0, %v6140
    %v6142 = vrot.slane %v6137, %v6141
    %v6160 = vunpack.c.l.b16 %v6120
    %v6161 = vunpack.c.l.b16 %v6121
    %v6162 = vunpack.c.l.b16 %v6122
    %v6163 = vunpack.c.l.b16 %v6123
    %v6164 = vunpack.c.l.b16 %v6124
    %v6165 = vunpack.c.l.b16 %v6125
    %v6166 = vunpack.c.l.b16 %v6126
    %v6167 = vunpack.c.l.b16 %v6127
    %v6168 = vunpack.c.l.b16 %v6128
    %v6169 = vunpack.c.l.b16 %v6129
    %v6170 = vunpack.c.l.b16 %v6130
    %v6171 = vunpack.c.l.b16 %v6131
    %v6172 = vunpack.c.l.b16 %v6132
    %v6173 = vunpack.c.l.b16 %v6133
    %v6174 = vunpack.c.l.b16 %v6134
    %v6175 = vunpack.c.l.b16 %v6135
    %v6176 = vpack.c.b16 %v6161, %v6160
    %v6177 = vpack.c.b16 %v6163, %v6162
    %v6178 = vpack.c.b16 %v6165, %v6164
    %v6179 = vpack.c.b16 %v6167, %v6166
    %v6180 = vpack.c.b16 %v6169, %v6168
    %v6181 = vpack.c.b16 %v6171, %v6170
    %v6182 = vpack.c.b16 %v6173, %v6172
    %v6183 = vpack.c.b16 %v6175, %v6174
    %6192 = vmatprep.subr.bf16.mxu0 0
    %6193 = vmatpush1.bf16.msra.mxu0 %v6176
    %6194 = vmatprep.subr.bf16.mxu0 0
    %6195 = vmatpush1.bf16.msra.mxu0 %v6177
    %6196 = vmatprep.subr.bf16.mxu0 0
    %6197 = vmatpush1.bf16.msra.mxu0 %v6178
    %6198 = vmatprep.subr.bf16.mxu0 0
    %6199 = vmatpush1.bf16.msra.mxu0 %v6179
    %6200 = vmatprep.subr.bf16.mxu0 0
    %6201 = vmatpush1.bf16.msra.mxu0 %v6180
    %6202 = vmatprep.subr.bf16.mxu0 0
    %6203 = vmatpush1.bf16.msra.mxu0 %v6181
    %6204 = vmatprep.subr.bf16.mxu0 0
    %6205 = vmatpush1.bf16.msra.mxu0 %v6182
    %6206 = vmatprep.subr.bf16.mxu0 0
    %6207 = vmatpush1.bf16.msra.mxu0 %v6183
    %6208 = vmatprep.subr.bf16.mxu0 0
    %6209 = vmatpush1.bf16.msra.mxu0 0
    %6210 = vmatprep.subr.bf16.mxu0 0
    %6211 = vmatpush1.bf16.msra.mxu0 0
    %6212 = vmatprep.subr.bf16.mxu0 0
    %6213 = vmatpush1.bf16.msra.mxu0 0
    %6214 = vmatprep.subr.bf16.mxu0 0
    %6215 = vmatpush1.bf16.msra.mxu0 0
    %6216 = vmatprep.subr.bf16.mxu0 0
    %6217 = vmatpush1.bf16.msra.mxu0 0
    %6218 = vmatprep.subr.bf16.mxu0 0
    %6219 = vmatpush1.bf16.msra.mxu0 0
    %6220 = vmatprep.subr.bf16.mxu0 0
    %6221 = vmatpush1.bf16.msra.mxu0 0
    %6222 = vmatprep.subr.bf16.mxu0 0
    %6223 = vmatpush1.bf16.msra.mxu0 0
    %6224 = vmatprep.mubr.bf16.mxu0 0
    %6225 = vmatmul.mubr.bf16.gmra.mrb[0].mxu0 %v6136
    %v6226 = vpop.f32.mrb[0].mxu0
    %v6227 = vadd.f32 %v6142, %v6226
    %v6228 = vpop.f32.mrb[0].mxu0
    %v6229 = vpop.f32.mrb[0].mxu0
    %v6230 = vadd.f32 %v6142, %v6229
    %v6231 = vpop.f32.mrb[0].mxu0
    %6232 = vdwg.mxu0
    %v6233 = vadd.f32 %v6227, %v6040
    %v6234 = vadd.f32 %v6230, %v6041
    %v6235 = vld [vmem:[%s57] sm:$0x1]
    %v6236 = vld [vmem:[%s59] sm:$0x1]
    %v6237 = vsel %vm137, %v6233, 0.0
    %6238 = vadd.xlane.f32.xlu0 %v6237
    %v6239 = vpop.xlane.xlu0 %6238
    %v6240 = vsel %vm137, %v6234, 0.0
    %6241 = vadd.xlane.f32.xlu0 %v6240
    %v6242 = vpop.xlane.xlu0 %6241
    %v6243 = vmul.f32 %v6239, %v144
    %v6244 = vmul.f32 %v6242, %v144
    %v6245 = vsub.f32 %v6233, %v6243
    %v6246 = vsub.f32 %v6234, %v6244
    %v6247 = vmul.f32 %v6245, %v6245
    %v6248 = vmul.f32 %v6246, %v6246
    %v6249 = vsel %vm137, %v6247, 0.0
    %6250 = vadd.xlane.f32.xlu0 %v6249
    %v6251 = vpop.xlane.xlu0 %6250
    %v6252 = vsel %vm137, %v6248, 0.0
    %6253 = vadd.xlane.f32.xlu0 %v6252
    %v6254 = vpop.xlane.xlu0 %6253
    %v6255 = vmul.f32 %v6251, %v144
    %v6256 = vmul.f32 %v6254, %v144
    %v6257 = vadd.f32 %v6255, 1e-12
    %v6258 = vadd.f32 %v6256, 1e-12
    %v6259 = vrsqrt.pop %v6257
    %v6260 = vrsqrt.pop %v6258
    %v6261 = vmul.f32 %v6245, %v6259
    %v6262 = vmul.f32 %v6246, %v6260
    %v6264 = vlaneseq
    %v6265 = vshrl.u32 %v6264, 7
    %v6266 = vsub.s32 0, %v6265
    %v6267 = vrot.slane %v6235, %v6266
    %v6269 = vmul.f32 %v6261, %v6267
    %v6270 = vmul.f32 %v6262, %v6267
    %v6272 = vlaneseq
    %v6273 = vshrl.u32 %v6272, 7
    %v6274 = vsub.s32 0, %v6273
    %v6275 = vrot.slane %v6236, %v6274
    %v6277 = vadd.f32 %v6269, %v6275
    %v6278 = vadd.f32 %v6270, %v6275
    %s6279 = scalar_lea.vmem %s21, 16
    %v6280 = vld [vmem:[%s6279] sm:$0xf]
    %v6281 = vld [vmem:[%s6279 + $0x4] sm:$0xf]
    %v6282 = vld [vmem:[%s6279 + $0x8] sm:$0xf]
    %v6283 = vld [vmem:[%s6279 + $0xc] sm:$0xf]
    %v6284 = vpack.c.bf16 %v6278, %v6277
    %s6285 = scalar_lea.vmem %s23, 1
    %v6286 = vld [vmem:[%s6285] sm:$0x1]
    %v6288 = vlaneseq
    %v6289 = vshrl.u32 %v6288, 7
    %v6290 = vsub.s32 0, %v6289
    %v6291 = vrot.slane %v6286, %v6290
    %v6297 = vunpack.c.l.b16 %v6280
    %v6298 = vunpack.c.l.b16 %v6281
    %v6299 = vunpack.c.l.b16 %v6282
    %v6300 = vunpack.c.l.b16 %v6283
    %v6301 = vpack.c.b16 %v6298, %v6297
    %v6302 = vpack.c.b16 %v6300, %v6299
    %v6306 = vsel %vm137, %v6284, 0
    %6308 = vmatprep.subr.bf16.mxu0 0
    %6309 = vmatpush1.bf16.msra.mxu0 %v6301
    %6310 = vmatprep.subr.bf16.mxu0 0
    %6311 = vmatpush1.bf16.msra.mxu0 %v6302
    %6312 = vmatprep.subr.bf16.mxu0 0
    %6313 = vmatpush1.bf16.msra.mxu0 0
    %6314 = vmatprep.subr.bf16.mxu0 0
    %6315 = vmatpush1.bf16.msra.mxu0 0
    %6316 = vmatprep.subr.bf16.mxu0 0
    %6317 = vmatpush1.bf16.msra.mxu0 0
    %6318 = vmatprep.subr.bf16.mxu0 0
    %6319 = vmatpush1.bf16.msra.mxu0 0
    %6320 = vmatprep.subr.bf16.mxu0 0
    %6321 = vmatpush1.bf16.msra.mxu0 0
    %6322 = vmatprep.subr.bf16.mxu0 0
    %6323 = vmatpush1.bf16.msra.mxu0 0
    %6324 = vmatprep.subr.bf16.mxu0 0
    %6325 = vmatpush1.bf16.msra.mxu0 0
    %6326 = vmatprep.subr.bf16.mxu0 0
    %6327 = vmatpush1.bf16.msra.mxu0 0
    %6328 = vmatprep.subr.bf16.mxu0 0
    %6329 = vmatpush1.bf16.msra.mxu0 0
    %6330 = vmatprep.subr.bf16.mxu0 0
    %6331 = vmatpush1.bf16.msra.mxu0 0
    %6332 = vmatprep.subr.bf16.mxu0 0
    %6333 = vmatpush1.bf16.msra.mxu0 0
    %6334 = vmatprep.subr.bf16.mxu0 0
    %6335 = vmatpush1.bf16.msra.mxu0 0
    %6336 = vmatprep.subr.bf16.mxu0 0
    %6337 = vmatpush1.bf16.msra.mxu0 0
    %6338 = vmatprep.subr.bf16.mxu0 0
    %6339 = vmatpush1.bf16.msra.mxu0 0
    %6340 = vmatprep.mubr.bf16.mxu0 0
    %6341 = vmatmul.mubr.bf16.gmra.mrb[0].mxu0 %v6306
    %v6342 = vpop.f32.mrb[0].mxu0
    %v6343 = vadd.f32 %v6291, %v6342
    %v6344 = vpop.f32.mrb[0].mxu0
    %v6345 = vpop.f32.mrb[0].mxu0
    %v6346 = vadd.f32 %v6291, %v6345
    %v6347 = vpop.f32.mrb[0].mxu0
    %6348 = vdwg.mxu0
    %6351 = vrot.lane.b32.xlu0 %v6343, 120
    %v6352 = vpop.permute.xlu0 %6351
    %6353 = vrot.lane.b32.xlu0 %v6346, 120
    %v6354 = vpop.permute.xlu0 %6353
    %6357 = vrot.lane.b32.xlu0 %v6343, 112
    %v6358 = vpop.permute.xlu0 %6357
    %6359 = vrot.lane.b32.xlu0 %v6346, 112
    %v6360 = vpop.permute.xlu0 %6359
    %6363 = vrot.lane.b32.xlu0 %v6343, 104
    %v6364 = vpop.permute.xlu0 %6363
    %6365 = vrot.lane.b32.xlu0 %v6346, 104
    %v6366 = vpop.permute.xlu0 %6365
    %v6369 = vcombine.low %v6343, %v6358
    %v6370 = vcombine.high %v6343, %v6358
    %v6372 = vunpack.c.l.s4 1983009808
    %v6373 = vunpack.c.0.s8 %v6372
    %v6374 = vlaneseq
    %v6375 = vshrl.u32 %v6374, 7
    %v6376 = vsub.s32 %v6373, %v6375
    %v6377 = vrot.slane %v6369, %v6376
    %v6379 = vunpack.c.l.s4 1983009808
    %v6380 = vunpack.c.0.s8 %v6379
    %v6381 = vlaneseq
    %v6382 = vshrl.u32 %v6381, 7
    %v6383 = vsub.s32 %v6380, %v6382
    %v6384 = vrot.slane %v6370, %v6383
    %v6385 = vcombine.low %v6352, %v6364
    %v6386 = vcombine.high %v6352, %v6364
    %v6388 = vunpack.c.l.s4 1983009808
    %v6389 = vunpack.c.0.s8 %v6388
    %v6390 = vlaneseq
    %v6391 = vshrl.u32 %v6390, 7
    %v6392 = vsub.s32 %v6389, %v6391
    %v6393 = vrot.slane %v6385, %v6392
    %v6395 = vunpack.c.l.s4 1983009808
    %v6396 = vunpack.c.0.s8 %v6395
    %v6397 = vlaneseq
    %v6398 = vshrl.u32 %v6397, 7
    %v6399 = vsub.s32 %v6396, %v6398
    %v6400 = vrot.slane %v6386, %v6399
    %v6401 = vcombine.low %v6377, %v6393
    %v6402 = vcombine.high %v6377, %v6393
    %v6404 = vunpack.c.l.s4 1934713408
    %v6405 = vunpack.c.0.s8 %v6404
    %v6406 = vlaneseq
    %v6407 = vshrl.u32 %v6406, 7
    %v6408 = vsub.s32 %v6405, %v6407
    %v6409 = vrot.slane %v6401, %v6408
    %v6411 = vunpack.c.l.s4 1934713408
    %v6412 = vunpack.c.0.s8 %v6411
    %v6413 = vlaneseq
    %v6414 = vshrl.u32 %v6413, 7
    %v6415 = vsub.s32 %v6412, %v6414
    %v6416 = vrot.slane %v6402, %v6415
    %v6417 = vcombine.low %v6384, %v6400
    %v6418 = vcombine.high %v6384, %v6400
    %v6420 = vunpack.c.l.s4 1934713408
    %v6421 = vunpack.c.0.s8 %v6420
    %v6422 = vlaneseq
    %v6423 = vshrl.u32 %v6422, 7
    %v6424 = vsub.s32 %v6421, %v6423
    %v6425 = vrot.slane %v6417, %v6424
    %v6427 = vunpack.c.l.s4 1934713408
    %v6428 = vunpack.c.0.s8 %v6427
    %v6429 = vlaneseq
    %v6430 = vshrl.u32 %v6429, 7
    %v6431 = vsub.s32 %v6428, %v6430
    %v6432 = vrot.slane %v6418, %v6431
    %v6433 = vcombine.high %v6409, 0.0
    %v6434 = vcombine.high %v6416, 0.0
    %v6435 = vcombine.high %v6425, 0.0
    %v6436 = vcombine.high %v6432, 0.0
    %v6437 = vcombine.low %v6346, %v6360
    %v6438 = vcombine.high %v6346, %v6360
    %v6440 = vunpack.c.l.s4 1983009808
    %v6441 = vunpack.c.0.s8 %v6440
    %v6442 = vlaneseq
    %v6443 = vshrl.u32 %v6442, 7
    %v6444 = vsub.s32 %v6441, %v6443
    %v6445 = vrot.slane %v6437, %v6444
    %v6447 = vunpack.c.l.s4 1983009808
    %v6448 = vunpack.c.0.s8 %v6447
    %v6449 = vlaneseq
    %v6450 = vshrl.u32 %v6449, 7
    %v6451 = vsub.s32 %v6448, %v6450
    %v6452 = vrot.slane %v6438, %v6451
    %v6453 = vcombine.low %v6354, %v6366
    %v6454 = vcombine.high %v6354, %v6366
    %v6456 = vunpack.c.l.s4 1983009808
    %v6457 = vunpack.c.0.s8 %v6456
    %v6458 = vlaneseq
    %v6459 = vshrl.u32 %v6458, 7
    %v6460 = vsub.s32 %v6457, %v6459
    %v6461 = vrot.slane %v6453, %v6460
    %v6463 = vunpack.c.l.s4 1983009808
    %v6464 = vunpack.c.0.s8 %v6463
    %v6465 = vlaneseq
    %v6466 = vshrl.u32 %v6465, 7
    %v6467 = vsub.s32 %v6464, %v6466
    %v6468 = vrot.slane %v6454, %v6467
    %v6469 = vcombine.low %v6445, %v6461
    %v6470 = vcombine.high %v6445, %v6461
    %v6472 = vunpack.c.l.s4 1934713408
    %v6473 = vunpack.c.0.s8 %v6472
    %v6474 = vlaneseq
    %v6475 = vshrl.u32 %v6474, 7
    %v6476 = vsub.s32 %v6473, %v6475
    %v6477 = vrot.slane %v6469, %v6476
    %v6479 = vunpack.c.l.s4 1934713408
    %v6480 = vunpack.c.0.s8 %v6479
    %v6481 = vlaneseq
    %v6482 = vshrl.u32 %v6481, 7
    %v6483 = vsub.s32 %v6480, %v6482
    %v6484 = vrot.slane %v6470, %v6483
    %v6485 = vcombine.low %v6452, %v6468
    %v6486 = vcombine.high %v6452, %v6468
    %v6488 = vunpack.c.l.s4 1934713408
    %v6489 = vunpack.c.0.s8 %v6488
    %v6490 = vlaneseq
    %v6491 = vshrl.u32 %v6490, 7
    %v6492 = vsub.s32 %v6489, %v6491
    %v6493 = vrot.slane %v6485, %v6492
    %v6495 = vunpack.c.l.s4 1934713408
    %v6496 = vunpack.c.0.s8 %v6495
    %v6497 = vlaneseq
    %v6498 = vshrl.u32 %v6497, 7
    %v6499 = vsub.s32 %v6496, %v6498
    %v6500 = vrot.slane %v6486, %v6499
    %v6501 = vcombine.high %v6477, 0.0
    %v6502 = vcombine.high %v6484, 0.0
    %v6503 = vcombine.high %v6493, 0.0
    %v6504 = vcombine.high %v6500, 0.0
    %v6505 = vcombine.low %v6409, %v6416
    %v6507 = vunpack.c.l.s4 1983009808
    %v6508 = vunpack.c.0.s8 %v6507
    %v6509 = vlaneseq
    %v6510 = vshrl.u32 %v6509, 7
    %v6511 = vsub.s32 %v6508, %v6510
    %v6512 = vrot.slane %v6505, %v6511
    %v6513 = vcombine.low %v6433, %v6434
    %v6515 = vunpack.c.l.s4 1983009808
    %v6516 = vunpack.c.0.s8 %v6515
    %v6517 = vlaneseq
    %v6518 = vshrl.u32 %v6517, 7
    %v6519 = vsub.s32 %v6516, %v6518
    %v6520 = vrot.slane %v6513, %v6519
    %v6521 = vcombine.low %v6425, %v6432
    %v6523 = vunpack.c.l.s4 1983009808
    %v6524 = vunpack.c.0.s8 %v6523
    %v6525 = vlaneseq
    %v6526 = vshrl.u32 %v6525, 7
    %v6527 = vsub.s32 %v6524, %v6526
    %v6528 = vrot.slane %v6521, %v6527
    %v6529 = vcombine.low %v6435, %v6436
    %v6531 = vunpack.c.l.s4 1983009808
    %v6532 = vunpack.c.0.s8 %v6531
    %v6533 = vlaneseq
    %v6534 = vshrl.u32 %v6533, 7
    %v6535 = vsub.s32 %v6532, %v6534
    %v6536 = vrot.slane %v6529, %v6535
    %v6537 = vcombine.low %v6512, %v6520
    %v6538 = vcombine.high %v6512, %v6520
    %v6540 = vunpack.c.l.s4 1934713408
    %v6541 = vunpack.c.0.s8 %v6540
    %v6542 = vlaneseq
    %v6543 = vshrl.u32 %v6542, 7
    %v6544 = vsub.s32 %v6541, %v6543
    %v6545 = vrot.slane %v6537, %v6544
    %v6547 = vunpack.c.l.s4 1934713408
    %v6548 = vunpack.c.0.s8 %v6547
    %v6549 = vlaneseq
    %v6550 = vshrl.u32 %v6549, 7
    %v6551 = vsub.s32 %v6548, %v6550
    %v6552 = vrot.slane %v6538, %v6551
    %v6553 = vcombine.low %v6528, %v6536
    %v6554 = vcombine.high %v6528, %v6536
    %v6556 = vunpack.c.l.s4 1934713408
    %v6557 = vunpack.c.0.s8 %v6556
    %v6558 = vlaneseq
    %v6559 = vshrl.u32 %v6558, 7
    %v6560 = vsub.s32 %v6557, %v6559
    %v6561 = vrot.slane %v6553, %v6560
    %v6563 = vunpack.c.l.s4 1934713408
    %v6564 = vunpack.c.0.s8 %v6563
    %v6565 = vlaneseq
    %v6566 = vshrl.u32 %v6565, 7
    %v6567 = vsub.s32 %v6564, %v6566
    %v6568 = vrot.slane %v6554, %v6567
    %v6569 = vcombine.low %v6545, %v6561
    %v6570 = vcombine.high %v6545, %v6561
    %v6571 = vcombine.low %v6552, %v6568
    %v6572 = vcombine.high %v6552, %v6568
    %v6573 = vcombine.low %v6477, %v6484
    %v6575 = vunpack.c.l.s4 1983009808
    %v6576 = vunpack.c.0.s8 %v6575
    %v6577 = vlaneseq
    %v6578 = vshrl.u32 %v6577, 7
    %v6579 = vsub.s32 %v6576, %v6578
    %v6580 = vrot.slane %v6573, %v6579
    %v6581 = vcombine.low %v6501, %v6502
    %v6583 = vunpack.c.l.s4 1983009808
    %v6584 = vunpack.c.0.s8 %v6583
    %v6585 = vlaneseq
    %v6586 = vshrl.u32 %v6585, 7
    %v6587 = vsub.s32 %v6584, %v6586
    %v6588 = vrot.slane %v6581, %v6587
    %v6589 = vcombine.low %v6493, %v6500
    %v6591 = vunpack.c.l.s4 1983009808
    %v6592 = vunpack.c.0.s8 %v6591
    %v6593 = vlaneseq
    %v6594 = vshrl.u32 %v6593, 7
    %v6595 = vsub.s32 %v6592, %v6594
    %v6596 = vrot.slane %v6589, %v6595
    %v6597 = vcombine.low %v6503, %v6504
    %v6599 = vunpack.c.l.s4 1983009808
    %v6600 = vunpack.c.0.s8 %v6599
    %v6601 = vlaneseq
    %v6602 = vshrl.u32 %v6601, 7
    %v6603 = vsub.s32 %v6600, %v6602
    %v6604 = vrot.slane %v6597, %v6603
    %v6605 = vcombine.low %v6580, %v6588
    %v6606 = vcombine.high %v6580, %v6588
    %v6608 = vunpack.c.l.s4 1934713408
    %v6609 = vunpack.c.0.s8 %v6608
    %v6610 = vlaneseq
    %v6611 = vshrl.u32 %v6610, 7
    %v6612 = vsub.s32 %v6609, %v6611
    %v6613 = vrot.slane %v6605, %v6612
    %v6615 = vunpack.c.l.s4 1934713408
    %v6616 = vunpack.c.0.s8 %v6615
    %v6617 = vlaneseq
    %v6618 = vshrl.u32 %v6617, 7
    %v6619 = vsub.s32 %v6616, %v6618
    %v6620 = vrot.slane %v6606, %v6619
    %v6621 = vcombine.low %v6596, %v6604
    %v6622 = vcombine.high %v6596, %v6604
    %v6624 = vunpack.c.l.s4 1934713408
    %v6625 = vunpack.c.0.s8 %v6624
    %v6626 = vlaneseq
    %v6627 = vshrl.u32 %v6626, 7
    %v6628 = vsub.s32 %v6625, %v6627
    %v6629 = vrot.slane %v6621, %v6628
    %v6631 = vunpack.c.l.s4 1934713408
    %v6632 = vunpack.c.0.s8 %v6631
    %v6633 = vlaneseq
    %v6634 = vshrl.u32 %v6633, 7
    %v6635 = vsub.s32 %v6632, %v6634
    %v6636 = vrot.slane %v6622, %v6635
    %v6637 = vcombine.low %v6613, %v6629
    %v6638 = vcombine.high %v6613, %v6629
    %v6639 = vcombine.low %v6620, %v6636
    %v6640 = vcombine.high %v6620, %v6636
    %v6641 = vpack.c.bf16 %v6569, %v6569
    %v6642 = vpack.c.bf16 %v6570, %v6570
    %v6643 = vpack.c.bf16 %v6571, %v6571
    %v6644 = vpack.c.bf16 %v6572, %v6572
    %v6645 = vpack.c.bf16 %v6637, %v6637
    %v6646 = vpack.c.bf16 %v6638, %v6638
    %v6647 = vpack.c.bf16 %v6639, %v6639
    %v6648 = vpack.c.bf16 %v6640, %v6640
    %6649 = vrot.lane.b32.xlu0 %v6343, 96
    %v6650 = vpop.permute.xlu0 %6649
    %6651 = vrot.lane.b32.xlu0 %v6346, 96
    %v6652 = vpop.permute.xlu0 %6651
    %6653 = vrot.lane.b32.xlu0 %v6352, 96
    %v6654 = vpop.permute.xlu0 %6653
    %6655 = vrot.lane.b32.xlu0 %v6354, 96
    %v6656 = vpop.permute.xlu0 %6655
    %6657 = vrot.lane.b32.xlu0 %v6358, 96
    %v6658 = vpop.permute.xlu0 %6657
    %6659 = vrot.lane.b32.xlu0 %v6360, 96
    %v6660 = vpop.permute.xlu0 %6659
    %6661 = vrot.lane.b32.xlu0 %v6364, 96
    %v6662 = vpop.permute.xlu0 %6661
    %6663 = vrot.lane.b32.xlu0 %v6366, 96
    %v6664 = vpop.permute.xlu0 %6663
    %v6673 = vcombine.low %v6650, %v6658
    %v6674 = vcombine.high %v6650, %v6658
    %v6676 = vunpack.c.l.s4 1983009808
    %v6677 = vunpack.c.0.s8 %v6676
    %v6678 = vlaneseq
    %v6679 = vshrl.u32 %v6678, 7
    %v6680 = vsub.s32 %v6677, %v6679
    %v6681 = vrot.slane %v6673, %v6680
    %v6683 = vunpack.c.l.s4 1983009808
    %v6684 = vunpack.c.0.s8 %v6683
    %v6685 = vlaneseq
    %v6686 = vshrl.u32 %v6685, 7
    %v6687 = vsub.s32 %v6684, %v6686
    %v6688 = vrot.slane %v6674, %v6687
    %v6689 = vcombine.low %v6654, %v6662
    %v6690 = vcombine.high %v6654, %v6662
    %v6692 = vunpack.c.l.s4 1983009808
    %v6693 = vunpack.c.0.s8 %v6692
    %v6694 = vlaneseq
    %v6695 = vshrl.u32 %v6694, 7
    %v6696 = vsub.s32 %v6693, %v6695
    %v6697 = vrot.slane %v6689, %v6696
    %v6699 = vunpack.c.l.s4 1983009808
    %v6700 = vunpack.c.0.s8 %v6699
    %v6701 = vlaneseq
    %v6702 = vshrl.u32 %v6701, 7
    %v6703 = vsub.s32 %v6700, %v6702
    %v6704 = vrot.slane %v6690, %v6703
    %v6705 = vcombine.low %v6681, %v6697
    %v6706 = vcombine.high %v6681, %v6697
    %v6708 = vunpack.c.l.s4 1934713408
    %v6709 = vunpack.c.0.s8 %v6708
    %v6710 = vlaneseq
    %v6711 = vshrl.u32 %v6710, 7
    %v6712 = vsub.s32 %v6709, %v6711
    %v6713 = vrot.slane %v6705, %v6712
    %v6715 = vunpack.c.l.s4 1934713408
    %v6716 = vunpack.c.0.s8 %v6715
    %v6717 = vlaneseq
    %v6718 = vshrl.u32 %v6717, 7
    %v6719 = vsub.s32 %v6716, %v6718
    %v6720 = vrot.slane %v6706, %v6719
    %v6721 = vcombine.low %v6688, %v6704
    %v6722 = vcombine.high %v6688, %v6704
    %v6724 = vunpack.c.l.s4 1934713408
    %v6725 = vunpack.c.0.s8 %v6724
    %v6726 = vlaneseq
    %v6727 = vshrl.u32 %v6726, 7
    %v6728 = vsub.s32 %v6725, %v6727
    %v6729 = vrot.slane %v6721, %v6728
    %v6731 = vunpack.c.l.s4 1934713408
    %v6732 = vunpack.c.0.s8 %v6731
    %v6733 = vlaneseq
    %v6734 = vshrl.u32 %v6733, 7
    %v6735 = vsub.s32 %v6732, %v6734
    %v6736 = vrot.slane %v6722, %v6735
    %v6737 = vcombine.high %v6713, 0.0
    %v6738 = vcombine.high %v6720, 0.0
    %v6739 = vcombine.high %v6729, 0.0
    %v6740 = vcombine.high %v6736, 0.0
    %v6741 = vcombine.low %v6652, %v6660
    %v6742 = vcombine.high %v6652, %v6660
    %v6744 = vunpack.c.l.s4 1983009808
    %v6745 = vunpack.c.0.s8 %v6744
    %v6746 = vlaneseq
    %v6747 = vshrl.u32 %v6746, 7
    %v6748 = vsub.s32 %v6745, %v6747
    %v6749 = vrot.slane %v6741, %v6748
    %v6751 = vunpack.c.l.s4 1983009808
    %v6752 = vunpack.c.0.s8 %v6751
    %v6753 = vlaneseq
    %v6754 = vshrl.u32 %v6753, 7
    %v6755 = vsub.s32 %v6752, %v6754
    %v6756 = vrot.slane %v6742, %v6755
    %v6757 = vcombine.low %v6656, %v6664
    %v6758 = vcombine.high %v6656, %v6664
    %v6760 = vunpack.c.l.s4 1983009808
    %v6761 = vunpack.c.0.s8 %v6760
    %v6762 = vlaneseq
    %v6763 = vshrl.u32 %v6762, 7
    %v6764 = vsub.s32 %v6761, %v6763
    %v6765 = vrot.slane %v6757, %v6764
    %v6767 = vunpack.c.l.s4 1983009808
    %v6768 = vunpack.c.0.s8 %v6767
    %v6769 = vlaneseq
    %v6770 = vshrl.u32 %v6769, 7
    %v6771 = vsub.s32 %v6768, %v6770
    %v6772 = vrot.slane %v6758, %v6771
    %v6773 = vcombine.low %v6749, %v6765
    %v6774 = vcombine.high %v6749, %v6765
    %v6776 = vunpack.c.l.s4 1934713408
    %v6777 = vunpack.c.0.s8 %v6776
    %v6778 = vlaneseq
    %v6779 = vshrl.u32 %v6778, 7
    %v6780 = vsub.s32 %v6777, %v6779
    %v6781 = vrot.slane %v6773, %v6780
    %v6783 = vunpack.c.l.s4 1934713408
    %v6784 = vunpack.c.0.s8 %v6783
    %v6785 = vlaneseq
    %v6786 = vshrl.u32 %v6785, 7
    %v6787 = vsub.s32 %v6784, %v6786
    %v6788 = vrot.slane %v6774, %v6787
    %v6789 = vcombine.low %v6756, %v6772
    %v6790 = vcombine.high %v6756, %v6772
    %v6792 = vunpack.c.l.s4 1934713408
    %v6793 = vunpack.c.0.s8 %v6792
    %v6794 = vlaneseq
    %v6795 = vshrl.u32 %v6794, 7
    %v6796 = vsub.s32 %v6793, %v6795
    %v6797 = vrot.slane %v6789, %v6796
    %v6799 = vunpack.c.l.s4 1934713408
    %v6800 = vunpack.c.0.s8 %v6799
    %v6801 = vlaneseq
    %v6802 = vshrl.u32 %v6801, 7
    %v6803 = vsub.s32 %v6800, %v6802
    %v6804 = vrot.slane %v6790, %v6803
    %v6805 = vcombine.high %v6781, 0.0
    %v6806 = vcombine.high %v6788, 0.0
    %v6807 = vcombine.high %v6797, 0.0
    %v6808 = vcombine.high %v6804, 0.0
    %v6809 = vcombine.low %v6713, %v6720
    %v6811 = vunpack.c.l.s4 1983009808
    %v6812 = vunpack.c.0.s8 %v6811
    %v6813 = vlaneseq
    %v6814 = vshrl.u32 %v6813, 7
    %v6815 = vsub.s32 %v6812, %v6814
    %v6816 = vrot.slane %v6809, %v6815
    %v6817 = vcombine.low %v6737, %v6738
    %v6819 = vunpack.c.l.s4 1983009808
    %v6820 = vunpack.c.0.s8 %v6819
    %v6821 = vlaneseq
    %v6822 = vshrl.u32 %v6821, 7
    %v6823 = vsub.s32 %v6820, %v6822
    %v6824 = vrot.slane %v6817, %v6823
    %v6825 = vcombine.low %v6729, %v6736
    %v6827 = vunpack.c.l.s4 1983009808
    %v6828 = vunpack.c.0.s8 %v6827
    %v6829 = vlaneseq
    %v6830 = vshrl.u32 %v6829, 7
    %v6831 = vsub.s32 %v6828, %v6830
    %v6832 = vrot.slane %v6825, %v6831
    %v6833 = vcombine.low %v6739, %v6740
    %v6835 = vunpack.c.l.s4 1983009808
    %v6836 = vunpack.c.0.s8 %v6835
    %v6837 = vlaneseq
    %v6838 = vshrl.u32 %v6837, 7
    %v6839 = vsub.s32 %v6836, %v6838
    %v6840 = vrot.slane %v6833, %v6839
    %v6841 = vcombine.low %v6816, %v6824
    %v6842 = vcombine.high %v6816, %v6824
    %v6844 = vunpack.c.l.s4 1934713408
    %v6845 = vunpack.c.0.s8 %v6844
    %v6846 = vlaneseq
    %v6847 = vshrl.u32 %v6846, 7
    %v6848 = vsub.s32 %v6845, %v6847
    %v6849 = vrot.slane %v6841, %v6848
    %v6851 = vunpack.c.l.s4 1934713408
    %v6852 = vunpack.c.0.s8 %v6851
    %v6853 = vlaneseq
    %v6854 = vshrl.u32 %v6853, 7
    %v6855 = vsub.s32 %v6852, %v6854
    %v6856 = vrot.slane %v6842, %v6855
    %v6857 = vcombine.low %v6832, %v6840
    %v6858 = vcombine.high %v6832, %v6840
    %v6860 = vunpack.c.l.s4 1934713408
    %v6861 = vunpack.c.0.s8 %v6860
    %v6862 = vlaneseq
    %v6863 = vshrl.u32 %v6862, 7
    %v6864 = vsub.s32 %v6861, %v6863
    %v6865 = vrot.slane %v6857, %v6864
    %v6867 = vunpack.c.l.s4 1934713408
    %v6868 = vunpack.c.0.s8 %v6867
    %v6869 = vlaneseq
    %v6870 = vshrl.u32 %v6869, 7
    %v6871 = vsub.s32 %v6868, %v6870
    %v6872 = vrot.slane %v6858, %v6871
    %v6873 = vcombine.low %v6849, %v6865
    %v6874 = vcombine.high %v6849, %v6865
    %v6875 = vcombine.low %v6856, %v6872
    %v6876 = vcombine.high %v6856, %v6872
    %v6877 = vcombine.low %v6781, %v6788
    %v6879 = vunpack.c.l.s4 1983009808
    %v6880 = vunpack.c.0.s8 %v6879
    %v6881 = vlaneseq
    %v6882 = vshrl.u32 %v6881, 7
    %v6883 = vsub.s32 %v6880, %v6882
    %v6884 = vrot.slane %v6877, %v6883
    %v6885 = vcombine.low %v6805, %v6806
    %v6887 = vunpack.c.l.s4 1983009808
    %v6888 = vunpack.c.0.s8 %v6887
    %v6889 = vlaneseq
    %v6890 = vshrl.u32 %v6889, 7
    %v6891 = vsub.s32 %v6888, %v6890
    %v6892 = vrot.slane %v6885, %v6891
    %v6893 = vcombine.low %v6797, %v6804
    %v6895 = vunpack.c.l.s4 1983009808
    %v6896 = vunpack.c.0.s8 %v6895
    %v6897 = vlaneseq
    %v6898 = vshrl.u32 %v6897, 7
    %v6899 = vsub.s32 %v6896, %v6898
    %v6900 = vrot.slane %v6893, %v6899
    %v6901 = vcombine.low %v6807, %v6808
    %v6903 = vunpack.c.l.s4 1983009808
    %v6904 = vunpack.c.0.s8 %v6903
    %v6905 = vlaneseq
    %v6906 = vshrl.u32 %v6905, 7
    %v6907 = vsub.s32 %v6904, %v6906
    %v6908 = vrot.slane %v6901, %v6907
    %v6909 = vcombine.low %v6884, %v6892
    %v6910 = vcombine.high %v6884, %v6892
    %v6912 = vunpack.c.l.s4 1934713408
    %v6913 = vunpack.c.0.s8 %v6912
    %v6914 = vlaneseq
    %v6915 = vshrl.u32 %v6914, 7
    %v6916 = vsub.s32 %v6913, %v6915
    %v6917 = vrot.slane %v6909, %v6916
    %v6919 = vunpack.c.l.s4 1934713408
    %v6920 = vunpack.c.0.s8 %v6919
    %v6921 = vlaneseq
    %v6922 = vshrl.u32 %v6921, 7
    %v6923 = vsub.s32 %v6920, %v6922
    %v6924 = vrot.slane %v6910, %v6923
    %v6925 = vcombine.low %v6900, %v6908
    %v6926 = vcombine.high %v6900, %v6908
    %v6928 = vunpack.c.l.s4 1934713408
    %v6929 = vunpack.c.0.s8 %v6928
    %v6930 = vlaneseq
    %v6931 = vshrl.u32 %v6930, 7
    %v6932 = vsub.s32 %v6929, %v6931
    %v6933 = vrot.slane %v6925, %v6932
    %v6935 = vunpack.c.l.s4 1934713408
    %v6936 = vunpack.c.0.s8 %v6935
    %v6937 = vlaneseq
    %v6938 = vshrl.u32 %v6937, 7
    %v6939 = vsub.s32 %v6936, %v6938
    %v6940 = vrot.slane %v6926, %v6939
    %v6941 = vcombine.low %v6917, %v6933
    %v6942 = vcombine.high %v6917, %v6933
    %v6943 = vcombine.low %v6924, %v6940
    %v6944 = vcombine.high %v6924, %v6940
    %v6945 = vpack.c.bf16 %v6873, %v6873
    %v6946 = vpack.c.bf16 %v6874, %v6874
    %v6947 = vpack.c.bf16 %v6875, %v6875
    %v6948 = vpack.c.bf16 %v6876, %v6876
    %v6949 = vpack.c.bf16 %v6941, %v6941
    %v6950 = vpack.c.bf16 %v6942, %v6942
    %v6951 = vpack.c.bf16 %v6943, %v6943
    %v6952 = vpack.c.bf16 %v6944, %v6944
    %6953 = vrot.lane.b32.xlu0 %v6343, 64
    %v6954 = vpop.permute.xlu0 %6953
    %6955 = vrot.lane.b32.xlu0 %v6346, 64
    %v6956 = vpop.permute.xlu0 %6955
    %6957 = vrot.lane.b32.xlu0 %v6352, 64
    %v6958 = vpop.permute.xlu0 %6957
    %6959 = vrot.lane.b32.xlu0 %v6354, 64
    %v6960 = vpop.permute.xlu0 %6959
    %6961 = vrot.lane.b32.xlu0 %v6358, 64
    %v6962 = vpop.permute.xlu0 %6961
    %6963 = vrot.lane.b32.xlu0 %v6360, 64
    %v6964 = vpop.permute.xlu0 %6963
    %6965 = vrot.lane.b32.xlu0 %v6364, 64
    %v6966 = vpop.permute.xlu0 %6965
    %6967 = vrot.lane.b32.xlu0 %v6366, 64
    %v6968 = vpop.permute.xlu0 %6967
    %v6977 = vcombine.low %v6954, %v6962
    %v6978 = vcombine.high %v6954, %v6962
    %v6980 = vunpack.c.l.s4 1983009808
    %v6981 = vunpack.c.0.s8 %v6980
    %v6982 = vlaneseq
    %v6983 = vshrl.u32 %v6982, 7
    %v6984 = vsub.s32 %v6981, %v6983
    %v6985 = vrot.slane %v6977, %v6984
    %v6987 = vunpack.c.l.s4 1983009808
    %v6988 = vunpack.c.0.s8 %v6987
    %v6989 = vlaneseq
    %v6990 = vshrl.u32 %v6989, 7
    %v6991 = vsub.s32 %v6988, %v6990
    %v6992 = vrot.slane %v6978, %v6991
    %v6993 = vcombine.low %v6958, %v6966
    %v6994 = vcombine.high %v6958, %v6966
    %v6996 = vunpack.c.l.s4 1983009808
    %v6997 = vunpack.c.0.s8 %v6996
    %v6998 = vlaneseq
    %v6999 = vshrl.u32 %v6998, 7
    %v7000 = vsub.s32 %v6997, %v6999
    %v7001 = vrot.slane %v6993, %v7000
    %v7003 = vunpack.c.l.s4 1983009808
    %v7004 = vunpack.c.0.s8 %v7003
    %v7005 = vlaneseq
    %v7006 = vshrl.u32 %v7005, 7
    %v7007 = vsub.s32 %v7004, %v7006
    %v7008 = vrot.slane %v6994, %v7007
    %v7009 = vcombine.low %v6985, %v7001
    %v7010 = vcombine.high %v6985, %v7001
    %v7012 = vunpack.c.l.s4 1934713408
    %v7013 = vunpack.c.0.s8 %v7012
    %v7014 = vlaneseq
    %v7015 = vshrl.u32 %v7014, 7
    %v7016 = vsub.s32 %v7013, %v7015
    %v7017 = vrot.slane %v7009, %v7016
    %v7019 = vunpack.c.l.s4 1934713408
    %v7020 = vunpack.c.0.s8 %v7019
    %v7021 = vlaneseq
    %v7022 = vshrl.u32 %v7021, 7
    %v7023 = vsub.s32 %v7020, %v7022
    %v7024 = vrot.slane %v7010, %v7023
    %v7025 = vcombine.low %v6992, %v7008
    %v7026 = vcombine.high %v6992, %v7008
    %v7028 = vunpack.c.l.s4 1934713408
    %v7029 = vunpack.c.0.s8 %v7028
    %v7030 = vlaneseq
    %v7031 = vshrl.u32 %v7030, 7
    %v7032 = vsub.s32 %v7029, %v7031
    %v7033 = vrot.slane %v7025, %v7032
    %v7035 = vunpack.c.l.s4 1934713408
    %v7036 = vunpack.c.0.s8 %v7035
    %v7037 = vlaneseq
    %v7038 = vshrl.u32 %v7037, 7
    %v7039 = vsub.s32 %v7036, %v7038
    %v7040 = vrot.slane %v7026, %v7039
    %v7041 = vcombine.high %v7017, 0.0
    %v7042 = vcombine.high %v7024, 0.0
    %v7043 = vcombine.high %v7033, 0.0
    %v7044 = vcombine.high %v7040, 0.0
    %v7045 = vcombine.low %v6956, %v6964
    %v7046 = vcombine.high %v6956, %v6964
    %v7048 = vunpack.c.l.s4 1983009808
    %v7049 = vunpack.c.0.s8 %v7048
    %v7050 = vlaneseq
    %v7051 = vshrl.u32 %v7050, 7
    %v7052 = vsub.s32 %v7049, %v7051
    %v7053 = vrot.slane %v7045, %v7052
    %v7055 = vunpack.c.l.s4 1983009808
    %v7056 = vunpack.c.0.s8 %v7055
    %v7057 = vlaneseq
    %v7058 = vshrl.u32 %v7057, 7
    %v7059 = vsub.s32 %v7056, %v7058
    %v7060 = vrot.slane %v7046, %v7059
    %v7061 = vcombine.low %v6960, %v6968
    %v7062 = vcombine.high %v6960, %v6968
    %v7064 = vunpack.c.l.s4 1983009808
    %v7065 = vunpack.c.0.s8 %v7064
    %v7066 = vlaneseq
    %v7067 = vshrl.u32 %v7066, 7
    %v7068 = vsub.s32 %v7065, %v7067
    %v7069 = vrot.slane %v7061, %v7068
    %v7071 = vunpack.c.l.s4 1983009808
    %v7072 = vunpack.c.0.s8 %v7071
    %v7073 = vlaneseq
    %v7074 = vshrl.u32 %v7073, 7
    %v7075 = vsub.s32 %v7072, %v7074
    %v7076 = vrot.slane %v7062, %v7075
    %v7077 = vcombine.low %v7053, %v7069
    %v7078 = vcombine.high %v7053, %v7069
    %v7080 = vunpack.c.l.s4 1934713408
    %v7081 = vunpack.c.0.s8 %v7080
    %v7082 = vlaneseq
    %v7083 = vshrl.u32 %v7082, 7
    %v7084 = vsub.s32 %v7081, %v7083
    %v7085 = vrot.slane %v7077, %v7084
    %v7087 = vunpack.c.l.s4 1934713408
    %v7088 = vunpack.c.0.s8 %v7087
    %v7089 = vlaneseq
    %v7090 = vshrl.u32 %v7089, 7
    %v7091 = vsub.s32 %v7088, %v7090
    %v7092 = vrot.slane %v7078, %v7091
    %v7093 = vcombine.low %v7060, %v7076
    %v7094 = vcombine.high %v7060, %v7076
    %v7096 = vunpack.c.l.s4 1934713408
    %v7097 = vunpack.c.0.s8 %v7096
    %v7098 = vlaneseq
    %v7099 = vshrl.u32 %v7098, 7
    %v7100 = vsub.s32 %v7097, %v7099
    %v7101 = vrot.slane %v7093, %v7100
    %v7103 = vunpack.c.l.s4 1934713408
    %v7104 = vunpack.c.0.s8 %v7103
    %v7105 = vlaneseq
    %v7106 = vshrl.u32 %v7105, 7
    %v7107 = vsub.s32 %v7104, %v7106
    %v7108 = vrot.slane %v7094, %v7107
    %v7109 = vcombine.high %v7085, 0.0
    %v7110 = vcombine.high %v7092, 0.0
    %v7111 = vcombine.high %v7101, 0.0
    %v7112 = vcombine.high %v7108, 0.0
    %v7113 = vcombine.low %v7017, %v7024
    %v7115 = vunpack.c.l.s4 1983009808
    %v7116 = vunpack.c.0.s8 %v7115
    %v7117 = vlaneseq
    %v7118 = vshrl.u32 %v7117, 7
    %v7119 = vsub.s32 %v7116, %v7118
    %v7120 = vrot.slane %v7113, %v7119
    %v7121 = vcombine.low %v7041, %v7042
    %v7123 = vunpack.c.l.s4 1983009808
    %v7124 = vunpack.c.0.s8 %v7123
    %v7125 = vlaneseq
    %v7126 = vshrl.u32 %v7125, 7
    %v7127 = vsub.s32 %v7124, %v7126
    %v7128 = vrot.slane %v7121, %v7127
    %v7129 = vcombine.low %v7033, %v7040
    %v7131 = vunpack.c.l.s4 1983009808
    %v7132 = vunpack.c.0.s8 %v7131
    %v7133 = vlaneseq
    %v7134 = vshrl.u32 %v7133, 7
    %v7135 = vsub.s32 %v7132, %v7134
    %v7136 = vrot.slane %v7129, %v7135
    %v7137 = vcombine.low %v7043, %v7044
    %v7139 = vunpack.c.l.s4 1983009808
    %v7140 = vunpack.c.0.s8 %v7139
    %v7141 = vlaneseq
    %v7142 = vshrl.u32 %v7141, 7
    %v7143 = vsub.s32 %v7140, %v7142
    %v7144 = vrot.slane %v7137, %v7143
    %v7145 = vcombine.low %v7120, %v7128
    %v7146 = vcombine.high %v7120, %v7128
    %v7148 = vunpack.c.l.s4 1934713408
    %v7149 = vunpack.c.0.s8 %v7148
    %v7150 = vlaneseq
    %v7151 = vshrl.u32 %v7150, 7
    %v7152 = vsub.s32 %v7149, %v7151
    %v7153 = vrot.slane %v7145, %v7152
    %v7155 = vunpack.c.l.s4 1934713408
    %v7156 = vunpack.c.0.s8 %v7155
    %v7157 = vlaneseq
    %v7158 = vshrl.u32 %v7157, 7
    %v7159 = vsub.s32 %v7156, %v7158
    %v7160 = vrot.slane %v7146, %v7159
    %v7161 = vcombine.low %v7136, %v7144
    %v7162 = vcombine.high %v7136, %v7144
    %v7164 = vunpack.c.l.s4 1934713408
    %v7165 = vunpack.c.0.s8 %v7164
    %v7166 = vlaneseq
    %v7167 = vshrl.u32 %v7166, 7
    %v7168 = vsub.s32 %v7165, %v7167
    %v7169 = vrot.slane %v7161, %v7168
    %v7171 = vunpack.c.l.s4 1934713408
    %v7172 = vunpack.c.0.s8 %v7171
    %v7173 = vlaneseq
    %v7174 = vshrl.u32 %v7173, 7
    %v7175 = vsub.s32 %v7172, %v7174
    %v7176 = vrot.slane %v7162, %v7175
    %v7177 = vcombine.low %v7153, %v7169
    %v7178 = vcombine.high %v7153, %v7169
    %v7179 = vcombine.low %v7160, %v7176
    %v7180 = vcombine.high %v7160, %v7176
    %v7181 = vcombine.low %v7085, %v7092
    %v7183 = vunpack.c.l.s4 1983009808
    %v7184 = vunpack.c.0.s8 %v7183
    %v7185 = vlaneseq
    %v7186 = vshrl.u32 %v7185, 7
    %v7187 = vsub.s32 %v7184, %v7186
    %v7188 = vrot.slane %v7181, %v7187
    %v7189 = vcombine.low %v7109, %v7110
    %v7191 = vunpack.c.l.s4 1983009808
    %v7192 = vunpack.c.0.s8 %v7191
    %v7193 = vlaneseq
    %v7194 = vshrl.u32 %v7193, 7
    %v7195 = vsub.s32 %v7192, %v7194
    %v7196 = vrot.slane %v7189, %v7195
    %v7197 = vcombine.low %v7101, %v7108
    %v7199 = vunpack.c.l.s4 1983009808
    %v7200 = vunpack.c.0.s8 %v7199
    %v7201 = vlaneseq
    %v7202 = vshrl.u32 %v7201, 7
    %v7203 = vsub.s32 %v7200, %v7202
    %v7204 = vrot.slane %v7197, %v7203
    %v7205 = vcombine.low %v7111, %v7112
    %v7207 = vunpack.c.l.s4 1983009808
    %v7208 = vunpack.c.0.s8 %v7207
    %v7209 = vlaneseq
    %v7210 = vshrl.u32 %v7209, 7
    %v7211 = vsub.s32 %v7208, %v7210
    %v7212 = vrot.slane %v7205, %v7211
    %v7213 = vcombine.low %v7188, %v7196
    %v7214 = vcombine.high %v7188, %v7196
    %v7216 = vunpack.c.l.s4 1934713408
    %v7217 = vunpack.c.0.s8 %v7216
    %v7218 = vlaneseq
    %v7219 = vshrl.u32 %v7218, 7
    %v7220 = vsub.s32 %v7217, %v7219
    %v7221 = vrot.slane %v7213, %v7220
    %v7223 = vunpack.c.l.s4 1934713408
    %v7224 = vunpack.c.0.s8 %v7223
    %v7225 = vlaneseq
    %v7226 = vshrl.u32 %v7225, 7
    %v7227 = vsub.s32 %v7224, %v7226
    %v7228 = vrot.slane %v7214, %v7227
    %v7229 = vcombine.low %v7204, %v7212
    %v7230 = vcombine.high %v7204, %v7212
    %v7232 = vunpack.c.l.s4 1934713408
    %v7233 = vunpack.c.0.s8 %v7232
    %v7234 = vlaneseq
    %v7235 = vshrl.u32 %v7234, 7
    %v7236 = vsub.s32 %v7233, %v7235
    %v7237 = vrot.slane %v7229, %v7236
    %v7239 = vunpack.c.l.s4 1934713408
    %v7240 = vunpack.c.0.s8 %v7239
    %v7241 = vlaneseq
    %v7242 = vshrl.u32 %v7241, 7
    %v7243 = vsub.s32 %v7240, %v7242
    %v7244 = vrot.slane %v7230, %v7243
    %v7245 = vcombine.low %v7221, %v7237
    %v7246 = vcombine.high %v7221, %v7237
    %v7247 = vcombine.low %v7228, %v7244
    %v7248 = vcombine.high %v7228, %v7244
    %v7249 = vpack.c.bf16 %v7177, %v7177
    %v7250 = vpack.c.bf16 %v7178, %v7178
    %v7251 = vpack.c.bf16 %v7179, %v7179
    %v7252 = vpack.c.bf16 %v7180, %v7180
    %v7253 = vpack.c.bf16 %v7245, %v7245
    %v7254 = vpack.c.bf16 %v7246, %v7246
    %v7255 = vpack.c.bf16 %v7247, %v7247
    %v7256 = vpack.c.bf16 %v7248, %v7248
    %v7258 = vsel %vm1274, %v6641, 0
    %v7261 = vsel %vm1274, %v6945, 0
    %7263 = vmatprep.subr.bf16.mxu0 0
    %7264 = vmatpush1.bf16.xpose.msra.mxu0 %v7261
    %7265 = vmatprep.subr.bf16.mxu0 0
    %7266 = vmatpush1.bf16.xpose.msra.mxu0 0
    %7267 = vmatprep.subr.bf16.mxu0 0
    %7268 = vmatpush1.bf16.xpose.msra.mxu0 0
    %7269 = vmatprep.subr.bf16.mxu0 0
    %7270 = vmatpush1.bf16.xpose.msra.mxu0 0
    %7271 = vmatprep.subr.bf16.mxu0 0
    %7272 = vmatpush1.bf16.xpose.msra.mxu0 0
    %7273 = vmatprep.subr.bf16.mxu0 0
    %7274 = vmatpush1.bf16.xpose.msra.mxu0 0
    %7275 = vmatprep.subr.bf16.mxu0 0
    %7276 = vmatpush1.bf16.xpose.msra.mxu0 0
    %7277 = vmatprep.subr.bf16.mxu0 0
    %7278 = vmatpush1.bf16.xpose.msra.mxu0 0
    %7279 = vmatprep.subr.bf16.mxu0 0
    %7280 = vmatpush1.bf16.xpose.msra.mxu0 0
    %7281 = vmatprep.subr.bf16.mxu0 0
    %7282 = vmatpush1.bf16.xpose.msra.mxu0 0
    %7283 = vmatprep.subr.bf16.mxu0 0
    %7284 = vmatpush1.bf16.xpose.msra.mxu0 0
    %7285 = vmatprep.subr.bf16.mxu0 0
    %7286 = vmatpush1.bf16.xpose.msra.mxu0 0
    %7287 = vmatprep.subr.bf16.mxu0 0
    %7288 = vmatpush1.bf16.xpose.msra.mxu0 0
    %7289 = vmatprep.subr.bf16.mxu0 0
    %7290 = vmatpush1.bf16.xpose.msra.mxu0 0
    %7291 = vmatprep.subr.bf16.mxu0 0
    %7292 = vmatpush1.bf16.xpose.msra.mxu0 0
    %7293 = vmatprep.subr.bf16.mxu0 0
    %7294 = vmatpush1.bf16.xpose.msra.mxu0 0
    %7295 = vmatprep.mubr.bf16.mxu0 0
    %7296 = vmatmul.mubr.bf16.gmra.mrb[0].mxu0 %v7258
    %v7297 = vpop.f32.mrb[0].mxu0
    %v7298 = vadd.f32 0.0, %v7297
    %v7299 = vpop.f32.mrb[0].mxu0
    %v7300 = vpop.f32.mrb[0].mxu0
    %v7301 = vpop.f32.mrb[0].mxu0
    %7302 = vdwg.mxu0
    %v7304 = vsel %vm1274, %v6642, 0
    %v7307 = vsel %vm1274, %v6946, 0
    %7309 = vmatprep.subr.bf16.mxu0 0
    %7310 = vmatpush1.bf16.xpose.msra.mxu0 %v7307
    %7311 = vmatprep.subr.bf16.mxu0 0
    %7312 = vmatpush1.bf16.xpose.msra.mxu0 0
    %7313 = vmatprep.subr.bf16.mxu0 0
    %7314 = vmatpush1.bf16.xpose.msra.mxu0 0
    %7315 = vmatprep.subr.bf16.mxu0 0
    %7316 = vmatpush1.bf16.xpose.msra.mxu0 0
    %7317 = vmatprep.subr.bf16.mxu0 0
    %7318 = vmatpush1.bf16.xpose.msra.mxu0 0
    %7319 = vmatprep.subr.bf16.mxu0 0
    %7320 = vmatpush1.bf16.xpose.msra.mxu0 0
    %7321 = vmatprep.subr.bf16.mxu0 0
    %7322 = vmatpush1.bf16.xpose.msra.mxu0 0
    %7323 = vmatprep.subr.bf16.mxu0 0
    %7324 = vmatpush1.bf16.xpose.msra.mxu0 0
    %7325 = vmatprep.subr.bf16.mxu0 0
    %7326 = vmatpush1.bf16.xpose.msra.mxu0 0
    %7327 = vmatprep.subr.bf16.mxu0 0
    %7328 = vmatpush1.bf16.xpose.msra.mxu0 0
    %7329 = vmatprep.subr.bf16.mxu0 0
    %7330 = vmatpush1.bf16.xpose.msra.mxu0 0
    %7331 = vmatprep.subr.bf16.mxu0 0
    %7332 = vmatpush1.bf16.xpose.msra.mxu0 0
    %7333 = vmatprep.subr.bf16.mxu0 0
    %7334 = vmatpush1.bf16.xpose.msra.mxu0 0
    %7335 = vmatprep.subr.bf16.mxu0 0
    %7336 = vmatpush1.bf16.xpose.msra.mxu0 0
    %7337 = vmatprep.subr.bf16.mxu0 0
    %7338 = vmatpush1.bf16.xpose.msra.mxu0 0
    %7339 = vmatprep.subr.bf16.mxu0 0
    %7340 = vmatpush1.bf16.xpose.msra.mxu0 0
    %7341 = vmatprep.mubr.bf16.mxu0 0
    %7342 = vmatmul.mubr.bf16.gmra.mrb[0].mxu0 %v7304
    %v7343 = vpop.f32.mrb[0].mxu0
    %v7344 = vadd.f32 0.0, %v7343
    %v7345 = vpop.f32.mrb[0].mxu0
    %v7346 = vpop.f32.mrb[0].mxu0
    %v7347 = vpop.f32.mrb[0].mxu0
    %7348 = vdwg.mxu0
    %v7350 = vsel %vm1274, %v6643, 0
    %v7353 = vsel %vm1274, %v6947, 0
    %7355 = vmatprep.subr.bf16.mxu0 0
    %7356 = vmatpush1.bf16.xpose.msra.mxu0 %v7353
    %7357 = vmatprep.subr.bf16.mxu0 0
    %7358 = vmatpush1.bf16.xpose.msra.mxu0 0
    %7359 = vmatprep.subr.bf16.mxu0 0
    %7360 = vmatpush1.bf16.xpose.msra.mxu0 0
    %7361 = vmatprep.subr.bf16.mxu0 0
    %7362 = vmatpush1.bf16.xpose.msra.mxu0 0
    %7363 = vmatprep.subr.bf16.mxu0 0
    %7364 = vmatpush1.bf16.xpose.msra.mxu0 0
    %7365 = vmatprep.subr.bf16.mxu0 0
    %7366 = vmatpush1.bf16.xpose.msra.mxu0 0
    %7367 = vmatprep.subr.bf16.mxu0 0
    %7368 = vmatpush1.bf16.xpose.msra.mxu0 0
    %7369 = vmatprep.subr.bf16.mxu0 0
    %7370 = vmatpush1.bf16.xpose.msra.mxu0 0
    %7371 = vmatprep.subr.bf16.mxu0 0
    %7372 = vmatpush1.bf16.xpose.msra.mxu0 0
    %7373 = vmatprep.subr.bf16.mxu0 0
    %7374 = vmatpush1.bf16.xpose.msra.mxu0 0
    %7375 = vmatprep.subr.bf16.mxu0 0
    %7376 = vmatpush1.bf16.xpose.msra.mxu0 0
    %7377 = vmatprep.subr.bf16.mxu0 0
    %7378 = vmatpush1.bf16.xpose.msra.mxu0 0
    %7379 = vmatprep.subr.bf16.mxu0 0
    %7380 = vmatpush1.bf16.xpose.msra.mxu0 0
    %7381 = vmatprep.subr.bf16.mxu0 0
    %7382 = vmatpush1.bf16.xpose.msra.mxu0 0
    %7383 = vmatprep.subr.bf16.mxu0 0
    %7384 = vmatpush1.bf16.xpose.msra.mxu0 0
    %7385 = vmatprep.subr.bf16.mxu0 0
    %7386 = vmatpush1.bf16.xpose.msra.mxu0 0
    %7387 = vmatprep.mubr.bf16.mxu0 0
    %7388 = vmatmul.mubr.bf16.gmra.mrb[0].mxu0 %v7350
    %v7389 = vpop.f32.mrb[0].mxu0
    %v7390 = vadd.f32 0.0, %v7389
    %v7391 = vpop.f32.mrb[0].mxu0
    %v7392 = vpop.f32.mrb[0].mxu0
    %v7393 = vpop.f32.mrb[0].mxu0
    %7394 = vdwg.mxu0
    %v7396 = vsel %vm1274, %v6644, 0
    %v7399 = vsel %vm1274, %v6948, 0
    %7401 = vmatprep.subr.bf16.mxu0 0
    %7402 = vmatpush1.bf16.xpose.msra.mxu0 %v7399
    %7403 = vmatprep.subr.bf16.mxu0 0
    %7404 = vmatpush1.bf16.xpose.msra.mxu0 0
    %7405 = vmatprep.subr.bf16.mxu0 0
    %7406 = vmatpush1.bf16.xpose.msra.mxu0 0
    %7407 = vmatprep.subr.bf16.mxu0 0
    %7408 = vmatpush1.bf16.xpose.msra.mxu0 0
    %7409 = vmatprep.subr.bf16.mxu0 0
    %7410 = vmatpush1.bf16.xpose.msra.mxu0 0
    %7411 = vmatprep.subr.bf16.mxu0 0
    %7412 = vmatpush1.bf16.xpose.msra.mxu0 0
    %7413 = vmatprep.subr.bf16.mxu0 0
    %7414 = vmatpush1.bf16.xpose.msra.mxu0 0
    %7415 = vmatprep.subr.bf16.mxu0 0
    %7416 = vmatpush1.bf16.xpose.msra.mxu0 0
    %7417 = vmatprep.subr.bf16.mxu0 0
    %7418 = vmatpush1.bf16.xpose.msra.mxu0 0
    %7419 = vmatprep.subr.bf16.mxu0 0
    %7420 = vmatpush1.bf16.xpose.msra.mxu0 0
    %7421 = vmatprep.subr.bf16.mxu0 0
    %7422 = vmatpush1.bf16.xpose.msra.mxu0 0
    %7423 = vmatprep.subr.bf16.mxu0 0
    %7424 = vmatpush1.bf16.xpose.msra.mxu0 0
    %7425 = vmatprep.subr.bf16.mxu0 0
    %7426 = vmatpush1.bf16.xpose.msra.mxu0 0
    %7427 = vmatprep.subr.bf16.mxu0 0
    %7428 = vmatpush1.bf16.xpose.msra.mxu0 0
    %7429 = vmatprep.subr.bf16.mxu0 0
    %7430 = vmatpush1.bf16.xpose.msra.mxu0 0
    %7431 = vmatprep.subr.bf16.mxu0 0
    %7432 = vmatpush1.bf16.xpose.msra.mxu0 0
    %7433 = vmatprep.mubr.bf16.mxu0 0
    %7434 = vmatmul.mubr.bf16.gmra.mrb[0].mxu0 %v7396
    %v7435 = vpop.f32.mrb[0].mxu0
    %v7436 = vadd.f32 0.0, %v7435
    %v7437 = vpop.f32.mrb[0].mxu0
    %v7438 = vpop.f32.mrb[0].mxu0
    %v7439 = vpop.f32.mrb[0].mxu0
    %7440 = vdwg.mxu0
    %v7442 = vsel %vm1274, %v6645, 0
    %v7445 = vsel %vm1274, %v6949, 0
    %7447 = vmatprep.subr.bf16.mxu0 0
    %7448 = vmatpush1.bf16.xpose.msra.mxu0 %v7445
    %7449 = vmatprep.subr.bf16.mxu0 0
    %7450 = vmatpush1.bf16.xpose.msra.mxu0 0
    %7451 = vmatprep.subr.bf16.mxu0 0
    %7452 = vmatpush1.bf16.xpose.msra.mxu0 0
    %7453 = vmatprep.subr.bf16.mxu0 0
    %7454 = vmatpush1.bf16.xpose.msra.mxu0 0
    %7455 = vmatprep.subr.bf16.mxu0 0
    %7456 = vmatpush1.bf16.xpose.msra.mxu0 0
    %7457 = vmatprep.subr.bf16.mxu0 0
    %7458 = vmatpush1.bf16.xpose.msra.mxu0 0
    %7459 = vmatprep.subr.bf16.mxu0 0
    %7460 = vmatpush1.bf16.xpose.msra.mxu0 0
    %7461 = vmatprep.subr.bf16.mxu0 0
    %7462 = vmatpush1.bf16.xpose.msra.mxu0 0
    %7463 = vmatprep.subr.bf16.mxu0 0
    %7464 = vmatpush1.bf16.xpose.msra.mxu0 0
    %7465 = vmatprep.subr.bf16.mxu0 0
    %7466 = vmatpush1.bf16.xpose.msra.mxu0 0
    %7467 = vmatprep.subr.bf16.mxu0 0
    %7468 = vmatpush1.bf16.xpose.msra.mxu0 0
    %7469 = vmatprep.subr.bf16.mxu0 0
    %7470 = vmatpush1.bf16.xpose.msra.mxu0 0
    %7471 = vmatprep.subr.bf16.mxu0 0
    %7472 = vmatpush1.bf16.xpose.msra.mxu0 0
    %7473 = vmatprep.subr.bf16.mxu0 0
    %7474 = vmatpush1.bf16.xpose.msra.mxu0 0
    %7475 = vmatprep.subr.bf16.mxu0 0
    %7476 = vmatpush1.bf16.xpose.msra.mxu0 0
    %7477 = vmatprep.subr.bf16.mxu0 0
    %7478 = vmatpush1.bf16.xpose.msra.mxu0 0
    %7479 = vmatprep.mubr.bf16.mxu0 0
    %7480 = vmatmul.mubr.bf16.gmra.mrb[0].mxu0 %v7442
    %v7481 = vpop.f32.mrb[0].mxu0
    %v7482 = vadd.f32 0.0, %v7481
    %v7483 = vpop.f32.mrb[0].mxu0
    %v7484 = vpop.f32.mrb[0].mxu0
    %v7485 = vpop.f32.mrb[0].mxu0
    %7486 = vdwg.mxu0
    %v7488 = vsel %vm1274, %v6646, 0
    %v7491 = vsel %vm1274, %v6950, 0
    %7493 = vmatprep.subr.bf16.mxu0 0
    %7494 = vmatpush1.bf16.xpose.msra.mxu0 %v7491
    %7495 = vmatprep.subr.bf16.mxu0 0
    %7496 = vmatpush1.bf16.xpose.msra.mxu0 0
    %7497 = vmatprep.subr.bf16.mxu0 0
    %7498 = vmatpush1.bf16.xpose.msra.mxu0 0
    %7499 = vmatprep.subr.bf16.mxu0 0
    %7500 = vmatpush1.bf16.xpose.msra.mxu0 0
    %7501 = vmatprep.subr.bf16.mxu0 0
    %7502 = vmatpush1.bf16.xpose.msra.mxu0 0
    %7503 = vmatprep.subr.bf16.mxu0 0
    %7504 = vmatpush1.bf16.xpose.msra.mxu0 0
    %7505 = vmatprep.subr.bf16.mxu0 0
    %7506 = vmatpush1.bf16.xpose.msra.mxu0 0
    %7507 = vmatprep.subr.bf16.mxu0 0
    %7508 = vmatpush1.bf16.xpose.msra.mxu0 0
    %7509 = vmatprep.subr.bf16.mxu0 0
    %7510 = vmatpush1.bf16.xpose.msra.mxu0 0
    %7511 = vmatprep.subr.bf16.mxu0 0
    %7512 = vmatpush1.bf16.xpose.msra.mxu0 0
    %7513 = vmatprep.subr.bf16.mxu0 0
    %7514 = vmatpush1.bf16.xpose.msra.mxu0 0
    %7515 = vmatprep.subr.bf16.mxu0 0
    %7516 = vmatpush1.bf16.xpose.msra.mxu0 0
    %7517 = vmatprep.subr.bf16.mxu0 0
    %7518 = vmatpush1.bf16.xpose.msra.mxu0 0
    %7519 = vmatprep.subr.bf16.mxu0 0
    %7520 = vmatpush1.bf16.xpose.msra.mxu0 0
    %7521 = vmatprep.subr.bf16.mxu0 0
    %7522 = vmatpush1.bf16.xpose.msra.mxu0 0
    %7523 = vmatprep.subr.bf16.mxu0 0
    %7524 = vmatpush1.bf16.xpose.msra.mxu0 0
    %7525 = vmatprep.mubr.bf16.mxu0 0
    %7526 = vmatmul.mubr.bf16.gmra.mrb[0].mxu0 %v7488
    %v7527 = vpop.f32.mrb[0].mxu0
    %v7528 = vadd.f32 0.0, %v7527
    %v7529 = vpop.f32.mrb[0].mxu0
    %v7530 = vpop.f32.mrb[0].mxu0
    %v7531 = vpop.f32.mrb[0].mxu0
    %7532 = vdwg.mxu0
    %v7534 = vsel %vm1274, %v6647, 0
    %v7537 = vsel %vm1274, %v6951, 0
    %7539 = vmatprep.subr.bf16.mxu0 0
    %7540 = vmatpush1.bf16.xpose.msra.mxu0 %v7537
    %7541 = vmatprep.subr.bf16.mxu0 0
    %7542 = vmatpush1.bf16.xpose.msra.mxu0 0
    %7543 = vmatprep.subr.bf16.mxu0 0
    %7544 = vmatpush1.bf16.xpose.msra.mxu0 0
    %7545 = vmatprep.subr.bf16.mxu0 0
    %7546 = vmatpush1.bf16.xpose.msra.mxu0 0
    %7547 = vmatprep.subr.bf16.mxu0 0
    %7548 = vmatpush1.bf16.xpose.msra.mxu0 0
    %7549 = vmatprep.subr.bf16.mxu0 0
    %7550 = vmatpush1.bf16.xpose.msra.mxu0 0
    %7551 = vmatprep.subr.bf16.mxu0 0
    %7552 = vmatpush1.bf16.xpose.msra.mxu0 0
    %7553 = vmatprep.subr.bf16.mxu0 0
    %7554 = vmatpush1.bf16.xpose.msra.mxu0 0
    %7555 = vmatprep.subr.bf16.mxu0 0
    %7556 = vmatpush1.bf16.xpose.msra.mxu0 0
    %7557 = vmatprep.subr.bf16.mxu0 0
    %7558 = vmatpush1.bf16.xpose.msra.mxu0 0
    %7559 = vmatprep.subr.bf16.mxu0 0
    %7560 = vmatpush1.bf16.xpose.msra.mxu0 0
    %7561 = vmatprep.subr.bf16.mxu0 0
    %7562 = vmatpush1.bf16.xpose.msra.mxu0 0
    %7563 = vmatprep.subr.bf16.mxu0 0
    %7564 = vmatpush1.bf16.xpose.msra.mxu0 0
    %7565 = vmatprep.subr.bf16.mxu0 0
    %7566 = vmatpush1.bf16.xpose.msra.mxu0 0
    %7567 = vmatprep.subr.bf16.mxu0 0
    %7568 = vmatpush1.bf16.xpose.msra.mxu0 0
    %7569 = vmatprep.subr.bf16.mxu0 0
    %7570 = vmatpush1.bf16.xpose.msra.mxu0 0
    %7571 = vmatprep.mubr.bf16.mxu0 0
    %7572 = vmatmul.mubr.bf16.gmra.mrb[0].mxu0 %v7534
    %v7573 = vpop.f32.mrb[0].mxu0
    %v7574 = vadd.f32 0.0, %v7573
    %v7575 = vpop.f32.mrb[0].mxu0
    %v7576 = vpop.f32.mrb[0].mxu0
    %v7577 = vpop.f32.mrb[0].mxu0
    %7578 = vdwg.mxu0
    %v7580 = vsel %vm1274, %v6648, 0
    %v7583 = vsel %vm1274, %v6952, 0
    %7585 = vmatprep.subr.bf16.mxu0 0
    %7586 = vmatpush1.bf16.xpose.msra.mxu0 %v7583
    %7587 = vmatprep.subr.bf16.mxu0 0
    %7588 = vmatpush1.bf16.xpose.msra.mxu0 0
    %7589 = vmatprep.subr.bf16.mxu0 0
    %7590 = vmatpush1.bf16.xpose.msra.mxu0 0
    %7591 = vmatprep.subr.bf16.mxu0 0
    %7592 = vmatpush1.bf16.xpose.msra.mxu0 0
    %7593 = vmatprep.subr.bf16.mxu0 0
    %7594 = vmatpush1.bf16.xpose.msra.mxu0 0
    %7595 = vmatprep.subr.bf16.mxu0 0
    %7596 = vmatpush1.bf16.xpose.msra.mxu0 0
    %7597 = vmatprep.subr.bf16.mxu0 0
    %7598 = vmatpush1.bf16.xpose.msra.mxu0 0
    %7599 = vmatprep.subr.bf16.mxu0 0
    %7600 = vmatpush1.bf16.xpose.msra.mxu0 0
    %7601 = vmatprep.subr.bf16.mxu0 0
    %7602 = vmatpush1.bf16.xpose.msra.mxu0 0
    %7603 = vmatprep.subr.bf16.mxu0 0
    %7604 = vmatpush1.bf16.xpose.msra.mxu0 0
    %7605 = vmatprep.subr.bf16.mxu0 0
    %7606 = vmatpush1.bf16.xpose.msra.mxu0 0
    %7607 = vmatprep.subr.bf16.mxu0 0
    %7608 = vmatpush1.bf16.xpose.msra.mxu0 0
    %7609 = vmatprep.subr.bf16.mxu0 0
    %7610 = vmatpush1.bf16.xpose.msra.mxu0 0
    %7611 = vmatprep.subr.bf16.mxu0 0
    %7612 = vmatpush1.bf16.xpose.msra.mxu0 0
    %7613 = vmatprep.subr.bf16.mxu0 0
    %7614 = vmatpush1.bf16.xpose.msra.mxu0 0
    %7615 = vmatprep.subr.bf16.mxu0 0
    %7616 = vmatpush1.bf16.xpose.msra.mxu0 0
    %7617 = vmatprep.mubr.bf16.mxu0 0
    %7618 = vmatmul.mubr.bf16.gmra.mrb[0].mxu0 %v7580
    %v7619 = vpop.f32.mrb[0].mxu0
    %v7620 = vadd.f32 0.0, %v7619
    %v7621 = vpop.f32.mrb[0].mxu0
    %v7622 = vpop.f32.mrb[0].mxu0
    %v7623 = vpop.f32.mrb[0].mxu0
    %7624 = vdwg.mxu0
    %v7625 = vmul.f32 %v7298, 0.35355338
    %v7626 = vmul.f32 %v7344, 0.35355338
    %v7627 = vmul.f32 %v7390, 0.35355338
    %v7628 = vmul.f32 %v7436, 0.35355338
    %v7629 = vmul.f32 %v7482, 0.35355338
    %v7630 = vmul.f32 %v7528, 0.35355338
    %v7631 = vmul.f32 %v7574, 0.35355338
    %v7632 = vmul.f32 %v7620, 0.35355338
    %v7633 = vadd.f32 %v7625, %v282
    %v7634 = vadd.f32 %v7626, %v283
    %v7635 = vadd.f32 %v7627, %v284
    %v7636 = vadd.f32 %v7628, %v285
    %v7637 = vadd.f32 %v7629, %v286
    %v7638 = vadd.f32 %v7630, %v287
    %v7639 = vadd.f32 %v7631, %v288
    %v7640 = vadd.f32 %v7632, %v289
    %v7641 = vsel %vm1274, %v7633, -inf
    %7642 = vmax.xlane.f32.xlu0 %v7641
    %v7643 = vpop.xlane.xlu0 %7642
    %v7644 = vsel %vm1274, %v7634, -inf
    %7645 = vmax.xlane.f32.xlu0 %v7644
    %v7646 = vpop.xlane.xlu0 %7645
    %v7647 = vsel %vm1274, %v7635, -inf
    %7648 = vmax.xlane.f32.xlu0 %v7647
    %v7649 = vpop.xlane.xlu0 %7648
    %v7650 = vsel %vm1274, %v7636, -inf
    %7651 = vmax.xlane.f32.xlu0 %v7650
    %v7652 = vpop.xlane.xlu0 %7651
    %v7653 = vsel %vm1274, %v7637, -inf
    %7654 = vmax.xlane.f32.xlu0 %v7653
    %v7655 = vpop.xlane.xlu0 %7654
    %v7656 = vsel %vm1274, %v7638, -inf
    %7657 = vmax.xlane.f32.xlu0 %v7656
    %v7658 = vpop.xlane.xlu0 %7657
    %v7659 = vsel %vm1274, %v7639, -inf
    %7660 = vmax.xlane.f32.xlu0 %v7659
    %v7661 = vpop.xlane.xlu0 %7660
    %v7662 = vsel %vm1274, %v7640, -inf
    %7663 = vmax.xlane.f32.xlu0 %v7662
    %v7664 = vpop.xlane.xlu0 %7663
    %v7665 = vsub.f32 %v7633, %v7643
    %v7666 = vsub.f32 %v7634, %v7646
    %v7667 = vsub.f32 %v7635, %v7649
    %v7668 = vsub.f32 %v7636, %v7652
    %v7669 = vsub.f32 %v7637, %v7655
    %v7670 = vsub.f32 %v7638, %v7658
    %v7671 = vsub.f32 %v7639, %v7661
    %v7672 = vsub.f32 %v7640, %v7664
    %v7673 = vmul.f32 %v7665, 1.442695
    %v7674 = vpow.pop %v7673
    %v7675 = vmul.f32 %v7666, 1.442695
    %v7676 = vpow.pop %v7675
    %v7677 = vmul.f32 %v7667, 1.442695
    %v7678 = vpow.pop %v7677
    %v7679 = vmul.f32 %v7668, 1.442695
    %v7680 = vpow.pop %v7679
    %v7681 = vmul.f32 %v7669, 1.442695
    %v7682 = vpow.pop %v7681
    %v7683 = vmul.f32 %v7670, 1.442695
    %v7684 = vpow.pop %v7683
    %v7685 = vmul.f32 %v7671, 1.442695
    %v7686 = vpow.pop %v7685
    %v7687 = vmul.f32 %v7672, 1.442695
    %v7688 = vpow.pop %v7687
    %v7689 = vsel %vm1274, %v7674, 0.0
    %7690 = vadd.xlane.f32.xlu0 %v7689
    %v7691 = vpop.xlane.xlu0 %7690
    %v7692 = vsel %vm1274, %v7676, 0.0
    %7693 = vadd.xlane.f32.xlu0 %v7692
    %v7694 = vpop.xlane.xlu0 %7693
    %v7695 = vsel %vm1274, %v7678, 0.0
    %7696 = vadd.xlane.f32.xlu0 %v7695
    %v7697 = vpop.xlane.xlu0 %7696
    %v7698 = vsel %vm1274, %v7680, 0.0
    %7699 = vadd.xlane.f32.xlu0 %v7698
    %v7700 = vpop.xlane.xlu0 %7699
    %v7701 = vsel %vm1274, %v7682, 0.0
    %7702 = vadd.xlane.f32.xlu0 %v7701
    %v7703 = vpop.xlane.xlu0 %7702
    %v7704 = vsel %vm1274, %v7684, 0.0
    %7705 = vadd.xlane.f32.xlu0 %v7704
    %v7706 = vpop.xlane.xlu0 %7705
    %v7707 = vsel %vm1274, %v7686, 0.0
    %7708 = vadd.xlane.f32.xlu0 %v7707
    %v7709 = vpop.xlane.xlu0 %7708
    %v7710 = vsel %vm1274, %v7688, 0.0
    %7711 = vadd.xlane.f32.xlu0 %v7710
    %v7712 = vpop.xlane.xlu0 %7711
    %v7713 = vrcp.pop %v7691
    %v7714 = vmul.f32 %v7674, %v7713
    %v7715 = vrcp.pop %v7694
    %v7716 = vmul.f32 %v7676, %v7715
    %v7717 = vrcp.pop %v7697
    %v7718 = vmul.f32 %v7678, %v7717
    %v7719 = vrcp.pop %v7700
    %v7720 = vmul.f32 %v7680, %v7719
    %v7721 = vrcp.pop %v7703
    %v7722 = vmul.f32 %v7682, %v7721
    %v7723 = vrcp.pop %v7706
    %v7724 = vmul.f32 %v7684, %v7723
    %v7725 = vrcp.pop %v7709
    %v7726 = vmul.f32 %v7686, %v7725
    %v7727 = vrcp.pop %v7712
    %v7728 = vmul.f32 %v7688, %v7727
    %v7729 = vpack.c.bf16 %v7714, %v7714
    %v7730 = vpack.c.bf16 %v7716, %v7716
    %v7731 = vpack.c.bf16 %v7718, %v7718
    %v7732 = vpack.c.bf16 %v7720, %v7720
    %v7733 = vpack.c.bf16 %v7722, %v7722
    %v7734 = vpack.c.bf16 %v7724, %v7724
    %v7735 = vpack.c.bf16 %v7726, %v7726
    %v7736 = vpack.c.bf16 %v7728, %v7728
    %v7738 = vsel %vm1274, %v7729, 0
    %v7741 = vsel %vm1758, %v7249, 0
    %7743 = vmatprep.subr.bf16.mxu0 0
    %7744 = vmatpush1.bf16.msra.mxu0 %v7741
    %7745 = vmatprep.subr.bf16.mxu0 0
    %7746 = vmatpush1.bf16.msra.mxu0 0
    %7747 = vmatprep.subr.bf16.mxu0 0
    %7748 = vmatpush1.bf16.msra.mxu0 0
    %7749 = vmatprep.subr.bf16.mxu0 0
    %7750 = vmatpush1.bf16.msra.mxu0 0
    %7751 = vmatprep.subr.bf16.mxu0 0
    %7752 = vmatpush1.bf16.msra.mxu0 0
    %7753 = vmatprep.subr.bf16.mxu0 0
    %7754 = vmatpush1.bf16.msra.mxu0 0
    %7755 = vmatprep.subr.bf16.mxu0 0
    %7756 = vmatpush1.bf16.msra.mxu0 0
    %7757 = vmatprep.subr.bf16.mxu0 0
    %7758 = vmatpush1.bf16.msra.mxu0 0
    %7759 = vmatprep.subr.bf16.mxu0 0
    %7760 = vmatpush1.bf16.msra.mxu0 0
    %7761 = vmatprep.subr.bf16.mxu0 0
    %7762 = vmatpush1.bf16.msra.mxu0 0
    %7763 = vmatprep.subr.bf16.mxu0 0
    %7764 = vmatpush1.bf16.msra.mxu0 0
    %7765 = vmatprep.subr.bf16.mxu0 0
    %7766 = vmatpush1.bf16.msra.mxu0 0
    %7767 = vmatprep.subr.bf16.mxu0 0
    %7768 = vmatpush1.bf16.msra.mxu0 0
    %7769 = vmatprep.subr.bf16.mxu0 0
    %7770 = vmatpush1.bf16.msra.mxu0 0
    %7771 = vmatprep.subr.bf16.mxu0 0
    %7772 = vmatpush1.bf16.msra.mxu0 0
    %7773 = vmatprep.subr.bf16.mxu0 0
    %7774 = vmatpush1.bf16.msra.mxu0 0
    %7775 = vmatprep.mubr.bf16.mxu0 0
    %7776 = vmatmul.mubr.bf16.gmra.mrb[0].mxu0 %v7738
    %v7777 = vpop.f32.mrb[0].mxu0
    %v7778 = vadd.f32 0.0, %v7777
    %v7779 = vpop.f32.mrb[0].mxu0
    %v7780 = vpop.f32.mrb[0].mxu0
    %v7781 = vpop.f32.mrb[0].mxu0
    %7782 = vdwg.mxu0
    %v7784 = vsel %vm1274, %v7730, 0
    %v7787 = vsel %vm1758, %v7250, 0
    %7789 = vmatprep.subr.bf16.mxu0 0
    %7790 = vmatpush1.bf16.msra.mxu0 %v7787
    %7791 = vmatprep.subr.bf16.mxu0 0
    %7792 = vmatpush1.bf16.msra.mxu0 0
    %7793 = vmatprep.subr.bf16.mxu0 0
    %7794 = vmatpush1.bf16.msra.mxu0 0
    %7795 = vmatprep.subr.bf16.mxu0 0
    %7796 = vmatpush1.bf16.msra.mxu0 0
    %7797 = vmatprep.subr.bf16.mxu0 0
    %7798 = vmatpush1.bf16.msra.mxu0 0
    %7799 = vmatprep.subr.bf16.mxu0 0
    %7800 = vmatpush1.bf16.msra.mxu0 0
    %7801 = vmatprep.subr.bf16.mxu0 0
    %7802 = vmatpush1.bf16.msra.mxu0 0
    %7803 = vmatprep.subr.bf16.mxu0 0
    %7804 = vmatpush1.bf16.msra.mxu0 0
    %7805 = vmatprep.subr.bf16.mxu0 0
    %7806 = vmatpush1.bf16.msra.mxu0 0
    %7807 = vmatprep.subr.bf16.mxu0 0
    %7808 = vmatpush1.bf16.msra.mxu0 0
    %7809 = vmatprep.subr.bf16.mxu0 0
    %7810 = vmatpush1.bf16.msra.mxu0 0
    %7811 = vmatprep.subr.bf16.mxu0 0
    %7812 = vmatpush1.bf16.msra.mxu0 0
    %7813 = vmatprep.subr.bf16.mxu0 0
    %7814 = vmatpush1.bf16.msra.mxu0 0
    %7815 = vmatprep.subr.bf16.mxu0 0
    %7816 = vmatpush1.bf16.msra.mxu0 0
    %7817 = vmatprep.subr.bf16.mxu0 0
    %7818 = vmatpush1.bf16.msra.mxu0 0
    %7819 = vmatprep.subr.bf16.mxu0 0
    %7820 = vmatpush1.bf16.msra.mxu0 0
    %7821 = vmatprep.mubr.bf16.mxu0 0
    %7822 = vmatmul.mubr.bf16.gmra.mrb[0].mxu0 %v7784
    %v7823 = vpop.f32.mrb[0].mxu0
    %v7824 = vadd.f32 0.0, %v7823
    %v7825 = vpop.f32.mrb[0].mxu0
    %v7826 = vpop.f32.mrb[0].mxu0
    %v7827 = vpop.f32.mrb[0].mxu0
    %7828 = vdwg.mxu0
    %v7830 = vsel %vm1274, %v7731, 0
    %v7833 = vsel %vm1758, %v7251, 0
    %7835 = vmatprep.subr.bf16.mxu0 0
    %7836 = vmatpush1.bf16.msra.mxu0 %v7833
    %7837 = vmatprep.subr.bf16.mxu0 0
    %7838 = vmatpush1.bf16.msra.mxu0 0
    %7839 = vmatprep.subr.bf16.mxu0 0
    %7840 = vmatpush1.bf16.msra.mxu0 0
    %7841 = vmatprep.subr.bf16.mxu0 0
    %7842 = vmatpush1.bf16.msra.mxu0 0
    %7843 = vmatprep.subr.bf16.mxu0 0
    %7844 = vmatpush1.bf16.msra.mxu0 0
    %7845 = vmatprep.subr.bf16.mxu0 0
    %7846 = vmatpush1.bf16.msra.mxu0 0
    %7847 = vmatprep.subr.bf16.mxu0 0
    %7848 = vmatpush1.bf16.msra.mxu0 0
    %7849 = vmatprep.subr.bf16.mxu0 0
    %7850 = vmatpush1.bf16.msra.mxu0 0
    %7851 = vmatprep.subr.bf16.mxu0 0
    %7852 = vmatpush1.bf16.msra.mxu0 0
    %7853 = vmatprep.subr.bf16.mxu0 0
    %7854 = vmatpush1.bf16.msra.mxu0 0
    %7855 = vmatprep.subr.bf16.mxu0 0
    %7856 = vmatpush1.bf16.msra.mxu0 0
    %7857 = vmatprep.subr.bf16.mxu0 0
    %7858 = vmatpush1.bf16.msra.mxu0 0
    %7859 = vmatprep.subr.bf16.mxu0 0
    %7860 = vmatpush1.bf16.msra.mxu0 0
    %7861 = vmatprep.subr.bf16.mxu0 0
    %7862 = vmatpush1.bf16.msra.mxu0 0
    %7863 = vmatprep.subr.bf16.mxu0 0
    %7864 = vmatpush1.bf16.msra.mxu0 0
    %7865 = vmatprep.subr.bf16.mxu0 0
    %7866 = vmatpush1.bf16.msra.mxu0 0
    %7867 = vmatprep.mubr.bf16.mxu0 0
    %7868 = vmatmul.mubr.bf16.gmra.mrb[0].mxu0 %v7830
    %v7869 = vpop.f32.mrb[0].mxu0
    %v7870 = vadd.f32 0.0, %v7869
    %v7871 = vpop.f32.mrb[0].mxu0
    %v7872 = vpop.f32.mrb[0].mxu0
    %v7873 = vpop.f32.mrb[0].mxu0
    %7874 = vdwg.mxu0
    %v7876 = vsel %vm1274, %v7732, 0
    %v7879 = vsel %vm1758, %v7252, 0
    %7881 = vmatprep.subr.bf16.mxu0 0
    %7882 = vmatpush1.bf16.msra.mxu0 %v7879
    %7883 = vmatprep.subr.bf16.mxu0 0
    %7884 = vmatpush1.bf16.msra.mxu0 0
    %7885 = vmatprep.subr.bf16.mxu0 0
    %7886 = vmatpush1.bf16.msra.mxu0 0
    %7887 = vmatprep.subr.bf16.mxu0 0
    %7888 = vmatpush1.bf16.msra.mxu0 0
    %7889 = vmatprep.subr.bf16.mxu0 0
    %7890 = vmatpush1.bf16.msra.mxu0 0
    %7891 = vmatprep.subr.bf16.mxu0 0
    %7892 = vmatpush1.bf16.msra.mxu0 0
    %7893 = vmatprep.subr.bf16.mxu0 0
    %7894 = vmatpush1.bf16.msra.mxu0 0
    %7895 = vmatprep.subr.bf16.mxu0 0
    %7896 = vmatpush1.bf16.msra.mxu0 0
    %7897 = vmatprep.subr.bf16.mxu0 0
    %7898 = vmatpush1.bf16.msra.mxu0 0
    %7899 = vmatprep.subr.bf16.mxu0 0
    %7900 = vmatpush1.bf16.msra.mxu0 0
    %7901 = vmatprep.subr.bf16.mxu0 0
    %7902 = vmatpush1.bf16.msra.mxu0 0
    %7903 = vmatprep.subr.bf16.mxu0 0
    %7904 = vmatpush1.bf16.msra.mxu0 0
    %7905 = vmatprep.subr.bf16.mxu0 0
    %7906 = vmatpush1.bf16.msra.mxu0 0
    %7907 = vmatprep.subr.bf16.mxu0 0
    %7908 = vmatpush1.bf16.msra.mxu0 0
    %7909 = vmatprep.subr.bf16.mxu0 0
    %7910 = vmatpush1.bf16.msra.mxu0 0
    %7911 = vmatprep.subr.bf16.mxu0 0
    %7912 = vmatpush1.bf16.msra.mxu0 0
    %7913 = vmatprep.mubr.bf16.mxu0 0
    %7914 = vmatmul.mubr.bf16.gmra.mrb[0].mxu0 %v7876
    %v7915 = vpop.f32.mrb[0].mxu0
    %v7916 = vadd.f32 0.0, %v7915
    %v7917 = vpop.f32.mrb[0].mxu0
    %v7918 = vpop.f32.mrb[0].mxu0
    %v7919 = vpop.f32.mrb[0].mxu0
    %7920 = vdwg.mxu0
    %v7922 = vsel %vm1274, %v7733, 0
    %v7925 = vsel %vm1758, %v7253, 0
    %7927 = vmatprep.subr.bf16.mxu0 0
    %7928 = vmatpush1.bf16.msra.mxu0 %v7925
    %7929 = vmatprep.subr.bf16.mxu0 0
    %7930 = vmatpush1.bf16.msra.mxu0 0
    %7931 = vmatprep.subr.bf16.mxu0 0
    %7932 = vmatpush1.bf16.msra.mxu0 0
    %7933 = vmatprep.subr.bf16.mxu0 0
    %7934 = vmatpush1.bf16.msra.mxu0 0
    %7935 = vmatprep.subr.bf16.mxu0 0
    %7936 = vmatpush1.bf16.msra.mxu0 0
    %7937 = vmatprep.subr.bf16.mxu0 0
    %7938 = vmatpush1.bf16.msra.mxu0 0
    %7939 = vmatprep.subr.bf16.mxu0 0
    %7940 = vmatpush1.bf16.msra.mxu0 0
    %7941 = vmatprep.subr.bf16.mxu0 0
    %7942 = vmatpush1.bf16.msra.mxu0 0
    %7943 = vmatprep.subr.bf16.mxu0 0
    %7944 = vmatpush1.bf16.msra.mxu0 0
    %7945 = vmatprep.subr.bf16.mxu0 0
    %7946 = vmatpush1.bf16.msra.mxu0 0
    %7947 = vmatprep.subr.bf16.mxu0 0
    %7948 = vmatpush1.bf16.msra.mxu0 0
    %7949 = vmatprep.subr.bf16.mxu0 0
    %7950 = vmatpush1.bf16.msra.mxu0 0
    %7951 = vmatprep.subr.bf16.mxu0 0
    %7952 = vmatpush1.bf16.msra.mxu0 0
    %7953 = vmatprep.subr.bf16.mxu0 0
    %7954 = vmatpush1.bf16.msra.mxu0 0
    %7955 = vmatprep.subr.bf16.mxu0 0
    %7956 = vmatpush1.bf16.msra.mxu0 0
    %7957 = vmatprep.subr.bf16.mxu0 0
    %7958 = vmatpush1.bf16.msra.mxu0 0
    %7959 = vmatprep.mubr.bf16.mxu0 0
    %7960 = vmatmul.mubr.bf16.gmra.mrb[0].mxu0 %v7922
    %v7961 = vpop.f32.mrb[0].mxu0
    %v7962 = vadd.f32 0.0, %v7961
    %v7963 = vpop.f32.mrb[0].mxu0
    %v7964 = vpop.f32.mrb[0].mxu0
    %v7965 = vpop.f32.mrb[0].mxu0
    %7966 = vdwg.mxu0
    %v7968 = vsel %vm1274, %v7734, 0
    %v7971 = vsel %vm1758, %v7254, 0
    %7973 = vmatprep.subr.bf16.mxu0 0
    %7974 = vmatpush1.bf16.msra.mxu0 %v7971
    %7975 = vmatprep.subr.bf16.mxu0 0
    %7976 = vmatpush1.bf16.msra.mxu0 0
    %7977 = vmatprep.subr.bf16.mxu0 0
    %7978 = vmatpush1.bf16.msra.mxu0 0
    %7979 = vmatprep.subr.bf16.mxu0 0
    %7980 = vmatpush1.bf16.msra.mxu0 0
    %7981 = vmatprep.subr.bf16.mxu0 0
    %7982 = vmatpush1.bf16.msra.mxu0 0
    %7983 = vmatprep.subr.bf16.mxu0 0
    %7984 = vmatpush1.bf16.msra.mxu0 0
    %7985 = vmatprep.subr.bf16.mxu0 0
    %7986 = vmatpush1.bf16.msra.mxu0 0
    %7987 = vmatprep.subr.bf16.mxu0 0
    %7988 = vmatpush1.bf16.msra.mxu0 0
    %7989 = vmatprep.subr.bf16.mxu0 0
    %7990 = vmatpush1.bf16.msra.mxu0 0
    %7991 = vmatprep.subr.bf16.mxu0 0
    %7992 = vmatpush1.bf16.msra.mxu0 0
    %7993 = vmatprep.subr.bf16.mxu0 0
    %7994 = vmatpush1.bf16.msra.mxu0 0
    %7995 = vmatprep.subr.bf16.mxu0 0
    %7996 = vmatpush1.bf16.msra.mxu0 0
    %7997 = vmatprep.subr.bf16.mxu0 0
    %7998 = vmatpush1.bf16.msra.mxu0 0
    %7999 = vmatprep.subr.bf16.mxu0 0
    %8000 = vmatpush1.bf16.msra.mxu0 0
    %8001 = vmatprep.subr.bf16.mxu0 0
    %8002 = vmatpush1.bf16.msra.mxu0 0
    %8003 = vmatprep.subr.bf16.mxu0 0
    %8004 = vmatpush1.bf16.msra.mxu0 0
    %8005 = vmatprep.mubr.bf16.mxu0 0
    %8006 = vmatmul.mubr.bf16.gmra.mrb[0].mxu0 %v7968
    %v8007 = vpop.f32.mrb[0].mxu0
    %v8008 = vadd.f32 0.0, %v8007
    %v8009 = vpop.f32.mrb[0].mxu0
    %v8010 = vpop.f32.mrb[0].mxu0
    %v8011 = vpop.f32.mrb[0].mxu0
    %8012 = vdwg.mxu0
    %v8014 = vsel %vm1274, %v7735, 0
    %v8017 = vsel %vm1758, %v7255, 0
    %8019 = vmatprep.subr.bf16.mxu0 0
    %8020 = vmatpush1.bf16.msra.mxu0 %v8017
    %8021 = vmatprep.subr.bf16.mxu0 0
    %8022 = vmatpush1.bf16.msra.mxu0 0
    %8023 = vmatprep.subr.bf16.mxu0 0
    %8024 = vmatpush1.bf16.msra.mxu0 0
    %8025 = vmatprep.subr.bf16.mxu0 0
    %8026 = vmatpush1.bf16.msra.mxu0 0
    %8027 = vmatprep.subr.bf16.mxu0 0
    %8028 = vmatpush1.bf16.msra.mxu0 0
    %8029 = vmatprep.subr.bf16.mxu0 0
    %8030 = vmatpush1.bf16.msra.mxu0 0
    %8031 = vmatprep.subr.bf16.mxu0 0
    %8032 = vmatpush1.bf16.msra.mxu0 0
    %8033 = vmatprep.subr.bf16.mxu0 0
    %8034 = vmatpush1.bf16.msra.mxu0 0
    %8035 = vmatprep.subr.bf16.mxu0 0
    %8036 = vmatpush1.bf16.msra.mxu0 0
    %8037 = vmatprep.subr.bf16.mxu0 0
    %8038 = vmatpush1.bf16.msra.mxu0 0
    %8039 = vmatprep.subr.bf16.mxu0 0
    %8040 = vmatpush1.bf16.msra.mxu0 0
    %8041 = vmatprep.subr.bf16.mxu0 0
    %8042 = vmatpush1.bf16.msra.mxu0 0
    %8043 = vmatprep.subr.bf16.mxu0 0
    %8044 = vmatpush1.bf16.msra.mxu0 0
    %8045 = vmatprep.subr.bf16.mxu0 0
    %8046 = vmatpush1.bf16.msra.mxu0 0
    %8047 = vmatprep.subr.bf16.mxu0 0
    %8048 = vmatpush1.bf16.msra.mxu0 0
    %8049 = vmatprep.subr.bf16.mxu0 0
    %8050 = vmatpush1.bf16.msra.mxu0 0
    %8051 = vmatprep.mubr.bf16.mxu0 0
    %8052 = vmatmul.mubr.bf16.gmra.mrb[0].mxu0 %v8014
    %v8053 = vpop.f32.mrb[0].mxu0
    %v8054 = vadd.f32 0.0, %v8053
    %v8055 = vpop.f32.mrb[0].mxu0
    %v8056 = vpop.f32.mrb[0].mxu0
    %v8057 = vpop.f32.mrb[0].mxu0
    %8058 = vdwg.mxu0
    %v8060 = vsel %vm1274, %v7736, 0
    %v8063 = vsel %vm1758, %v7256, 0
    %8065 = vmatprep.subr.bf16.mxu0 0
    %8066 = vmatpush1.bf16.msra.mxu0 %v8063
    %8067 = vmatprep.subr.bf16.mxu0 0
    %8068 = vmatpush1.bf16.msra.mxu0 0
    %8069 = vmatprep.subr.bf16.mxu0 0
    %8070 = vmatpush1.bf16.msra.mxu0 0
    %8071 = vmatprep.subr.bf16.mxu0 0
    %8072 = vmatpush1.bf16.msra.mxu0 0
    %8073 = vmatprep.subr.bf16.mxu0 0
    %8074 = vmatpush1.bf16.msra.mxu0 0
    %8075 = vmatprep.subr.bf16.mxu0 0
    %8076 = vmatpush1.bf16.msra.mxu0 0
    %8077 = vmatprep.subr.bf16.mxu0 0
    %8078 = vmatpush1.bf16.msra.mxu0 0
    %8079 = vmatprep.subr.bf16.mxu0 0
    %8080 = vmatpush1.bf16.msra.mxu0 0
    %8081 = vmatprep.subr.bf16.mxu0 0
    %8082 = vmatpush1.bf16.msra.mxu0 0
    %8083 = vmatprep.subr.bf16.mxu0 0
    %8084 = vmatpush1.bf16.msra.mxu0 0
    %8085 = vmatprep.subr.bf16.mxu0 0
    %8086 = vmatpush1.bf16.msra.mxu0 0
    %8087 = vmatprep.subr.bf16.mxu0 0
    %8088 = vmatpush1.bf16.msra.mxu0 0
    %8089 = vmatprep.subr.bf16.mxu0 0
    %8090 = vmatpush1.bf16.msra.mxu0 0
    %8091 = vmatprep.subr.bf16.mxu0 0
    %8092 = vmatpush1.bf16.msra.mxu0 0
    %8093 = vmatprep.subr.bf16.mxu0 0
    %8094 = vmatpush1.bf16.msra.mxu0 0
    %8095 = vmatprep.subr.bf16.mxu0 0
    %8096 = vmatpush1.bf16.msra.mxu0 0
    %8097 = vmatprep.mubr.bf16.mxu0 0
    %8098 = vmatmul.mubr.bf16.gmra.mrb[0].mxu0 %v8060
    %v8099 = vpop.f32.mrb[0].mxu0
    %v8100 = vadd.f32 0.0, %v8099
    %v8101 = vpop.f32.mrb[0].mxu0
    %v8102 = vpop.f32.mrb[0].mxu0
    %v8103 = vpop.f32.mrb[0].mxu0
    %8104 = vdwg.mxu0
    %v8105 = vcombine.low %v7714, %v7718
    %v8106 = vcombine.high %v7714, %v7718
    %v8108 = vunpack.c.l.s4 1983009808
    %v8109 = vunpack.c.0.s8 %v8108
    %v8110 = vlaneseq
    %v8111 = vshrl.u32 %v8110, 7
    %v8112 = vsub.s32 %v8109, %v8111
    %v8113 = vrot.slane %v8105, %v8112
    %v8115 = vunpack.c.l.s4 1983009808
    %v8116 = vunpack.c.0.s8 %v8115
    %v8117 = vlaneseq
    %v8118 = vshrl.u32 %v8117, 7
    %v8119 = vsub.s32 %v8116, %v8118
    %v8120 = vrot.slane %v8106, %v8119
    %v8121 = vcombine.low %v7716, %v7720
    %v8122 = vcombine.high %v7716, %v7720
    %v8124 = vunpack.c.l.s4 1983009808
    %v8125 = vunpack.c.0.s8 %v8124
    %v8126 = vlaneseq
    %v8127 = vshrl.u32 %v8126, 7
    %v8128 = vsub.s32 %v8125, %v8127
    %v8129 = vrot.slane %v8121, %v8128
    %v8131 = vunpack.c.l.s4 1983009808
    %v8132 = vunpack.c.0.s8 %v8131
    %v8133 = vlaneseq
    %v8134 = vshrl.u32 %v8133, 7
    %v8135 = vsub.s32 %v8132, %v8134
    %v8136 = vrot.slane %v8122, %v8135
    %v8137 = vcombine.low %v7722, %v7726
    %v8138 = vcombine.high %v7722, %v7726
    %v8140 = vunpack.c.l.s4 1983009808
    %v8141 = vunpack.c.0.s8 %v8140
    %v8142 = vlaneseq
    %v8143 = vshrl.u32 %v8142, 7
    %v8144 = vsub.s32 %v8141, %v8143
    %v8145 = vrot.slane %v8137, %v8144
    %v8147 = vunpack.c.l.s4 1983009808
    %v8148 = vunpack.c.0.s8 %v8147
    %v8149 = vlaneseq
    %v8150 = vshrl.u32 %v8149, 7
    %v8151 = vsub.s32 %v8148, %v8150
    %v8152 = vrot.slane %v8138, %v8151
    %v8153 = vcombine.low %v7724, %v7728
    %v8154 = vcombine.high %v7724, %v7728
    %v8156 = vunpack.c.l.s4 1983009808
    %v8157 = vunpack.c.0.s8 %v8156
    %v8158 = vlaneseq
    %v8159 = vshrl.u32 %v8158, 7
    %v8160 = vsub.s32 %v8157, %v8159
    %v8161 = vrot.slane %v8153, %v8160
    %v8163 = vunpack.c.l.s4 1983009808
    %v8164 = vunpack.c.0.s8 %v8163
    %v8165 = vlaneseq
    %v8166 = vshrl.u32 %v8165, 7
    %v8167 = vsub.s32 %v8164, %v8166
    %v8168 = vrot.slane %v8154, %v8167
    %v8169 = vcombine.low %v8113, %v8129
    %v8170 = vcombine.high %v8113, %v8129
    %v8172 = vunpack.c.l.s4 1934713408
    %v8173 = vunpack.c.0.s8 %v8172
    %v8174 = vlaneseq
    %v8175 = vshrl.u32 %v8174, 7
    %v8176 = vsub.s32 %v8173, %v8175
    %v8177 = vrot.slane %v8169, %v8176
    %v8179 = vunpack.c.l.s4 1934713408
    %v8180 = vunpack.c.0.s8 %v8179
    %v8181 = vlaneseq
    %v8182 = vshrl.u32 %v8181, 7
    %v8183 = vsub.s32 %v8180, %v8182
    %v8184 = vrot.slane %v8170, %v8183
    %v8185 = vcombine.low %v8120, %v8136
    %v8186 = vcombine.high %v8120, %v8136
    %v8188 = vunpack.c.l.s4 1934713408
    %v8189 = vunpack.c.0.s8 %v8188
    %v8190 = vlaneseq
    %v8191 = vshrl.u32 %v8190, 7
    %v8192 = vsub.s32 %v8189, %v8191
    %v8193 = vrot.slane %v8185, %v8192
    %v8195 = vunpack.c.l.s4 1934713408
    %v8196 = vunpack.c.0.s8 %v8195
    %v8197 = vlaneseq
    %v8198 = vshrl.u32 %v8197, 7
    %v8199 = vsub.s32 %v8196, %v8198
    %v8200 = vrot.slane %v8186, %v8199
    %v8201 = vcombine.low %v8145, %v8161
    %v8202 = vcombine.high %v8145, %v8161
    %v8204 = vunpack.c.l.s4 1934713408
    %v8205 = vunpack.c.0.s8 %v8204
    %v8206 = vlaneseq
    %v8207 = vshrl.u32 %v8206, 7
    %v8208 = vsub.s32 %v8205, %v8207
    %v8209 = vrot.slane %v8201, %v8208
    %v8211 = vunpack.c.l.s4 1934713408
    %v8212 = vunpack.c.0.s8 %v8211
    %v8213 = vlaneseq
    %v8214 = vshrl.u32 %v8213, 7
    %v8215 = vsub.s32 %v8212, %v8214
    %v8216 = vrot.slane %v8202, %v8215
    %v8217 = vcombine.low %v8152, %v8168
    %v8218 = vcombine.high %v8152, %v8168
    %v8220 = vunpack.c.l.s4 1934713408
    %v8221 = vunpack.c.0.s8 %v8220
    %v8222 = vlaneseq
    %v8223 = vshrl.u32 %v8222, 7
    %v8224 = vsub.s32 %v8221, %v8223
    %v8225 = vrot.slane %v8217, %v8224
    %v8227 = vunpack.c.l.s4 1934713408
    %v8228 = vunpack.c.0.s8 %v8227
    %v8229 = vlaneseq
    %v8230 = vshrl.u32 %v8229, 7
    %v8231 = vsub.s32 %v8228, %v8230
    %v8232 = vrot.slane %v8218, %v8231
    %v8233 = vcombine.low %v8177, %v8209
    %v8234 = vcombine.high %v8177, %v8209
    %v8235 = vcombine.low %v8184, %v8216
    %v8236 = vcombine.high %v8184, %v8216
    %v8237 = vcombine.low %v8193, %v8225
    %v8238 = vcombine.high %v8193, %v8225
    %v8239 = vcombine.low %v8200, %v8232
    %v8240 = vcombine.high %v8200, %v8232
    %v8241 = vcombine.low %v8233, %v8235
    %v8242 = vcombine.high %v8233, %v8235
    %v8244 = vunpack.c.l.s4 1983009808
    %v8245 = vunpack.c.0.s8 %v8244
    %v8246 = vlaneseq
    %v8247 = vshrl.u32 %v8246, 7
    %v8248 = vsub.s32 %v8245, %v8247
    %v8249 = vrot.slane %v8241, %v8248
    %v8251 = vunpack.c.l.s4 1983009808
    %v8252 = vunpack.c.0.s8 %v8251
    %v8253 = vlaneseq
    %v8254 = vshrl.u32 %v8253, 7
    %v8255 = vsub.s32 %v8252, %v8254
    %v8256 = vrot.slane %v8242, %v8255
    %v8257 = vcombine.low %v8234, %v8236
    %v8258 = vcombine.high %v8234, %v8236
    %v8260 = vunpack.c.l.s4 1983009808
    %v8261 = vunpack.c.0.s8 %v8260
    %v8262 = vlaneseq
    %v8263 = vshrl.u32 %v8262, 7
    %v8264 = vsub.s32 %v8261, %v8263
    %v8265 = vrot.slane %v8257, %v8264
    %v8267 = vunpack.c.l.s4 1983009808
    %v8268 = vunpack.c.0.s8 %v8267
    %v8269 = vlaneseq
    %v8270 = vshrl.u32 %v8269, 7
    %v8271 = vsub.s32 %v8268, %v8270
    %v8272 = vrot.slane %v8258, %v8271
    %v8273 = vcombine.low %v8237, %v8239
    %v8274 = vcombine.high %v8237, %v8239
    %v8276 = vunpack.c.l.s4 1983009808
    %v8277 = vunpack.c.0.s8 %v8276
    %v8278 = vlaneseq
    %v8279 = vshrl.u32 %v8278, 7
    %v8280 = vsub.s32 %v8277, %v8279
    %v8281 = vrot.slane %v8273, %v8280
    %v8283 = vunpack.c.l.s4 1983009808
    %v8284 = vunpack.c.0.s8 %v8283
    %v8285 = vlaneseq
    %v8286 = vshrl.u32 %v8285, 7
    %v8287 = vsub.s32 %v8284, %v8286
    %v8288 = vrot.slane %v8274, %v8287
    %v8289 = vcombine.low %v8238, %v8240
    %v8290 = vcombine.high %v8238, %v8240
    %v8292 = vunpack.c.l.s4 1983009808
    %v8293 = vunpack.c.0.s8 %v8292
    %v8294 = vlaneseq
    %v8295 = vshrl.u32 %v8294, 7
    %v8296 = vsub.s32 %v8293, %v8295
    %v8297 = vrot.slane %v8289, %v8296
    %v8299 = vunpack.c.l.s4 1983009808
    %v8300 = vunpack.c.0.s8 %v8299
    %v8301 = vlaneseq
    %v8302 = vshrl.u32 %v8301, 7
    %v8303 = vsub.s32 %v8300, %v8302
    %v8304 = vrot.slane %v8290, %v8303
    %v8305 = vcombine.low %v8249, %v8265
    %v8306 = vcombine.high %v8249, %v8265
    %v8308 = vunpack.c.l.s4 1934713408
    %v8309 = vunpack.c.0.s8 %v8308
    %v8310 = vlaneseq
    %v8311 = vshrl.u32 %v8310, 7
    %v8312 = vsub.s32 %v8309, %v8311
    %v8313 = vrot.slane %v8305, %v8312
    %v8315 = vunpack.c.l.s4 1934713408
    %v8316 = vunpack.c.0.s8 %v8315
    %v8317 = vlaneseq
    %v8318 = vshrl.u32 %v8317, 7
    %v8319 = vsub.s32 %v8316, %v8318
    %v8320 = vrot.slane %v8306, %v8319
    %v8321 = vcombine.low %v8256, %v8272
    %v8322 = vcombine.high %v8256, %v8272
    %v8324 = vunpack.c.l.s4 1934713408
    %v8325 = vunpack.c.0.s8 %v8324
    %v8326 = vlaneseq
    %v8327 = vshrl.u32 %v8326, 7
    %v8328 = vsub.s32 %v8325, %v8327
    %v8329 = vrot.slane %v8321, %v8328
    %v8331 = vunpack.c.l.s4 1934713408
    %v8332 = vunpack.c.0.s8 %v8331
    %v8333 = vlaneseq
    %v8334 = vshrl.u32 %v8333, 7
    %v8335 = vsub.s32 %v8332, %v8334
    %v8336 = vrot.slane %v8322, %v8335
    %v8337 = vcombine.low %v8281, %v8297
    %v8338 = vcombine.high %v8281, %v8297
    %v8340 = vunpack.c.l.s4 1934713408
    %v8341 = vunpack.c.0.s8 %v8340
    %v8342 = vlaneseq
    %v8343 = vshrl.u32 %v8342, 7
    %v8344 = vsub.s32 %v8341, %v8343
    %v8345 = vrot.slane %v8337, %v8344
    %v8347 = vunpack.c.l.s4 1934713408
    %v8348 = vunpack.c.0.s8 %v8347
    %v8349 = vlaneseq
    %v8350 = vshrl.u32 %v8349, 7
    %v8351 = vsub.s32 %v8348, %v8350
    %v8352 = vrot.slane %v8338, %v8351
    %v8353 = vcombine.low %v8288, %v8304
    %v8354 = vcombine.high %v8288, %v8304
    %v8356 = vunpack.c.l.s4 1934713408
    %v8357 = vunpack.c.0.s8 %v8356
    %v8358 = vlaneseq
    %v8359 = vshrl.u32 %v8358, 7
    %v8360 = vsub.s32 %v8357, %v8359
    %v8361 = vrot.slane %v8353, %v8360
    %v8363 = vunpack.c.l.s4 1934713408
    %v8364 = vunpack.c.0.s8 %v8363
    %v8365 = vlaneseq
    %v8366 = vshrl.u32 %v8365, 7
    %v8367 = vsub.s32 %v8364, %v8366
    %v8368 = vrot.slane %v8354, %v8367
    %v8369 = vcombine.low %v8313, %v8345
    %v8370 = vcombine.high %v8313, %v8345
    %v8371 = vcombine.low %v8320, %v8352
    %v8372 = vcombine.high %v8320, %v8352
    %v8373 = vcombine.low %v8329, %v8361
    %v8374 = vcombine.high %v8329, %v8361
    %v8375 = vcombine.low %v8336, %v8368
    %v8376 = vcombine.high %v8336, %v8368
    %8378 = vrot.lane.b32.xlu0 %v8370, 8
    %v8379 = vpop.permute.xlu0 %8378
    %8382 = vrot.lane.b32.xlu0 %v8371, 16
    %v8383 = vpop.permute.xlu0 %8382
    %8386 = vrot.lane.b32.xlu0 %v8372, 24
    %v8387 = vpop.permute.xlu0 %8386
    %8390 = vrot.lane.b32.xlu0 %v8373, 32
    %v8391 = vpop.permute.xlu0 %8390
    %8394 = vrot.lane.b32.xlu0 %v8374, 40
    %v8395 = vpop.permute.xlu0 %8394
    %8398 = vrot.lane.b32.xlu0 %v8375, 48
    %v8399 = vpop.permute.xlu0 %8398
    %8402 = vrot.lane.b32.xlu0 %v8376, 56
    %v8403 = vpop.permute.xlu0 %8402
    %v8405 = vsel %vm1274, %v8369, %v8379
    %v8406 = vsel %vm2425, %v8405, %v8383
    %v8407 = vsel %vm2427, %v8406, %v8387
    %v8408 = vsel %vm137, %v8407, %v8391
    %v8409 = vsel %vm2430, %v8408, %v8395
    %v8410 = vsel %vm2432, %v8409, %v8399
    %v8411 = vsel %vm2434, %v8410, %v8403
    %v8412 = vcombine.low %v7778, %v7870
    %v8413 = vcombine.high %v7778, %v7870
    %v8415 = vunpack.c.l.s4 1983009808
    %v8416 = vunpack.c.0.s8 %v8415
    %v8417 = vlaneseq
    %v8418 = vshrl.u32 %v8417, 7
    %v8419 = vsub.s32 %v8416, %v8418
    %v8420 = vrot.slane %v8412, %v8419
    %v8422 = vunpack.c.l.s4 1983009808
    %v8423 = vunpack.c.0.s8 %v8422
    %v8424 = vlaneseq
    %v8425 = vshrl.u32 %v8424, 7
    %v8426 = vsub.s32 %v8423, %v8425
    %v8427 = vrot.slane %v8413, %v8426
    %v8428 = vcombine.low %v7824, %v7916
    %v8429 = vcombine.high %v7824, %v7916
    %v8431 = vunpack.c.l.s4 1983009808
    %v8432 = vunpack.c.0.s8 %v8431
    %v8433 = vlaneseq
    %v8434 = vshrl.u32 %v8433, 7
    %v8435 = vsub.s32 %v8432, %v8434
    %v8436 = vrot.slane %v8428, %v8435
    %v8438 = vunpack.c.l.s4 1983009808
    %v8439 = vunpack.c.0.s8 %v8438
    %v8440 = vlaneseq
    %v8441 = vshrl.u32 %v8440, 7
    %v8442 = vsub.s32 %v8439, %v8441
    %v8443 = vrot.slane %v8429, %v8442
    %v8444 = vcombine.low %v8420, %v8436
    %v8445 = vcombine.high %v8420, %v8436
    %v8447 = vunpack.c.l.s4 1934713408
    %v8448 = vunpack.c.0.s8 %v8447
    %v8449 = vlaneseq
    %v8450 = vshrl.u32 %v8449, 7
    %v8451 = vsub.s32 %v8448, %v8450
    %v8452 = vrot.slane %v8444, %v8451
    %v8454 = vunpack.c.l.s4 1934713408
    %v8455 = vunpack.c.0.s8 %v8454
    %v8456 = vlaneseq
    %v8457 = vshrl.u32 %v8456, 7
    %v8458 = vsub.s32 %v8455, %v8457
    %v8459 = vrot.slane %v8445, %v8458
    %v8460 = vcombine.low %v8427, %v8443
    %v8461 = vcombine.high %v8427, %v8443
    %v8463 = vunpack.c.l.s4 1934713408
    %v8464 = vunpack.c.0.s8 %v8463
    %v8465 = vlaneseq
    %v8466 = vshrl.u32 %v8465, 7
    %v8467 = vsub.s32 %v8464, %v8466
    %v8468 = vrot.slane %v8460, %v8467
    %v8470 = vunpack.c.l.s4 1934713408
    %v8471 = vunpack.c.0.s8 %v8470
    %v8472 = vlaneseq
    %v8473 = vshrl.u32 %v8472, 7
    %v8474 = vsub.s32 %v8471, %v8473
    %v8475 = vrot.slane %v8461, %v8474
    %v8476 = vcombine.high %v8452, 0.0
    %v8477 = vcombine.high %v8459, 0.0
    %v8478 = vcombine.high %v8468, 0.0
    %v8479 = vcombine.high %v8475, 0.0
    %v8480 = vcombine.low %v7962, %v8054
    %v8481 = vcombine.high %v7962, %v8054
    %v8483 = vunpack.c.l.s4 1983009808
    %v8484 = vunpack.c.0.s8 %v8483
    %v8485 = vlaneseq
    %v8486 = vshrl.u32 %v8485, 7
    %v8487 = vsub.s32 %v8484, %v8486
    %v8488 = vrot.slane %v8480, %v8487
    %v8490 = vunpack.c.l.s4 1983009808
    %v8491 = vunpack.c.0.s8 %v8490
    %v8492 = vlaneseq
    %v8493 = vshrl.u32 %v8492, 7
    %v8494 = vsub.s32 %v8491, %v8493
    %v8495 = vrot.slane %v8481, %v8494
    %v8496 = vcombine.low %v8008, %v8100
    %v8497 = vcombine.high %v8008, %v8100
    %v8499 = vunpack.c.l.s4 1983009808
    %v8500 = vunpack.c.0.s8 %v8499
    %v8501 = vlaneseq
    %v8502 = vshrl.u32 %v8501, 7
    %v8503 = vsub.s32 %v8500, %v8502
    %v8504 = vrot.slane %v8496, %v8503
    %v8506 = vunpack.c.l.s4 1983009808
    %v8507 = vunpack.c.0.s8 %v8506
    %v8508 = vlaneseq
    %v8509 = vshrl.u32 %v8508, 7
    %v8510 = vsub.s32 %v8507, %v8509
    %v8511 = vrot.slane %v8497, %v8510
    %v8512 = vcombine.low %v8488, %v8504
    %v8513 = vcombine.high %v8488, %v8504
    %v8515 = vunpack.c.l.s4 1934713408
    %v8516 = vunpack.c.0.s8 %v8515
    %v8517 = vlaneseq
    %v8518 = vshrl.u32 %v8517, 7
    %v8519 = vsub.s32 %v8516, %v8518
    %v8520 = vrot.slane %v8512, %v8519
    %v8522 = vunpack.c.l.s4 1934713408
    %v8523 = vunpack.c.0.s8 %v8522
    %v8524 = vlaneseq
    %v8525 = vshrl.u32 %v8524, 7
    %v8526 = vsub.s32 %v8523, %v8525
    %v8527 = vrot.slane %v8513, %v8526
    %v8528 = vcombine.low %v8495, %v8511
    %v8529 = vcombine.high %v8495, %v8511
    %v8531 = vunpack.c.l.s4 1934713408
    %v8532 = vunpack.c.0.s8 %v8531
    %v8533 = vlaneseq
    %v8534 = vshrl.u32 %v8533, 7
    %v8535 = vsub.s32 %v8532, %v8534
    %v8536 = vrot.slane %v8528, %v8535
    %v8538 = vunpack.c.l.s4 1934713408
    %v8539 = vunpack.c.0.s8 %v8538
    %v8540 = vlaneseq
    %v8541 = vshrl.u32 %v8540, 7
    %v8542 = vsub.s32 %v8539, %v8541
    %v8543 = vrot.slane %v8529, %v8542
    %v8544 = vcombine.high %v8520, 0.0
    %v8545 = vcombine.high %v8527, 0.0
    %v8546 = vcombine.high %v8536, 0.0
    %v8547 = vcombine.high %v8543, 0.0
    %v8548 = vcombine.low %v8452, %v8459
    %v8550 = vunpack.c.l.s4 1983009808
    %v8551 = vunpack.c.0.s8 %v8550
    %v8552 = vlaneseq
    %v8553 = vshrl.u32 %v8552, 7
    %v8554 = vsub.s32 %v8551, %v8553
    %v8555 = vrot.slane %v8548, %v8554
    %v8556 = vcombine.low %v8476, %v8477
    %v8558 = vunpack.c.l.s4 1983009808
    %v8559 = vunpack.c.0.s8 %v8558
    %v8560 = vlaneseq
    %v8561 = vshrl.u32 %v8560, 7
    %v8562 = vsub.s32 %v8559, %v8561
    %v8563 = vrot.slane %v8556, %v8562
    %v8564 = vcombine.low %v8468, %v8475
    %v8566 = vunpack.c.l.s4 1983009808
    %v8567 = vunpack.c.0.s8 %v8566
    %v8568 = vlaneseq
    %v8569 = vshrl.u32 %v8568, 7
    %v8570 = vsub.s32 %v8567, %v8569
    %v8571 = vrot.slane %v8564, %v8570
    %v8572 = vcombine.low %v8478, %v8479
    %v8574 = vunpack.c.l.s4 1983009808
    %v8575 = vunpack.c.0.s8 %v8574
    %v8576 = vlaneseq
    %v8577 = vshrl.u32 %v8576, 7
    %v8578 = vsub.s32 %v8575, %v8577
    %v8579 = vrot.slane %v8572, %v8578
    %v8580 = vcombine.low %v8555, %v8563
    %v8581 = vcombine.high %v8555, %v8563
    %v8583 = vunpack.c.l.s4 1934713408
    %v8584 = vunpack.c.0.s8 %v8583
    %v8585 = vlaneseq
    %v8586 = vshrl.u32 %v8585, 7
    %v8587 = vsub.s32 %v8584, %v8586
    %v8588 = vrot.slane %v8580, %v8587
    %v8590 = vunpack.c.l.s4 1934713408
    %v8591 = vunpack.c.0.s8 %v8590
    %v8592 = vlaneseq
    %v8593 = vshrl.u32 %v8592, 7
    %v8594 = vsub.s32 %v8591, %v8593
    %v8595 = vrot.slane %v8581, %v8594
    %v8596 = vcombine.low %v8571, %v8579
    %v8597 = vcombine.high %v8571, %v8579
    %v8599 = vunpack.c.l.s4 1934713408
    %v8600 = vunpack.c.0.s8 %v8599
    %v8601 = vlaneseq
    %v8602 = vshrl.u32 %v8601, 7
    %v8603 = vsub.s32 %v8600, %v8602
    %v8604 = vrot.slane %v8596, %v8603
    %v8606 = vunpack.c.l.s4 1934713408
    %v8607 = vunpack.c.0.s8 %v8606
    %v8608 = vlaneseq
    %v8609 = vshrl.u32 %v8608, 7
    %v8610 = vsub.s32 %v8607, %v8609
    %v8611 = vrot.slane %v8597, %v8610
    %v8612 = vcombine.low %v8588, %v8604
    %v8613 = vcombine.high %v8588, %v8604
    %v8614 = vcombine.low %v8595, %v8611
    %v8615 = vcombine.high %v8595, %v8611
    %v8616 = vcombine.low %v8520, %v8527
    %v8618 = vunpack.c.l.s4 1983009808
    %v8619 = vunpack.c.0.s8 %v8618
    %v8620 = vlaneseq
    %v8621 = vshrl.u32 %v8620, 7
    %v8622 = vsub.s32 %v8619, %v8621
    %v8623 = vrot.slane %v8616, %v8622
    %v8624 = vcombine.low %v8544, %v8545
    %v8626 = vunpack.c.l.s4 1983009808
    %v8627 = vunpack.c.0.s8 %v8626
    %v8628 = vlaneseq
    %v8629 = vshrl.u32 %v8628, 7
    %v8630 = vsub.s32 %v8627, %v8629
    %v8631 = vrot.slane %v8624, %v8630
    %v8632 = vcombine.low %v8536, %v8543
    %v8634 = vunpack.c.l.s4 1983009808
    %v8635 = vunpack.c.0.s8 %v8634
    %v8636 = vlaneseq
    %v8637 = vshrl.u32 %v8636, 7
    %v8638 = vsub.s32 %v8635, %v8637
    %v8639 = vrot.slane %v8632, %v8638
    %v8640 = vcombine.low %v8546, %v8547
    %v8642 = vunpack.c.l.s4 1983009808
    %v8643 = vunpack.c.0.s8 %v8642
    %v8644 = vlaneseq
    %v8645 = vshrl.u32 %v8644, 7
    %v8646 = vsub.s32 %v8643, %v8645
    %v8647 = vrot.slane %v8640, %v8646
    %v8648 = vcombine.low %v8623, %v8631
    %v8649 = vcombine.high %v8623, %v8631
    %v8651 = vunpack.c.l.s4 1934713408
    %v8652 = vunpack.c.0.s8 %v8651
    %v8653 = vlaneseq
    %v8654 = vshrl.u32 %v8653, 7
    %v8655 = vsub.s32 %v8652, %v8654
    %v8656 = vrot.slane %v8648, %v8655
    %v8658 = vunpack.c.l.s4 1934713408
    %v8659 = vunpack.c.0.s8 %v8658
    %v8660 = vlaneseq
    %v8661 = vshrl.u32 %v8660, 7
    %v8662 = vsub.s32 %v8659, %v8661
    %v8663 = vrot.slane %v8649, %v8662
    %v8664 = vcombine.low %v8639, %v8647
    %v8665 = vcombine.high %v8639, %v8647
    %v8667 = vunpack.c.l.s4 1934713408
    %v8668 = vunpack.c.0.s8 %v8667
    %v8669 = vlaneseq
    %v8670 = vshrl.u32 %v8669, 7
    %v8671 = vsub.s32 %v8668, %v8670
    %v8672 = vrot.slane %v8664, %v8671
    %v8674 = vunpack.c.l.s4 1934713408
    %v8675 = vunpack.c.0.s8 %v8674
    %v8676 = vlaneseq
    %v8677 = vshrl.u32 %v8676, 7
    %v8678 = vsub.s32 %v8675, %v8677
    %v8679 = vrot.slane %v8665, %v8678
    %v8680 = vcombine.low %v8656, %v8672
    %v8681 = vcombine.high %v8656, %v8672
    %v8682 = vcombine.low %v8663, %v8679
    %v8683 = vcombine.high %v8663, %v8679
    %8686 = vrot.lane.b32.xlu0 %v8613, 8
    %v8687 = vpop.permute.xlu0 %8686
    %8688 = vrot.lane.b32.xlu0 %v8681, 8
    %v8689 = vpop.permute.xlu0 %8688
    %8694 = vrot.lane.b32.xlu0 %v8614, 16
    %v8695 = vpop.permute.xlu0 %8694
    %8696 = vrot.lane.b32.xlu0 %v8682, 16
    %v8697 = vpop.permute.xlu0 %8696
    %8702 = vrot.lane.b32.xlu0 %v8615, 24
    %v8703 = vpop.permute.xlu0 %8702
    %8704 = vrot.lane.b32.xlu0 %v8683, 24
    %v8705 = vpop.permute.xlu0 %8704
    %v8708 = vsel %vm1274, %v8612, %v8687
    %v8709 = vsel %vm1274, %v8680, %v8689
    %v8710 = vsel %vm2425, %v8708, %v8695
    %v8711 = vsel %vm2425, %v8709, %v8697
    %v8712 = vsel %vm2427, %v8710, %v8703
    %v8713 = vsel %vm2427, %v8711, %v8705
    %s8714 = scalar_lea.vmem %s25, 16
    %v8715 = vld [vmem:[%s8714] sm:$0xf]
    %v8716 = vld [vmem:[%s8714 + $0x4] sm:$0xf]
    %v8717 = vld [vmem:[%s8714 + $0x8] sm:$0xf]
    %v8718 = vld [vmem:[%s8714 + $0xc] sm:$0xf]
    %v8719 = vpack.c.bf16 %v8713, %v8712
    %s8720 = scalar_lea.vmem %s27, 1
    %v8721 = vld [vmem:[%s8720] sm:$0x1]
    %v8723 = vlaneseq
    %v8724 = vshrl.u32 %v8723, 7
    %v8725 = vsub.s32 0, %v8724
    %v8726 = vrot.slane %v8721, %v8725
    %v8732 = vunpack.c.l.b16 %v8715
    %v8733 = vunpack.c.l.b16 %v8716
    %v8734 = vunpack.c.l.b16 %v8717
    %v8735 = vunpack.c.l.b16 %v8718
    %v8736 = vpack.c.b16 %v8733, %v8732
    %v8737 = vpack.c.b16 %v8735, %v8734
    %v8741 = vsel %vm137, %v8719, 0
    %8743 = vmatprep.subr.bf16.mxu0 0
    %8744 = vmatpush1.bf16.msra.mxu0 %v8736
    %8745 = vmatprep.subr.bf16.mxu0 0
    %8746 = vmatpush1.bf16.msra.mxu0 %v8737
    %8747 = vmatprep.subr.bf16.mxu0 0
    %8748 = vmatpush1.bf16.msra.mxu0 0
    %8749 = vmatprep.subr.bf16.mxu0 0
    %8750 = vmatpush1.bf16.msra.mxu0 0
    %8751 = vmatprep.subr.bf16.mxu0 0
    %8752 = vmatpush1.bf16.msra.mxu0 0
    %8753 = vmatprep.subr.bf16.mxu0 0
    %8754 = vmatpush1.bf16.msra.mxu0 0
    %8755 = vmatprep.subr.bf16.mxu0 0
    %8756 = vmatpush1.bf16.msra.mxu0 0
    %8757 = vmatprep.subr.bf16.mxu0 0
    %8758 = vmatpush1.bf16.msra.mxu0 0
    %8759 = vmatprep.subr.bf16.mxu0 0
    %8760 = vmatpush1.bf16.msra.mxu0 0
    %8761 = vmatprep.subr.bf16.mxu0 0
    %8762 = vmatpush1.bf16.msra.mxu0 0
    %8763 = vmatprep.subr.bf16.mxu0 0
    %8764 = vmatpush1.bf16.msra.mxu0 0
    %8765 = vmatprep.subr.bf16.mxu0 0
    %8766 = vmatpush1.bf16.msra.mxu0 0
    %8767 = vmatprep.subr.bf16.mxu0 0
    %8768 = vmatpush1.bf16.msra.mxu0 0
    %8769 = vmatprep.subr.bf16.mxu0 0
    %8770 = vmatpush1.bf16.msra.mxu0 0
    %8771 = vmatprep.subr.bf16.mxu0 0
    %8772 = vmatpush1.bf16.msra.mxu0 0
    %8773 = vmatprep.subr.bf16.mxu0 0
    %8774 = vmatpush1.bf16.msra.mxu0 0
    %8775 = vmatprep.mubr.bf16.mxu0 0
    %8776 = vmatmul.mubr.bf16.gmra.mrb[0].mxu0 %v8741
    %v8777 = vpop.f32.mrb[0].mxu0
    %v8778 = vadd.f32 %v8726, %v8777
    %v8779 = vpop.f32.mrb[0].mxu0
    %v8780 = vpop.f32.mrb[0].mxu0
    %v8781 = vadd.f32 %v8726, %v8780
    %v8782 = vpop.f32.mrb[0].mxu0
    %8783 = vdwg.mxu0
    %v8784 = vadd.f32 %v8778, %v6277
    %v8785 = vadd.f32 %v8781, %v6278
    %s8786 = scalar_lea.vmem %s29, 1
    %v8787 = vld [vmem:[%s8786] sm:$0x1]
    %s8788 = scalar_lea.vmem %s31, 1
    %v8789 = vld [vmem:[%s8788] sm:$0x1]
    %v8790 = vsel %vm137, %v8784, 0.0
    %8791 = vadd.xlane.f32.xlu0 %v8790
    %v8792 = vpop.xlane.xlu0 %8791
    %v8793 = vsel %vm137, %v8785, 0.0
    %8794 = vadd.xlane.f32.xlu0 %v8793
    %v8795 = vpop.xlane.xlu0 %8794
    %v8796 = vmul.f32 %v8792, %v144
    %v8797 = vmul.f32 %v8795, %v144
    %v8798 = vsub.f32 %v8784, %v8796
    %v8799 = vsub.f32 %v8785, %v8797
    %v8800 = vmul.f32 %v8798, %v8798
    %v8801 = vmul.f32 %v8799, %v8799
    %v8802 = vsel %vm137, %v8800, 0.0
    %8803 = vadd.xlane.f32.xlu0 %v8802
    %v8804 = vpop.xlane.xlu0 %8803
    %v8805 = vsel %vm137, %v8801, 0.0
    %8806 = vadd.xlane.f32.xlu0 %v8805
    %v8807 = vpop.xlane.xlu0 %8806
    %v8808 = vmul.f32 %v8804, %v144
    %v8809 = vmul.f32 %v8807, %v144
    %v8810 = vadd.f32 %v8808, 1e-12
    %v8811 = vadd.f32 %v8809, 1e-12
    %v8812 = vrsqrt.pop %v8810
    %v8813 = vrsqrt.pop %v8811
    %v8814 = vmul.f32 %v8798, %v8812
    %v8815 = vmul.f32 %v8799, %v8813
    %v8817 = vlaneseq
    %v8818 = vshrl.u32 %v8817, 7
    %v8819 = vsub.s32 0, %v8818
    %v8820 = vrot.slane %v8787, %v8819
    %v8822 = vmul.f32 %v8814, %v8820
    %v8823 = vmul.f32 %v8815, %v8820
    %v8825 = vlaneseq
    %v8826 = vshrl.u32 %v8825, 7
    %v8827 = vsub.s32 0, %v8826
    %v8828 = vrot.slane %v8789, %v8827
    %v8830 = vadd.f32 %v8822, %v8828
    %v8831 = vadd.f32 %v8823, %v8828
    %s8832 = scalar_lea.vmem %s33, 16
    %v8833 = vld [vmem:[%s8832] sm:$0xf]
    %v8834 = vld [vmem:[%s8832 + $0x4] sm:$0xf]
    %v8835 = vld [vmem:[%s8832 + $0x8] sm:$0xf]
    %v8836 = vld [vmem:[%s8832 + $0xc] sm:$0xf]
    %v8837 = vpack.c.bf16 %v8831, %v8830
    %s8838 = scalar_lea.vmem %s35, 1
    %v8839 = vld [vmem:[%s8838] sm:$0x1]
    %v8841 = vlaneseq
    %v8842 = vshrl.u32 %v8841, 7
    %v8843 = vsub.s32 0, %v8842
    %v8844 = vrot.slane %v8839, %v8843
    %v8850 = vunpack.c.l.b16 %v8833
    %v8851 = vunpack.c.l.b16 %v8834
    %v8852 = vunpack.c.l.b16 %v8835
    %v8853 = vunpack.c.l.b16 %v8836
    %v8854 = vpack.c.b16 %v8851, %v8850
    %v8855 = vpack.c.b16 %v8853, %v8852
    %v8859 = vsel %vm137, %v8837, 0
    %8861 = vmatprep.subr.bf16.mxu0 0
    %8862 = vmatpush1.bf16.msra.mxu0 %v8854
    %8863 = vmatprep.subr.bf16.mxu0 0
    %8864 = vmatpush1.bf16.msra.mxu0 %v8855
    %8865 = vmatprep.subr.bf16.mxu0 0
    %8866 = vmatpush1.bf16.msra.mxu0 0
    %8867 = vmatprep.subr.bf16.mxu0 0
    %8868 = vmatpush1.bf16.msra.mxu0 0
    %8869 = vmatprep.subr.bf16.mxu0 0
    %8870 = vmatpush1.bf16.msra.mxu0 0
    %8871 = vmatprep.subr.bf16.mxu0 0
    %8872 = vmatpush1.bf16.msra.mxu0 0
    %8873 = vmatprep.subr.bf16.mxu0 0
    %8874 = vmatpush1.bf16.msra.mxu0 0
    %8875 = vmatprep.subr.bf16.mxu0 0
    %8876 = vmatpush1.bf16.msra.mxu0 0
    %8877 = vmatprep.subr.bf16.mxu0 0
    %8878 = vmatpush1.bf16.msra.mxu0 0
    %8879 = vmatprep.subr.bf16.mxu0 0
    %8880 = vmatpush1.bf16.msra.mxu0 0
    %8881 = vmatprep.subr.bf16.mxu0 0
    %8882 = vmatpush1.bf16.msra.mxu0 0
    %8883 = vmatprep.subr.bf16.mxu0 0
    %8884 = vmatpush1.bf16.msra.mxu0 0
    %8885 = vmatprep.subr.bf16.mxu0 0
    %8886 = vmatpush1.bf16.msra.mxu0 0
    %8887 = vmatprep.subr.bf16.mxu0 0
    %8888 = vmatpush1.bf16.msra.mxu0 0
    %8889 = vmatprep.subr.bf16.mxu0 0
    %8890 = vmatpush1.bf16.msra.mxu0 0
    %8891 = vmatprep.subr.bf16.mxu0 0
    %8892 = vmatpush1.bf16.msra.mxu0 0
    %8893 = vmatprep.mubr.bf16.mxu0 0
    %8894 = vmatmul.mubr.bf16.gmra.mrb[0].mxu0 %v8859
    %v8895 = vpop.f32.mrb[0].mxu0
    %v8896 = vadd.f32 %v8844, %v8895
    %v8897 = vpop.f32.mrb[0].mxu0
    %v8898 = vpop.f32.mrb[0].mxu0
    %v8899 = vadd.f32 %v8844, %v8898
    %v8900 = vpop.f32.mrb[0].mxu0
    %8901 = vdwg.mxu0
    %s8902 = scalar_lea.vmem %s37, 16
    %v8903 = vld [vmem:[%s8902] sm:$0xf]
    %v8904 = vld [vmem:[%s8902 + $0x4] sm:$0xf]
    %v8905 = vld [vmem:[%s8902 + $0x8] sm:$0xf]
    %v8906 = vld [vmem:[%s8902 + $0xc] sm:$0xf]
    %s8907 = scalar_lea.vmem %s39, 1
    %v8908 = vld [vmem:[%s8907] sm:$0x1]
    %v8910 = vlaneseq
    %v8911 = vshrl.u32 %v8910, 7
    %v8912 = vsub.s32 0, %v8911
    %v8913 = vrot.slane %v8908, %v8912
    %v8919 = vunpack.c.l.b16 %v8903
    %v8920 = vunpack.c.l.b16 %v8904
    %v8921 = vunpack.c.l.b16 %v8905
    %v8922 = vunpack.c.l.b16 %v8906
    %v8923 = vpack.c.b16 %v8920, %v8919
    %v8924 = vpack.c.b16 %v8922, %v8921
    %8927 = vmatprep.subr.bf16.mxu0 0
    %8928 = vmatpush1.bf16.msra.mxu0 %v8923
    %8929 = vmatprep.subr.bf16.mxu0 0
    %8930 = vmatpush1.bf16.msra.mxu0 %v8924
    %8931 = vmatprep.subr.bf16.mxu0 0
    %8932 = vmatpush1.bf16.msra.mxu0 0
    %8933 = vmatprep.subr.bf16.mxu0 0
    %8934 = vmatpush1.bf16.msra.mxu0 0
    %8935 = vmatprep.subr.bf16.mxu0 0
    %8936 = vmatpush1.bf16.msra.mxu0 0
    %8937 = vmatprep.subr.bf16.mxu0 0
    %8938 = vmatpush1.bf16.msra.mxu0 0
    %8939 = vmatprep.subr.bf16.mxu0 0
    %8940 = vmatpush1.bf16.msra.mxu0 0
    %8941 = vmatprep.subr.bf16.mxu0 0
    %8942 = vmatpush1.bf16.msra.mxu0 0
    %8943 = vmatprep.subr.bf16.mxu0 0
    %8944 = vmatpush1.bf16.msra.mxu0 0
    %8945 = vmatprep.subr.bf16.mxu0 0
    %8946 = vmatpush1.bf16.msra.mxu0 0
    %8947 = vmatprep.subr.bf16.mxu0 0
    %8948 = vmatpush1.bf16.msra.mxu0 0
    %8949 = vmatprep.subr.bf16.mxu0 0
    %8950 = vmatpush1.bf16.msra.mxu0 0
    %8951 = vmatprep.subr.bf16.mxu0 0
    %8952 = vmatpush1.bf16.msra.mxu0 0
    %8953 = vmatprep.subr.bf16.mxu0 0
    %8954 = vmatpush1.bf16.msra.mxu0 0
    %8955 = vmatprep.subr.bf16.mxu0 0
    %8956 = vmatpush1.bf16.msra.mxu0 0
    %8957 = vmatprep.subr.bf16.mxu0 0
    %8958 = vmatpush1.bf16.msra.mxu0 0
    %8959 = vmatprep.mubr.bf16.mxu0 0
    %8960 = vmatmul.mubr.bf16.gmra.mrb[0].mxu0 %v2946
    %v8961 = vpop.f32.mrb[0].mxu0
    %v8962 = vadd.f32 %v8913, %v8961
    %v8963 = vpop.f32.mrb[0].mxu0
    %v8964 = vpop.f32.mrb[0].mxu0
    %v8965 = vadd.f32 %v8913, %v8964
    %v8966 = vpop.f32.mrb[0].mxu0
    %8967 = vmatprep.mubr.bf16.mxu0 0
    %8968 = vmatmul.mubr.bf16.gmra.mrb[0].mxu0 %v2949
    %v8969 = vpop.f32.mrb[0].mxu0
    %v8970 = vadd.f32 %v8913, %v8969
    %v8971 = vpop.f32.mrb[0].mxu0
    %v8972 = vpop.f32.mrb[0].mxu0
    %v8973 = vadd.f32 %v8913, %v8972
    %v8974 = vpop.f32.mrb[0].mxu0
    %8975 = vdwg.mxu0
    %8978 = vrot.lane.b32.xlu0 %v8896, 120
    %v8979 = vpop.permute.xlu0 %8978
    %8980 = vrot.lane.b32.xlu0 %v8899, 120
    %v8981 = vpop.permute.xlu0 %8980
    %8984 = vrot.lane.b32.xlu0 %v8896, 112
    %v8985 = vpop.permute.xlu0 %8984
    %8986 = vrot.lane.b32.xlu0 %v8899, 112
    %v8987 = vpop.permute.xlu0 %8986
    %8990 = vrot.lane.b32.xlu0 %v8896, 104
    %v8991 = vpop.permute.xlu0 %8990
    %8992 = vrot.lane.b32.xlu0 %v8899, 104
    %v8993 = vpop.permute.xlu0 %8992
    %v8996 = vcombine.low %v8896, %v8985
    %v8997 = vcombine.high %v8896, %v8985
    %v8999 = vunpack.c.l.s4 1983009808
    %v9000 = vunpack.c.0.s8 %v8999
    %v9001 = vlaneseq
    %v9002 = vshrl.u32 %v9001, 7
    %v9003 = vsub.s32 %v9000, %v9002
    %v9004 = vrot.slane %v8996, %v9003
    %v9006 = vunpack.c.l.s4 1983009808
    %v9007 = vunpack.c.0.s8 %v9006
    %v9008 = vlaneseq
    %v9009 = vshrl.u32 %v9008, 7
    %v9010 = vsub.s32 %v9007, %v9009
    %v9011 = vrot.slane %v8997, %v9010
    %v9012 = vcombine.low %v8979, %v8991
    %v9013 = vcombine.high %v8979, %v8991
    %v9015 = vunpack.c.l.s4 1983009808
    %v9016 = vunpack.c.0.s8 %v9015
    %v9017 = vlaneseq
    %v9018 = vshrl.u32 %v9017, 7
    %v9019 = vsub.s32 %v9016, %v9018
    %v9020 = vrot.slane %v9012, %v9019
    %v9022 = vunpack.c.l.s4 1983009808
    %v9023 = vunpack.c.0.s8 %v9022
    %v9024 = vlaneseq
    %v9025 = vshrl.u32 %v9024, 7
    %v9026 = vsub.s32 %v9023, %v9025
    %v9027 = vrot.slane %v9013, %v9026
    %v9028 = vcombine.low %v9004, %v9020
    %v9029 = vcombine.high %v9004, %v9020
    %v9031 = vunpack.c.l.s4 1934713408
    %v9032 = vunpack.c.0.s8 %v9031
    %v9033 = vlaneseq
    %v9034 = vshrl.u32 %v9033, 7
    %v9035 = vsub.s32 %v9032, %v9034
    %v9036 = vrot.slane %v9028, %v9035
    %v9038 = vunpack.c.l.s4 1934713408
    %v9039 = vunpack.c.0.s8 %v9038
    %v9040 = vlaneseq
    %v9041 = vshrl.u32 %v9040, 7
    %v9042 = vsub.s32 %v9039, %v9041
    %v9043 = vrot.slane %v9029, %v9042
    %v9044 = vcombine.low %v9011, %v9027
    %v9045 = vcombine.high %v9011, %v9027
    %v9047 = vunpack.c.l.s4 1934713408
    %v9048 = vunpack.c.0.s8 %v9047
    %v9049 = vlaneseq
    %v9050 = vshrl.u32 %v9049, 7
    %v9051 = vsub.s32 %v9048, %v9050
    %v9052 = vrot.slane %v9044, %v9051
    %v9054 = vunpack.c.l.s4 1934713408
    %v9055 = vunpack.c.0.s8 %v9054
    %v9056 = vlaneseq
    %v9057 = vshrl.u32 %v9056, 7
    %v9058 = vsub.s32 %v9055, %v9057
    %v9059 = vrot.slane %v9045, %v9058
    %v9060 = vcombine.high %v9036, 0.0
    %v9061 = vcombine.high %v9043, 0.0
    %v9062 = vcombine.high %v9052, 0.0
    %v9063 = vcombine.high %v9059, 0.0
    %v9064 = vcombine.low %v8899, %v8987
    %v9065 = vcombine.high %v8899, %v8987
    %v9067 = vunpack.c.l.s4 1983009808
    %v9068 = vunpack.c.0.s8 %v9067
    %v9069 = vlaneseq
    %v9070 = vshrl.u32 %v9069, 7
    %v9071 = vsub.s32 %v9068, %v9070
    %v9072 = vrot.slane %v9064, %v9071
    %v9074 = vunpack.c.l.s4 1983009808
    %v9075 = vunpack.c.0.s8 %v9074
    %v9076 = vlaneseq
    %v9077 = vshrl.u32 %v9076, 7
    %v9078 = vsub.s32 %v9075, %v9077
    %v9079 = vrot.slane %v9065, %v9078
    %v9080 = vcombine.low %v8981, %v8993
    %v9081 = vcombine.high %v8981, %v8993
    %v9083 = vunpack.c.l.s4 1983009808
    %v9084 = vunpack.c.0.s8 %v9083
    %v9085 = vlaneseq
    %v9086 = vshrl.u32 %v9085, 7
    %v9087 = vsub.s32 %v9084, %v9086
    %v9088 = vrot.slane %v9080, %v9087
    %v9090 = vunpack.c.l.s4 1983009808
    %v9091 = vunpack.c.0.s8 %v9090
    %v9092 = vlaneseq
    %v9093 = vshrl.u32 %v9092, 7
    %v9094 = vsub.s32 %v9091, %v9093
    %v9095 = vrot.slane %v9081, %v9094
    %v9096 = vcombine.low %v9072, %v9088
    %v9097 = vcombine.high %v9072, %v9088
    %v9099 = vunpack.c.l.s4 1934713408
    %v9100 = vunpack.c.0.s8 %v9099
    %v9101 = vlaneseq
    %v9102 = vshrl.u32 %v9101, 7
    %v9103 = vsub.s32 %v9100, %v9102
    %v9104 = vrot.slane %v9096, %v9103
    %v9106 = vunpack.c.l.s4 1934713408
    %v9107 = vunpack.c.0.s8 %v9106
    %v9108 = vlaneseq
    %v9109 = vshrl.u32 %v9108, 7
    %v9110 = vsub.s32 %v9107, %v9109
    %v9111 = vrot.slane %v9097, %v9110
    %v9112 = vcombine.low %v9079, %v9095
    %v9113 = vcombine.high %v9079, %v9095
    %v9115 = vunpack.c.l.s4 1934713408
    %v9116 = vunpack.c.0.s8 %v9115
    %v9117 = vlaneseq
    %v9118 = vshrl.u32 %v9117, 7
    %v9119 = vsub.s32 %v9116, %v9118
    %v9120 = vrot.slane %v9112, %v9119
    %v9122 = vunpack.c.l.s4 1934713408
    %v9123 = vunpack.c.0.s8 %v9122
    %v9124 = vlaneseq
    %v9125 = vshrl.u32 %v9124, 7
    %v9126 = vsub.s32 %v9123, %v9125
    %v9127 = vrot.slane %v9113, %v9126
    %v9128 = vcombine.high %v9104, 0.0
    %v9129 = vcombine.high %v9111, 0.0
    %v9130 = vcombine.high %v9120, 0.0
    %v9131 = vcombine.high %v9127, 0.0
    %v9132 = vcombine.low %v9036, %v9043
    %v9134 = vunpack.c.l.s4 1983009808
    %v9135 = vunpack.c.0.s8 %v9134
    %v9136 = vlaneseq
    %v9137 = vshrl.u32 %v9136, 7
    %v9138 = vsub.s32 %v9135, %v9137
    %v9139 = vrot.slane %v9132, %v9138
    %v9140 = vcombine.low %v9060, %v9061
    %v9142 = vunpack.c.l.s4 1983009808
    %v9143 = vunpack.c.0.s8 %v9142
    %v9144 = vlaneseq
    %v9145 = vshrl.u32 %v9144, 7
    %v9146 = vsub.s32 %v9143, %v9145
    %v9147 = vrot.slane %v9140, %v9146
    %v9148 = vcombine.low %v9052, %v9059
    %v9150 = vunpack.c.l.s4 1983009808
    %v9151 = vunpack.c.0.s8 %v9150
    %v9152 = vlaneseq
    %v9153 = vshrl.u32 %v9152, 7
    %v9154 = vsub.s32 %v9151, %v9153
    %v9155 = vrot.slane %v9148, %v9154
    %v9156 = vcombine.low %v9062, %v9063
    %v9158 = vunpack.c.l.s4 1983009808
    %v9159 = vunpack.c.0.s8 %v9158
    %v9160 = vlaneseq
    %v9161 = vshrl.u32 %v9160, 7
    %v9162 = vsub.s32 %v9159, %v9161
    %v9163 = vrot.slane %v9156, %v9162
    %v9164 = vcombine.low %v9139, %v9147
    %v9165 = vcombine.high %v9139, %v9147
    %v9167 = vunpack.c.l.s4 1934713408
    %v9168 = vunpack.c.0.s8 %v9167
    %v9169 = vlaneseq
    %v9170 = vshrl.u32 %v9169, 7
    %v9171 = vsub.s32 %v9168, %v9170
    %v9172 = vrot.slane %v9164, %v9171
    %v9174 = vunpack.c.l.s4 1934713408
    %v9175 = vunpack.c.0.s8 %v9174
    %v9176 = vlaneseq
    %v9177 = vshrl.u32 %v9176, 7
    %v9178 = vsub.s32 %v9175, %v9177
    %v9179 = vrot.slane %v9165, %v9178
    %v9180 = vcombine.low %v9155, %v9163
    %v9181 = vcombine.high %v9155, %v9163
    %v9183 = vunpack.c.l.s4 1934713408
    %v9184 = vunpack.c.0.s8 %v9183
    %v9185 = vlaneseq
    %v9186 = vshrl.u32 %v9185, 7
    %v9187 = vsub.s32 %v9184, %v9186
    %v9188 = vrot.slane %v9180, %v9187
    %v9190 = vunpack.c.l.s4 1934713408
    %v9191 = vunpack.c.0.s8 %v9190
    %v9192 = vlaneseq
    %v9193 = vshrl.u32 %v9192, 7
    %v9194 = vsub.s32 %v9191, %v9193
    %v9195 = vrot.slane %v9181, %v9194
    %v9196 = vcombine.low %v9172, %v9188
    %v9197 = vcombine.high %v9172, %v9188
    %v9198 = vcombine.low %v9179, %v9195
    %v9199 = vcombine.high %v9179, %v9195
    %v9200 = vcombine.low %v9104, %v9111
    %v9202 = vunpack.c.l.s4 1983009808
    %v9203 = vunpack.c.0.s8 %v9202
    %v9204 = vlaneseq
    %v9205 = vshrl.u32 %v9204, 7
    %v9206 = vsub.s32 %v9203, %v9205
    %v9207 = vrot.slane %v9200, %v9206
    %v9208 = vcombine.low %v9128, %v9129
    %v9210 = vunpack.c.l.s4 1983009808
    %v9211 = vunpack.c.0.s8 %v9210
    %v9212 = vlaneseq
    %v9213 = vshrl.u32 %v9212, 7
    %v9214 = vsub.s32 %v9211, %v9213
    %v9215 = vrot.slane %v9208, %v9214
    %v9216 = vcombine.low %v9120, %v9127
    %v9218 = vunpack.c.l.s4 1983009808
    %v9219 = vunpack.c.0.s8 %v9218
    %v9220 = vlaneseq
    %v9221 = vshrl.u32 %v9220, 7
    %v9222 = vsub.s32 %v9219, %v9221
    %v9223 = vrot.slane %v9216, %v9222
    %v9224 = vcombine.low %v9130, %v9131
    %v9226 = vunpack.c.l.s4 1983009808
    %v9227 = vunpack.c.0.s8 %v9226
    %v9228 = vlaneseq
    %v9229 = vshrl.u32 %v9228, 7
    %v9230 = vsub.s32 %v9227, %v9229
    %v9231 = vrot.slane %v9224, %v9230
    %v9232 = vcombine.low %v9207, %v9215
    %v9233 = vcombine.high %v9207, %v9215
    %v9235 = vunpack.c.l.s4 1934713408
    %v9236 = vunpack.c.0.s8 %v9235
    %v9237 = vlaneseq
    %v9238 = vshrl.u32 %v9237, 7
    %v9239 = vsub.s32 %v9236, %v9238
    %v9240 = vrot.slane %v9232, %v9239
    %v9242 = vunpack.c.l.s4 1934713408
    %v9243 = vunpack.c.0.s8 %v9242
    %v9244 = vlaneseq
    %v9245 = vshrl.u32 %v9244, 7
    %v9246 = vsub.s32 %v9243, %v9245
    %v9247 = vrot.slane %v9233, %v9246
    %v9248 = vcombine.low %v9223, %v9231
    %v9249 = vcombine.high %v9223, %v9231
    %v9251 = vunpack.c.l.s4 1934713408
    %v9252 = vunpack.c.0.s8 %v9251
    %v9253 = vlaneseq
    %v9254 = vshrl.u32 %v9253, 7
    %v9255 = vsub.s32 %v9252, %v9254
    %v9256 = vrot.slane %v9248, %v9255
    %v9258 = vunpack.c.l.s4 1934713408
    %v9259 = vunpack.c.0.s8 %v9258
    %v9260 = vlaneseq
    %v9261 = vshrl.u32 %v9260, 7
    %v9262 = vsub.s32 %v9259, %v9261
    %v9263 = vrot.slane %v9249, %v9262
    %v9264 = vcombine.low %v9240, %v9256
    %v9265 = vcombine.high %v9240, %v9256
    %v9266 = vcombine.low %v9247, %v9263
    %v9267 = vcombine.high %v9247, %v9263
    %v9268 = vpack.c.bf16 %v9196, %v9196
    %v9269 = vpack.c.bf16 %v9197, %v9197
    %v9270 = vpack.c.bf16 %v9198, %v9198
    %v9271 = vpack.c.bf16 %v9199, %v9199
    %v9272 = vpack.c.bf16 %v9264, %v9264
    %v9273 = vpack.c.bf16 %v9265, %v9265
    %v9274 = vpack.c.bf16 %v9266, %v9266
    %v9275 = vpack.c.bf16 %v9267, %v9267
    %9280 = vrot.lane.b32.xlu0 %v8962, 120
    %v9281 = vpop.permute.xlu0 %9280
    %9282 = vrot.lane.b32.xlu0 %v8965, 120
    %v9283 = vpop.permute.xlu0 %9282
    %9284 = vrot.lane.b32.xlu0 %v8970, 120
    %v9285 = vpop.permute.xlu0 %9284
    %9286 = vrot.lane.b32.xlu0 %v8973, 120
    %v9287 = vpop.permute.xlu0 %9286
    %9292 = vrot.lane.b32.xlu0 %v8962, 112
    %v9293 = vpop.permute.xlu0 %9292
    %9294 = vrot.lane.b32.xlu0 %v8965, 112
    %v9295 = vpop.permute.xlu0 %9294
    %9296 = vrot.lane.b32.xlu0 %v8970, 112
    %v9297 = vpop.permute.xlu0 %9296
    %9298 = vrot.lane.b32.xlu0 %v8973, 112
    %v9299 = vpop.permute.xlu0 %9298
    %9304 = vrot.lane.b32.xlu0 %v8962, 104
    %v9305 = vpop.permute.xlu0 %9304
    %9306 = vrot.lane.b32.xlu0 %v8965, 104
    %v9307 = vpop.permute.xlu0 %9306
    %9308 = vrot.lane.b32.xlu0 %v8970, 104
    %v9309 = vpop.permute.xlu0 %9308
    %9310 = vrot.lane.b32.xlu0 %v8973, 104
    %v9311 = vpop.permute.xlu0 %9310
    %v9316 = vcombine.low %v8962, %v9293
    %v9317 = vcombine.high %v8962, %v9293
    %v9319 = vunpack.c.l.s4 1983009808
    %v9320 = vunpack.c.0.s8 %v9319
    %v9321 = vlaneseq
    %v9322 = vshrl.u32 %v9321, 7
    %v9323 = vsub.s32 %v9320, %v9322
    %v9324 = vrot.slane %v9316, %v9323
    %v9326 = vunpack.c.l.s4 1983009808
    %v9327 = vunpack.c.0.s8 %v9326
    %v9328 = vlaneseq
    %v9329 = vshrl.u32 %v9328, 7
    %v9330 = vsub.s32 %v9327, %v9329
    %v9331 = vrot.slane %v9317, %v9330
    %v9332 = vcombine.low %v9281, %v9305
    %v9333 = vcombine.high %v9281, %v9305
    %v9335 = vunpack.c.l.s4 1983009808
    %v9336 = vunpack.c.0.s8 %v9335
    %v9337 = vlaneseq
    %v9338 = vshrl.u32 %v9337, 7
    %v9339 = vsub.s32 %v9336, %v9338
    %v9340 = vrot.slane %v9332, %v9339
    %v9342 = vunpack.c.l.s4 1983009808
    %v9343 = vunpack.c.0.s8 %v9342
    %v9344 = vlaneseq
    %v9345 = vshrl.u32 %v9344, 7
    %v9346 = vsub.s32 %v9343, %v9345
    %v9347 = vrot.slane %v9333, %v9346
    %v9348 = vcombine.low %v9324, %v9340
    %v9349 = vcombine.high %v9324, %v9340
    %v9351 = vunpack.c.l.s4 1934713408
    %v9352 = vunpack.c.0.s8 %v9351
    %v9353 = vlaneseq
    %v9354 = vshrl.u32 %v9353, 7
    %v9355 = vsub.s32 %v9352, %v9354
    %v9356 = vrot.slane %v9348, %v9355
    %v9358 = vunpack.c.l.s4 1934713408
    %v9359 = vunpack.c.0.s8 %v9358
    %v9360 = vlaneseq
    %v9361 = vshrl.u32 %v9360, 7
    %v9362 = vsub.s32 %v9359, %v9361
    %v9363 = vrot.slane %v9349, %v9362
    %v9364 = vcombine.low %v9331, %v9347
    %v9365 = vcombine.high %v9331, %v9347
    %v9367 = vunpack.c.l.s4 1934713408
    %v9368 = vunpack.c.0.s8 %v9367
    %v9369 = vlaneseq
    %v9370 = vshrl.u32 %v9369, 7
    %v9371 = vsub.s32 %v9368, %v9370
    %v9372 = vrot.slane %v9364, %v9371
    %v9374 = vunpack.c.l.s4 1934713408
    %v9375 = vunpack.c.0.s8 %v9374
    %v9376 = vlaneseq
    %v9377 = vshrl.u32 %v9376, 7
    %v9378 = vsub.s32 %v9375, %v9377
    %v9379 = vrot.slane %v9365, %v9378
    %v9380 = vcombine.high %v9356, 0.0
    %v9381 = vcombine.high %v9363, 0.0
    %v9382 = vcombine.high %v9372, 0.0
    %v9383 = vcombine.high %v9379, 0.0
    %v9384 = vcombine.low %v8965, %v9295
    %v9385 = vcombine.high %v8965, %v9295
    %v9387 = vunpack.c.l.s4 1983009808
    %v9388 = vunpack.c.0.s8 %v9387
    %v9389 = vlaneseq
    %v9390 = vshrl.u32 %v9389, 7
    %v9391 = vsub.s32 %v9388, %v9390
    %v9392 = vrot.slane %v9384, %v9391
    %v9394 = vunpack.c.l.s4 1983009808
    %v9395 = vunpack.c.0.s8 %v9394
    %v9396 = vlaneseq
    %v9397 = vshrl.u32 %v9396, 7
    %v9398 = vsub.s32 %v9395, %v9397
    %v9399 = vrot.slane %v9385, %v9398
    %v9400 = vcombine.low %v9283, %v9307
    %v9401 = vcombine.high %v9283, %v9307
    %v9403 = vunpack.c.l.s4 1983009808
    %v9404 = vunpack.c.0.s8 %v9403
    %v9405 = vlaneseq
    %v9406 = vshrl.u32 %v9405, 7
    %v9407 = vsub.s32 %v9404, %v9406
    %v9408 = vrot.slane %v9400, %v9407
    %v9410 = vunpack.c.l.s4 1983009808
    %v9411 = vunpack.c.0.s8 %v9410
    %v9412 = vlaneseq
    %v9413 = vshrl.u32 %v9412, 7
    %v9414 = vsub.s32 %v9411, %v9413
    %v9415 = vrot.slane %v9401, %v9414
    %v9416 = vcombine.low %v9392, %v9408
    %v9417 = vcombine.high %v9392, %v9408
    %v9419 = vunpack.c.l.s4 1934713408
    %v9420 = vunpack.c.0.s8 %v9419
    %v9421 = vlaneseq
    %v9422 = vshrl.u32 %v9421, 7
    %v9423 = vsub.s32 %v9420, %v9422
    %v9424 = vrot.slane %v9416, %v9423
    %v9426 = vunpack.c.l.s4 1934713408
    %v9427 = vunpack.c.0.s8 %v9426
    %v9428 = vlaneseq
    %v9429 = vshrl.u32 %v9428, 7
    %v9430 = vsub.s32 %v9427, %v9429
    %v9431 = vrot.slane %v9417, %v9430
    %v9432 = vcombine.low %v9399, %v9415
    %v9433 = vcombine.high %v9399, %v9415
    %v9435 = vunpack.c.l.s4 1934713408
    %v9436 = vunpack.c.0.s8 %v9435
    %v9437 = vlaneseq
    %v9438 = vshrl.u32 %v9437, 7
    %v9439 = vsub.s32 %v9436, %v9438
    %v9440 = vrot.slane %v9432, %v9439
    %v9442 = vunpack.c.l.s4 1934713408
    %v9443 = vunpack.c.0.s8 %v9442
    %v9444 = vlaneseq
    %v9445 = vshrl.u32 %v9444, 7
    %v9446 = vsub.s32 %v9443, %v9445
    %v9447 = vrot.slane %v9433, %v9446
    %v9448 = vcombine.high %v9424, 0.0
    %v9449 = vcombine.high %v9431, 0.0
    %v9450 = vcombine.high %v9440, 0.0
    %v9451 = vcombine.high %v9447, 0.0
    %v9452 = vcombine.low %v8970, %v9297
    %v9453 = vcombine.high %v8970, %v9297
    %v9455 = vunpack.c.l.s4 1983009808
    %v9456 = vunpack.c.0.s8 %v9455
    %v9457 = vlaneseq
    %v9458 = vshrl.u32 %v9457, 7
    %v9459 = vsub.s32 %v9456, %v9458
    %v9460 = vrot.slane %v9452, %v9459
    %v9462 = vunpack.c.l.s4 1983009808
    %v9463 = vunpack.c.0.s8 %v9462
    %v9464 = vlaneseq
    %v9465 = vshrl.u32 %v9464, 7
    %v9466 = vsub.s32 %v9463, %v9465
    %v9467 = vrot.slane %v9453, %v9466
    %v9468 = vcombine.low %v9285, %v9309
    %v9469 = vcombine.high %v9285, %v9309
    %v9471 = vunpack.c.l.s4 1983009808
    %v9472 = vunpack.c.0.s8 %v9471
    %v9473 = vlaneseq
    %v9474 = vshrl.u32 %v9473, 7
    %v9475 = vsub.s32 %v9472, %v9474
    %v9476 = vrot.slane %v9468, %v9475
    %v9478 = vunpack.c.l.s4 1983009808
    %v9479 = vunpack.c.0.s8 %v9478
    %v9480 = vlaneseq
    %v9481 = vshrl.u32 %v9480, 7
    %v9482 = vsub.s32 %v9479, %v9481
    %v9483 = vrot.slane %v9469, %v9482
    %v9484 = vcombine.low %v9460, %v9476
    %v9485 = vcombine.high %v9460, %v9476
    %v9487 = vunpack.c.l.s4 1934713408
    %v9488 = vunpack.c.0.s8 %v9487
    %v9489 = vlaneseq
    %v9490 = vshrl.u32 %v9489, 7
    %v9491 = vsub.s32 %v9488, %v9490
    %v9492 = vrot.slane %v9484, %v9491
    %v9494 = vunpack.c.l.s4 1934713408
    %v9495 = vunpack.c.0.s8 %v9494
    %v9496 = vlaneseq
    %v9497 = vshrl.u32 %v9496, 7
    %v9498 = vsub.s32 %v9495, %v9497
    %v9499 = vrot.slane %v9485, %v9498
    %v9500 = vcombine.low %v9467, %v9483
    %v9501 = vcombine.high %v9467, %v9483
    %v9503 = vunpack.c.l.s4 1934713408
    %v9504 = vunpack.c.0.s8 %v9503
    %v9505 = vlaneseq
    %v9506 = vshrl.u32 %v9505, 7
    %v9507 = vsub.s32 %v9504, %v9506
    %v9508 = vrot.slane %v9500, %v9507
    %v9510 = vunpack.c.l.s4 1934713408
    %v9511 = vunpack.c.0.s8 %v9510
    %v9512 = vlaneseq
    %v9513 = vshrl.u32 %v9512, 7
    %v9514 = vsub.s32 %v9511, %v9513
    %v9515 = vrot.slane %v9501, %v9514
    %v9516 = vcombine.high %v9492, 0.0
    %v9517 = vcombine.high %v9499, 0.0
    %v9518 = vcombine.high %v9508, 0.0
    %v9519 = vcombine.high %v9515, 0.0
    %v9520 = vcombine.low %v8973, %v9299
    %v9521 = vcombine.high %v8973, %v9299
    %v9523 = vunpack.c.l.s4 1983009808
    %v9524 = vunpack.c.0.s8 %v9523
    %v9525 = vlaneseq
    %v9526 = vshrl.u32 %v9525, 7
    %v9527 = vsub.s32 %v9524, %v9526
    %v9528 = vrot.slane %v9520, %v9527
    %v9530 = vunpack.c.l.s4 1983009808
    %v9531 = vunpack.c.0.s8 %v9530
    %v9532 = vlaneseq
    %v9533 = vshrl.u32 %v9532, 7
    %v9534 = vsub.s32 %v9531, %v9533
    %v9535 = vrot.slane %v9521, %v9534
    %v9536 = vcombine.low %v9287, %v9311
    %v9537 = vcombine.high %v9287, %v9311
    %v9539 = vunpack.c.l.s4 1983009808
    %v9540 = vunpack.c.0.s8 %v9539
    %v9541 = vlaneseq
    %v9542 = vshrl.u32 %v9541, 7
    %v9543 = vsub.s32 %v9540, %v9542
    %v9544 = vrot.slane %v9536, %v9543
    %v9546 = vunpack.c.l.s4 1983009808
    %v9547 = vunpack.c.0.s8 %v9546
    %v9548 = vlaneseq
    %v9549 = vshrl.u32 %v9548, 7
    %v9550 = vsub.s32 %v9547, %v9549
    %v9551 = vrot.slane %v9537, %v9550
    %v9552 = vcombine.low %v9528, %v9544
    %v9553 = vcombine.high %v9528, %v9544
    %v9555 = vunpack.c.l.s4 1934713408
    %v9556 = vunpack.c.0.s8 %v9555
    %v9557 = vlaneseq
    %v9558 = vshrl.u32 %v9557, 7
    %v9559 = vsub.s32 %v9556, %v9558
    %v9560 = vrot.slane %v9552, %v9559
    %v9562 = vunpack.c.l.s4 1934713408
    %v9563 = vunpack.c.0.s8 %v9562
    %v9564 = vlaneseq
    %v9565 = vshrl.u32 %v9564, 7
    %v9566 = vsub.s32 %v9563, %v9565
    %v9567 = vrot.slane %v9553, %v9566
    %v9568 = vcombine.low %v9535, %v9551
    %v9569 = vcombine.high %v9535, %v9551
    %v9571 = vunpack.c.l.s4 1934713408
    %v9572 = vunpack.c.0.s8 %v9571
    %v9573 = vlaneseq
    %v9574 = vshrl.u32 %v9573, 7
    %v9575 = vsub.s32 %v9572, %v9574
    %v9576 = vrot.slane %v9568, %v9575
    %v9578 = vunpack.c.l.s4 1934713408
    %v9579 = vunpack.c.0.s8 %v9578
    %v9580 = vlaneseq
    %v9581 = vshrl.u32 %v9580, 7
    %v9582 = vsub.s32 %v9579, %v9581
    %v9583 = vrot.slane %v9569, %v9582
    %v9584 = vcombine.high %v9560, 0.0
    %v9585 = vcombine.high %v9567, 0.0
    %v9586 = vcombine.high %v9576, 0.0
    %v9587 = vcombine.high %v9583, 0.0
    %v9588 = vcombine.low %v9356, %v9363
    %v9590 = vunpack.c.l.s4 1983009808
    %v9591 = vunpack.c.0.s8 %v9590
    %v9592 = vlaneseq
    %v9593 = vshrl.u32 %v9592, 7
    %v9594 = vsub.s32 %v9591, %v9593
    %v9595 = vrot.slane %v9588, %v9594
    %v9596 = vcombine.low %v9380, %v9381
    %v9598 = vunpack.c.l.s4 1983009808
    %v9599 = vunpack.c.0.s8 %v9598
    %v9600 = vlaneseq
    %v9601 = vshrl.u32 %v9600, 7
    %v9602 = vsub.s32 %v9599, %v9601
    %v9603 = vrot.slane %v9596, %v9602
    %v9604 = vcombine.low %v9372, %v9379
    %v9606 = vunpack.c.l.s4 1983009808
    %v9607 = vunpack.c.0.s8 %v9606
    %v9608 = vlaneseq
    %v9609 = vshrl.u32 %v9608, 7
    %v9610 = vsub.s32 %v9607, %v9609
    %v9611 = vrot.slane %v9604, %v9610
    %v9612 = vcombine.low %v9382, %v9383
    %v9614 = vunpack.c.l.s4 1983009808
    %v9615 = vunpack.c.0.s8 %v9614
    %v9616 = vlaneseq
    %v9617 = vshrl.u32 %v9616, 7
    %v9618 = vsub.s32 %v9615, %v9617
    %v9619 = vrot.slane %v9612, %v9618
    %v9620 = vcombine.low %v9595, %v9603
    %v9621 = vcombine.high %v9595, %v9603
    %v9623 = vunpack.c.l.s4 1934713408
    %v9624 = vunpack.c.0.s8 %v9623
    %v9625 = vlaneseq
    %v9626 = vshrl.u32 %v9625, 7
    %v9627 = vsub.s32 %v9624, %v9626
    %v9628 = vrot.slane %v9620, %v9627
    %v9630 = vunpack.c.l.s4 1934713408
    %v9631 = vunpack.c.0.s8 %v9630
    %v9632 = vlaneseq
    %v9633 = vshrl.u32 %v9632, 7
    %v9634 = vsub.s32 %v9631, %v9633
    %v9635 = vrot.slane %v9621, %v9634
    %v9636 = vcombine.low %v9611, %v9619
    %v9637 = vcombine.high %v9611, %v9619
    %v9639 = vunpack.c.l.s4 1934713408
    %v9640 = vunpack.c.0.s8 %v9639
    %v9641 = vlaneseq
    %v9642 = vshrl.u32 %v9641, 7
    %v9643 = vsub.s32 %v9640, %v9642
    %v9644 = vrot.slane %v9636, %v9643
    %v9646 = vunpack.c.l.s4 1934713408
    %v9647 = vunpack.c.0.s8 %v9646
    %v9648 = vlaneseq
    %v9649 = vshrl.u32 %v9648, 7
    %v9650 = vsub.s32 %v9647, %v9649
    %v9651 = vrot.slane %v9637, %v9650
    %v9652 = vcombine.low %v9628, %v9644
    %v9653 = vcombine.high %v9628, %v9644
    %v9654 = vcombine.low %v9635, %v9651
    %v9655 = vcombine.high %v9635, %v9651
    %v9656 = vcombine.low %v9424, %v9431
    %v9658 = vunpack.c.l.s4 1983009808
    %v9659 = vunpack.c.0.s8 %v9658
    %v9660 = vlaneseq
    %v9661 = vshrl.u32 %v9660, 7
    %v9662 = vsub.s32 %v9659, %v9661
    %v9663 = vrot.slane %v9656, %v9662
    %v9664 = vcombine.low %v9448, %v9449
    %v9666 = vunpack.c.l.s4 1983009808
    %v9667 = vunpack.c.0.s8 %v9666
    %v9668 = vlaneseq
    %v9669 = vshrl.u32 %v9668, 7
    %v9670 = vsub.s32 %v9667, %v9669
    %v9671 = vrot.slane %v9664, %v9670
    %v9672 = vcombine.low %v9440, %v9447
    %v9674 = vunpack.c.l.s4 1983009808
    %v9675 = vunpack.c.0.s8 %v9674
    %v9676 = vlaneseq
    %v9677 = vshrl.u32 %v9676, 7
    %v9678 = vsub.s32 %v9675, %v9677
    %v9679 = vrot.slane %v9672, %v9678
    %v9680 = vcombine.low %v9450, %v9451
    %v9682 = vunpack.c.l.s4 1983009808
    %v9683 = vunpack.c.0.s8 %v9682
    %v9684 = vlaneseq
    %v9685 = vshrl.u32 %v9684, 7
    %v9686 = vsub.s32 %v9683, %v9685
    %v9687 = vrot.slane %v9680, %v9686
    %v9688 = vcombine.low %v9663, %v9671
    %v9689 = vcombine.high %v9663, %v9671
    %v9691 = vunpack.c.l.s4 1934713408
    %v9692 = vunpack.c.0.s8 %v9691
    %v9693 = vlaneseq
    %v9694 = vshrl.u32 %v9693, 7
    %v9695 = vsub.s32 %v9692, %v9694
    %v9696 = vrot.slane %v9688, %v9695
    %v9698 = vunpack.c.l.s4 1934713408
    %v9699 = vunpack.c.0.s8 %v9698
    %v9700 = vlaneseq
    %v9701 = vshrl.u32 %v9700, 7
    %v9702 = vsub.s32 %v9699, %v9701
    %v9703 = vrot.slane %v9689, %v9702
    %v9704 = vcombine.low %v9679, %v9687
    %v9705 = vcombine.high %v9679, %v9687
    %v9707 = vunpack.c.l.s4 1934713408
    %v9708 = vunpack.c.0.s8 %v9707
    %v9709 = vlaneseq
    %v9710 = vshrl.u32 %v9709, 7
    %v9711 = vsub.s32 %v9708, %v9710
    %v9712 = vrot.slane %v9704, %v9711
    %v9714 = vunpack.c.l.s4 1934713408
    %v9715 = vunpack.c.0.s8 %v9714
    %v9716 = vlaneseq
    %v9717 = vshrl.u32 %v9716, 7
    %v9718 = vsub.s32 %v9715, %v9717
    %v9719 = vrot.slane %v9705, %v9718
    %v9720 = vcombine.low %v9696, %v9712
    %v9721 = vcombine.high %v9696, %v9712
    %v9722 = vcombine.low %v9703, %v9719
    %v9723 = vcombine.high %v9703, %v9719
    %v9724 = vcombine.low %v9492, %v9499
    %v9726 = vunpack.c.l.s4 1983009808
    %v9727 = vunpack.c.0.s8 %v9726
    %v9728 = vlaneseq
    %v9729 = vshrl.u32 %v9728, 7
    %v9730 = vsub.s32 %v9727, %v9729
    %v9731 = vrot.slane %v9724, %v9730
    %v9732 = vcombine.low %v9516, %v9517
    %v9734 = vunpack.c.l.s4 1983009808
    %v9735 = vunpack.c.0.s8 %v9734
    %v9736 = vlaneseq
    %v9737 = vshrl.u32 %v9736, 7
    %v9738 = vsub.s32 %v9735, %v9737
    %v9739 = vrot.slane %v9732, %v9738
    %v9740 = vcombine.low %v9508, %v9515
    %v9742 = vunpack.c.l.s4 1983009808
    %v9743 = vunpack.c.0.s8 %v9742
    %v9744 = vlaneseq
    %v9745 = vshrl.u32 %v9744, 7
    %v9746 = vsub.s32 %v9743, %v9745
    %v9747 = vrot.slane %v9740, %v9746
    %v9748 = vcombine.low %v9518, %v9519
    %v9750 = vunpack.c.l.s4 1983009808
    %v9751 = vunpack.c.0.s8 %v9750
    %v9752 = vlaneseq
    %v9753 = vshrl.u32 %v9752, 7
    %v9754 = vsub.s32 %v9751, %v9753
    %v9755 = vrot.slane %v9748, %v9754
    %v9756 = vcombine.low %v9731, %v9739
    %v9757 = vcombine.high %v9731, %v9739
    %v9759 = vunpack.c.l.s4 1934713408
    %v9760 = vunpack.c.0.s8 %v9759
    %v9761 = vlaneseq
    %v9762 = vshrl.u32 %v9761, 7
    %v9763 = vsub.s32 %v9760, %v9762
    %v9764 = vrot.slane %v9756, %v9763
    %v9766 = vunpack.c.l.s4 1934713408
    %v9767 = vunpack.c.0.s8 %v9766
    %v9768 = vlaneseq
    %v9769 = vshrl.u32 %v9768, 7
    %v9770 = vsub.s32 %v9767, %v9769
    %v9771 = vrot.slane %v9757, %v9770
    %v9772 = vcombine.low %v9747, %v9755
    %v9773 = vcombine.high %v9747, %v9755
    %v9775 = vunpack.c.l.s4 1934713408
    %v9776 = vunpack.c.0.s8 %v9775
    %v9777 = vlaneseq
    %v9778 = vshrl.u32 %v9777, 7
    %v9779 = vsub.s32 %v9776, %v9778
    %v9780 = vrot.slane %v9772, %v9779
    %v9782 = vunpack.c.l.s4 1934713408
    %v9783 = vunpack.c.0.s8 %v9782
    %v9784 = vlaneseq
    %v9785 = vshrl.u32 %v9784, 7
    %v9786 = vsub.s32 %v9783, %v9785
    %v9787 = vrot.slane %v9773, %v9786
    %v9788 = vcombine.low %v9764, %v9780
    %v9789 = vcombine.high %v9764, %v9780
    %v9790 = vcombine.low %v9771, %v9787
    %v9791 = vcombine.high %v9771, %v9787
    %v9792 = vcombine.low %v9560, %v9567
    %v9794 = vunpack.c.l.s4 1983009808
    %v9795 = vunpack.c.0.s8 %v9794
    %v9796 = vlaneseq
    %v9797 = vshrl.u32 %v9796, 7
    %v9798 = vsub.s32 %v9795, %v9797
    %v9799 = vrot.slane %v9792, %v9798
    %v9800 = vcombine.low %v9584, %v9585
    %v9802 = vunpack.c.l.s4 1983009808
    %v9803 = vunpack.c.0.s8 %v9802
    %v9804 = vlaneseq
    %v9805 = vshrl.u32 %v9804, 7
    %v9806 = vsub.s32 %v9803, %v9805
    %v9807 = vrot.slane %v9800, %v9806
    %v9808 = vcombine.low %v9576, %v9583
    %v9810 = vunpack.c.l.s4 1983009808
    %v9811 = vunpack.c.0.s8 %v9810
    %v9812 = vlaneseq
    %v9813 = vshrl.u32 %v9812, 7
    %v9814 = vsub.s32 %v9811, %v9813
    %v9815 = vrot.slane %v9808, %v9814
    %v9816 = vcombine.low %v9586, %v9587
    %v9818 = vunpack.c.l.s4 1983009808
    %v9819 = vunpack.c.0.s8 %v9818
    %v9820 = vlaneseq
    %v9821 = vshrl.u32 %v9820, 7
    %v9822 = vsub.s32 %v9819, %v9821
    %v9823 = vrot.slane %v9816, %v9822
    %v9824 = vcombine.low %v9799, %v9807
    %v9825 = vcombine.high %v9799, %v9807
    %v9827 = vunpack.c.l.s4 1934713408
    %v9828 = vunpack.c.0.s8 %v9827
    %v9829 = vlaneseq
    %v9830 = vshrl.u32 %v9829, 7
    %v9831 = vsub.s32 %v9828, %v9830
    %v9832 = vrot.slane %v9824, %v9831
    %v9834 = vunpack.c.l.s4 1934713408
    %v9835 = vunpack.c.0.s8 %v9834
    %v9836 = vlaneseq
    %v9837 = vshrl.u32 %v9836, 7
    %v9838 = vsub.s32 %v9835, %v9837
    %v9839 = vrot.slane %v9825, %v9838
    %v9840 = vcombine.low %v9815, %v9823
    %v9841 = vcombine.high %v9815, %v9823
    %v9843 = vunpack.c.l.s4 1934713408
    %v9844 = vunpack.c.0.s8 %v9843
    %v9845 = vlaneseq
    %v9846 = vshrl.u32 %v9845, 7
    %v9847 = vsub.s32 %v9844, %v9846
    %v9848 = vrot.slane %v9840, %v9847
    %v9850 = vunpack.c.l.s4 1934713408
    %v9851 = vunpack.c.0.s8 %v9850
    %v9852 = vlaneseq
    %v9853 = vshrl.u32 %v9852, 7
    %v9854 = vsub.s32 %v9851, %v9853
    %v9855 = vrot.slane %v9841, %v9854
    %v9856 = vcombine.low %v9832, %v9848
    %v9857 = vcombine.high %v9832, %v9848
    %v9858 = vcombine.low %v9839, %v9855
    %v9859 = vcombine.high %v9839, %v9855
    %v9860 = vpack.c.bf16 %v9720, %v9652
    %v9861 = vpack.c.bf16 %v9721, %v9653
    %v9862 = vpack.c.bf16 %v9722, %v9654
    %v9863 = vpack.c.bf16 %v9723, %v9655
    %v9864 = vpack.c.bf16 %v9856, %v9788
    %v9865 = vpack.c.bf16 %v9857, %v9789
    %v9866 = vpack.c.bf16 %v9858, %v9790
    %v9867 = vpack.c.bf16 %v9859, %v9791
    %9868 = vrot.lane.b32.xlu0 %v8962, 96
    %v9869 = vpop.permute.xlu0 %9868
    %9870 = vrot.lane.b32.xlu0 %v8965, 96
    %v9871 = vpop.permute.xlu0 %9870
    %9872 = vrot.lane.b32.xlu0 %v8970, 96
    %v9873 = vpop.permute.xlu0 %9872
    %9874 = vrot.lane.b32.xlu0 %v8973, 96
    %v9875 = vpop.permute.xlu0 %9874
    %9876 = vrot.lane.b32.xlu0 %v9281, 96
    %v9877 = vpop.permute.xlu0 %9876
    %9878 = vrot.lane.b32.xlu0 %v9283, 96
    %v9879 = vpop.permute.xlu0 %9878
    %9880 = vrot.lane.b32.xlu0 %v9285, 96
    %v9881 = vpop.permute.xlu0 %9880
    %9882 = vrot.lane.b32.xlu0 %v9287, 96
    %v9883 = vpop.permute.xlu0 %9882
    %9884 = vrot.lane.b32.xlu0 %v9293, 96
    %v9885 = vpop.permute.xlu0 %9884
    %9886 = vrot.lane.b32.xlu0 %v9295, 96
    %v9887 = vpop.permute.xlu0 %9886
    %9888 = vrot.lane.b32.xlu0 %v9297, 96
    %v9889 = vpop.permute.xlu0 %9888
    %9890 = vrot.lane.b32.xlu0 %v9299, 96
    %v9891 = vpop.permute.xlu0 %9890
    %9892 = vrot.lane.b32.xlu0 %v9305, 96
    %v9893 = vpop.permute.xlu0 %9892
    %9894 = vrot.lane.b32.xlu0 %v9307, 96
    %v9895 = vpop.permute.xlu0 %9894
    %9896 = vrot.lane.b32.xlu0 %v9309, 96
    %v9897 = vpop.permute.xlu0 %9896
    %9898 = vrot.lane.b32.xlu0 %v9311, 96
    %v9899 = vpop.permute.xlu0 %9898
    %v9916 = vcombine.low %v9869, %v9885
    %v9917 = vcombine.high %v9869, %v9885
    %v9919 = vunpack.c.l.s4 1983009808
    %v9920 = vunpack.c.0.s8 %v9919
    %v9921 = vlaneseq
    %v9922 = vshrl.u32 %v9921, 7
    %v9923 = vsub.s32 %v9920, %v9922
    %v9924 = vrot.slane %v9916, %v9923
    %v9926 = vunpack.c.l.s4 1983009808
    %v9927 = vunpack.c.0.s8 %v9926
    %v9928 = vlaneseq
    %v9929 = vshrl.u32 %v9928, 7
    %v9930 = vsub.s32 %v9927, %v9929
    %v9931 = vrot.slane %v9917, %v9930
    %v9932 = vcombine.low %v9877, %v9893
    %v9933 = vcombine.high %v9877, %v9893
    %v9935 = vunpack.c.l.s4 1983009808
    %v9936 = vunpack.c.0.s8 %v9935
    %v9937 = vlaneseq
    %v9938 = vshrl.u32 %v9937, 7
    %v9939 = vsub.s32 %v9936, %v9938
    %v9940 = vrot.slane %v9932, %v9939
    %v9942 = vunpack.c.l.s4 1983009808
    %v9943 = vunpack.c.0.s8 %v9942
    %v9944 = vlaneseq
    %v9945 = vshrl.u32 %v9944, 7
    %v9946 = vsub.s32 %v9943, %v9945
    %v9947 = vrot.slane %v9933, %v9946
    %v9948 = vcombine.low %v9924, %v9940
    %v9949 = vcombine.high %v9924, %v9940
    %v9951 = vunpack.c.l.s4 1934713408
    %v9952 = vunpack.c.0.s8 %v9951
    %v9953 = vlaneseq
    %v9954 = vshrl.u32 %v9953, 7
    %v9955 = vsub.s32 %v9952, %v9954
    %v9956 = vrot.slane %v9948, %v9955
    %v9958 = vunpack.c.l.s4 1934713408
    %v9959 = vunpack.c.0.s8 %v9958
    %v9960 = vlaneseq
    %v9961 = vshrl.u32 %v9960, 7
    %v9962 = vsub.s32 %v9959, %v9961
    %v9963 = vrot.slane %v9949, %v9962
    %v9964 = vcombine.low %v9931, %v9947
    %v9965 = vcombine.high %v9931, %v9947
    %v9967 = vunpack.c.l.s4 1934713408
    %v9968 = vunpack.c.0.s8 %v9967
    %v9969 = vlaneseq
    %v9970 = vshrl.u32 %v9969, 7
    %v9971 = vsub.s32 %v9968, %v9970
    %v9972 = vrot.slane %v9964, %v9971
    %v9974 = vunpack.c.l.s4 1934713408
    %v9975 = vunpack.c.0.s8 %v9974
    %v9976 = vlaneseq
    %v9977 = vshrl.u32 %v9976, 7
    %v9978 = vsub.s32 %v9975, %v9977
    %v9979 = vrot.slane %v9965, %v9978
    %v9980 = vcombine.high %v9956, 0.0
    %v9981 = vcombine.high %v9963, 0.0
    %v9982 = vcombine.high %v9972, 0.0
    %v9983 = vcombine.high %v9979, 0.0
    %v9984 = vcombine.low %v9871, %v9887
    %v9985 = vcombine.high %v9871, %v9887
    %v9987 = vunpack.c.l.s4 1983009808
    %v9988 = vunpack.c.0.s8 %v9987
    %v9989 = vlaneseq
    %v9990 = vshrl.u32 %v9989, 7
    %v9991 = vsub.s32 %v9988, %v9990
    %v9992 = vrot.slane %v9984, %v9991
    %v9994 = vunpack.c.l.s4 1983009808
    %v9995 = vunpack.c.0.s8 %v9994
    %v9996 = vlaneseq
    %v9997 = vshrl.u32 %v9996, 7
    %v9998 = vsub.s32 %v9995, %v9997
    %v9999 = vrot.slane %v9985, %v9998
    %v10000 = vcombine.low %v9879, %v9895
    %v10001 = vcombine.high %v9879, %v9895
    %v10003 = vunpack.c.l.s4 1983009808
    %v10004 = vunpack.c.0.s8 %v10003
    %v10005 = vlaneseq
    %v10006 = vshrl.u32 %v10005, 7
    %v10007 = vsub.s32 %v10004, %v10006
    %v10008 = vrot.slane %v10000, %v10007
    %v10010 = vunpack.c.l.s4 1983009808
    %v10011 = vunpack.c.0.s8 %v10010
    %v10012 = vlaneseq
    %v10013 = vshrl.u32 %v10012, 7
    %v10014 = vsub.s32 %v10011, %v10013
    %v10015 = vrot.slane %v10001, %v10014
    %v10016 = vcombine.low %v9992, %v10008
    %v10017 = vcombine.high %v9992, %v10008
    %v10019 = vunpack.c.l.s4 1934713408
    %v10020 = vunpack.c.0.s8 %v10019
    %v10021 = vlaneseq
    %v10022 = vshrl.u32 %v10021, 7
    %v10023 = vsub.s32 %v10020, %v10022
    %v10024 = vrot.slane %v10016, %v10023
    %v10026 = vunpack.c.l.s4 1934713408
    %v10027 = vunpack.c.0.s8 %v10026
    %v10028 = vlaneseq
    %v10029 = vshrl.u32 %v10028, 7
    %v10030 = vsub.s32 %v10027, %v10029
    %v10031 = vrot.slane %v10017, %v10030
    %v10032 = vcombine.low %v9999, %v10015
    %v10033 = vcombine.high %v9999, %v10015
    %v10035 = vunpack.c.l.s4 1934713408
    %v10036 = vunpack.c.0.s8 %v10035
    %v10037 = vlaneseq
    %v10038 = vshrl.u32 %v10037, 7
    %v10039 = vsub.s32 %v10036, %v10038
    %v10040 = vrot.slane %v10032, %v10039
    %v10042 = vunpack.c.l.s4 1934713408
    %v10043 = vunpack.c.0.s8 %v10042
    %v10044 = vlaneseq
    %v10045 = vshrl.u32 %v10044, 7
    %v10046 = vsub.s32 %v10043, %v10045
    %v10047 = vrot.slane %v10033, %v10046
    %v10048 = vcombine.high %v10024, 0.0
    %v10049 = vcombine.high %v10031, 0.0
    %v10050 = vcombine.high %v10040, 0.0
    %v10051 = vcombine.high %v10047, 0.0
    %v10052 = vcombine.low %v9873, %v9889
    %v10053 = vcombine.high %v9873, %v9889
    %v10055 = vunpack.c.l.s4 1983009808
    %v10056 = vunpack.c.0.s8 %v10055
    %v10057 = vlaneseq
    %v10058 = vshrl.u32 %v10057, 7
    %v10059 = vsub.s32 %v10056, %v10058
    %v10060 = vrot.slane %v10052, %v10059
    %v10062 = vunpack.c.l.s4 1983009808
    %v10063 = vunpack.c.0.s8 %v10062
    %v10064 = vlaneseq
    %v10065 = vshrl.u32 %v10064, 7
    %v10066 = vsub.s32 %v10063, %v10065
    %v10067 = vrot.slane %v10053, %v10066
    %v10068 = vcombine.low %v9881, %v9897
    %v10069 = vcombine.high %v9881, %v9897
    %v10071 = vunpack.c.l.s4 1983009808
    %v10072 = vunpack.c.0.s8 %v10071
    %v10073 = vlaneseq
    %v10074 = vshrl.u32 %v10073, 7
    %v10075 = vsub.s32 %v10072, %v10074
    %v10076 = vrot.slane %v10068, %v10075
    %v10078 = vunpack.c.l.s4 1983009808
    %v10079 = vunpack.c.0.s8 %v10078
    %v10080 = vlaneseq
    %v10081 = vshrl.u32 %v10080, 7
    %v10082 = vsub.s32 %v10079, %v10081
    %v10083 = vrot.slane %v10069, %v10082
    %v10084 = vcombine.low %v10060, %v10076
    %v10085 = vcombine.high %v10060, %v10076
    %v10087 = vunpack.c.l.s4 1934713408
    %v10088 = vunpack.c.0.s8 %v10087
    %v10089 = vlaneseq
    %v10090 = vshrl.u32 %v10089, 7
    %v10091 = vsub.s32 %v10088, %v10090
    %v10092 = vrot.slane %v10084, %v10091
    %v10094 = vunpack.c.l.s4 1934713408
    %v10095 = vunpack.c.0.s8 %v10094
    %v10096 = vlaneseq
    %v10097 = vshrl.u32 %v10096, 7
    %v10098 = vsub.s32 %v10095, %v10097
    %v10099 = vrot.slane %v10085, %v10098
    %v10100 = vcombine.low %v10067, %v10083
    %v10101 = vcombine.high %v10067, %v10083
    %v10103 = vunpack.c.l.s4 1934713408
    %v10104 = vunpack.c.0.s8 %v10103
    %v10105 = vlaneseq
    %v10106 = vshrl.u32 %v10105, 7
    %v10107 = vsub.s32 %v10104, %v10106
    %v10108 = vrot.slane %v10100, %v10107
    %v10110 = vunpack.c.l.s4 1934713408
    %v10111 = vunpack.c.0.s8 %v10110
    %v10112 = vlaneseq
    %v10113 = vshrl.u32 %v10112, 7
    %v10114 = vsub.s32 %v10111, %v10113
    %v10115 = vrot.slane %v10101, %v10114
    %v10116 = vcombine.high %v10092, 0.0
    %v10117 = vcombine.high %v10099, 0.0
    %v10118 = vcombine.high %v10108, 0.0
    %v10119 = vcombine.high %v10115, 0.0
    %v10120 = vcombine.low %v9875, %v9891
    %v10121 = vcombine.high %v9875, %v9891
    %v10123 = vunpack.c.l.s4 1983009808
    %v10124 = vunpack.c.0.s8 %v10123
    %v10125 = vlaneseq
    %v10126 = vshrl.u32 %v10125, 7
    %v10127 = vsub.s32 %v10124, %v10126
    %v10128 = vrot.slane %v10120, %v10127
    %v10130 = vunpack.c.l.s4 1983009808
    %v10131 = vunpack.c.0.s8 %v10130
    %v10132 = vlaneseq
    %v10133 = vshrl.u32 %v10132, 7
    %v10134 = vsub.s32 %v10131, %v10133
    %v10135 = vrot.slane %v10121, %v10134
    %v10136 = vcombine.low %v9883, %v9899
    %v10137 = vcombine.high %v9883, %v9899
    %v10139 = vunpack.c.l.s4 1983009808
    %v10140 = vunpack.c.0.s8 %v10139
    %v10141 = vlaneseq
    %v10142 = vshrl.u32 %v10141, 7
    %v10143 = vsub.s32 %v10140, %v10142
    %v10144 = vrot.slane %v10136, %v10143
    %v10146 = vunpack.c.l.s4 1983009808
    %v10147 = vunpack.c.0.s8 %v10146
    %v10148 = vlaneseq
    %v10149 = vshrl.u32 %v10148, 7
    %v10150 = vsub.s32 %v10147, %v10149
    %v10151 = vrot.slane %v10137, %v10150
    %v10152 = vcombine.low %v10128, %v10144
    %v10153 = vcombine.high %v10128, %v10144
    %v10155 = vunpack.c.l.s4 1934713408
    %v10156 = vunpack.c.0.s8 %v10155
    %v10157 = vlaneseq
    %v10158 = vshrl.u32 %v10157, 7
    %v10159 = vsub.s32 %v10156, %v10158
    %v10160 = vrot.slane %v10152, %v10159
    %v10162 = vunpack.c.l.s4 1934713408
    %v10163 = vunpack.c.0.s8 %v10162
    %v10164 = vlaneseq
    %v10165 = vshrl.u32 %v10164, 7
    %v10166 = vsub.s32 %v10163, %v10165
    %v10167 = vrot.slane %v10153, %v10166
    %v10168 = vcombine.low %v10135, %v10151
    %v10169 = vcombine.high %v10135, %v10151
    %v10171 = vunpack.c.l.s4 1934713408
    %v10172 = vunpack.c.0.s8 %v10171
    %v10173 = vlaneseq
    %v10174 = vshrl.u32 %v10173, 7
    %v10175 = vsub.s32 %v10172, %v10174
    %v10176 = vrot.slane %v10168, %v10175
    %v10178 = vunpack.c.l.s4 1934713408
    %v10179 = vunpack.c.0.s8 %v10178
    %v10180 = vlaneseq
    %v10181 = vshrl.u32 %v10180, 7
    %v10182 = vsub.s32 %v10179, %v10181
    %v10183 = vrot.slane %v10169, %v10182
    %v10184 = vcombine.high %v10160, 0.0
    %v10185 = vcombine.high %v10167, 0.0
    %v10186 = vcombine.high %v10176, 0.0
    %v10187 = vcombine.high %v10183, 0.0
    %v10188 = vcombine.low %v9956, %v9963
    %v10190 = vunpack.c.l.s4 1983009808
    %v10191 = vunpack.c.0.s8 %v10190
    %v10192 = vlaneseq
    %v10193 = vshrl.u32 %v10192, 7
    %v10194 = vsub.s32 %v10191, %v10193
    %v10195 = vrot.slane %v10188, %v10194
    %v10196 = vcombine.low %v9980, %v9981
    %v10198 = vunpack.c.l.s4 1983009808
    %v10199 = vunpack.c.0.s8 %v10198
    %v10200 = vlaneseq
    %v10201 = vshrl.u32 %v10200, 7
    %v10202 = vsub.s32 %v10199, %v10201
    %v10203 = vrot.slane %v10196, %v10202
    %v10204 = vcombine.low %v9972, %v9979
    %v10206 = vunpack.c.l.s4 1983009808
    %v10207 = vunpack.c.0.s8 %v10206
    %v10208 = vlaneseq
    %v10209 = vshrl.u32 %v10208, 7
    %v10210 = vsub.s32 %v10207, %v10209
    %v10211 = vrot.slane %v10204, %v10210
    %v10212 = vcombine.low %v9982, %v9983
    %v10214 = vunpack.c.l.s4 1983009808
    %v10215 = vunpack.c.0.s8 %v10214
    %v10216 = vlaneseq
    %v10217 = vshrl.u32 %v10216, 7
    %v10218 = vsub.s32 %v10215, %v10217
    %v10219 = vrot.slane %v10212, %v10218
    %v10220 = vcombine.low %v10195, %v10203
    %v10221 = vcombine.high %v10195, %v10203
    %v10223 = vunpack.c.l.s4 1934713408
    %v10224 = vunpack.c.0.s8 %v10223
    %v10225 = vlaneseq
    %v10226 = vshrl.u32 %v10225, 7
    %v10227 = vsub.s32 %v10224, %v10226
    %v10228 = vrot.slane %v10220, %v10227
    %v10230 = vunpack.c.l.s4 1934713408
    %v10231 = vunpack.c.0.s8 %v10230
    %v10232 = vlaneseq
    %v10233 = vshrl.u32 %v10232, 7
    %v10234 = vsub.s32 %v10231, %v10233
    %v10235 = vrot.slane %v10221, %v10234
    %v10236 = vcombine.low %v10211, %v10219
    %v10237 = vcombine.high %v10211, %v10219
    %v10239 = vunpack.c.l.s4 1934713408
    %v10240 = vunpack.c.0.s8 %v10239
    %v10241 = vlaneseq
    %v10242 = vshrl.u32 %v10241, 7
    %v10243 = vsub.s32 %v10240, %v10242
    %v10244 = vrot.slane %v10236, %v10243
    %v10246 = vunpack.c.l.s4 1934713408
    %v10247 = vunpack.c.0.s8 %v10246
    %v10248 = vlaneseq
    %v10249 = vshrl.u32 %v10248, 7
    %v10250 = vsub.s32 %v10247, %v10249
    %v10251 = vrot.slane %v10237, %v10250
    %v10252 = vcombine.low %v10228, %v10244
    %v10253 = vcombine.high %v10228, %v10244
    %v10254 = vcombine.low %v10235, %v10251
    %v10255 = vcombine.high %v10235, %v10251
    %v10256 = vcombine.low %v10024, %v10031
    %v10258 = vunpack.c.l.s4 1983009808
    %v10259 = vunpack.c.0.s8 %v10258
    %v10260 = vlaneseq
    %v10261 = vshrl.u32 %v10260, 7
    %v10262 = vsub.s32 %v10259, %v10261
    %v10263 = vrot.slane %v10256, %v10262
    %v10264 = vcombine.low %v10048, %v10049
    %v10266 = vunpack.c.l.s4 1983009808
    %v10267 = vunpack.c.0.s8 %v10266
    %v10268 = vlaneseq
    %v10269 = vshrl.u32 %v10268, 7
    %v10270 = vsub.s32 %v10267, %v10269
    %v10271 = vrot.slane %v10264, %v10270
    %v10272 = vcombine.low %v10040, %v10047
    %v10274 = vunpack.c.l.s4 1983009808
    %v10275 = vunpack.c.0.s8 %v10274
    %v10276 = vlaneseq
    %v10277 = vshrl.u32 %v10276, 7
    %v10278 = vsub.s32 %v10275, %v10277
    %v10279 = vrot.slane %v10272, %v10278
    %v10280 = vcombine.low %v10050, %v10051
    %v10282 = vunpack.c.l.s4 1983009808
    %v10283 = vunpack.c.0.s8 %v10282
    %v10284 = vlaneseq
    %v10285 = vshrl.u32 %v10284, 7
    %v10286 = vsub.s32 %v10283, %v10285
    %v10287 = vrot.slane %v10280, %v10286
    %v10288 = vcombine.low %v10263, %v10271
    %v10289 = vcombine.high %v10263, %v10271
    %v10291 = vunpack.c.l.s4 1934713408
    %v10292 = vunpack.c.0.s8 %v10291
    %v10293 = vlaneseq
    %v10294 = vshrl.u32 %v10293, 7
    %v10295 = vsub.s32 %v10292, %v10294
    %v10296 = vrot.slane %v10288, %v10295
    %v10298 = vunpack.c.l.s4 1934713408
    %v10299 = vunpack.c.0.s8 %v10298
    %v10300 = vlaneseq
    %v10301 = vshrl.u32 %v10300, 7
    %v10302 = vsub.s32 %v10299, %v10301
    %v10303 = vrot.slane %v10289, %v10302
    %v10304 = vcombine.low %v10279, %v10287
    %v10305 = vcombine.high %v10279, %v10287
    %v10307 = vunpack.c.l.s4 1934713408
    %v10308 = vunpack.c.0.s8 %v10307
    %v10309 = vlaneseq
    %v10310 = vshrl.u32 %v10309, 7
    %v10311 = vsub.s32 %v10308, %v10310
    %v10312 = vrot.slane %v10304, %v10311
    %v10314 = vunpack.c.l.s4 1934713408
    %v10315 = vunpack.c.0.s8 %v10314
    %v10316 = vlaneseq
    %v10317 = vshrl.u32 %v10316, 7
    %v10318 = vsub.s32 %v10315, %v10317
    %v10319 = vrot.slane %v10305, %v10318
    %v10320 = vcombine.low %v10296, %v10312
    %v10321 = vcombine.high %v10296, %v10312
    %v10322 = vcombine.low %v10303, %v10319
    %v10323 = vcombine.high %v10303, %v10319
    %v10324 = vcombine.low %v10092, %v10099
    %v10326 = vunpack.c.l.s4 1983009808
    %v10327 = vunpack.c.0.s8 %v10326
    %v10328 = vlaneseq
    %v10329 = vshrl.u32 %v10328, 7
    %v10330 = vsub.s32 %v10327, %v10329
    %v10331 = vrot.slane %v10324, %v10330
    %v10332 = vcombine.low %v10116, %v10117
    %v10334 = vunpack.c.l.s4 1983009808
    %v10335 = vunpack.c.0.s8 %v10334
    %v10336 = vlaneseq
    %v10337 = vshrl.u32 %v10336, 7
    %v10338 = vsub.s32 %v10335, %v10337
    %v10339 = vrot.slane %v10332, %v10338
    %v10340 = vcombine.low %v10108, %v10115
    %v10342 = vunpack.c.l.s4 1983009808
    %v10343 = vunpack.c.0.s8 %v10342
    %v10344 = vlaneseq
    %v10345 = vshrl.u32 %v10344, 7
    %v10346 = vsub.s32 %v10343, %v10345
    %v10347 = vrot.slane %v10340, %v10346
    %v10348 = vcombine.low %v10118, %v10119
    %v10350 = vunpack.c.l.s4 1983009808
    %v10351 = vunpack.c.0.s8 %v10350
    %v10352 = vlaneseq
    %v10353 = vshrl.u32 %v10352, 7
    %v10354 = vsub.s32 %v10351, %v10353
    %v10355 = vrot.slane %v10348, %v10354
    %v10356 = vcombine.low %v10331, %v10339
    %v10357 = vcombine.high %v10331, %v10339
    %v10359 = vunpack.c.l.s4 1934713408
    %v10360 = vunpack.c.0.s8 %v10359
    %v10361 = vlaneseq
    %v10362 = vshrl.u32 %v10361, 7
    %v10363 = vsub.s32 %v10360, %v10362
    %v10364 = vrot.slane %v10356, %v10363
    %v10366 = vunpack.c.l.s4 1934713408
    %v10367 = vunpack.c.0.s8 %v10366
    %v10368 = vlaneseq
    %v10369 = vshrl.u32 %v10368, 7
    %v10370 = vsub.s32 %v10367, %v10369
    %v10371 = vrot.slane %v10357, %v10370
    %v10372 = vcombine.low %v10347, %v10355
    %v10373 = vcombine.high %v10347, %v10355
    %v10375 = vunpack.c.l.s4 1934713408
    %v10376 = vunpack.c.0.s8 %v10375
    %v10377 = vlaneseq
    %v10378 = vshrl.u32 %v10377, 7
    %v10379 = vsub.s32 %v10376, %v10378
    %v10380 = vrot.slane %v10372, %v10379
    %v10382 = vunpack.c.l.s4 1934713408
    %v10383 = vunpack.c.0.s8 %v10382
    %v10384 = vlaneseq
    %v10385 = vshrl.u32 %v10384, 7
    %v10386 = vsub.s32 %v10383, %v10385
    %v10387 = vrot.slane %v10373, %v10386
    %v10388 = vcombine.low %v10364, %v10380
    %v10389 = vcombine.high %v10364, %v10380
    %v10390 = vcombine.low %v10371, %v10387
    %v10391 = vcombine.high %v10371, %v10387
    %v10392 = vcombine.low %v10160, %v10167
    %v10394 = vunpack.c.l.s4 1983009808
    %v10395 = vunpack.c.0.s8 %v10394
    %v10396 = vlaneseq
    %v10397 = vshrl.u32 %v10396, 7
    %v10398 = vsub.s32 %v10395, %v10397
    %v10399 = vrot.slane %v10392, %v10398
    %v10400 = vcombine.low %v10184, %v10185
    %v10402 = vunpack.c.l.s4 1983009808
    %v10403 = vunpack.c.0.s8 %v10402
    %v10404 = vlaneseq
    %v10405 = vshrl.u32 %v10404, 7
    %v10406 = vsub.s32 %v10403, %v10405
    %v10407 = vrot.slane %v10400, %v10406
    %v10408 = vcombine.low %v10176, %v10183
    %v10410 = vunpack.c.l.s4 1983009808
    %v10411 = vunpack.c.0.s8 %v10410
    %v10412 = vlaneseq
    %v10413 = vshrl.u32 %v10412, 7
    %v10414 = vsub.s32 %v10411, %v10413
    %v10415 = vrot.slane %v10408, %v10414
    %v10416 = vcombine.low %v10186, %v10187
    %v10418 = vunpack.c.l.s4 1983009808
    %v10419 = vunpack.c.0.s8 %v10418
    %v10420 = vlaneseq
    %v10421 = vshrl.u32 %v10420, 7
    %v10422 = vsub.s32 %v10419, %v10421
    %v10423 = vrot.slane %v10416, %v10422
    %v10424 = vcombine.low %v10399, %v10407
    %v10425 = vcombine.high %v10399, %v10407
    %v10427 = vunpack.c.l.s4 1934713408
    %v10428 = vunpack.c.0.s8 %v10427
    %v10429 = vlaneseq
    %v10430 = vshrl.u32 %v10429, 7
    %v10431 = vsub.s32 %v10428, %v10430
    %v10432 = vrot.slane %v10424, %v10431
    %v10434 = vunpack.c.l.s4 1934713408
    %v10435 = vunpack.c.0.s8 %v10434
    %v10436 = vlaneseq
    %v10437 = vshrl.u32 %v10436, 7
    %v10438 = vsub.s32 %v10435, %v10437
    %v10439 = vrot.slane %v10425, %v10438
    %v10440 = vcombine.low %v10415, %v10423
    %v10441 = vcombine.high %v10415, %v10423
    %v10443 = vunpack.c.l.s4 1934713408
    %v10444 = vunpack.c.0.s8 %v10443
    %v10445 = vlaneseq
    %v10446 = vshrl.u32 %v10445, 7
    %v10447 = vsub.s32 %v10444, %v10446
    %v10448 = vrot.slane %v10440, %v10447
    %v10450 = vunpack.c.l.s4 1934713408
    %v10451 = vunpack.c.0.s8 %v10450
    %v10452 = vlaneseq
    %v10453 = vshrl.u32 %v10452, 7
    %v10454 = vsub.s32 %v10451, %v10453
    %v10455 = vrot.slane %v10441, %v10454
    %v10456 = vcombine.low %v10432, %v10448
    %v10457 = vcombine.high %v10432, %v10448
    %v10458 = vcombine.low %v10439, %v10455
    %v10459 = vcombine.high %v10439, %v10455
    %v10460 = vpack.c.bf16 %v10320, %v10252
    %v10461 = vpack.c.bf16 %v10321, %v10253
    %v10462 = vpack.c.bf16 %v10322, %v10254
    %v10463 = vpack.c.bf16 %v10323, %v10255
    %v10464 = vpack.c.bf16 %v10456, %v10388
    %v10465 = vpack.c.bf16 %v10457, %v10389
    %v10466 = vpack.c.bf16 %v10458, %v10390
    %v10467 = vpack.c.bf16 %v10459, %v10391
    %v10469 = vsel %vm1274, %v9268, 0
    %v10472 = vsel %vm1274, %v9860, 0
    %10474 = vmatprep.subr.bf16.mxu0 0
    %10475 = vmatpush1.bf16.xpose.msra.mxu0 %v10472
    %10476 = vmatprep.subr.bf16.mxu0 0
    %10477 = vmatpush1.bf16.xpose.msra.mxu0 0
    %10478 = vmatprep.subr.bf16.mxu0 0
    %10479 = vmatpush1.bf16.xpose.msra.mxu0 0
    %10480 = vmatprep.subr.bf16.mxu0 0
    %10481 = vmatpush1.bf16.xpose.msra.mxu0 0
    %10482 = vmatprep.subr.bf16.mxu0 0
    %10483 = vmatpush1.bf16.xpose.msra.mxu0 0
    %10484 = vmatprep.subr.bf16.mxu0 0
    %10485 = vmatpush1.bf16.xpose.msra.mxu0 0
    %10486 = vmatprep.subr.bf16.mxu0 0
    %10487 = vmatpush1.bf16.xpose.msra.mxu0 0
    %10488 = vmatprep.subr.bf16.mxu0 0
    %10489 = vmatpush1.bf16.xpose.msra.mxu0 0
    %10490 = vmatprep.subr.bf16.mxu0 0
    %10491 = vmatpush1.bf16.xpose.msra.mxu0 0
    %10492 = vmatprep.subr.bf16.mxu0 0
    %10493 = vmatpush1.bf16.xpose.msra.mxu0 0
    %10494 = vmatprep.subr.bf16.mxu0 0
    %10495 = vmatpush1.bf16.xpose.msra.mxu0 0
    %10496 = vmatprep.subr.bf16.mxu0 0
    %10497 = vmatpush1.bf16.xpose.msra.mxu0 0
    %10498 = vmatprep.subr.bf16.mxu0 0
    %10499 = vmatpush1.bf16.xpose.msra.mxu0 0
    %10500 = vmatprep.subr.bf16.mxu0 0
    %10501 = vmatpush1.bf16.xpose.msra.mxu0 0
    %10502 = vmatprep.subr.bf16.mxu0 0
    %10503 = vmatpush1.bf16.xpose.msra.mxu0 0
    %10504 = vmatprep.subr.bf16.mxu0 0
    %10505 = vmatpush1.bf16.xpose.msra.mxu0 0
    %10506 = vmatprep.mubr.bf16.mxu0 0
    %10507 = vmatmul.mubr.bf16.gmra.mrb[0].mxu0 %v10469
    %v10508 = vpop.f32.mrb[0].mxu0
    %v10509 = vadd.f32 0.0, %v10508
    %v10510 = vpop.f32.mrb[0].mxu0
    %v10511 = vpop.f32.mrb[0].mxu0
    %v10512 = vpop.f32.mrb[0].mxu0
    %10513 = vdwg.mxu0
    %v10515 = vsel %vm1274, %v9269, 0
    %v10518 = vsel %vm1274, %v9861, 0
    %10520 = vmatprep.subr.bf16.mxu0 0
    %10521 = vmatpush1.bf16.xpose.msra.mxu0 %v10518
    %10522 = vmatprep.subr.bf16.mxu0 0
    %10523 = vmatpush1.bf16.xpose.msra.mxu0 0
    %10524 = vmatprep.subr.bf16.mxu0 0
    %10525 = vmatpush1.bf16.xpose.msra.mxu0 0
    %10526 = vmatprep.subr.bf16.mxu0 0
    %10527 = vmatpush1.bf16.xpose.msra.mxu0 0
    %10528 = vmatprep.subr.bf16.mxu0 0
    %10529 = vmatpush1.bf16.xpose.msra.mxu0 0
    %10530 = vmatprep.subr.bf16.mxu0 0
    %10531 = vmatpush1.bf16.xpose.msra.mxu0 0
    %10532 = vmatprep.subr.bf16.mxu0 0
    %10533 = vmatpush1.bf16.xpose.msra.mxu0 0
    %10534 = vmatprep.subr.bf16.mxu0 0
    %10535 = vmatpush1.bf16.xpose.msra.mxu0 0
    %10536 = vmatprep.subr.bf16.mxu0 0
    %10537 = vmatpush1.bf16.xpose.msra.mxu0 0
    %10538 = vmatprep.subr.bf16.mxu0 0
    %10539 = vmatpush1.bf16.xpose.msra.mxu0 0
    %10540 = vmatprep.subr.bf16.mxu0 0
    %10541 = vmatpush1.bf16.xpose.msra.mxu0 0
    %10542 = vmatprep.subr.bf16.mxu0 0
    %10543 = vmatpush1.bf16.xpose.msra.mxu0 0
    %10544 = vmatprep.subr.bf16.mxu0 0
    %10545 = vmatpush1.bf16.xpose.msra.mxu0 0
    %10546 = vmatprep.subr.bf16.mxu0 0
    %10547 = vmatpush1.bf16.xpose.msra.mxu0 0
    %10548 = vmatprep.subr.bf16.mxu0 0
    %10549 = vmatpush1.bf16.xpose.msra.mxu0 0
    %10550 = vmatprep.subr.bf16.mxu0 0
    %10551 = vmatpush1.bf16.xpose.msra.mxu0 0
    %10552 = vmatprep.mubr.bf16.mxu0 0
    %10553 = vmatmul.mubr.bf16.gmra.mrb[0].mxu0 %v10515
    %v10554 = vpop.f32.mrb[0].mxu0
    %v10555 = vadd.f32 0.0, %v10554
    %v10556 = vpop.f32.mrb[0].mxu0
    %v10557 = vpop.f32.mrb[0].mxu0
    %v10558 = vpop.f32.mrb[0].mxu0
    %10559 = vdwg.mxu0
    %v10561 = vsel %vm1274, %v9270, 0
    %v10564 = vsel %vm1274, %v9862, 0
    %10566 = vmatprep.subr.bf16.mxu0 0
    %10567 = vmatpush1.bf16.xpose.msra.mxu0 %v10564
    %10568 = vmatprep.subr.bf16.mxu0 0
    %10569 = vmatpush1.bf16.xpose.msra.mxu0 0
    %10570 = vmatprep.subr.bf16.mxu0 0
    %10571 = vmatpush1.bf16.xpose.msra.mxu0 0
    %10572 = vmatprep.subr.bf16.mxu0 0
    %10573 = vmatpush1.bf16.xpose.msra.mxu0 0
    %10574 = vmatprep.subr.bf16.mxu0 0
    %10575 = vmatpush1.bf16.xpose.msra.mxu0 0
    %10576 = vmatprep.subr.bf16.mxu0 0
    %10577 = vmatpush1.bf16.xpose.msra.mxu0 0
    %10578 = vmatprep.subr.bf16.mxu0 0
    %10579 = vmatpush1.bf16.xpose.msra.mxu0 0
    %10580 = vmatprep.subr.bf16.mxu0 0
    %10581 = vmatpush1.bf16.xpose.msra.mxu0 0
    %10582 = vmatprep.subr.bf16.mxu0 0
    %10583 = vmatpush1.bf16.xpose.msra.mxu0 0
    %10584 = vmatprep.subr.bf16.mxu0 0
    %10585 = vmatpush1.bf16.xpose.msra.mxu0 0
    %10586 = vmatprep.subr.bf16.mxu0 0
    %10587 = vmatpush1.bf16.xpose.msra.mxu0 0
    %10588 = vmatprep.subr.bf16.mxu0 0
    %10589 = vmatpush1.bf16.xpose.msra.mxu0 0
    %10590 = vmatprep.subr.bf16.mxu0 0
    %10591 = vmatpush1.bf16.xpose.msra.mxu0 0
    %10592 = vmatprep.subr.bf16.mxu0 0
    %10593 = vmatpush1.bf16.xpose.msra.mxu0 0
    %10594 = vmatprep.subr.bf16.mxu0 0
    %10595 = vmatpush1.bf16.xpose.msra.mxu0 0
    %10596 = vmatprep.subr.bf16.mxu0 0
    %10597 = vmatpush1.bf16.xpose.msra.mxu0 0
    %10598 = vmatprep.mubr.bf16.mxu0 0
    %10599 = vmatmul.mubr.bf16.gmra.mrb[0].mxu0 %v10561
    %v10600 = vpop.f32.mrb[0].mxu0
    %v10601 = vadd.f32 0.0, %v10600
    %v10602 = vpop.f32.mrb[0].mxu0
    %v10603 = vpop.f32.mrb[0].mxu0
    %v10604 = vpop.f32.mrb[0].mxu0
    %10605 = vdwg.mxu0
    %v10607 = vsel %vm1274, %v9271, 0
    %v10610 = vsel %vm1274, %v9863, 0
    %10612 = vmatprep.subr.bf16.mxu0 0
    %10613 = vmatpush1.bf16.xpose.msra.mxu0 %v10610
    %10614 = vmatprep.subr.bf16.mxu0 0
    %10615 = vmatpush1.bf16.xpose.msra.mxu0 0
    %10616 = vmatprep.subr.bf16.mxu0 0
    %10617 = vmatpush1.bf16.xpose.msra.mxu0 0
    %10618 = vmatprep.subr.bf16.mxu0 0
    %10619 = vmatpush1.bf16.xpose.msra.mxu0 0
    %10620 = vmatprep.subr.bf16.mxu0 0
    %10621 = vmatpush1.bf16.xpose.msra.mxu0 0
    %10622 = vmatprep.subr.bf16.mxu0 0
    %10623 = vmatpush1.bf16.xpose.msra.mxu0 0
    %10624 = vmatprep.subr.bf16.mxu0 0
    %10625 = vmatpush1.bf16.xpose.msra.mxu0 0
    %10626 = vmatprep.subr.bf16.mxu0 0
    %10627 = vmatpush1.bf16.xpose.msra.mxu0 0
    %10628 = vmatprep.subr.bf16.mxu0 0
    %10629 = vmatpush1.bf16.xpose.msra.mxu0 0
    %10630 = vmatprep.subr.bf16.mxu0 0
    %10631 = vmatpush1.bf16.xpose.msra.mxu0 0
    %10632 = vmatprep.subr.bf16.mxu0 0
    %10633 = vmatpush1.bf16.xpose.msra.mxu0 0
    %10634 = vmatprep.subr.bf16.mxu0 0
    %10635 = vmatpush1.bf16.xpose.msra.mxu0 0
    %10636 = vmatprep.subr.bf16.mxu0 0
    %10637 = vmatpush1.bf16.xpose.msra.mxu0 0
    %10638 = vmatprep.subr.bf16.mxu0 0
    %10639 = vmatpush1.bf16.xpose.msra.mxu0 0
    %10640 = vmatprep.subr.bf16.mxu0 0
    %10641 = vmatpush1.bf16.xpose.msra.mxu0 0
    %10642 = vmatprep.subr.bf16.mxu0 0
    %10643 = vmatpush1.bf16.xpose.msra.mxu0 0
    %10644 = vmatprep.mubr.bf16.mxu0 0
    %10645 = vmatmul.mubr.bf16.gmra.mrb[0].mxu0 %v10607
    %v10646 = vpop.f32.mrb[0].mxu0
    %v10647 = vadd.f32 0.0, %v10646
    %v10648 = vpop.f32.mrb[0].mxu0
    %v10649 = vpop.f32.mrb[0].mxu0
    %v10650 = vpop.f32.mrb[0].mxu0
    %10651 = vdwg.mxu0
    %v10653 = vsel %vm1274, %v9272, 0
    %v10656 = vsel %vm1274, %v9864, 0
    %10658 = vmatprep.subr.bf16.mxu0 0
    %10659 = vmatpush1.bf16.xpose.msra.mxu0 %v10656
    %10660 = vmatprep.subr.bf16.mxu0 0
    %10661 = vmatpush1.bf16.xpose.msra.mxu0 0
    %10662 = vmatprep.subr.bf16.mxu0 0
    %10663 = vmatpush1.bf16.xpose.msra.mxu0 0
    %10664 = vmatprep.subr.bf16.mxu0 0
    %10665 = vmatpush1.bf16.xpose.msra.mxu0 0
    %10666 = vmatprep.subr.bf16.mxu0 0
    %10667 = vmatpush1.bf16.xpose.msra.mxu0 0
    %10668 = vmatprep.subr.bf16.mxu0 0
    %10669 = vmatpush1.bf16.xpose.msra.mxu0 0
    %10670 = vmatprep.subr.bf16.mxu0 0
    %10671 = vmatpush1.bf16.xpose.msra.mxu0 0
    %10672 = vmatprep.subr.bf16.mxu0 0
    %10673 = vmatpush1.bf16.xpose.msra.mxu0 0
    %10674 = vmatprep.subr.bf16.mxu0 0
    %10675 = vmatpush1.bf16.xpose.msra.mxu0 0
    %10676 = vmatprep.subr.bf16.mxu0 0
    %10677 = vmatpush1.bf16.xpose.msra.mxu0 0
    %10678 = vmatprep.subr.bf16.mxu0 0
    %10679 = vmatpush1.bf16.xpose.msra.mxu0 0
    %10680 = vmatprep.subr.bf16.mxu0 0
    %10681 = vmatpush1.bf16.xpose.msra.mxu0 0
    %10682 = vmatprep.subr.bf16.mxu0 0
    %10683 = vmatpush1.bf16.xpose.msra.mxu0 0
    %10684 = vmatprep.subr.bf16.mxu0 0
    %10685 = vmatpush1.bf16.xpose.msra.mxu0 0
    %10686 = vmatprep.subr.bf16.mxu0 0
    %10687 = vmatpush1.bf16.xpose.msra.mxu0 0
    %10688 = vmatprep.subr.bf16.mxu0 0
    %10689 = vmatpush1.bf16.xpose.msra.mxu0 0
    %10690 = vmatprep.mubr.bf16.mxu0 0
    %10691 = vmatmul.mubr.bf16.gmra.mrb[0].mxu0 %v10653
    %v10692 = vpop.f32.mrb[0].mxu0
    %v10693 = vadd.f32 0.0, %v10692
    %v10694 = vpop.f32.mrb[0].mxu0
    %v10695 = vpop.f32.mrb[0].mxu0
    %v10696 = vpop.f32.mrb[0].mxu0
    %10697 = vdwg.mxu0
    %v10699 = vsel %vm1274, %v9273, 0
    %v10702 = vsel %vm1274, %v9865, 0
    %10704 = vmatprep.subr.bf16.mxu0 0
    %10705 = vmatpush1.bf16.xpose.msra.mxu0 %v10702
    %10706 = vmatprep.subr.bf16.mxu0 0
    %10707 = vmatpush1.bf16.xpose.msra.mxu0 0
    %10708 = vmatprep.subr.bf16.mxu0 0
    %10709 = vmatpush1.bf16.xpose.msra.mxu0 0
    %10710 = vmatprep.subr.bf16.mxu0 0
    %10711 = vmatpush1.bf16.xpose.msra.mxu0 0
    %10712 = vmatprep.subr.bf16.mxu0 0
    %10713 = vmatpush1.bf16.xpose.msra.mxu0 0
    %10714 = vmatprep.subr.bf16.mxu0 0
    %10715 = vmatpush1.bf16.xpose.msra.mxu0 0
    %10716 = vmatprep.subr.bf16.mxu0 0
    %10717 = vmatpush1.bf16.xpose.msra.mxu0 0
    %10718 = vmatprep.subr.bf16.mxu0 0
    %10719 = vmatpush1.bf16.xpose.msra.mxu0 0
    %10720 = vmatprep.subr.bf16.mxu0 0
    %10721 = vmatpush1.bf16.xpose.msra.mxu0 0
    %10722 = vmatprep.subr.bf16.mxu0 0
    %10723 = vmatpush1.bf16.xpose.msra.mxu0 0
    %10724 = vmatprep.subr.bf16.mxu0 0
    %10725 = vmatpush1.bf16.xpose.msra.mxu0 0
    %10726 = vmatprep.subr.bf16.mxu0 0
    %10727 = vmatpush1.bf16.xpose.msra.mxu0 0
    %10728 = vmatprep.subr.bf16.mxu0 0
    %10729 = vmatpush1.bf16.xpose.msra.mxu0 0
    %10730 = vmatprep.subr.bf16.mxu0 0
    %10731 = vmatpush1.bf16.xpose.msra.mxu0 0
    %10732 = vmatprep.subr.bf16.mxu0 0
    %10733 = vmatpush1.bf16.xpose.msra.mxu0 0
    %10734 = vmatprep.subr.bf16.mxu0 0
    %10735 = vmatpush1.bf16.xpose.msra.mxu0 0
    %10736 = vmatprep.mubr.bf16.mxu0 0
    %10737 = vmatmul.mubr.bf16.gmra.mrb[0].mxu0 %v10699
    %v10738 = vpop.f32.mrb[0].mxu0
    %v10739 = vadd.f32 0.0, %v10738
    %v10740 = vpop.f32.mrb[0].mxu0
    %v10741 = vpop.f32.mrb[0].mxu0
    %v10742 = vpop.f32.mrb[0].mxu0
    %10743 = vdwg.mxu0
    %v10745 = vsel %vm1274, %v9274, 0
    %v10748 = vsel %vm1274, %v9866, 0
    %10750 = vmatprep.subr.bf16.mxu0 0
    %10751 = vmatpush1.bf16.xpose.msra.mxu0 %v10748
    %10752 = vmatprep.subr.bf16.mxu0 0
    %10753 = vmatpush1.bf16.xpose.msra.mxu0 0
    %10754 = vmatprep.subr.bf16.mxu0 0
    %10755 = vmatpush1.bf16.xpose.msra.mxu0 0
    %10756 = vmatprep.subr.bf16.mxu0 0
    %10757 = vmatpush1.bf16.xpose.msra.mxu0 0
    %10758 = vmatprep.subr.bf16.mxu0 0
    %10759 = vmatpush1.bf16.xpose.msra.mxu0 0
    %10760 = vmatprep.subr.bf16.mxu0 0
    %10761 = vmatpush1.bf16.xpose.msra.mxu0 0
    %10762 = vmatprep.subr.bf16.mxu0 0
    %10763 = vmatpush1.bf16.xpose.msra.mxu0 0
    %10764 = vmatprep.subr.bf16.mxu0 0
    %10765 = vmatpush1.bf16.xpose.msra.mxu0 0
    %10766 = vmatprep.subr.bf16.mxu0 0
    %10767 = vmatpush1.bf16.xpose.msra.mxu0 0
    %10768 = vmatprep.subr.bf16.mxu0 0
    %10769 = vmatpush1.bf16.xpose.msra.mxu0 0
    %10770 = vmatprep.subr.bf16.mxu0 0
    %10771 = vmatpush1.bf16.xpose.msra.mxu0 0
    %10772 = vmatprep.subr.bf16.mxu0 0
    %10773 = vmatpush1.bf16.xpose.msra.mxu0 0
    %10774 = vmatprep.subr.bf16.mxu0 0
    %10775 = vmatpush1.bf16.xpose.msra.mxu0 0
    %10776 = vmatprep.subr.bf16.mxu0 0
    %10777 = vmatpush1.bf16.xpose.msra.mxu0 0
    %10778 = vmatprep.subr.bf16.mxu0 0
    %10779 = vmatpush1.bf16.xpose.msra.mxu0 0
    %10780 = vmatprep.subr.bf16.mxu0 0
    %10781 = vmatpush1.bf16.xpose.msra.mxu0 0
    %10782 = vmatprep.mubr.bf16.mxu0 0
    %10783 = vmatmul.mubr.bf16.gmra.mrb[0].mxu0 %v10745
    %v10784 = vpop.f32.mrb[0].mxu0
    %v10785 = vadd.f32 0.0, %v10784
    %v10786 = vpop.f32.mrb[0].mxu0
    %v10787 = vpop.f32.mrb[0].mxu0
    %v10788 = vpop.f32.mrb[0].mxu0
    %10789 = vdwg.mxu0
    %v10791 = vsel %vm1274, %v9275, 0
    %v10794 = vsel %vm1274, %v9867, 0
    %10796 = vmatprep.subr.bf16.mxu0 0
    %10797 = vmatpush1.bf16.xpose.msra.mxu0 %v10794
    %10798 = vmatprep.subr.bf16.mxu0 0
    %10799 = vmatpush1.bf16.xpose.msra.mxu0 0
    %10800 = vmatprep.subr.bf16.mxu0 0
    %10801 = vmatpush1.bf16.xpose.msra.mxu0 0
    %10802 = vmatprep.subr.bf16.mxu0 0
    %10803 = vmatpush1.bf16.xpose.msra.mxu0 0
    %10804 = vmatprep.subr.bf16.mxu0 0
    %10805 = vmatpush1.bf16.xpose.msra.mxu0 0
    %10806 = vmatprep.subr.bf16.mxu0 0
    %10807 = vmatpush1.bf16.xpose.msra.mxu0 0
    %10808 = vmatprep.subr.bf16.mxu0 0
    %10809 = vmatpush1.bf16.xpose.msra.mxu0 0
    %10810 = vmatprep.subr.bf16.mxu0 0
    %10811 = vmatpush1.bf16.xpose.msra.mxu0 0
    %10812 = vmatprep.subr.bf16.mxu0 0
    %10813 = vmatpush1.bf16.xpose.msra.mxu0 0
    %10814 = vmatprep.subr.bf16.mxu0 0
    %10815 = vmatpush1.bf16.xpose.msra.mxu0 0
    %10816 = vmatprep.subr.bf16.mxu0 0
    %10817 = vmatpush1.bf16.xpose.msra.mxu0 0
    %10818 = vmatprep.subr.bf16.mxu0 0
    %10819 = vmatpush1.bf16.xpose.msra.mxu0 0
    %10820 = vmatprep.subr.bf16.mxu0 0
    %10821 = vmatpush1.bf16.xpose.msra.mxu0 0
    %10822 = vmatprep.subr.bf16.mxu0 0
    %10823 = vmatpush1.bf16.xpose.msra.mxu0 0
    %10824 = vmatprep.subr.bf16.mxu0 0
    %10825 = vmatpush1.bf16.xpose.msra.mxu0 0
    %10826 = vmatprep.subr.bf16.mxu0 0
    %10827 = vmatpush1.bf16.xpose.msra.mxu0 0
    %10828 = vmatprep.mubr.bf16.mxu0 0
    %10829 = vmatmul.mubr.bf16.gmra.mrb[0].mxu0 %v10791
    %v10830 = vpop.f32.mrb[0].mxu0
    %v10831 = vadd.f32 0.0, %v10830
    %v10832 = vpop.f32.mrb[0].mxu0
    %v10833 = vpop.f32.mrb[0].mxu0
    %v10834 = vpop.f32.mrb[0].mxu0
    %10835 = vdwg.mxu0
    %v10836 = vmul.f32 %v10509, 0.35355338
    %v10837 = vmul.f32 %v10555, 0.35355338
    %v10838 = vmul.f32 %v10601, 0.35355338
    %v10839 = vmul.f32 %v10647, 0.35355338
    %v10840 = vmul.f32 %v10693, 0.35355338
    %v10841 = vmul.f32 %v10739, 0.35355338
    %v10842 = vmul.f32 %v10785, 0.35355338
    %v10843 = vmul.f32 %v10831, 0.35355338
    %v10844 = vadd.f32 %v10836, %v290
    %v10845 = vadd.f32 %v10837, %v291
    %v10846 = vadd.f32 %v10838, %v292
    %v10847 = vadd.f32 %v10839, %v293
    %v10848 = vadd.f32 %v10840, %v294
    %v10849 = vadd.f32 %v10841, %v295
    %v10850 = vadd.f32 %v10842, %v296
    %v10851 = vadd.f32 %v10843, %v297
    %v10852 = vsel %vm2425, %v10844, -inf
    %10853 = vmax.xlane.f32.xlu0 %v10852
    %v10854 = vpop.xlane.xlu0 %10853
    %v10855 = vsel %vm2425, %v10845, -inf
    %10856 = vmax.xlane.f32.xlu0 %v10855
    %v10857 = vpop.xlane.xlu0 %10856
    %v10858 = vsel %vm2425, %v10846, -inf
    %10859 = vmax.xlane.f32.xlu0 %v10858
    %v10860 = vpop.xlane.xlu0 %10859
    %v10861 = vsel %vm2425, %v10847, -inf
    %10862 = vmax.xlane.f32.xlu0 %v10861
    %v10863 = vpop.xlane.xlu0 %10862
    %v10864 = vsel %vm2425, %v10848, -inf
    %10865 = vmax.xlane.f32.xlu0 %v10864
    %v10866 = vpop.xlane.xlu0 %10865
    %v10867 = vsel %vm2425, %v10849, -inf
    %10868 = vmax.xlane.f32.xlu0 %v10867
    %v10869 = vpop.xlane.xlu0 %10868
    %v10870 = vsel %vm2425, %v10850, -inf
    %10871 = vmax.xlane.f32.xlu0 %v10870
    %v10872 = vpop.xlane.xlu0 %10871
    %v10873 = vsel %vm2425, %v10851, -inf
    %10874 = vmax.xlane.f32.xlu0 %v10873
    %v10875 = vpop.xlane.xlu0 %10874
    %v10876 = vsub.f32 %v10844, %v10854
    %v10877 = vsub.f32 %v10845, %v10857
    %v10878 = vsub.f32 %v10846, %v10860
    %v10879 = vsub.f32 %v10847, %v10863
    %v10880 = vsub.f32 %v10848, %v10866
    %v10881 = vsub.f32 %v10849, %v10869
    %v10882 = vsub.f32 %v10850, %v10872
    %v10883 = vsub.f32 %v10851, %v10875
    %v10884 = vmul.f32 %v10876, 1.442695
    %v10885 = vpow.pop %v10884
    %v10886 = vmul.f32 %v10877, 1.442695
    %v10887 = vpow.pop %v10886
    %v10888 = vmul.f32 %v10878, 1.442695
    %v10889 = vpow.pop %v10888
    %v10890 = vmul.f32 %v10879, 1.442695
    %v10891 = vpow.pop %v10890
    %v10892 = vmul.f32 %v10880, 1.442695
    %v10893 = vpow.pop %v10892
    %v10894 = vmul.f32 %v10881, 1.442695
    %v10895 = vpow.pop %v10894
    %v10896 = vmul.f32 %v10882, 1.442695
    %v10897 = vpow.pop %v10896
    %v10898 = vmul.f32 %v10883, 1.442695
    %v10899 = vpow.pop %v10898
    %v10900 = vsel %vm2425, %v10885, 0.0
    %10901 = vadd.xlane.f32.xlu0 %v10900
    %v10902 = vpop.xlane.xlu0 %10901
    %v10903 = vsel %vm2425, %v10887, 0.0
    %10904 = vadd.xlane.f32.xlu0 %v10903
    %v10905 = vpop.xlane.xlu0 %10904
    %v10906 = vsel %vm2425, %v10889, 0.0
    %10907 = vadd.xlane.f32.xlu0 %v10906
    %v10908 = vpop.xlane.xlu0 %10907
    %v10909 = vsel %vm2425, %v10891, 0.0
    %10910 = vadd.xlane.f32.xlu0 %v10909
    %v10911 = vpop.xlane.xlu0 %10910
    %v10912 = vsel %vm2425, %v10893, 0.0
    %10913 = vadd.xlane.f32.xlu0 %v10912
    %v10914 = vpop.xlane.xlu0 %10913
    %v10915 = vsel %vm2425, %v10895, 0.0
    %10916 = vadd.xlane.f32.xlu0 %v10915
    %v10917 = vpop.xlane.xlu0 %10916
    %v10918 = vsel %vm2425, %v10897, 0.0
    %10919 = vadd.xlane.f32.xlu0 %v10918
    %v10920 = vpop.xlane.xlu0 %10919
    %v10921 = vsel %vm2425, %v10899, 0.0
    %10922 = vadd.xlane.f32.xlu0 %v10921
    %v10923 = vpop.xlane.xlu0 %10922
    %v10924 = vrcp.pop %v10902
    %v10925 = vmul.f32 %v10885, %v10924
    %v10926 = vrcp.pop %v10905
    %v10927 = vmul.f32 %v10887, %v10926
    %v10928 = vrcp.pop %v10908
    %v10929 = vmul.f32 %v10889, %v10928
    %v10930 = vrcp.pop %v10911
    %v10931 = vmul.f32 %v10891, %v10930
    %v10932 = vrcp.pop %v10914
    %v10933 = vmul.f32 %v10893, %v10932
    %v10934 = vrcp.pop %v10917
    %v10935 = vmul.f32 %v10895, %v10934
    %v10936 = vrcp.pop %v10920
    %v10937 = vmul.f32 %v10897, %v10936
    %v10938 = vrcp.pop %v10923
    %v10939 = vmul.f32 %v10899, %v10938
    %v10940 = vpack.c.bf16 %v10925, %v10925
    %v10941 = vpack.c.bf16 %v10927, %v10927
    %v10942 = vpack.c.bf16 %v10929, %v10929
    %v10943 = vpack.c.bf16 %v10931, %v10931
    %v10944 = vpack.c.bf16 %v10933, %v10933
    %v10945 = vpack.c.bf16 %v10935, %v10935
    %v10946 = vpack.c.bf16 %v10937, %v10937
    %v10947 = vpack.c.bf16 %v10939, %v10939
    %v10949 = vsel %vm2425, %v10940, 0
    %10951 = vmatprep.subr.bf16.mxu0 0
    %10952 = vmatpush1.bf16.msra.mxu0 %v10460
    %10953 = vmatprep.subr.bf16.mxu0 0
    %10954 = vmatpush1.bf16.msra.mxu0 0
    %10955 = vmatprep.subr.bf16.mxu0 0
    %10956 = vmatpush1.bf16.msra.mxu0 0
    %10957 = vmatprep.subr.bf16.mxu0 0
    %10958 = vmatpush1.bf16.msra.mxu0 0
    %10959 = vmatprep.subr.bf16.mxu0 0
    %10960 = vmatpush1.bf16.msra.mxu0 0
    %10961 = vmatprep.subr.bf16.mxu0 0
    %10962 = vmatpush1.bf16.msra.mxu0 0
    %10963 = vmatprep.subr.bf16.mxu0 0
    %10964 = vmatpush1.bf16.msra.mxu0 0
    %10965 = vmatprep.subr.bf16.mxu0 0
    %10966 = vmatpush1.bf16.msra.mxu0 0
    %10967 = vmatprep.subr.bf16.mxu0 0
    %10968 = vmatpush1.bf16.msra.mxu0 0
    %10969 = vmatprep.subr.bf16.mxu0 0
    %10970 = vmatpush1.bf16.msra.mxu0 0
    %10971 = vmatprep.subr.bf16.mxu0 0
    %10972 = vmatpush1.bf16.msra.mxu0 0
    %10973 = vmatprep.subr.bf16.mxu0 0
    %10974 = vmatpush1.bf16.msra.mxu0 0
    %10975 = vmatprep.subr.bf16.mxu0 0
    %10976 = vmatpush1.bf16.msra.mxu0 0
    %10977 = vmatprep.subr.bf16.mxu0 0
    %10978 = vmatpush1.bf16.msra.mxu0 0
    %10979 = vmatprep.subr.bf16.mxu0 0
    %10980 = vmatpush1.bf16.msra.mxu0 0
    %10981 = vmatprep.subr.bf16.mxu0 0
    %10982 = vmatpush1.bf16.msra.mxu0 0
    %10983 = vmatprep.mubr.bf16.mxu0 0
    %10984 = vmatmul.mubr.bf16.gmra.mrb[0].mxu0 %v10949
    %v10985 = vpop.f32.mrb[0].mxu0
    %v10986 = vadd.f32 0.0, %v10985
    %v10987 = vpop.f32.mrb[0].mxu0
    %v10988 = vpop.f32.mrb[0].mxu0
    %v10989 = vpop.f32.mrb[0].mxu0
    %10990 = vdwg.mxu0
    %v10992 = vsel %vm2425, %v10941, 0
    %10994 = vmatprep.subr.bf16.mxu0 0
    %10995 = vmatpush1.bf16.msra.mxu0 %v10461
    %10996 = vmatprep.subr.bf16.mxu0 0
    %10997 = vmatpush1.bf16.msra.mxu0 0
    %10998 = vmatprep.subr.bf16.mxu0 0
    %10999 = vmatpush1.bf16.msra.mxu0 0
    %11000 = vmatprep.subr.bf16.mxu0 0
    %11001 = vmatpush1.bf16.msra.mxu0 0
    %11002 = vmatprep.subr.bf16.mxu0 0
    %11003 = vmatpush1.bf16.msra.mxu0 0
    %11004 = vmatprep.subr.bf16.mxu0 0
    %11005 = vmatpush1.bf16.msra.mxu0 0
    %11006 = vmatprep.subr.bf16.mxu0 0
    %11007 = vmatpush1.bf16.msra.mxu0 0
    %11008 = vmatprep.subr.bf16.mxu0 0
    %11009 = vmatpush1.bf16.msra.mxu0 0
    %11010 = vmatprep.subr.bf16.mxu0 0
    %11011 = vmatpush1.bf16.msra.mxu0 0
    %11012 = vmatprep.subr.bf16.mxu0 0
    %11013 = vmatpush1.bf16.msra.mxu0 0
    %11014 = vmatprep.subr.bf16.mxu0 0
    %11015 = vmatpush1.bf16.msra.mxu0 0
    %11016 = vmatprep.subr.bf16.mxu0 0
    %11017 = vmatpush1.bf16.msra.mxu0 0
    %11018 = vmatprep.subr.bf16.mxu0 0
    %11019 = vmatpush1.bf16.msra.mxu0 0
    %11020 = vmatprep.subr.bf16.mxu0 0
    %11021 = vmatpush1.bf16.msra.mxu0 0
    %11022 = vmatprep.subr.bf16.mxu0 0
    %11023 = vmatpush1.bf16.msra.mxu0 0
    %11024 = vmatprep.subr.bf16.mxu0 0
    %11025 = vmatpush1.bf16.msra.mxu0 0
    %11026 = vmatprep.mubr.bf16.mxu0 0
    %11027 = vmatmul.mubr.bf16.gmra.mrb[0].mxu0 %v10992
    %v11028 = vpop.f32.mrb[0].mxu0
    %v11029 = vadd.f32 0.0, %v11028
    %v11030 = vpop.f32.mrb[0].mxu0
    %v11031 = vpop.f32.mrb[0].mxu0
    %v11032 = vpop.f32.mrb[0].mxu0
    %11033 = vdwg.mxu0
    %v11035 = vsel %vm2425, %v10942, 0
    %11037 = vmatprep.subr.bf16.mxu0 0
    %11038 = vmatpush1.bf16.msra.mxu0 %v10462
    %11039 = vmatprep.subr.bf16.mxu0 0
    %11040 = vmatpush1.bf16.msra.mxu0 0
    %11041 = vmatprep.subr.bf16.mxu0 0
    %11042 = vmatpush1.bf16.msra.mxu0 0
    %11043 = vmatprep.subr.bf16.mxu0 0
    %11044 = vmatpush1.bf16.msra.mxu0 0
    %11045 = vmatprep.subr.bf16.mxu0 0
    %11046 = vmatpush1.bf16.msra.mxu0 0
    %11047 = vmatprep.subr.bf16.mxu0 0
    %11048 = vmatpush1.bf16.msra.mxu0 0
    %11049 = vmatprep.subr.bf16.mxu0 0
    %11050 = vmatpush1.bf16.msra.mxu0 0
    %11051 = vmatprep.subr.bf16.mxu0 0
    %11052 = vmatpush1.bf16.msra.mxu0 0
    %11053 = vmatprep.subr.bf16.mxu0 0
    %11054 = vmatpush1.bf16.msra.mxu0 0
    %11055 = vmatprep.subr.bf16.mxu0 0
    %11056 = vmatpush1.bf16.msra.mxu0 0
    %11057 = vmatprep.subr.bf16.mxu0 0
    %11058 = vmatpush1.bf16.msra.mxu0 0
    %11059 = vmatprep.subr.bf16.mxu0 0
    %11060 = vmatpush1.bf16.msra.mxu0 0
    %11061 = vmatprep.subr.bf16.mxu0 0
    %11062 = vmatpush1.bf16.msra.mxu0 0
    %11063 = vmatprep.subr.bf16.mxu0 0
    %11064 = vmatpush1.bf16.msra.mxu0 0
    %11065 = vmatprep.subr.bf16.mxu0 0
    %11066 = vmatpush1.bf16.msra.mxu0 0
    %11067 = vmatprep.subr.bf16.mxu0 0
    %11068 = vmatpush1.bf16.msra.mxu0 0
    %11069 = vmatprep.mubr.bf16.mxu0 0
    %11070 = vmatmul.mubr.bf16.gmra.mrb[0].mxu0 %v11035
    %v11071 = vpop.f32.mrb[0].mxu0
    %v11072 = vadd.f32 0.0, %v11071
    %v11073 = vpop.f32.mrb[0].mxu0
    %v11074 = vpop.f32.mrb[0].mxu0
    %v11075 = vpop.f32.mrb[0].mxu0
    %11076 = vdwg.mxu0
    %v11078 = vsel %vm2425, %v10943, 0
    %11080 = vmatprep.subr.bf16.mxu0 0
    %11081 = vmatpush1.bf16.msra.mxu0 %v10463
    %11082 = vmatprep.subr.bf16.mxu0 0
    %11083 = vmatpush1.bf16.msra.mxu0 0
    %11084 = vmatprep.subr.bf16.mxu0 0
    %11085 = vmatpush1.bf16.msra.mxu0 0
    %11086 = vmatprep.subr.bf16.mxu0 0
    %11087 = vmatpush1.bf16.msra.mxu0 0
    %11088 = vmatprep.subr.bf16.mxu0 0
    %11089 = vmatpush1.bf16.msra.mxu0 0
    %11090 = vmatprep.subr.bf16.mxu0 0
    %11091 = vmatpush1.bf16.msra.mxu0 0
    %11092 = vmatprep.subr.bf16.mxu0 0
    %11093 = vmatpush1.bf16.msra.mxu0 0
    %11094 = vmatprep.subr.bf16.mxu0 0
    %11095 = vmatpush1.bf16.msra.mxu0 0
    %11096 = vmatprep.subr.bf16.mxu0 0
    %11097 = vmatpush1.bf16.msra.mxu0 0
    %11098 = vmatprep.subr.bf16.mxu0 0
    %11099 = vmatpush1.bf16.msra.mxu0 0
    %11100 = vmatprep.subr.bf16.mxu0 0
    %11101 = vmatpush1.bf16.msra.mxu0 0
    %11102 = vmatprep.subr.bf16.mxu0 0
    %11103 = vmatpush1.bf16.msra.mxu0 0
    %11104 = vmatprep.subr.bf16.mxu0 0
    %11105 = vmatpush1.bf16.msra.mxu0 0
    %11106 = vmatprep.subr.bf16.mxu0 0
    %11107 = vmatpush1.bf16.msra.mxu0 0
    %11108 = vmatprep.subr.bf16.mxu0 0
    %11109 = vmatpush1.bf16.msra.mxu0 0
    %11110 = vmatprep.subr.bf16.mxu0 0
    %11111 = vmatpush1.bf16.msra.mxu0 0
    %11112 = vmatprep.mubr.bf16.mxu0 0
    %11113 = vmatmul.mubr.bf16.gmra.mrb[0].mxu0 %v11078
    %v11114 = vpop.f32.mrb[0].mxu0
    %v11115 = vadd.f32 0.0, %v11114
    %v11116 = vpop.f32.mrb[0].mxu0
    %v11117 = vpop.f32.mrb[0].mxu0
    %v11118 = vpop.f32.mrb[0].mxu0
    %11119 = vdwg.mxu0
    %v11121 = vsel %vm2425, %v10944, 0
    %11123 = vmatprep.subr.bf16.mxu0 0
    %11124 = vmatpush1.bf16.msra.mxu0 %v10464
    %11125 = vmatprep.subr.bf16.mxu0 0
    %11126 = vmatpush1.bf16.msra.mxu0 0
    %11127 = vmatprep.subr.bf16.mxu0 0
    %11128 = vmatpush1.bf16.msra.mxu0 0
    %11129 = vmatprep.subr.bf16.mxu0 0
    %11130 = vmatpush1.bf16.msra.mxu0 0
    %11131 = vmatprep.subr.bf16.mxu0 0
    %11132 = vmatpush1.bf16.msra.mxu0 0
    %11133 = vmatprep.subr.bf16.mxu0 0
    %11134 = vmatpush1.bf16.msra.mxu0 0
    %11135 = vmatprep.subr.bf16.mxu0 0
    %11136 = vmatpush1.bf16.msra.mxu0 0
    %11137 = vmatprep.subr.bf16.mxu0 0
    %11138 = vmatpush1.bf16.msra.mxu0 0
    %11139 = vmatprep.subr.bf16.mxu0 0
    %11140 = vmatpush1.bf16.msra.mxu0 0
    %11141 = vmatprep.subr.bf16.mxu0 0
    %11142 = vmatpush1.bf16.msra.mxu0 0
    %11143 = vmatprep.subr.bf16.mxu0 0
    %11144 = vmatpush1.bf16.msra.mxu0 0
    %11145 = vmatprep.subr.bf16.mxu0 0
    %11146 = vmatpush1.bf16.msra.mxu0 0
    %11147 = vmatprep.subr.bf16.mxu0 0
    %11148 = vmatpush1.bf16.msra.mxu0 0
    %11149 = vmatprep.subr.bf16.mxu0 0
    %11150 = vmatpush1.bf16.msra.mxu0 0
    %11151 = vmatprep.subr.bf16.mxu0 0
    %11152 = vmatpush1.bf16.msra.mxu0 0
    %11153 = vmatprep.subr.bf16.mxu0 0
    %11154 = vmatpush1.bf16.msra.mxu0 0
    %11155 = vmatprep.mubr.bf16.mxu0 0
    %11156 = vmatmul.mubr.bf16.gmra.mrb[0].mxu0 %v11121
    %v11157 = vpop.f32.mrb[0].mxu0
    %v11158 = vadd.f32 0.0, %v11157
    %v11159 = vpop.f32.mrb[0].mxu0
    %v11160 = vpop.f32.mrb[0].mxu0
    %v11161 = vpop.f32.mrb[0].mxu0
    %11162 = vdwg.mxu0
    %v11164 = vsel %vm2425, %v10945, 0
    %11166 = vmatprep.subr.bf16.mxu0 0
    %11167 = vmatpush1.bf16.msra.mxu0 %v10465
    %11168 = vmatprep.subr.bf16.mxu0 0
    %11169 = vmatpush1.bf16.msra.mxu0 0
    %11170 = vmatprep.subr.bf16.mxu0 0
    %11171 = vmatpush1.bf16.msra.mxu0 0
    %11172 = vmatprep.subr.bf16.mxu0 0
    %11173 = vmatpush1.bf16.msra.mxu0 0
    %11174 = vmatprep.subr.bf16.mxu0 0
    %11175 = vmatpush1.bf16.msra.mxu0 0
    %11176 = vmatprep.subr.bf16.mxu0 0
    %11177 = vmatpush1.bf16.msra.mxu0 0
    %11178 = vmatprep.subr.bf16.mxu0 0
    %11179 = vmatpush1.bf16.msra.mxu0 0
    %11180 = vmatprep.subr.bf16.mxu0 0
    %11181 = vmatpush1.bf16.msra.mxu0 0
    %11182 = vmatprep.subr.bf16.mxu0 0
    %11183 = vmatpush1.bf16.msra.mxu0 0
    %11184 = vmatprep.subr.bf16.mxu0 0
    %11185 = vmatpush1.bf16.msra.mxu0 0
    %11186 = vmatprep.subr.bf16.mxu0 0
    %11187 = vmatpush1.bf16.msra.mxu0 0
    %11188 = vmatprep.subr.bf16.mxu0 0
    %11189 = vmatpush1.bf16.msra.mxu0 0
    %11190 = vmatprep.subr.bf16.mxu0 0
    %11191 = vmatpush1.bf16.msra.mxu0 0
    %11192 = vmatprep.subr.bf16.mxu0 0
    %11193 = vmatpush1.bf16.msra.mxu0 0
    %11194 = vmatprep.subr.bf16.mxu0 0
    %11195 = vmatpush1.bf16.msra.mxu0 0
    %11196 = vmatprep.subr.bf16.mxu0 0
    %11197 = vmatpush1.bf16.msra.mxu0 0
    %11198 = vmatprep.mubr.bf16.mxu0 0
    %11199 = vmatmul.mubr.bf16.gmra.mrb[0].mxu0 %v11164
    %v11200 = vpop.f32.mrb[0].mxu0
    %v11201 = vadd.f32 0.0, %v11200
    %v11202 = vpop.f32.mrb[0].mxu0
    %v11203 = vpop.f32.mrb[0].mxu0
    %v11204 = vpop.f32.mrb[0].mxu0
    %11205 = vdwg.mxu0
    %v11207 = vsel %vm2425, %v10946, 0
    %11209 = vmatprep.subr.bf16.mxu0 0
    %11210 = vmatpush1.bf16.msra.mxu0 %v10466
    %11211 = vmatprep.subr.bf16.mxu0 0
    %11212 = vmatpush1.bf16.msra.mxu0 0
    %11213 = vmatprep.subr.bf16.mxu0 0
    %11214 = vmatpush1.bf16.msra.mxu0 0
    %11215 = vmatprep.subr.bf16.mxu0 0
    %11216 = vmatpush1.bf16.msra.mxu0 0
    %11217 = vmatprep.subr.bf16.mxu0 0
    %11218 = vmatpush1.bf16.msra.mxu0 0
    %11219 = vmatprep.subr.bf16.mxu0 0
    %11220 = vmatpush1.bf16.msra.mxu0 0
    %11221 = vmatprep.subr.bf16.mxu0 0
    %11222 = vmatpush1.bf16.msra.mxu0 0
    %11223 = vmatprep.subr.bf16.mxu0 0
    %11224 = vmatpush1.bf16.msra.mxu0 0
    %11225 = vmatprep.subr.bf16.mxu0 0
    %11226 = vmatpush1.bf16.msra.mxu0 0
    %11227 = vmatprep.subr.bf16.mxu0 0
    %11228 = vmatpush1.bf16.msra.mxu0 0
    %11229 = vmatprep.subr.bf16.mxu0 0
    %11230 = vmatpush1.bf16.msra.mxu0 0
    %11231 = vmatprep.subr.bf16.mxu0 0
    %11232 = vmatpush1.bf16.msra.mxu0 0
    %11233 = vmatprep.subr.bf16.mxu0 0
    %11234 = vmatpush1.bf16.msra.mxu0 0
    %11235 = vmatprep.subr.bf16.mxu0 0
    %11236 = vmatpush1.bf16.msra.mxu0 0
    %11237 = vmatprep.subr.bf16.mxu0 0
    %11238 = vmatpush1.bf16.msra.mxu0 0
    %11239 = vmatprep.subr.bf16.mxu0 0
    %11240 = vmatpush1.bf16.msra.mxu0 0
    %11241 = vmatprep.mubr.bf16.mxu0 0
    %11242 = vmatmul.mubr.bf16.gmra.mrb[0].mxu0 %v11207
    %v11243 = vpop.f32.mrb[0].mxu0
    %v11244 = vadd.f32 0.0, %v11243
    %v11245 = vpop.f32.mrb[0].mxu0
    %v11246 = vpop.f32.mrb[0].mxu0
    %v11247 = vpop.f32.mrb[0].mxu0
    %11248 = vdwg.mxu0
    %v11250 = vsel %vm2425, %v10947, 0
    %11252 = vmatprep.subr.bf16.mxu0 0
    %11253 = vmatpush1.bf16.msra.mxu0 %v10467
    %11254 = vmatprep.subr.bf16.mxu0 0
    %11255 = vmatpush1.bf16.msra.mxu0 0
    %11256 = vmatprep.subr.bf16.mxu0 0
    %11257 = vmatpush1.bf16.msra.mxu0 0
    %11258 = vmatprep.subr.bf16.mxu0 0
    %11259 = vmatpush1.bf16.msra.mxu0 0
    %11260 = vmatprep.subr.bf16.mxu0 0
    %11261 = vmatpush1.bf16.msra.mxu0 0
    %11262 = vmatprep.subr.bf16.mxu0 0
    %11263 = vmatpush1.bf16.msra.mxu0 0
    %11264 = vmatprep.subr.bf16.mxu0 0
    %11265 = vmatpush1.bf16.msra.mxu0 0
    %11266 = vmatprep.subr.bf16.mxu0 0
    %11267 = vmatpush1.bf16.msra.mxu0 0
    %11268 = vmatprep.subr.bf16.mxu0 0
    %11269 = vmatpush1.bf16.msra.mxu0 0
    %11270 = vmatprep.subr.bf16.mxu0 0
    %11271 = vmatpush1.bf16.msra.mxu0 0
    %11272 = vmatprep.subr.bf16.mxu0 0
    %11273 = vmatpush1.bf16.msra.mxu0 0
    %11274 = vmatprep.subr.bf16.mxu0 0
    %11275 = vmatpush1.bf16.msra.mxu0 0
    %11276 = vmatprep.subr.bf16.mxu0 0
    %11277 = vmatpush1.bf16.msra.mxu0 0
    %11278 = vmatprep.subr.bf16.mxu0 0
    %11279 = vmatpush1.bf16.msra.mxu0 0
    %11280 = vmatprep.subr.bf16.mxu0 0
    %11281 = vmatpush1.bf16.msra.mxu0 0
    %11282 = vmatprep.subr.bf16.mxu0 0
    %11283 = vmatpush1.bf16.msra.mxu0 0
    %11284 = vmatprep.mubr.bf16.mxu0 0
    %11285 = vmatmul.mubr.bf16.gmra.mrb[0].mxu0 %v11250
    %v11286 = vpop.f32.mrb[0].mxu0
    %v11287 = vadd.f32 0.0, %v11286
    %v11288 = vpop.f32.mrb[0].mxu0
    %v11289 = vpop.f32.mrb[0].mxu0
    %v11290 = vpop.f32.mrb[0].mxu0
    %11291 = vdwg.mxu0
    %v11292 = vcombine.low %v10925, %v10929
    %v11293 = vcombine.high %v10925, %v10929
    %v11295 = vunpack.c.l.s4 1983009808
    %v11296 = vunpack.c.0.s8 %v11295
    %v11297 = vlaneseq
    %v11298 = vshrl.u32 %v11297, 7
    %v11299 = vsub.s32 %v11296, %v11298
    %v11300 = vrot.slane %v11292, %v11299
    %v11302 = vunpack.c.l.s4 1983009808
    %v11303 = vunpack.c.0.s8 %v11302
    %v11304 = vlaneseq
    %v11305 = vshrl.u32 %v11304, 7
    %v11306 = vsub.s32 %v11303, %v11305
    %v11307 = vrot.slane %v11293, %v11306
    %v11308 = vcombine.low %v10927, %v10931
    %v11309 = vcombine.high %v10927, %v10931
    %v11311 = vunpack.c.l.s4 1983009808
    %v11312 = vunpack.c.0.s8 %v11311
    %v11313 = vlaneseq
    %v11314 = vshrl.u32 %v11313, 7
    %v11315 = vsub.s32 %v11312, %v11314
    %v11316 = vrot.slane %v11308, %v11315
    %v11318 = vunpack.c.l.s4 1983009808
    %v11319 = vunpack.c.0.s8 %v11318
    %v11320 = vlaneseq
    %v11321 = vshrl.u32 %v11320, 7
    %v11322 = vsub.s32 %v11319, %v11321
    %v11323 = vrot.slane %v11309, %v11322
    %v11324 = vcombine.low %v10933, %v10937
    %v11325 = vcombine.high %v10933, %v10937
    %v11327 = vunpack.c.l.s4 1983009808
    %v11328 = vunpack.c.0.s8 %v11327
    %v11329 = vlaneseq
    %v11330 = vshrl.u32 %v11329, 7
    %v11331 = vsub.s32 %v11328, %v11330
    %v11332 = vrot.slane %v11324, %v11331
    %v11334 = vunpack.c.l.s4 1983009808
    %v11335 = vunpack.c.0.s8 %v11334
    %v11336 = vlaneseq
    %v11337 = vshrl.u32 %v11336, 7
    %v11338 = vsub.s32 %v11335, %v11337
    %v11339 = vrot.slane %v11325, %v11338
    %v11340 = vcombine.low %v10935, %v10939
    %v11341 = vcombine.high %v10935, %v10939
    %v11343 = vunpack.c.l.s4 1983009808
    %v11344 = vunpack.c.0.s8 %v11343
    %v11345 = vlaneseq
    %v11346 = vshrl.u32 %v11345, 7
    %v11347 = vsub.s32 %v11344, %v11346
    %v11348 = vrot.slane %v11340, %v11347
    %v11350 = vunpack.c.l.s4 1983009808
    %v11351 = vunpack.c.0.s8 %v11350
    %v11352 = vlaneseq
    %v11353 = vshrl.u32 %v11352, 7
    %v11354 = vsub.s32 %v11351, %v11353
    %v11355 = vrot.slane %v11341, %v11354
    %v11356 = vcombine.low %v11300, %v11316
    %v11357 = vcombine.high %v11300, %v11316
    %v11359 = vunpack.c.l.s4 1934713408
    %v11360 = vunpack.c.0.s8 %v11359
    %v11361 = vlaneseq
    %v11362 = vshrl.u32 %v11361, 7
    %v11363 = vsub.s32 %v11360, %v11362
    %v11364 = vrot.slane %v11356, %v11363
    %v11366 = vunpack.c.l.s4 1934713408
    %v11367 = vunpack.c.0.s8 %v11366
    %v11368 = vlaneseq
    %v11369 = vshrl.u32 %v11368, 7
    %v11370 = vsub.s32 %v11367, %v11369
    %v11371 = vrot.slane %v11357, %v11370
    %v11372 = vcombine.low %v11307, %v11323
    %v11373 = vcombine.high %v11307, %v11323
    %v11375 = vunpack.c.l.s4 1934713408
    %v11376 = vunpack.c.0.s8 %v11375
    %v11377 = vlaneseq
    %v11378 = vshrl.u32 %v11377, 7
    %v11379 = vsub.s32 %v11376, %v11378
    %v11380 = vrot.slane %v11372, %v11379
    %v11382 = vunpack.c.l.s4 1934713408
    %v11383 = vunpack.c.0.s8 %v11382
    %v11384 = vlaneseq
    %v11385 = vshrl.u32 %v11384, 7
    %v11386 = vsub.s32 %v11383, %v11385
    %v11387 = vrot.slane %v11373, %v11386
    %v11388 = vcombine.low %v11332, %v11348
    %v11389 = vcombine.high %v11332, %v11348
    %v11391 = vunpack.c.l.s4 1934713408
    %v11392 = vunpack.c.0.s8 %v11391
    %v11393 = vlaneseq
    %v11394 = vshrl.u32 %v11393, 7
    %v11395 = vsub.s32 %v11392, %v11394
    %v11396 = vrot.slane %v11388, %v11395
    %v11398 = vunpack.c.l.s4 1934713408
    %v11399 = vunpack.c.0.s8 %v11398
    %v11400 = vlaneseq
    %v11401 = vshrl.u32 %v11400, 7
    %v11402 = vsub.s32 %v11399, %v11401
    %v11403 = vrot.slane %v11389, %v11402
    %v11404 = vcombine.low %v11339, %v11355
    %v11405 = vcombine.high %v11339, %v11355
    %v11407 = vunpack.c.l.s4 1934713408
    %v11408 = vunpack.c.0.s8 %v11407
    %v11409 = vlaneseq
    %v11410 = vshrl.u32 %v11409, 7
    %v11411 = vsub.s32 %v11408, %v11410
    %v11412 = vrot.slane %v11404, %v11411
    %v11414 = vunpack.c.l.s4 1934713408
    %v11415 = vunpack.c.0.s8 %v11414
    %v11416 = vlaneseq
    %v11417 = vshrl.u32 %v11416, 7
    %v11418 = vsub.s32 %v11415, %v11417
    %v11419 = vrot.slane %v11405, %v11418
    %v11420 = vcombine.low %v11364, %v11396
    %v11421 = vcombine.high %v11364, %v11396
    %v11422 = vcombine.low %v11371, %v11403
    %v11423 = vcombine.high %v11371, %v11403
    %v11424 = vcombine.low %v11380, %v11412
    %v11425 = vcombine.high %v11380, %v11412
    %v11426 = vcombine.low %v11387, %v11419
    %v11427 = vcombine.high %v11387, %v11419
    %v11428 = vcombine.low %v11420, %v11422
    %v11429 = vcombine.high %v11420, %v11422
    %v11431 = vunpack.c.l.s4 1983009808
    %v11432 = vunpack.c.0.s8 %v11431
    %v11433 = vlaneseq
    %v11434 = vshrl.u32 %v11433, 7
    %v11435 = vsub.s32 %v11432, %v11434
    %v11436 = vrot.slane %v11428, %v11435
    %v11438 = vunpack.c.l.s4 1983009808
    %v11439 = vunpack.c.0.s8 %v11438
    %v11440 = vlaneseq
    %v11441 = vshrl.u32 %v11440, 7
    %v11442 = vsub.s32 %v11439, %v11441
    %v11443 = vrot.slane %v11429, %v11442
    %v11444 = vcombine.low %v11421, %v11423
    %v11445 = vcombine.high %v11421, %v11423
    %v11447 = vunpack.c.l.s4 1983009808
    %v11448 = vunpack.c.0.s8 %v11447
    %v11449 = vlaneseq
    %v11450 = vshrl.u32 %v11449, 7
    %v11451 = vsub.s32 %v11448, %v11450
    %v11452 = vrot.slane %v11444, %v11451
    %v11454 = vunpack.c.l.s4 1983009808
    %v11455 = vunpack.c.0.s8 %v11454
    %v11456 = vlaneseq
    %v11457 = vshrl.u32 %v11456, 7
    %v11458 = vsub.s32 %v11455, %v11457
    %v11459 = vrot.slane %v11445, %v11458
    %v11460 = vcombine.low %v11424, %v11426
    %v11461 = vcombine.high %v11424, %v11426
    %v11463 = vunpack.c.l.s4 1983009808
    %v11464 = vunpack.c.0.s8 %v11463
    %v11465 = vlaneseq
    %v11466 = vshrl.u32 %v11465, 7
    %v11467 = vsub.s32 %v11464, %v11466
    %v11468 = vrot.slane %v11460, %v11467
    %v11470 = vunpack.c.l.s4 1983009808
    %v11471 = vunpack.c.0.s8 %v11470
    %v11472 = vlaneseq
    %v11473 = vshrl.u32 %v11472, 7
    %v11474 = vsub.s32 %v11471, %v11473
    %v11475 = vrot.slane %v11461, %v11474
    %v11476 = vcombine.low %v11425, %v11427
    %v11477 = vcombine.high %v11425, %v11427
    %v11479 = vunpack.c.l.s4 1983009808
    %v11480 = vunpack.c.0.s8 %v11479
    %v11481 = vlaneseq
    %v11482 = vshrl.u32 %v11481, 7
    %v11483 = vsub.s32 %v11480, %v11482
    %v11484 = vrot.slane %v11476, %v11483
    %v11486 = vunpack.c.l.s4 1983009808
    %v11487 = vunpack.c.0.s8 %v11486
    %v11488 = vlaneseq
    %v11489 = vshrl.u32 %v11488, 7
    %v11490 = vsub.s32 %v11487, %v11489
    %v11491 = vrot.slane %v11477, %v11490
    %v11492 = vcombine.low %v11436, %v11452
    %v11493 = vcombine.high %v11436, %v11452
    %v11495 = vunpack.c.l.s4 1934713408
    %v11496 = vunpack.c.0.s8 %v11495
    %v11497 = vlaneseq
    %v11498 = vshrl.u32 %v11497, 7
    %v11499 = vsub.s32 %v11496, %v11498
    %v11500 = vrot.slane %v11492, %v11499
    %v11502 = vunpack.c.l.s4 1934713408
    %v11503 = vunpack.c.0.s8 %v11502
    %v11504 = vlaneseq
    %v11505 = vshrl.u32 %v11504, 7
    %v11506 = vsub.s32 %v11503, %v11505
    %v11507 = vrot.slane %v11493, %v11506
    %v11508 = vcombine.low %v11443, %v11459
    %v11509 = vcombine.high %v11443, %v11459
    %v11511 = vunpack.c.l.s4 1934713408
    %v11512 = vunpack.c.0.s8 %v11511
    %v11513 = vlaneseq
    %v11514 = vshrl.u32 %v11513, 7
    %v11515 = vsub.s32 %v11512, %v11514
    %v11516 = vrot.slane %v11508, %v11515
    %v11518 = vunpack.c.l.s4 1934713408
    %v11519 = vunpack.c.0.s8 %v11518
    %v11520 = vlaneseq
    %v11521 = vshrl.u32 %v11520, 7
    %v11522 = vsub.s32 %v11519, %v11521
    %v11523 = vrot.slane %v11509, %v11522
    %v11524 = vcombine.low %v11468, %v11484
    %v11525 = vcombine.high %v11468, %v11484
    %v11527 = vunpack.c.l.s4 1934713408
    %v11528 = vunpack.c.0.s8 %v11527
    %v11529 = vlaneseq
    %v11530 = vshrl.u32 %v11529, 7
    %v11531 = vsub.s32 %v11528, %v11530
    %v11532 = vrot.slane %v11524, %v11531
    %v11534 = vunpack.c.l.s4 1934713408
    %v11535 = vunpack.c.0.s8 %v11534
    %v11536 = vlaneseq
    %v11537 = vshrl.u32 %v11536, 7
    %v11538 = vsub.s32 %v11535, %v11537
    %v11539 = vrot.slane %v11525, %v11538
    %v11540 = vcombine.low %v11475, %v11491
    %v11541 = vcombine.high %v11475, %v11491
    %v11543 = vunpack.c.l.s4 1934713408
    %v11544 = vunpack.c.0.s8 %v11543
    %v11545 = vlaneseq
    %v11546 = vshrl.u32 %v11545, 7
    %v11547 = vsub.s32 %v11544, %v11546
    %v11548 = vrot.slane %v11540, %v11547
    %v11550 = vunpack.c.l.s4 1934713408
    %v11551 = vunpack.c.0.s8 %v11550
    %v11552 = vlaneseq
    %v11553 = vshrl.u32 %v11552, 7
    %v11554 = vsub.s32 %v11551, %v11553
    %v11555 = vrot.slane %v11541, %v11554
    %v11556 = vcombine.low %v11500, %v11532
    %v11557 = vcombine.high %v11500, %v11532
    %v11558 = vcombine.low %v11507, %v11539
    %v11559 = vcombine.high %v11507, %v11539
    %v11560 = vcombine.low %v11516, %v11548
    %v11561 = vcombine.high %v11516, %v11548
    %v11562 = vcombine.low %v11523, %v11555
    %v11563 = vcombine.high %v11523, %v11555
    %11565 = vrot.lane.b32.xlu0 %v11557, 16
    %v11566 = vpop.permute.xlu0 %11565
    %11569 = vrot.lane.b32.xlu0 %v11558, 32
    %v11570 = vpop.permute.xlu0 %11569
    %11573 = vrot.lane.b32.xlu0 %v11559, 48
    %v11574 = vpop.permute.xlu0 %11573
    %11577 = vrot.lane.b32.xlu0 %v11560, 64
    %v11578 = vpop.permute.xlu0 %11577
    %11581 = vrot.lane.b32.xlu0 %v11561, 80
    %v11582 = vpop.permute.xlu0 %11581
    %11585 = vrot.lane.b32.xlu0 %v11562, 96
    %v11586 = vpop.permute.xlu0 %11585
    %11589 = vrot.lane.b32.xlu0 %v11563, 112
    %v11590 = vpop.permute.xlu0 %11589
    %v11592 = vsel %vm2425, %v11556, %v11566
    %v11593 = vsel %vm137, %v11592, %v11570
    %v11594 = vsel %vm2432, %v11593, %v11574
    %v11595 = vsel %vm226, %v11594, %v11578
    %v11596 = vsel %vm5620, %v11595, %v11582
    %v11597 = vsel %vm5622, %v11596, %v11586
    %v11598 = vsel %vm5624, %v11597, %v11590
    %v11599 = vcombine.low %v10986, %v11072
    %v11600 = vcombine.high %v10986, %v11072
    %v11602 = vunpack.c.l.s4 1983009808
    %v11603 = vunpack.c.0.s8 %v11602
    %v11604 = vlaneseq
    %v11605 = vshrl.u32 %v11604, 7
    %v11606 = vsub.s32 %v11603, %v11605
    %v11607 = vrot.slane %v11599, %v11606
    %v11609 = vunpack.c.l.s4 1983009808
    %v11610 = vunpack.c.0.s8 %v11609
    %v11611 = vlaneseq
    %v11612 = vshrl.u32 %v11611, 7
    %v11613 = vsub.s32 %v11610, %v11612
    %v11614 = vrot.slane %v11600, %v11613
    %v11615 = vcombine.low %v11029, %v11115
    %v11616 = vcombine.high %v11029, %v11115
    %v11618 = vunpack.c.l.s4 1983009808
    %v11619 = vunpack.c.0.s8 %v11618
    %v11620 = vlaneseq
    %v11621 = vshrl.u32 %v11620, 7
    %v11622 = vsub.s32 %v11619, %v11621
    %v11623 = vrot.slane %v11615, %v11622
    %v11625 = vunpack.c.l.s4 1983009808
    %v11626 = vunpack.c.0.s8 %v11625
    %v11627 = vlaneseq
    %v11628 = vshrl.u32 %v11627, 7
    %v11629 = vsub.s32 %v11626, %v11628
    %v11630 = vrot.slane %v11616, %v11629
    %v11631 = vcombine.low %v11607, %v11623
    %v11632 = vcombine.high %v11607, %v11623
    %v11634 = vunpack.c.l.s4 1934713408
    %v11635 = vunpack.c.0.s8 %v11634
    %v11636 = vlaneseq
    %v11637 = vshrl.u32 %v11636, 7
    %v11638 = vsub.s32 %v11635, %v11637
    %v11639 = vrot.slane %v11631, %v11638
    %v11641 = vunpack.c.l.s4 1934713408
    %v11642 = vunpack.c.0.s8 %v11641
    %v11643 = vlaneseq
    %v11644 = vshrl.u32 %v11643, 7
    %v11645 = vsub.s32 %v11642, %v11644
    %v11646 = vrot.slane %v11632, %v11645
    %v11647 = vcombine.low %v11614, %v11630
    %v11648 = vcombine.high %v11614, %v11630
    %v11650 = vunpack.c.l.s4 1934713408
    %v11651 = vunpack.c.0.s8 %v11650
    %v11652 = vlaneseq
    %v11653 = vshrl.u32 %v11652, 7
    %v11654 = vsub.s32 %v11651, %v11653
    %v11655 = vrot.slane %v11647, %v11654
    %v11657 = vunpack.c.l.s4 1934713408
    %v11658 = vunpack.c.0.s8 %v11657
    %v11659 = vlaneseq
    %v11660 = vshrl.u32 %v11659, 7
    %v11661 = vsub.s32 %v11658, %v11660
    %v11662 = vrot.slane %v11648, %v11661
    %v11663 = vcombine.high %v11639, 0.0
    %v11664 = vcombine.high %v11646, 0.0
    %v11665 = vcombine.high %v11655, 0.0
    %v11666 = vcombine.high %v11662, 0.0
    %v11667 = vcombine.low %v11158, %v11244
    %v11668 = vcombine.high %v11158, %v11244
    %v11670 = vunpack.c.l.s4 1983009808
    %v11671 = vunpack.c.0.s8 %v11670
    %v11672 = vlaneseq
    %v11673 = vshrl.u32 %v11672, 7
    %v11674 = vsub.s32 %v11671, %v11673
    %v11675 = vrot.slane %v11667, %v11674
    %v11677 = vunpack.c.l.s4 1983009808
    %v11678 = vunpack.c.0.s8 %v11677
    %v11679 = vlaneseq
    %v11680 = vshrl.u32 %v11679, 7
    %v11681 = vsub.s32 %v11678, %v11680
    %v11682 = vrot.slane %v11668, %v11681
    %v11683 = vcombine.low %v11201, %v11287
    %v11684 = vcombine.high %v11201, %v11287
    %v11686 = vunpack.c.l.s4 1983009808
    %v11687 = vunpack.c.0.s8 %v11686
    %v11688 = vlaneseq
    %v11689 = vshrl.u32 %v11688, 7
    %v11690 = vsub.s32 %v11687, %v11689
    %v11691 = vrot.slane %v11683, %v11690
    %v11693 = vunpack.c.l.s4 1983009808
    %v11694 = vunpack.c.0.s8 %v11693
    %v11695 = vlaneseq
    %v11696 = vshrl.u32 %v11695, 7
    %v11697 = vsub.s32 %v11694, %v11696
    %v11698 = vrot.slane %v11684, %v11697
    %v11699 = vcombine.low %v11675, %v11691
    %v11700 = vcombine.high %v11675, %v11691
    %v11702 = vunpack.c.l.s4 1934713408
    %v11703 = vunpack.c.0.s8 %v11702
    %v11704 = vlaneseq
    %v11705 = vshrl.u32 %v11704, 7
    %v11706 = vsub.s32 %v11703, %v11705
    %v11707 = vrot.slane %v11699, %v11706
    %v11709 = vunpack.c.l.s4 1934713408
    %v11710 = vunpack.c.0.s8 %v11709
    %v11711 = vlaneseq
    %v11712 = vshrl.u32 %v11711, 7
    %v11713 = vsub.s32 %v11710, %v11712
    %v11714 = vrot.slane %v11700, %v11713
    %v11715 = vcombine.low %v11682, %v11698
    %v11716 = vcombine.high %v11682, %v11698
    %v11718 = vunpack.c.l.s4 1934713408
    %v11719 = vunpack.c.0.s8 %v11718
    %v11720 = vlaneseq
    %v11721 = vshrl.u32 %v11720, 7
    %v11722 = vsub.s32 %v11719, %v11721
    %v11723 = vrot.slane %v11715, %v11722
    %v11725 = vunpack.c.l.s4 1934713408
    %v11726 = vunpack.c.0.s8 %v11725
    %v11727 = vlaneseq
    %v11728 = vshrl.u32 %v11727, 7
    %v11729 = vsub.s32 %v11726, %v11728
    %v11730 = vrot.slane %v11716, %v11729
    %v11731 = vcombine.high %v11707, 0.0
    %v11732 = vcombine.high %v11714, 0.0
    %v11733 = vcombine.high %v11723, 0.0
    %v11734 = vcombine.high %v11730, 0.0
    %v11735 = vcombine.low %v11639, %v11646
    %v11737 = vunpack.c.l.s4 1983009808
    %v11738 = vunpack.c.0.s8 %v11737
    %v11739 = vlaneseq
    %v11740 = vshrl.u32 %v11739, 7
    %v11741 = vsub.s32 %v11738, %v11740
    %v11742 = vrot.slane %v11735, %v11741
    %v11743 = vcombine.low %v11663, %v11664
    %v11745 = vunpack.c.l.s4 1983009808
    %v11746 = vunpack.c.0.s8 %v11745
    %v11747 = vlaneseq
    %v11748 = vshrl.u32 %v11747, 7
    %v11749 = vsub.s32 %v11746, %v11748
    %v11750 = vrot.slane %v11743, %v11749
    %v11751 = vcombine.low %v11655, %v11662
    %v11753 = vunpack.c.l.s4 1983009808
    %v11754 = vunpack.c.0.s8 %v11753
    %v11755 = vlaneseq
    %v11756 = vshrl.u32 %v11755, 7
    %v11757 = vsub.s32 %v11754, %v11756
    %v11758 = vrot.slane %v11751, %v11757
    %v11759 = vcombine.low %v11665, %v11666
    %v11761 = vunpack.c.l.s4 1983009808
    %v11762 = vunpack.c.0.s8 %v11761
    %v11763 = vlaneseq
    %v11764 = vshrl.u32 %v11763, 7
    %v11765 = vsub.s32 %v11762, %v11764
    %v11766 = vrot.slane %v11759, %v11765
    %v11767 = vcombine.low %v11742, %v11750
    %v11768 = vcombine.high %v11742, %v11750
    %v11770 = vunpack.c.l.s4 1934713408
    %v11771 = vunpack.c.0.s8 %v11770
    %v11772 = vlaneseq
    %v11773 = vshrl.u32 %v11772, 7
    %v11774 = vsub.s32 %v11771, %v11773
    %v11775 = vrot.slane %v11767, %v11774
    %v11777 = vunpack.c.l.s4 1934713408
    %v11778 = vunpack.c.0.s8 %v11777
    %v11779 = vlaneseq
    %v11780 = vshrl.u32 %v11779, 7
    %v11781 = vsub.s32 %v11778, %v11780
    %v11782 = vrot.slane %v11768, %v11781
    %v11783 = vcombine.low %v11758, %v11766
    %v11784 = vcombine.high %v11758, %v11766
    %v11786 = vunpack.c.l.s4 1934713408
    %v11787 = vunpack.c.0.s8 %v11786
    %v11788 = vlaneseq
    %v11789 = vshrl.u32 %v11788, 7
    %v11790 = vsub.s32 %v11787, %v11789
    %v11791 = vrot.slane %v11783, %v11790
    %v11793 = vunpack.c.l.s4 1934713408
    %v11794 = vunpack.c.0.s8 %v11793
    %v11795 = vlaneseq
    %v11796 = vshrl.u32 %v11795, 7
    %v11797 = vsub.s32 %v11794, %v11796
    %v11798 = vrot.slane %v11784, %v11797
    %v11799 = vcombine.low %v11775, %v11791
    %v11800 = vcombine.high %v11775, %v11791
    %v11801 = vcombine.low %v11782, %v11798
    %v11802 = vcombine.high %v11782, %v11798
    %v11803 = vcombine.low %v11707, %v11714
    %v11805 = vunpack.c.l.s4 1983009808
    %v11806 = vunpack.c.0.s8 %v11805
    %v11807 = vlaneseq
    %v11808 = vshrl.u32 %v11807, 7
    %v11809 = vsub.s32 %v11806, %v11808
    %v11810 = vrot.slane %v11803, %v11809
    %v11811 = vcombine.low %v11731, %v11732
    %v11813 = vunpack.c.l.s4 1983009808
    %v11814 = vunpack.c.0.s8 %v11813
    %v11815 = vlaneseq
    %v11816 = vshrl.u32 %v11815, 7
    %v11817 = vsub.s32 %v11814, %v11816
    %v11818 = vrot.slane %v11811, %v11817
    %v11819 = vcombine.low %v11723, %v11730
    %v11821 = vunpack.c.l.s4 1983009808
    %v11822 = vunpack.c.0.s8 %v11821
    %v11823 = vlaneseq
    %v11824 = vshrl.u32 %v11823, 7
    %v11825 = vsub.s32 %v11822, %v11824
    %v11826 = vrot.slane %v11819, %v11825
    %v11827 = vcombine.low %v11733, %v11734
    %v11829 = vunpack.c.l.s4 1983009808
    %v11830 = vunpack.c.0.s8 %v11829
    %v11831 = vlaneseq
    %v11832 = vshrl.u32 %v11831, 7
    %v11833 = vsub.s32 %v11830, %v11832
    %v11834 = vrot.slane %v11827, %v11833
    %v11835 = vcombine.low %v11810, %v11818
    %v11836 = vcombine.high %v11810, %v11818
    %v11838 = vunpack.c.l.s4 1934713408
    %v11839 = vunpack.c.0.s8 %v11838
    %v11840 = vlaneseq
    %v11841 = vshrl.u32 %v11840, 7
    %v11842 = vsub.s32 %v11839, %v11841
    %v11843 = vrot.slane %v11835, %v11842
    %v11845 = vunpack.c.l.s4 1934713408
    %v11846 = vunpack.c.0.s8 %v11845
    %v11847 = vlaneseq
    %v11848 = vshrl.u32 %v11847, 7
    %v11849 = vsub.s32 %v11846, %v11848
    %v11850 = vrot.slane %v11836, %v11849
    %v11851 = vcombine.low %v11826, %v11834
    %v11852 = vcombine.high %v11826, %v11834
    %v11854 = vunpack.c.l.s4 1934713408
    %v11855 = vunpack.c.0.s8 %v11854
    %v11856 = vlaneseq
    %v11857 = vshrl.u32 %v11856, 7
    %v11858 = vsub.s32 %v11855, %v11857
    %v11859 = vrot.slane %v11851, %v11858
    %v11861 = vunpack.c.l.s4 1934713408
    %v11862 = vunpack.c.0.s8 %v11861
    %v11863 = vlaneseq
    %v11864 = vshrl.u32 %v11863, 7
    %v11865 = vsub.s32 %v11862, %v11864
    %v11866 = vrot.slane %v11852, %v11865
    %v11867 = vcombine.low %v11843, %v11859
    %v11868 = vcombine.high %v11843, %v11859
    %v11869 = vcombine.low %v11850, %v11866
    %v11870 = vcombine.high %v11850, %v11866
    %11873 = vrot.lane.b32.xlu0 %v11800, 8
    %v11874 = vpop.permute.xlu0 %11873
    %11875 = vrot.lane.b32.xlu0 %v11868, 8
    %v11876 = vpop.permute.xlu0 %11875
    %11881 = vrot.lane.b32.xlu0 %v11801, 16
    %v11882 = vpop.permute.xlu0 %11881
    %11883 = vrot.lane.b32.xlu0 %v11869, 16
    %v11884 = vpop.permute.xlu0 %11883
    %11889 = vrot.lane.b32.xlu0 %v11802, 24
    %v11890 = vpop.permute.xlu0 %11889
    %11891 = vrot.lane.b32.xlu0 %v11870, 24
    %v11892 = vpop.permute.xlu0 %11891
    %v11895 = vsel %vm1274, %v11799, %v11874
    %v11896 = vsel %vm1274, %v11867, %v11876
    %v11897 = vsel %vm2425, %v11895, %v11882
    %v11898 = vsel %vm2425, %v11896, %v11884
    %v11899 = vsel %vm2427, %v11897, %v11890
    %v11900 = vsel %vm2427, %v11898, %v11892
    %s11901 = scalar_lea.vmem %s41, 16
    %v11902 = vld [vmem:[%s11901] sm:$0xf]
    %v11903 = vld [vmem:[%s11901 + $0x4] sm:$0xf]
    %v11904 = vld [vmem:[%s11901 + $0x8] sm:$0xf]
    %v11905 = vld [vmem:[%s11901 + $0xc] sm:$0xf]
    %v11906 = vpack.c.bf16 %v11900, %v11899
    %s11907 = scalar_lea.vmem %s43, 1
    %v11908 = vld [vmem:[%s11907] sm:$0x1]
    %v11910 = vlaneseq
    %v11911 = vshrl.u32 %v11910, 7
    %v11912 = vsub.s32 0, %v11911
    %v11913 = vrot.slane %v11908, %v11912
    %v11919 = vunpack.c.l.b16 %v11902
    %v11920 = vunpack.c.l.b16 %v11903
    %v11921 = vunpack.c.l.b16 %v11904
    %v11922 = vunpack.c.l.b16 %v11905
    %v11923 = vpack.c.b16 %v11920, %v11919
    %v11924 = vpack.c.b16 %v11922, %v11921
    %v11928 = vsel %vm137, %v11906, 0
    %11930 = vmatprep.subr.bf16.mxu0 0
    %11931 = vmatpush1.bf16.msra.mxu0 %v11923
    %11932 = vmatprep.subr.bf16.mxu0 0
    %11933 = vmatpush1.bf16.msra.mxu0 %v11924
    %11934 = vmatprep.subr.bf16.mxu0 0
    %11935 = vmatpush1.bf16.msra.mxu0 0
    %11936 = vmatprep.subr.bf16.mxu0 0
    %11937 = vmatpush1.bf16.msra.mxu0 0
    %11938 = vmatprep.subr.bf16.mxu0 0
    %11939 = vmatpush1.bf16.msra.mxu0 0
    %11940 = vmatprep.subr.bf16.mxu0 0
    %11941 = vmatpush1.bf16.msra.mxu0 0
    %11942 = vmatprep.subr.bf16.mxu0 0
    %11943 = vmatpush1.bf16.msra.mxu0 0
    %11944 = vmatprep.subr.bf16.mxu0 0
    %11945 = vmatpush1.bf16.msra.mxu0 0
    %11946 = vmatprep.subr.bf16.mxu0 0
    %11947 = vmatpush1.bf16.msra.mxu0 0
    %11948 = vmatprep.subr.bf16.mxu0 0
    %11949 = vmatpush1.bf16.msra.mxu0 0
    %11950 = vmatprep.subr.bf16.mxu0 0
    %11951 = vmatpush1.bf16.msra.mxu0 0
    %11952 = vmatprep.subr.bf16.mxu0 0
    %11953 = vmatpush1.bf16.msra.mxu0 0
    %11954 = vmatprep.subr.bf16.mxu0 0
    %11955 = vmatpush1.bf16.msra.mxu0 0
    %11956 = vmatprep.subr.bf16.mxu0 0
    %11957 = vmatpush1.bf16.msra.mxu0 0
    %11958 = vmatprep.subr.bf16.mxu0 0
    %11959 = vmatpush1.bf16.msra.mxu0 0
    %11960 = vmatprep.subr.bf16.mxu0 0
    %11961 = vmatpush1.bf16.msra.mxu0 0
    %11962 = vmatprep.mubr.bf16.mxu0 0
    %11963 = vmatmul.mubr.bf16.gmra.mrb[0].mxu0 %v11928
    %v11964 = vpop.f32.mrb[0].mxu0
    %v11965 = vadd.f32 %v11913, %v11964
    %v11966 = vpop.f32.mrb[0].mxu0
    %v11967 = vpop.f32.mrb[0].mxu0
    %v11968 = vadd.f32 %v11913, %v11967
    %v11969 = vpop.f32.mrb[0].mxu0
    %11970 = vdwg.mxu0
    %v11971 = vadd.f32 %v11965, %v8830
    %v11972 = vadd.f32 %v11968, %v8831
    %s11973 = scalar_lea.vmem %s45, 1
    %v11974 = vld [vmem:[%s11973] sm:$0x1]
    %s11975 = scalar_lea.vmem %s47, 1
    %v11976 = vld [vmem:[%s11975] sm:$0x1]
    %v11977 = vsel %vm137, %v11971, 0.0
    %11978 = vadd.xlane.f32.xlu0 %v11977
    %v11979 = vpop.xlane.xlu0 %11978
    %v11980 = vsel %vm137, %v11972, 0.0
    %11981 = vadd.xlane.f32.xlu0 %v11980
    %v11982 = vpop.xlane.xlu0 %11981
    %v11983 = vmul.f32 %v11979, %v144
    %v11984 = vmul.f32 %v11982, %v144
    %v11985 = vsub.f32 %v11971, %v11983
    %v11986 = vsub.f32 %v11972, %v11984
    %v11987 = vmul.f32 %v11985, %v11985
    %v11988 = vmul.f32 %v11986, %v11986
    %v11989 = vsel %vm137, %v11987, 0.0
    %11990 = vadd.xlane.f32.xlu0 %v11989
    %v11991 = vpop.xlane.xlu0 %11990
    %v11992 = vsel %vm137, %v11988, 0.0
    %11993 = vadd.xlane.f32.xlu0 %v11992
    %v11994 = vpop.xlane.xlu0 %11993
    %v11995 = vmul.f32 %v11991, %v144
    %v11996 = vmul.f32 %v11994, %v144
    %v11997 = vadd.f32 %v11995, 1e-12
    %v11998 = vadd.f32 %v11996, 1e-12
    %v11999 = vrsqrt.pop %v11997
    %v12000 = vrsqrt.pop %v11998
    %v12001 = vmul.f32 %v11985, %v11999
    %v12002 = vmul.f32 %v11986, %v12000
    %v12004 = vlaneseq
    %v12005 = vshrl.u32 %v12004, 7
    %v12006 = vsub.s32 0, %v12005
    %v12007 = vrot.slane %v11974, %v12006
    %v12009 = vmul.f32 %v12001, %v12007
    %v12010 = vmul.f32 %v12002, %v12007
    %v12012 = vlaneseq
    %v12013 = vshrl.u32 %v12012, 7
    %v12014 = vsub.s32 0, %v12013
    %v12015 = vrot.slane %v11976, %v12014
    %v12017 = vadd.f32 %v12009, %v12015
    %v12018 = vadd.f32 %v12010, %v12015
    %s12019 = scalar_lea.vmem %s49, 16
    %v12020 = vld [vmem:[%s12019] sm:$0xf]
    %v12021 = vld [vmem:[%s12019 + $0x4] sm:$0xf]
    %v12022 = vld [vmem:[%s12019 + $0x8] sm:$0xf]
    %v12023 = vld [vmem:[%s12019 + $0xc] sm:$0xf]
    %v12024 = vpack.c.bf16 %v12018, %v12017
    %s12025 = scalar_lea.vmem %s51, 1
    %v12026 = vld [vmem:[%s12025] sm:$0x1]
    %v12028 = vlaneseq
    %v12029 = vshrl.u32 %v12028, 7
    %v12030 = vsub.s32 0, %v12029
    %v12031 = vrot.slane %v12026, %v12030
    %v12037 = vunpack.c.l.b16 %v12020
    %v12038 = vunpack.c.l.b16 %v12021
    %v12039 = vunpack.c.l.b16 %v12022
    %v12040 = vunpack.c.l.b16 %v12023
    %v12041 = vpack.c.b16 %v12038, %v12037
    %v12042 = vpack.c.b16 %v12040, %v12039
    %v12046 = vsel %vm137, %v12024, 0
    %12048 = vmatprep.subr.bf16.mxu0 0
    %12049 = vmatpush1.bf16.msra.mxu0 %v12041
    %12050 = vmatprep.subr.bf16.mxu0 0
    %12051 = vmatpush1.bf16.msra.mxu0 %v12042
    %12052 = vmatprep.subr.bf16.mxu0 0
    %12053 = vmatpush1.bf16.msra.mxu0 0
    %12054 = vmatprep.subr.bf16.mxu0 0
    %12055 = vmatpush1.bf16.msra.mxu0 0
    %12056 = vmatprep.subr.bf16.mxu0 0
    %12057 = vmatpush1.bf16.msra.mxu0 0
    %12058 = vmatprep.subr.bf16.mxu0 0
    %12059 = vmatpush1.bf16.msra.mxu0 0
    %12060 = vmatprep.subr.bf16.mxu0 0
    %12061 = vmatpush1.bf16.msra.mxu0 0
    %12062 = vmatprep.subr.bf16.mxu0 0
    %12063 = vmatpush1.bf16.msra.mxu0 0
    %12064 = vmatprep.subr.bf16.mxu0 0
    %12065 = vmatpush1.bf16.msra.mxu0 0
    %12066 = vmatprep.subr.bf16.mxu0 0
    %12067 = vmatpush1.bf16.msra.mxu0 0
    %12068 = vmatprep.subr.bf16.mxu0 0
    %12069 = vmatpush1.bf16.msra.mxu0 0
    %12070 = vmatprep.subr.bf16.mxu0 0
    %12071 = vmatpush1.bf16.msra.mxu0 0
    %12072 = vmatprep.subr.bf16.mxu0 0
    %12073 = vmatpush1.bf16.msra.mxu0 0
    %12074 = vmatprep.subr.bf16.mxu0 0
    %12075 = vmatpush1.bf16.msra.mxu0 0
    %12076 = vmatprep.subr.bf16.mxu0 0
    %12077 = vmatpush1.bf16.msra.mxu0 0
    %12078 = vmatprep.subr.bf16.mxu0 0
    %12079 = vmatpush1.bf16.msra.mxu0 0
    %12080 = vmatprep.mubr.bf16.mxu0 0
    %12081 = vmatmul.mubr.bf16.gmra.mrb[0].mxu0 %v12046
    %v12082 = vpop.f32.mrb[0].mxu0
    %v12083 = vadd.f32 %v12031, %v12082
    %v12084 = vpop.f32.mrb[0].mxu0
    %v12085 = vpop.f32.mrb[0].mxu0
    %v12086 = vadd.f32 %v12031, %v12085
    %v12087 = vpop.f32.mrb[0].mxu0
    %12088 = vdwg.mxu0
    %v12089 = vmul.f32 %v12083, 0.5
    %v12090 = vmul.f32 %v12086, 0.5
    %v12091 = vmul.f32 %v12083, 0.70710677
    %v12092 = vmul.f32 %v12086, 0.70710677
    %v12093 = verf.f32.pop %v12091
    %v12094 = verf.f32.pop %v12092
    %v12095 = vadd.f32 %v12093, 1.0
    %v12096 = vadd.f32 %v12094, 1.0
    %v12097 = vmul.f32 %v12089, %v12095
    %v12098 = vmul.f32 %v12090, %v12096
    %s12099 = scalar_lea.vmem %s53, 64
    %v12100 = vld [vmem:[%s12099] sm:$0xf]
    %v12101 = vld [vmem:[%s12099 + $0x4] sm:$0xf]
    %v12102 = vld [vmem:[%s12099 + $0x8] sm:$0xf]
    %v12103 = vld [vmem:[%s12099 + $0xc] sm:$0xf]
    %v12104 = vld [vmem:[%s12099 + $0x10] sm:$0xf]
    %v12105 = vld [vmem:[%s12099 + $0x14] sm:$0xf]
    %v12106 = vld [vmem:[%s12099 + $0x18] sm:$0xf]
    %v12107 = vld [vmem:[%s12099 + $0x1c] sm:$0xf]
    %v12108 = vld [vmem:[%s12099 + $0x20] sm:$0xf]
    %v12109 = vld [vmem:[%s12099 + $0x24] sm:$0xf]
    %v12110 = vld [vmem:[%s12099 + $0x28] sm:$0xf]
    %v12111 = vld [vmem:[%s12099 + $0x2c] sm:$0xf]
    %v12112 = vld [vmem:[%s12099 + $0x30] sm:$0xf]
    %v12113 = vld [vmem:[%s12099 + $0x34] sm:$0xf]
    %v12114 = vld [vmem:[%s12099 + $0x38] sm:$0xf]
    %v12115 = vld [vmem:[%s12099 + $0x3c] sm:$0xf]
    %v12116 = vpack.c.bf16 %v12098, %v12097
    %s12117 = scalar_lea.vmem %s55, 1
    %v12118 = vld [vmem:[%s12117] sm:$0x1]
    %v12120 = vlaneseq
    %v12121 = vshrl.u32 %v12120, 7
    %v12122 = vsub.s32 0, %v12121
    %v12123 = vrot.slane %v12118, %v12122
    %v12141 = vunpack.c.l.b16 %v12100
    %v12142 = vunpack.c.l.b16 %v12101
    %v12143 = vunpack.c.l.b16 %v12102
    %v12144 = vunpack.c.l.b16 %v12103
    %v12145 = vunpack.c.l.b16 %v12104
    %v12146 = vunpack.c.l.b16 %v12105
    %v12147 = vunpack.c.l.b16 %v12106
    %v12148 = vunpack.c.l.b16 %v12107
    %v12149 = vunpack.c.l.b16 %v12108
    %v12150 = vunpack.c.l.b16 %v12109
    %v12151 = vunpack.c.l.b16 %v12110
    %v12152 = vunpack.c.l.b16 %v12111
    %v12153 = vunpack.c.l.b16 %v12112
    %v12154 = vunpack.c.l.b16 %v12113
    %v12155 = vunpack.c.l.b16 %v12114
    %v12156 = vunpack.c.l.b16 %v12115
    %v12157 = vpack.c.b16 %v12142, %v12141
    %v12158 = vpack.c.b16 %v12144, %v12143
    %v12159 = vpack.c.b16 %v12146, %v12145
    %v12160 = vpack.c.b16 %v12148, %v12147
    %v12161 = vpack.c.b16 %v12150, %v12149
    %v12162 = vpack.c.b16 %v12152, %v12151
    %v12163 = vpack.c.b16 %v12154, %v12153
    %v12164 = vpack.c.b16 %v12156, %v12155
    %12173 = vmatprep.subr.bf16.mxu0 0
    %12174 = vmatpush1.bf16.msra.mxu0 %v12157
    %12175 = vmatprep.subr.bf16.mxu0 0
    %12176 = vmatpush1.bf16.msra.mxu0 %v12158
    %12177 = vmatprep.subr.bf16.mxu0 0
    %12178 = vmatpush1.bf16.msra.mxu0 %v12159
    %12179 = vmatprep.subr.bf16.mxu0 0
    %12180 = vmatpush1.bf16.msra.mxu0 %v12160
    %12181 = vmatprep.subr.bf16.mxu0 0
    %12182 = vmatpush1.bf16.msra.mxu0 %v12161
    %12183 = vmatprep.subr.bf16.mxu0 0
    %12184 = vmatpush1.bf16.msra.mxu0 %v12162
    %12185 = vmatprep.subr.bf16.mxu0 0
    %12186 = vmatpush1.bf16.msra.mxu0 %v12163
    %12187 = vmatprep.subr.bf16.mxu0 0
    %12188 = vmatpush1.bf16.msra.mxu0 %v12164
    %12189 = vmatprep.subr.bf16.mxu0 0
    %12190 = vmatpush1.bf16.msra.mxu0 0
    %12191 = vmatprep.subr.bf16.mxu0 0
    %12192 = vmatpush1.bf16.msra.mxu0 0
    %12193 = vmatprep.subr.bf16.mxu0 0
    %12194 = vmatpush1.bf16.msra.mxu0 0
    %12195 = vmatprep.subr.bf16.mxu0 0
    %12196 = vmatpush1.bf16.msra.mxu0 0
    %12197 = vmatprep.subr.bf16.mxu0 0
    %12198 = vmatpush1.bf16.msra.mxu0 0
    %12199 = vmatprep.subr.bf16.mxu0 0
    %12200 = vmatpush1.bf16.msra.mxu0 0
    %12201 = vmatprep.subr.bf16.mxu0 0
    %12202 = vmatpush1.bf16.msra.mxu0 0
    %12203 = vmatprep.subr.bf16.mxu0 0
    %12204 = vmatpush1.bf16.msra.mxu0 0
    %12205 = vmatprep.mubr.bf16.mxu0 0
    %12206 = vmatmul.mubr.bf16.gmra.mrb[0].mxu0 %v12116
    %v12207 = vpop.f32.mrb[0].mxu0
    %v12208 = vadd.f32 %v12123, %v12207
    %v12209 = vpop.f32.mrb[0].mxu0
    %v12210 = vpop.f32.mrb[0].mxu0
    %v12211 = vadd.f32 %v12123, %v12210
    %v12212 = vpop.f32.mrb[0].mxu0
    %12213 = vdwg.mxu0
    %v12214 = vadd.f32 %v12208, %v12017
    %v12215 = vadd.f32 %v12211, %v12018
    %s12216 = scalar_lea.vmem %s57, 1
    %v12217 = vld [vmem:[%s12216] sm:$0x1]
    %s12218 = scalar_lea.vmem %s59, 1
    %v12219 = vld [vmem:[%s12218] sm:$0x1]
    %v12220 = vsel %vm137, %v12214, 0.0
    %12221 = vadd.xlane.f32.xlu0 %v12220
    %v12222 = vpop.xlane.xlu0 %12221
    %v12223 = vsel %vm137, %v12215, 0.0
    %12224 = vadd.xlane.f32.xlu0 %v12223
    %v12225 = vpop.xlane.xlu0 %12224
    %v12226 = vmul.f32 %v12222, %v144
    %v12227 = vmul.f32 %v12225, %v144
    %v12228 = vsub.f32 %v12214, %v12226
    %v12229 = vsub.f32 %v12215, %v12227
    %v12230 = vmul.f32 %v12228, %v12228
    %v12231 = vmul.f32 %v12229, %v12229
    %v12232 = vsel %vm137, %v12230, 0.0
    %12233 = vadd.xlane.f32.xlu0 %v12232
    %v12234 = vpop.xlane.xlu0 %12233
    %v12235 = vsel %vm137, %v12231, 0.0
    %12236 = vadd.xlane.f32.xlu0 %v12235
    %v12237 = vpop.xlane.xlu0 %12236
    %v12238 = vmul.f32 %v12234, %v144
    %v12239 = vmul.f32 %v12237, %v144
    %v12240 = vadd.f32 %v12238, 1e-12
    %v12241 = vadd.f32 %v12239, 1e-12
    %v12242 = vrsqrt.pop %v12240
    %v12243 = vrsqrt.pop %v12241
    %v12244 = vmul.f32 %v12228, %v12242
    %v12245 = vmul.f32 %v12229, %v12243
    %v12247 = vlaneseq
    %v12248 = vshrl.u32 %v12247, 7
    %v12249 = vsub.s32 0, %v12248
    %v12250 = vrot.slane %v12217, %v12249
    %v12252 = vmul.f32 %v12244, %v12250
    %v12253 = vmul.f32 %v12245, %v12250
    %v12255 = vlaneseq
    %v12256 = vshrl.u32 %v12255, 7
    %v12257 = vsub.s32 0, %v12256
    %v12258 = vrot.slane %v12219, %v12257
    %v12260 = vadd.f32 %v12252, %v12258
    %v12261 = vadd.f32 %v12253, %v12258
    %v12262 = vld [vmem:[%s17] sm:$0xf]
    %v12263 = vld [vmem:[%s17 + $0x4] sm:$0xf]
    %v12264 = vld [vmem:[%s17 + $0x8] sm:$0xf]
    %v12265 = vld [vmem:[%s17 + $0xc] sm:$0xf]
    %v12266 = vpack.c.bf16 %v12261, %v12260
    %v12267 = vld [vmem:[%s19] sm:$0x1]
    %v12269 = vlaneseq
    %v12270 = vshrl.u32 %v12269, 7
    %v12271 = vsub.s32 0, %v12270
    %v12272 = vrot.slane %v12267, %v12271
    %v12278 = vunpack.c.l.b16 %v12262
    %v12279 = vunpack.c.l.b16 %v12263
    %v12280 = vunpack.c.l.b16 %v12264
    %v12281 = vunpack.c.l.b16 %v12265
    %v12282 = vpack.c.b16 %v12279, %v12278
    %v12283 = vpack.c.b16 %v12281, %v12280
    %v12287 = vsel %vm137, %v12266, 0
    %12289 = vmatprep.subr.bf16.mxu0 0
    %12290 = vmatpush1.bf16.msra.mxu0 %v12282
    %12291 = vmatprep.subr.bf16.mxu0 0
    %12292 = vmatpush1.bf16.msra.mxu0 %v12283
    %12293 = vmatprep.subr.bf16.mxu0 0
    %12294 = vmatpush1.bf16.msra.mxu0 0
    %12295 = vmatprep.subr.bf16.mxu0 0
    %12296 = vmatpush1.bf16.msra.mxu0 0
    %12297 = vmatprep.subr.bf16.mxu0 0
    %12298 = vmatpush1.bf16.msra.mxu0 0
    %12299 = vmatprep.subr.bf16.mxu0 0
    %12300 = vmatpush1.bf16.msra.mxu0 0
    %12301 = vmatprep.subr.bf16.mxu0 0
    %12302 = vmatpush1.bf16.msra.mxu0 0
    %12303 = vmatprep.subr.bf16.mxu0 0
    %12304 = vmatpush1.bf16.msra.mxu0 0
    %12305 = vmatprep.subr.bf16.mxu0 0
    %12306 = vmatpush1.bf16.msra.mxu0 0
    %12307 = vmatprep.subr.bf16.mxu0 0
    %12308 = vmatpush1.bf16.msra.mxu0 0
    %12309 = vmatprep.subr.bf16.mxu0 0
    %12310 = vmatpush1.bf16.msra.mxu0 0
    %12311 = vmatprep.subr.bf16.mxu0 0
    %12312 = vmatpush1.bf16.msra.mxu0 0
    %12313 = vmatprep.subr.bf16.mxu0 0
    %12314 = vmatpush1.bf16.msra.mxu0 0
    %12315 = vmatprep.subr.bf16.mxu0 0
    %12316 = vmatpush1.bf16.msra.mxu0 0
    %12317 = vmatprep.subr.bf16.mxu0 0
    %12318 = vmatpush1.bf16.msra.mxu0 0
    %12319 = vmatprep.subr.bf16.mxu0 0
    %12320 = vmatpush1.bf16.msra.mxu0 0
    %12321 = vmatprep.mubr.bf16.mxu0 0
    %12322 = vmatmul.mubr.bf16.gmra.mrb[0].mxu0 %v12287
    %v12323 = vpop.f32.mrb[0].mxu0
    %v12324 = vadd.f32 %v12272, %v12323
    %v12325 = vpop.f32.mrb[0].mxu0
    %v12326 = vpop.f32.mrb[0].mxu0
    %v12327 = vadd.f32 %v12272, %v12326
    %v12328 = vpop.f32.mrb[0].mxu0
    %12329 = vdwg.mxu0
    %12330 = vst [vmem:[#allocation2] sm:$0xff] %v12324
    %12331 = vst [vmem:[#allocation2 + $0x8] sm:$0xff] %v12327
    %12333 = vrot.lane.b32.xlu0 %v8411, 64
    %v12334 = vpop.permute.xlu0 %12333
    %v12336 = vsel %vm226, %v2435, %v12334
    %12337 = vst [vmem:[%s63] sm:$0xff] %v12336
    %12338 = vst [vmem:[%s65] sm:$0xff] %v5625
    %12339 = vst [vmem:[%s65 + $0x8] sm:$0xff] %v11598
    // Predicated region
    $region122: #{bert_decoder_forward.1} parent=1 // pred_check
      _
    $region123: #{bert_decoder_forward.1} parent=1 // pred_check_branch
      %12341 = sbr.rel (0) target = $region125
    $region124: #{bert_decoder_forward.1} parent=1 // pred_region
      %s12343 = ssub.s32 256, 256
      %12344 = vsyncadd [#allocation3], %s12343
      %s12345 = sshll.u32 [#allocation2], 4
      %s12346 = int_to_ptr.vmem [resolvable:$true] %s12345
      %12351 = dma.vmem_to_hbm [thread:$0]  %s12346, 256, %s61, [#allocation3], 128, 128, 8
    $region125: #{bert_decoder_forward.1} parent=1 // pred_fallthru
      _
    // Predicated region
    $region126: #{bert_decoder_forward.1} parent=1 // pred_check
      _
    $region127: #{bert_decoder_forward.1} parent=1 // pred_check_branch
      %12353 = sbr.rel (0) target = $region129
    $region128: #{bert_decoder_forward.1} parent=1 // pred_region
      _
    $region129: #{bert_decoder_forward.1} parent=1 // pred_fallthru
      _
    // Predicated region
    $region130: #{bert_decoder_forward.1} parent=1 // pred_check
      _
    $region131: #{bert_decoder_forward.1} parent=1 // pred_check_branch
      %12355 = sbr.rel (0) target = $region133
    $region132: #{bert_decoder_forward.1} parent=1 // pred_region
      _
    $region133: #{bert_decoder_forward.1} parent=1 // pred_fallthru
      _
    // Predicated region
    $region134: #{bert_decoder_forward.1} parent=1 // pred_check
      _
    $region135: #{bert_decoder_forward.1} parent=1 // pred_check_branch
      %12357 = sbr.rel (0) target = $region137
    $region136: #{bert_decoder_forward.1} parent=1 // pred_region
      %12358 = dma.done [#allocation3], 256
    $region137: #{bert_decoder_forward.1} parent=1 // pred_fallthru
      _
    // Predicated region
    $region138: #{bert_decoder_forward.1} parent=1 // pred_check
      _
    $region139: #{bert_decoder_forward.1} parent=1 // pred_check_branch
      %12360 = sbr.rel (0) target = $region141
    $region140: #{bert_decoder_forward.1} parent=1 // pred_region
      _
    $region141: #{bert_decoder_forward.1} parent=1 // pred_fallthru
      _
    // Predicated region
    $region142: #{bert_decoder_forward.1} parent=1 // pred_check
      _
    $region143: #{bert_decoder_forward.1} parent=1 // pred_check_branch
      %12362 = sbr.rel (0) target = $region145
    $region144: #{bert_decoder_forward.1} parent=1 // pred_region
      _
    $region145: #{bert_decoder_forward.1} parent=1 // pred_fallthru
      _
    %12363 = vsyncpa [#allocation3], 1

</llo_original>
